<compile_context>
chip_gen: v7x
topology: tpu7x:2x2x1
jax: 0.10.0
libtpu: 0.0.40
codegen_flags: <defaults>
</compile_context>

<pallas_src>
import numpy as np
import jax
import jax.numpy as jnp
from jax.experimental import pallas as pl
from jax.experimental.pallas import tpu as pltpu

# Dims implied by the module: Linear(9*24*24, 11) => 96x96 RGB input.
H = W = 96
C1, C1P = 3, 8            # conv1 in-channels (padded to a sublane multiple)
C2 = 16                   # conv1 out-channels
C3, C3P = 9, 16           # conv2 out-channels (padded to a sublane multiple)
H1, W1 = H // 2, W // 2   # 48, 48
H2, W2 = H1 // 2, W1 // 2 # 24, 24
M = 11
K1 = 9 * C1P              # 72
K2 = 9 * C2               # 144

VMEM_LIMIT = 32 * 1024 * 1024


# --------------------------------------------------------------------------
# fused kernel: one image per grid step, everything resident in VMEM scratch
# --------------------------------------------------------------------------
def _fused_kernel(x_ref, w1_ref, b1_ref, w2_ref, b2_ref, s1_ref, s2_ref,
                  wl_ref, bl_ref, o_ref, xp_ref, y1_ref, y2_ref):
    f32 = jnp.float32

    # ---- halo padding done in VMEM (no host-side jnp.pad / extra HBM copy) ----
    xp_ref[...] = jnp.zeros((H + 2, C1P, W + 2), f32)
    y1_ref[...] = jnp.zeros((H1 + 2, C2, W1 + 2), f32)
    zc = jnp.zeros((H, C1, 1), f32)
    # x block is (1, H, C1, W); write rows 1..H, channels 0..2, zero side columns.
    xp_ref[pl.ds(1, H), 0:C1, :] = jnp.concatenate([zc, x_ref[0], zc], axis=2)

    w1m = w1_ref[...]          # (C2, K1)   im2col conv1 weights
    b1v = b1_ref[...]          # (C2, 1)
    s1 = s1_ref[...]           # (W, W)     exact [even | odd] column selector

    # ---- conv1 (3->16) + ReLU + 2x2 maxpool : one pooled row per step ---------
    @pl.loop(0, H1)
    def _(r):
        h = 2 * r
        blk = xp_ref[pl.ds(h, 4)]                       # (4, C1P, W+2)

        def conv_row(rows3):                            # (3, C1P, W+2)
            p = jnp.concatenate(
                [rows3[:, :, dx:dx + W].reshape(3 * C1P, W) for dx in range(3)],
                axis=0)                                 # (K1, W) im2col patch
            return jnp.dot(w1m, p, preferred_element_type=f32)   # (C2, W)

        t = jnp.maximum(conv_row(blk[0:3]), conv_row(blk[1:4]))  # vertical max
        sel = jnp.dot(t, s1, preferred_element_type=f32)         # [even | odd]
        pooled = jnp.maximum(sel[:, :W1], sel[:, W1:])           # horizontal max
        row = jnp.maximum(pooled + b1v, 0.0)                     # bias + ReLU
        zc1 = jnp.zeros((C2, 1), f32)
        y1_ref[pl.ds(r + 1, 1)] = jnp.concatenate([zc1, row, zc1], axis=1)[None]

    w2m = w2_ref[...]          # (C3P, K2)
    b2v = b2_ref[...]          # (C3P, 1)
    s2 = s2_ref[...]           # (W1, W1)

    # ---- conv2 (16->9, padded to 16) + ReLU + 2x2 maxpool ---------------------
    @pl.loop(0, H2)
    def _(r):
        h = 2 * r
        blk = y1_ref[pl.ds(h, 4)]                       # (4, C2, W1+2)

        def conv_row(rows3):                            # (3, C2, W1+2)
            p = jnp.concatenate(
                [rows3[:, :, dx:dx + W1].reshape(3 * C2, W1) for dx in range(3)],
                axis=0)                                 # (K2, W1)
            return jnp.dot(w2m, p, preferred_element_type=f32)   # (C3P, W1)

        t = jnp.maximum(conv_row(blk[0:3]), conv_row(blk[1:4]))
        sel = jnp.dot(t, s2, preferred_element_type=f32)
        pooled = jnp.maximum(sel[:, :W2], sel[:, W2:])
        row = jnp.maximum(pooled + b2v, 0.0)            # (C3P, W2)
        y2_ref[pl.ds(r, 1)] = row[None]

    # ---- flatten (free sublane reshape) + Linear on the VPU -------------------
    flat = y2_ref[...].reshape(H2 * C3P, W2)            # (384, 24)
    prod = flat[None, :, :] * wl_ref[...]               # (M, 384, 24)
    out = jnp.sum(jnp.sum(prod, axis=2), axis=1) + bl_ref[0, :]   # (M,)
    o_ref[...] = out.reshape(1, 1, M)


def _pool_select(w):
    """(w, w) 0/1 matrix: t @ S == concat([t[:, 0::2], t[:, 1::2]], axis=1)."""
    wo = w // 2
    s = np.zeros((w, w), np.float32)
    s[2 * np.arange(wo), np.arange(wo)] = 1.0
    s[2 * np.arange(wo) + 1, wo + np.arange(wo)] = 1.0
    return jnp.asarray(s)


# --------------------------------------------------------------------------
# public forward: PyTorch NCHW input, PyTorch NCHW flatten order
# --------------------------------------------------------------------------
def leaf_classify_forward(x_nchw, params):
    """Fused Pallas forward pass matching LeafClassify.forward (NCHW input)."""
    w1, b1, w2, b2, wl, bl = params
    N = x_nchw.shape[0]
    assert x_nchw.shape[1:] == (C1, H, W)

    # boundary layout plumbing only: (N,C,H,W) -> (N,H,C,W) so W sits on lanes.
    xt = jnp.transpose(x_nchw, (0, 2, 1, 3))

    # conv weights -> im2col matrices, k index = dx*(3*Cin_pad) + dy*Cin_pad + ci
    w1m = jnp.pad(jnp.transpose(w1, (0, 3, 2, 1)),
                  ((0, 0), (0, 0), (0, 0), (0, C1P - C1))).reshape(C2, K1)
    w2m = jnp.pad(jnp.transpose(w2, (0, 3, 2, 1)).reshape(C3, K2),
                  ((0, C3P - C3), (0, 0)))
    b2p = jnp.pad(b2, (0, C3P - C3))

    # linear weight -> (M, H2*C3P, W2) matching the in-kernel (row, chan, col)
    # storage order; this reproduces PyTorch's NCHW flatten exactly.
    wlr = jnp.pad(wl.reshape(M, C3, H2, W2),
                  ((0, 0), (0, C3P - C3), (0, 0), (0, 0)))
    wl2 = jnp.transpose(wlr, (0, 2, 1, 3)).reshape(M, H2 * C3P, W2)

    s1 = _pool_select(W)
    s2 = _pool_select(W1)

    out = pl.pallas_call(
        _fused_kernel,
        out_shape=jax.ShapeDtypeStruct((N, 1, M), jnp.float32),
        grid=(N,),
        in_specs=[
            pl.BlockSpec((1, H, C1, W), lambda n: (n, 0, 0, 0)),   # image
            pl.BlockSpec((C2, K1), lambda n: (0, 0)),              # conv1 W
            pl.BlockSpec((C2, 1), lambda n: (0, 0)),               # conv1 b
            pl.BlockSpec((C3P, K2), lambda n: (0, 0)),             # conv2 W
            pl.BlockSpec((C3P, 1), lambda n: (0, 0)),              # conv2 b
            pl.BlockSpec((W, W), lambda n: (0, 0)),                # pool sel 1
            pl.BlockSpec((W1, W1), lambda n: (0, 0)),              # pool sel 2
            pl.BlockSpec((M, H2 * C3P, W2), lambda n: (0, 0, 0)),  # linear W
            pl.BlockSpec((1, M), lambda n: (0, 0)),                # linear b
        ],
        out_specs=pl.BlockSpec((1, 1, M), lambda n: (n, 0, 0)),
        scratch_shapes=[
            pltpu.VMEM((H + 2, C1P, W + 2), jnp.float32),    # padded input
            pltpu.VMEM((H1 + 2, C2, W1 + 2), jnp.float32),   # padded pool1 out
            pltpu.VMEM((H2, C3P, W2), jnp.float32),          # pool2 out
        ],
        compiler_params=pltpu.CompilerParams(
            dimension_semantics=("parallel",),
            vmem_limit_bytes=VMEM_LIMIT),
    )(xt, w1m, b1.reshape(C2, 1), w2m, b2p.reshape(C3P, 1), s1, s2,
      wl2, bl.reshape(1, M))

    # TODO(synk): nn.BatchNorm2d layers exist in __init__ but are never called
    # in forward(), so they are intentionally not implemented.
    return out.reshape(N, M)


# ----------------------------- pure-JAX reference ----------------------------
def reference_forward(x_nchw, params):
    w1, b1, w2, b2, wl, bl = params
    x = jnp.transpose(x_nchw, (0, 2, 3, 1))

    def conv(xin, w, b):
        wt = jnp.transpose(w, (2, 3, 1, 0))  # HWIO
        y = jax.lax.conv_general_dilated(
            xin, wt, window_strides=(1, 1), padding=((1, 1), (1, 1)),
            dimension_numbers=("NHWC", "HWIO", "NHWC"),
            precision=jax.lax.Precision.HIGHEST)
        return jax.nn.relu(y + b)

    def pool(y):
        return jax.lax.reduce_window(y, -jnp.inf, jax.lax.max,
                                     (1, 2, 2, 1), (1, 2, 2, 1), "VALID")

    y = pool(conv(x, w1, b1))
    y = pool(conv(y, w2, b2))
    flat = jnp.transpose(y, (0, 3, 1, 2)).reshape(x_nchw.shape[0], -1)
    return jnp.dot(flat, wl.T, precision=jax.lax.Precision.HIGHEST) + bl


if __name__ == "__main__":
    key = jax.random.PRNGKey(0)
    ks = jax.random.split(key, 7)
    N = 2
    # Linear(9*24*24, 11) implies a 96x96 spatial input (two 2x2 pools).
    x = jax.random.normal(ks[0], (N, C1, H, W), dtype=jnp.float32)

    def uinit(k, shape, fan_in):
        bound = 1.0 / float(np.sqrt(fan_in))
        return jax.random.uniform(k, shape, jnp.float32, -bound, bound)

    params = (
        uinit(ks[1], (C2, C1, 3, 3), C1 * 9),          # conv1 weight
        uinit(ks[2], (C2,), C1 * 9),                   # conv1 bias
        uinit(ks[3], (C3, C2, 3, 3), C2 * 9),          # conv2 weight
        uinit(ks[4], (C3,), C2 * 9),                   # conv2 bias
        uinit(ks[5], (M, C3 * H2 * W2), C3 * H2 * W2), # linear weight
        uinit(ks[6], (M,), C3 * H2 * W2),              # linear bias
    )

    fwd = jax.jit(leaf_classify_forward)
    out = jax.block_until_ready(fwd(x, params))
    assert out.shape == (N, M) and out.dtype == jnp.float32

    ref = reference_forward(x, params)
    np.testing.assert_allclose(np.asarray(out), np.asarray(ref),
                               rtol=2e-3, atol=2e-3)

    print("KERNEL_OK")
</pallas_src>

<mosaic_0001>
module attributes {stable_mosaic.version = 11 : i64} {
  func.func @_fused_kernel(%arg0: i32, %arg1: memref<1x96x3x96xf32, #tpu.memory_space<vmem>>, %arg2: memref<16x72xf32, #tpu.memory_space<vmem>>, %arg3: memref<16x1xf32, #tpu.memory_space<vmem>>, %arg4: memref<16x144xf32, #tpu.memory_space<vmem>>, %arg5: memref<16x1xf32, #tpu.memory_space<vmem>>, %arg6: memref<96x96xf32, #tpu.memory_space<vmem>>, %arg7: memref<48x48xf32, #tpu.memory_space<vmem>>, %arg8: memref<11x384x24xf32, #tpu.memory_space<vmem>>, %arg9: memref<1x11xf32, #tpu.memory_space<vmem>>, %arg10: memref<1x1x11xf32, #tpu.memory_space<vmem>>, %arg11: memref<98x8x98xf32, #tpu.memory_space<vmem>>, %arg12: memref<50x16x50xf32, #tpu.memory_space<vmem>>, %arg13: memref<24x16x24xf32, #tpu.memory_space<vmem>>) attributes {dimension_semantics = [#tpu.dimension_semantics<parallel>], iteration_bounds = array<i64: 2>, scalar_prefetch = 0 : i64, scratch_operands = 3 : i64, tpu.core_type = #tpu.core_type<tc>, window_params = [{transform_indices = @transform_0, window_bounds = array<i64: 1, 96, 3, 96>}, {pipeline_mode = #tpu.pipeline_mode<synchronous>, transform_indices = @transform_1, window_bounds = array<i64: 16, 72>}, {pipeline_mode = #tpu.pipeline_mode<synchronous>, transform_indices = @transform_2, window_bounds = array<i64: 16, 1>}, {pipeline_mode = #tpu.pipeline_mode<synchronous>, transform_indices = @transform_3, window_bounds = array<i64: 16, 144>}, {pipeline_mode = #tpu.pipeline_mode<synchronous>, transform_indices = @transform_4, window_bounds = array<i64: 16, 1>}, {pipeline_mode = #tpu.pipeline_mode<synchronous>, transform_indices = @transform_5, window_bounds = array<i64: 96, 96>}, {pipeline_mode = #tpu.pipeline_mode<synchronous>, transform_indices = @transform_6, window_bounds = array<i64: 48, 48>}, {pipeline_mode = #tpu.pipeline_mode<synchronous>, transform_indices = @transform_7, window_bounds = array<i64: 11, 384, 24>}, {pipeline_mode = #tpu.pipeline_mode<synchronous>, transform_indices = @transform_8, window_bounds = array<i64: 1, 11>}, {transform_indices = @transform_9, window_bounds = array<i64: 1, 1, 11>}]} {
    %cst = arith.constant 0.000000e+00 : f32
    %0 = vector.broadcast %cst : f32 to vector<98x8x98xf32>
    %c0 = arith.constant 0 : index
    %c0_0 = arith.constant 0 : index
    %c0_1 = arith.constant 0 : index
    %1 = vector.load %arg11[%c0, %c0_0, %c0_1] : memref<98x8x98xf32, #tpu.memory_space<vmem>>, vector<98x8x98xf32>
    tpu.vector_store %arg11[%c0, %c0_0, %c0_1], %0 {strides = array<i32>} : memref<98x8x98xf32, #tpu.memory_space<vmem>>, vector<98x8x98xf32>,
    %cst_2 = arith.constant 0.000000e+00 : f32
    %2 = vector.broadcast %cst_2 : f32 to vector<50x16x50xf32>
    %c0_3 = arith.constant 0 : index
    %c0_4 = arith.constant 0 : index
    %c0_5 = arith.constant 0 : index
    %3 = vector.load %arg12[%c0_3, %c0_4, %c0_5] : memref<50x16x50xf32, #tpu.memory_space<vmem>>, vector<50x16x50xf32>
    tpu.vector_store %arg12[%c0_3, %c0_4, %c0_5], %2 {strides = array<i32>} : memref<50x16x50xf32, #tpu.memory_space<vmem>>, vector<50x16x50xf32>,
    %cst_6 = arith.constant 0.000000e+00 : f32
    %4 = vector.broadcast %cst_6 : f32 to vector<96x3x1xf32>
    %c0_7 = arith.constant 0 : index
    %c0_8 = arith.constant 0 : index
    %c0_9 = arith.constant 0 : index
    %c0_10 = arith.constant 0 : index
    %5 = vector.load %arg1[%c0_7, %c0_8, %c0_9, %c0_10] : memref<1x96x3x96xf32, #tpu.memory_space<vmem>>, vector<1x96x3x96xf32>
    %6 = vector.shape_cast %5 : vector<1x96x3x96xf32> to vector<96x3x96xf32>
    %7 = tpu.concatenate %4, %6, %4 in 2 : vector<96x3x1xf32>, vector<96x3x96xf32>, vector<96x3x1xf32> -> vector<96x3x98xf32>
    %c1 = arith.constant 1 : index
    %c0_11 = arith.constant 0 : index
    %c0_12 = arith.constant 0 : index
    %8 = vector.load %arg11[%c1, %c0_11, %c0_12] : memref<98x8x98xf32, #tpu.memory_space<vmem>>, vector<96x3x98xf32>
    tpu.vector_store %arg11[%c1, %c0_11, %c0_12], %7 {strides = array<i32>} : memref<98x8x98xf32, #tpu.memory_space<vmem>>, vector<96x3x98xf32>,
    %c0_13 = arith.constant 0 : index
    %c0_14 = arith.constant 0 : index
    %9 = vector.load %arg2[%c0_13, %c0_14] : memref<16x72xf32, #tpu.memory_space<vmem>>, vector<16x72xf32>
    %c0_15 = arith.constant 0 : index
    %c0_16 = arith.constant 0 : index
    %10 = vector.load %arg3[%c0_15, %c0_16] : memref<16x1xf32, #tpu.memory_space<vmem>>, vector<16x1xf32>
    %c0_17 = arith.constant 0 : index
    %c0_18 = arith.constant 0 : index
    %11 = vector.load %arg6[%c0_17, %c0_18] : memref<96x96xf32, #tpu.memory_space<vmem>>, vector<96x96xf32>
    %c0_i32 = arith.constant 0 : i32
    %c48_i32 = arith.constant 48 : i32
    %12 = arith.addi %c0_i32, %c48_i32 : i32
    %c1_i32 = arith.constant 1 : i32
    scf.for %arg14 = %c0_i32 to %12 step %c1_i32  : i32 {
      %c1_i32_42 = arith.constant 1 : i32
      %30 = arith.muli %arg14, %c1_i32_42 : i32
      %c0_i32_43 = arith.constant 0 : i32
      %31 = arith.addi %c0_i32_43, %30 : i32
      %c2_i32 = arith.constant 2 : i32
      %32 = arith.muli %c2_i32, %31 : i32
      %33 = arith.index_cast %32 : i32 to index
      %c0_44 = arith.constant 0 : index
      %c0_45 = arith.constant 0 : index
      %34 = vector.load %arg11[%33, %c0_44, %c0_45] : memref<98x8x98xf32, #tpu.memory_space<vmem>>, vector<4x8x98xf32>
      %35 = vector.extract_strided_slice %34 {offsets = [0, 0, 0], sizes = [3, 8, 98], strides = [1, 1, 1]} : vector<4x8x98xf32> to vector<3x8x98xf32>
      %36 = vector.extract_strided_slice %35 {offsets = [0, 0, 0], sizes = [3, 8, 96], strides = [1, 1, 1]} : vector<3x8x98xf32> to vector<3x8x96xf32>
      %37 = vector.shape_cast %36 : vector<3x8x96xf32> to vector<24x96xf32>
      %38 = vector.extract_strided_slice %35 {offsets = [0, 0, 1], sizes = [3, 8, 96], strides = [1, 1, 1]} : vector<3x8x98xf32> to vector<3x8x96xf32>
      %39 = vector.shape_cast %38 : vector<3x8x96xf32> to vector<24x96xf32>
      %40 = vector.extract_strided_slice %35 {offsets = [0, 0, 2], sizes = [3, 8, 96], strides = [1, 1, 1]} : vector<3x8x98xf32> to vector<3x8x96xf32>
      %41 = vector.shape_cast %40 : vector<3x8x96xf32> to vector<24x96xf32>
      %42 = tpu.concatenate %37, %39, %41 in 0 : vector<24x96xf32>, vector<24x96xf32>, vector<24x96xf32> -> vector<72x96xf32>
      %cst_46 = arith.constant dense<0.000000e+00> : vector<16x96xf32>
      %43 = tpu.matmul %9, %42, %cst_46 {dimension_numbers = #tpu.dot_dimension_numbers<[1], [0], [0], [1], [0, 0, 1, 1], [], []>} : vector<16x72xf32>, vector<72x96xf32>, vector<16x96xf32> -> vector<16x96xf32>
      %44 = vector.extract_strided_slice %34 {offsets = [1, 0, 0], sizes = [3, 8, 98], strides = [1, 1, 1]} : vector<4x8x98xf32> to vector<3x8x98xf32>
      %45 = vector.extract_strided_slice %44 {offsets = [0, 0, 0], sizes = [3, 8, 96], strides = [1, 1, 1]} : vector<3x8x98xf32> to vector<3x8x96xf32>
      %46 = vector.shape_cast %45 : vector<3x8x96xf32> to vector<24x96xf32>
      %47 = vector.extract_strided_slice %44 {offsets = [0, 0, 1], sizes = [3, 8, 96], strides = [1, 1, 1]} : vector<3x8x98xf32> to vector<3x8x96xf32>
      %48 = vector.shape_cast %47 : vector<3x8x96xf32> to vector<24x96xf32>
      %49 = vector.extract_strided_slice %44 {offsets = [0, 0, 2], sizes = [3, 8, 96], strides = [1, 1, 1]} : vector<3x8x98xf32> to vector<3x8x96xf32>
      %50 = vector.shape_cast %49 : vector<3x8x96xf32> to vector<24x96xf32>
      %51 = tpu.concatenate %46, %48, %50 in 0 : vector<24x96xf32>, vector<24x96xf32>, vector<24x96xf32> -> vector<72x96xf32>
      %cst_47 = arith.constant dense<0.000000e+00> : vector<16x96xf32>
      %52 = tpu.matmul %9, %51, %cst_47 {dimension_numbers = #tpu.dot_dimension_numbers<[1], [0], [0], [1], [0, 0, 1, 1], [], []>} : vector<16x72xf32>, vector<72x96xf32>, vector<16x96xf32> -> vector<16x96xf32>
      %53 = arith.maximumf %43, %52 : vector<16x96xf32>
      %cst_48 = arith.constant dense<0.000000e+00> : vector<16x96xf32>
      %54 = tpu.matmul %53, %11, %cst_48 {dimension_numbers = #tpu.dot_dimension_numbers<[1], [0], [0], [1], [0, 0, 1, 1], [], []>} : vector<16x96xf32>, vector<96x96xf32>, vector<16x96xf32> -> vector<16x96xf32>
      %55 = vector.extract_strided_slice %54 {offsets = [0, 0], sizes = [16, 48], strides = [1, 1]} : vector<16x96xf32> to vector<16x48xf32>
      %56 = vector.extract_strided_slice %54 {offsets = [0, 48], sizes = [16, 48], strides = [1, 1]} : vector<16x96xf32> to vector<16x48xf32>
      %57 = arith.maximumf %55, %56 : vector<16x48xf32>
      %58 = vector.broadcast %10 : vector<16x1xf32> to vector<16x48xf32>
      %59 = arith.addf %57, %58 : vector<16x48xf32>
      %cst_49 = arith.constant 0.000000e+00 : f32
      %60 = vector.broadcast %cst_49 : f32 to vector<16x48xf32>
      %61 = arith.maximumf %59, %60 : vector<16x48xf32>
      %cst_50 = arith.constant 0.000000e+00 : f32
      %62 = vector.broadcast %cst_50 : f32 to vector<16x1xf32>
      %63 = tpu.concatenate %62, %61, %62 in 1 : vector<16x1xf32>, vector<16x48xf32>, vector<16x1xf32> -> vector<16x50xf32>
      %64 = vector.shape_cast %63 : vector<16x50xf32> to vector<1x16x50xf32>
      %c1_i32_51 = arith.constant 1 : i32
      %65 = arith.addi %31, %c1_i32_51 : i32
      %66 = arith.index_cast %65 : i32 to index
      %c0_52 = arith.constant 0 : index
      %c0_53 = arith.constant 0 : index
      %67 = vector.load %arg12[%66, %c0_52, %c0_53] : memref<50x16x50xf32, #tpu.memory_space<vmem>>, vector<1x16x50xf32>
      tpu.vector_store %arg12[%66, %c0_52, %c0_53], %64 {strides = array<i32>} : memref<50x16x50xf32, #tpu.memory_space<vmem>>, vector<1x16x50xf32>,
    }
    %c48_i32_19 = arith.constant 48 : i32
    %c0_20 = arith.constant 0 : index
    %c0_21 = arith.constant 0 : index
    %13 = vector.load %arg4[%c0_20, %c0_21] : memref<16x144xf32, #tpu.memory_space<vmem>>, vector<16x144xf32>
    %c0_22 = arith.constant 0 : index
    %c0_23 = arith.constant 0 : index
    %14 = vector.load %arg5[%c0_22, %c0_23] : memref<16x1xf32, #tpu.memory_space<vmem>>, vector<16x1xf32>
    %c0_24 = arith.constant 0 : index
    %c0_25 = arith.constant 0 : index
    %15 = vector.load %arg7[%c0_24, %c0_25] : memref<48x48xf32, #tpu.memory_space<vmem>>, vector<48x48xf32>
    %c0_i32_26 = arith.constant 0 : i32
    %c24_i32 = arith.constant 24 : i32
    %16 = arith.addi %c0_i32_26, %c24_i32 : i32
    %c1_i32_27 = arith.constant 1 : i32
    scf.for %arg14 = %c0_i32_26 to %16 step %c1_i32_27  : i32 {
      %c1_i32_42 = arith.constant 1 : i32
      %30 = arith.muli %arg14, %c1_i32_42 : i32
      %c0_i32_43 = arith.constant 0 : i32
      %31 = arith.addi %c0_i32_43, %30 : i32
      %c2_i32 = arith.constant 2 : i32
      %32 = arith.muli %c2_i32, %31 : i32
      %33 = arith.index_cast %32 : i32 to index
      %c0_44 = arith.constant 0 : index
      %c0_45 = arith.constant 0 : index
      %34 = vector.load %arg12[%33, %c0_44, %c0_45] : memref<50x16x50xf32, #tpu.memory_space<vmem>>, vector<4x16x50xf32>
      %35 = vector.extract_strided_slice %34 {offsets = [0, 0, 0], sizes = [3, 16, 50], strides = [1, 1, 1]} : vector<4x16x50xf32> to vector<3x16x50xf32>
      %36 = vector.extract_strided_slice %35 {offsets = [0, 0, 0], sizes = [3, 16, 48], strides = [1, 1, 1]} : vector<3x16x50xf32> to vector<3x16x48xf32>
      %37 = vector.shape_cast %36 : vector<3x16x48xf32> to vector<48x48xf32>
      %38 = vector.extract_strided_slice %35 {offsets = [0, 0, 1], sizes = [3, 16, 48], strides = [1, 1, 1]} : vector<3x16x50xf32> to vector<3x16x48xf32>
      %39 = vector.shape_cast %38 : vector<3x16x48xf32> to vector<48x48xf32>
      %40 = vector.extract_strided_slice %35 {offsets = [0, 0, 2], sizes = [3, 16, 48], strides = [1, 1, 1]} : vector<3x16x50xf32> to vector<3x16x48xf32>
      %41 = vector.shape_cast %40 : vector<3x16x48xf32> to vector<48x48xf32>
      %42 = tpu.concatenate %37, %39, %41 in 0 : vector<48x48xf32>, vector<48x48xf32>, vector<48x48xf32> -> vector<144x48xf32>
      %cst_46 = arith.constant dense<0.000000e+00> : vector<16x48xf32>
      %43 = tpu.matmul %13, %42, %cst_46 {dimension_numbers = #tpu.dot_dimension_numbers<[1], [0], [0], [1], [0, 0, 1, 1], [], []>} : vector<16x144xf32>, vector<144x48xf32>, vector<16x48xf32> -> vector<16x48xf32>
      %44 = vector.extract_strided_slice %34 {offsets = [1, 0, 0], sizes = [3, 16, 50], strides = [1, 1, 1]} : vector<4x16x50xf32> to vector<3x16x50xf32>
      %45 = vector.extract_strided_slice %44 {offsets = [0, 0, 0], sizes = [3, 16, 48], strides = [1, 1, 1]} : vector<3x16x50xf32> to vector<3x16x48xf32>
      %46 = vector.shape_cast %45 : vector<3x16x48xf32> to vector<48x48xf32>
      %47 = vector.extract_strided_slice %44 {offsets = [0, 0, 1], sizes = [3, 16, 48], strides = [1, 1, 1]} : vector<3x16x50xf32> to vector<3x16x48xf32>
      %48 = vector.shape_cast %47 : vector<3x16x48xf32> to vector<48x48xf32>
      %49 = vector.extract_strided_slice %44 {offsets = [0, 0, 2], sizes = [3, 16, 48], strides = [1, 1, 1]} : vector<3x16x50xf32> to vector<3x16x48xf32>
      %50 = vector.shape_cast %49 : vector<3x16x48xf32> to vector<48x48xf32>
      %51 = tpu.concatenate %46, %48, %50 in 0 : vector<48x48xf32>, vector<48x48xf32>, vector<48x48xf32> -> vector<144x48xf32>
      %cst_47 = arith.constant dense<0.000000e+00> : vector<16x48xf32>
      %52 = tpu.matmul %13, %51, %cst_47 {dimension_numbers = #tpu.dot_dimension_numbers<[1], [0], [0], [1], [0, 0, 1, 1], [], []>} : vector<16x144xf32>, vector<144x48xf32>, vector<16x48xf32> -> vector<16x48xf32>
      %53 = arith.maximumf %43, %52 : vector<16x48xf32>
      %cst_48 = arith.constant dense<0.000000e+00> : vector<16x48xf32>
      %54 = tpu.matmul %53, %15, %cst_48 {dimension_numbers = #tpu.dot_dimension_numbers<[1], [0], [0], [1], [0, 0, 1, 1], [], []>} : vector<16x48xf32>, vector<48x48xf32>, vector<16x48xf32> -> vector<16x48xf32>
      %55 = vector.extract_strided_slice %54 {offsets = [0, 0], sizes = [16, 24], strides = [1, 1]} : vector<16x48xf32> to vector<16x24xf32>
      %56 = vector.extract_strided_slice %54 {offsets = [0, 24], sizes = [16, 24], strides = [1, 1]} : vector<16x48xf32> to vector<16x24xf32>
      %57 = arith.maximumf %55, %56 : vector<16x24xf32>
      %58 = vector.broadcast %14 : vector<16x1xf32> to vector<16x24xf32>
      %59 = arith.addf %57, %58 : vector<16x24xf32>
      %cst_49 = arith.constant 0.000000e+00 : f32
      %60 = vector.broadcast %cst_49 : f32 to vector<16x24xf32>
      %61 = arith.maximumf %59, %60 : vector<16x24xf32>
      %62 = vector.shape_cast %61 : vector<16x24xf32> to vector<1x16x24xf32>
      %63 = arith.index_cast %31 : i32 to index
      %c0_50 = arith.constant 0 : index
      %c0_51 = arith.constant 0 : index
      %64 = vector.load %arg13[%63, %c0_50, %c0_51] : memref<24x16x24xf32, #tpu.memory_space<vmem>>, vector<1x16x24xf32>
      tpu.vector_store %arg13[%63, %c0_50, %c0_51], %62 {strides = array<i32>} : memref<24x16x24xf32, #tpu.memory_space<vmem>>, vector<1x16x24xf32>,
    }
    %c24_i32_28 = arith.constant 24 : i32
    %c0_29 = arith.constant 0 : index
    %c0_30 = arith.constant 0 : index
    %c0_31 = arith.constant 0 : index
    %17 = vector.load %arg13[%c0_29, %c0_30, %c0_31] : memref<24x16x24xf32, #tpu.memory_space<vmem>>, vector<24x16x24xf32>
    %18 = vector.shape_cast %17 : vector<24x16x24xf32> to vector<384x24xf32>
    %19 = vector.shape_cast %18 : vector<384x24xf32> to vector<1x384x24xf32>
    %c0_32 = arith.constant 0 : index
    %c0_33 = arith.constant 0 : index
    %c0_34 = arith.constant 0 : index
    %20 = vector.load %arg8[%c0_32, %c0_33, %c0_34] : memref<11x384x24xf32, #tpu.memory_space<vmem>>, vector<11x384x24xf32>
    %21 = vector.broadcast %19 : vector<1x384x24xf32> to vector<11x384x24xf32>
    %22 = arith.mulf %21, %20 : vector<11x384x24xf32>
    %cst_35 = arith.constant dense<0.000000e+00> : vector<11x384xf32>
    %23 = vector.multi_reduction <add>, %22, %cst_35 [2] : vector<11x384x24xf32> to vector<11x384xf32>
    %cst_36 = arith.constant dense<0.000000e+00> : vector<11xf32>
    %24 = vector.multi_reduction <add>, %23, %cst_36 [1] : vector<11x384xf32> to vector<11xf32>
    %c0_37 = arith.constant 0 : index
    %c0_38 = arith.constant 0 : index
    %25 = vector.load %arg9[%c0_37, %c0_38] : memref<1x11xf32, #tpu.memory_space<vmem>>, vector<1x11xf32>
    %26 = vector.shape_cast %25 : vector<1x11xf32> to vector<11xf32>
    %27 = arith.addf %24, %26 : vector<11xf32>
    %28 = vector.shape_cast %27 : vector<11xf32> to vector<1x1x11xf32>
    %c0_39 = arith.constant 0 : index
    %c0_40 = arith.constant 0 : index
    %c0_41 = arith.constant 0 : index
    %29 = vector.load %arg10[%c0_39, %c0_40, %c0_41] : memref<1x1x11xf32, #tpu.memory_space<vmem>>, vector<1x1x11xf32>
    tpu.vector_store %arg10[%c0_39, %c0_40, %c0_41], %28 {strides = array<i32>} : memref<1x1x11xf32, #tpu.memory_space<vmem>>, vector<1x1x11xf32>,
    return
  }
  func.func @transform_0(%arg0: i32) -> (i32, i32, i32, i32) {
    %c0_i32 = arith.constant 0 : i32
    %c0_i32_0 = arith.constant 0 : i32
    %c0_i32_1 = arith.constant 0 : i32
    %c0_i32_2 = arith.constant 0 : i32
    return %arg0, %c0_i32, %c0_i32_0, %c0_i32_1 : i32, i32, i32, i32
  }
  func.func @transform_1(%arg0: i32) -> (i32, i32) {
    %c0_i32 = arith.constant 0 : i32
    %c0_i32_0 = arith.constant 0 : i32
    %c0_i32_1 = arith.constant 0 : i32
    return %c0_i32, %c0_i32_0 : i32, i32
  }
  func.func @transform_2(%arg0: i32) -> (i32, i32) {
    %c0_i32 = arith.constant 0 : i32
    %c0_i32_0 = arith.constant 0 : i32
    %c0_i32_1 = arith.constant 0 : i32
    return %c0_i32, %c0_i32_0 : i32, i32
  }
  func.func @transform_3(%arg0: i32) -> (i32, i32) {
    %c0_i32 = arith.constant 0 : i32
    %c0_i32_0 = arith.constant 0 : i32
    %c0_i32_1 = arith.constant 0 : i32
    return %c0_i32, %c0_i32_0 : i32, i32
  }
  func.func @transform_4(%arg0: i32) -> (i32, i32) {
    %c0_i32 = arith.constant 0 : i32
    %c0_i32_0 = arith.constant 0 : i32
    %c0_i32_1 = arith.constant 0 : i32
    return %c0_i32, %c0_i32_0 : i32, i32
  }
  func.func @transform_5(%arg0: i32) -> (i32, i32) {
    %c0_i32 = arith.constant 0 : i32
    %c0_i32_0 = arith.constant 0 : i32
    %c0_i32_1 = arith.constant 0 : i32
    return %c0_i32, %c0_i32_0 : i32, i32
  }
  func.func @transform_6(%arg0: i32) -> (i32, i32) {
    %c0_i32 = arith.constant 0 : i32
    %c0_i32_0 = arith.constant 0 : i32
    %c0_i32_1 = arith.constant 0 : i32
    return %c0_i32, %c0_i32_0 : i32, i32
  }
  func.func @transform_7(%arg0: i32) -> (i32, i32, i32) {
    %c0_i32 = arith.constant 0 : i32
    %c0_i32_0 = arith.constant 0 : i32
    %c0_i32_1 = arith.constant 0 : i32
    %c0_i32_2 = arith.constant 0 : i32
    return %c0_i32, %c0_i32_0, %c0_i32_1 : i32, i32, i32
  }
  func.func @transform_8(%arg0: i32) -> (i32, i32) {
    %c0_i32 = arith.constant 0 : i32
    %c0_i32_0 = arith.constant 0 : i32
    %c0_i32_1 = arith.constant 0 : i32
    return %c0_i32, %c0_i32_0 : i32, i32
  }
  func.func @transform_9(%arg0: i32) -> (i32, i32, i32) {
    %c0_i32 = arith.constant 0 : i32
    %c0_i32_0 = arith.constant 0 : i32
    %c0_i32_1 = arith.constant 0 : i32
    return %arg0, %c0_i32, %c0_i32_0 : i32, i32, i32
  }
}

</mosaic_0001>

<llo_original>
// kernel: leaf_classify_forward.1
$region0: #{leaf_classify_forward.1}
  #allocation0 [shape = 'u32[]', space=smem, size = 0x4, offset = 0x4, fixed_abs, tag = 'smem constant byte address 0x4 - core index']
  #allocation1 [shape = 'u32[144,128]{1,0:T(1,128)}', space=vmem, size = 0x12000, scoped, tag = 'internal scratch']
  #allocation2 [shape = 'f32[98,8,98]{2,1,0:T(8,128)}', space=vmem, size = 0x62000, scoped, tag = 'scratch operand']
  #allocation3 [shape = 'f32[50,16,50]{2,1,0:T(8,128)}', space=vmem, size = 0x64000, scoped, tag = 'scratch operand']
  #allocation4 [shape = 'f32[24,16,24]{2,1,0:T(8,128)}', space=vmem, size = 0x30000, scoped, tag = 'scratch operand']
  %s0 = inlined_call_operand.vmem [shape: f32[2,96,3,96], index: 0, kind: input, shape index: {}]
  %s1 = inlined_call_operand.vmem [shape: f32[16,72], index: 1, kind: input, shape index: {}]
  %s2 = inlined_call_operand.vmem [shape: f32[16,1], index: 2, kind: input, shape index: {}]
  %s3 = inlined_call_operand.vmem [shape: f32[16,144], index: 3, kind: input, shape index: {}]
  %s4 = inlined_call_operand.vmem [shape: f32[16,1], index: 4, kind: input, shape index: {}]
  %s5 = inlined_call_operand.vmem [shape: f32[96,96], index: 5, kind: input, shape index: {}]
  %s6 = inlined_call_operand.vmem [shape: f32[48,48], index: 6, kind: input, shape index: {}]
  %s7 = inlined_call_operand.vmem [shape: f32[11,384,24], index: 7, kind: input, shape index: {}]
  %s8 = inlined_call_operand.vmem [shape: f32[1,11], index: 8, kind: input, shape index: {}]
  %s9 = inlined_call_operand.hbm [shape: f32[2,1,11], index: 9, kind: output, shape index: {}]
  %s10 = sld [smem:[#allocation0]]
  $region83: #{leaf_classify_forward.1} parent=0
    _
  %s12 = ssub.s32 1, %s10
  %s13 = scalar_select 0, %s12, %s10
  $region1: #{leaf_classify_forward.1} parent=0
    #allocation5 [shape = 'u8[1024]{0}', space=vmem, size = 0x400, scoped, tag = 'output window, operand 0']
    #allocation6 [shape = 's32[2]{0}', space=sflag, size = 0x8, scoped, tag = 'scoped memory for leaf_classify_forward.1']
    %14 = vsyncpa [#allocation6], 0
    %s15 = scalar_lea.sflag [#allocation6], 1
    %16 = vsyncpa %s15, 0
    loop: start=0, step=1, limit=4
    $region2: #{leaf_classify_forward.1} parent=1 // loop_pre_header
      _
    $region3: #{leaf_classify_forward.1} parent=1 // loop_header
      %s18 = sphi 0, %s22
      %p19 = scmp.ge.s32.totalorder %s18, 4
      %s28 = sphi 0, %s30
      %s31 = sphi 0, %s28
      %s32 = sphi 0, %s31
      %s48 = sphi 0, %s32
      %s52 = sphi 0, %s52
      %s54 = sphi 0, %s52
      %s55 = sphi 0, %s54
      %s69 = sphi 0, %s55
      %s73 = sphi 0, %s73
      %s75 = sphi 0, %s73
      %s76 = sphi 0, %s75
      %s90 = sphi 0, %s76
      %s94 = sphi 0, %s94
      %s96 = sphi 0, %s94
      %s97 = sphi 0, %s96
      %s111 = sphi 0, %s97
      %s115 = sphi 0, %s115
      %s117 = sphi 0, %s115
      %s118 = sphi 0, %s117
      %s132 = sphi 0, %s118
      %s136 = sphi 0, %s136
      %s138 = sphi 0, %s136
      %s139 = sphi 0, %s138
      %s153 = sphi 0, %s139
      %s157 = sphi 0, %s157
      %s159 = sphi 0, %s157
      %s160 = sphi 0, %s159
      %s174 = sphi 0, %s160
      %s178 = sphi 0, %s178
      %s180 = sphi 0, %s178
      %s181 = sphi 0, %s180
      %s195 = sphi 0, %s181
      %s199 = sphi 0, %s199
      %s201 = sphi 0, %s199
      %s202 = sphi 0, %s201
      %s216 = sphi 0, %s202
      %s222 = sphi 0, %s224
      %s225 = sphi 0, %s222
      %s226 = sphi 0, %s225
      %s242 = sphi 0, %s226
    $region4: #{leaf_classify_forward.1} parent=1 // loop_header_branch
      %21 = sbr.rel (%p19) target = $region8
    $region5: #{leaf_classify_forward.1} parent=1 // loop_body
      %s23 = ssub.s32 %s18, 1
      %s24 = ssub.s32 %s18, 2
      %s25 = sadd.s32 %s18, 1
      %s26 = ssub.s32 %s18, %s25
      %p27 = scmp.eq.s32.totalorder %s26, 0
      %s29 = sadd.s32 %s28, 1
      %s30 = scalar_select %p27, %s28, %s29
      %p33 = pneg %p27
      %p34 = scmp.eq.s32.totalorder %s18, 1
      %p35 = por %p33, %p34
      %p36 = scmp.ne.s32.totalorder %s28, %s31
      %p37 = scmp.eq.s32.totalorder %s18, 0
      %p38 = por %p36, %p37
      %p39 = scmp.ne.s32.totalorder %s28, %s31
      %p40 = scmp.eq.s32.totalorder %s23, 1
      %p41 = por %p39, %p40
      %p42 = scmp.ne.s32.totalorder %s31, %s32
      %p43 = scmp.eq.s32.totalorder %s23, 0
      %p44 = por %p42, %p43
      %p45 = scmp.ne.s32.totalorder %s31, %s32
      %p46 = scmp.eq.s32.totalorder %s24, 1
      %p47 = por %p45, %p46
      %p49 = scmp.ne.s32.totalorder %s32, %s48
      %p50 = scmp.eq.s32.totalorder %s24, 0
      %p51 = por %p49, %p50
      %s53 = sadd.s32 %s52, 1
      %p56 = scmp.eq.s32.totalorder %s18, 1
      %p57 = scmp.ne.s32.totalorder %s52, %s54
      %p58 = scmp.eq.s32.totalorder %s18, 0
      %p59 = por %p57, %p58
      %p60 = scmp.ne.s32.totalorder %s52, %s54
      %p61 = scmp.eq.s32.totalorder %s23, 1
      %p62 = por %p60, %p61
      %p63 = scmp.ne.s32.totalorder %s54, %s55
      %p64 = scmp.eq.s32.totalorder %s23, 0
      %p65 = por %p63, %p64
      %p66 = scmp.ne.s32.totalorder %s54, %s55
      %p67 = scmp.eq.s32.totalorder %s24, 1
      %p68 = por %p66, %p67
      %p70 = scmp.ne.s32.totalorder %s55, %s69
      %p71 = scmp.eq.s32.totalorder %s24, 0
      %p72 = por %p70, %p71
      %s74 = sadd.s32 %s73, 1
      %p77 = scmp.eq.s32.totalorder %s18, 1
      %p78 = scmp.ne.s32.totalorder %s73, %s75
      %p79 = scmp.eq.s32.totalorder %s18, 0
      %p80 = por %p78, %p79
      %p81 = scmp.ne.s32.totalorder %s73, %s75
      %p82 = scmp.eq.s32.totalorder %s23, 1
      %p83 = por %p81, %p82
      %p84 = scmp.ne.s32.totalorder %s75, %s76
      %p85 = scmp.eq.s32.totalorder %s23, 0
      %p86 = por %p84, %p85
      %p87 = scmp.ne.s32.totalorder %s75, %s76
      %p88 = scmp.eq.s32.totalorder %s24, 1
      %p89 = por %p87, %p88
      %p91 = scmp.ne.s32.totalorder %s76, %s90
      %p92 = scmp.eq.s32.totalorder %s24, 0
      %p93 = por %p91, %p92
      %s95 = sadd.s32 %s94, 1
      %p98 = scmp.eq.s32.totalorder %s18, 1
      %p99 = scmp.ne.s32.totalorder %s94, %s96
      %p100 = scmp.eq.s32.totalorder %s18, 0
      %p101 = por %p99, %p100
      %p102 = scmp.ne.s32.totalorder %s94, %s96
      %p103 = scmp.eq.s32.totalorder %s23, 1
      %p104 = por %p102, %p103
      %p105 = scmp.ne.s32.totalorder %s96, %s97
      %p106 = scmp.eq.s32.totalorder %s23, 0
      %p107 = por %p105, %p106
      %p108 = scmp.ne.s32.totalorder %s96, %s97
      %p109 = scmp.eq.s32.totalorder %s24, 1
      %p110 = por %p108, %p109
      %p112 = scmp.ne.s32.totalorder %s97, %s111
      %p113 = scmp.eq.s32.totalorder %s24, 0
      %p114 = por %p112, %p113
      %s116 = sadd.s32 %s115, 1
      %p119 = scmp.eq.s32.totalorder %s18, 1
      %p120 = scmp.ne.s32.totalorder %s115, %s117
      %p121 = scmp.eq.s32.totalorder %s18, 0
      %p122 = por %p120, %p121
      %p123 = scmp.ne.s32.totalorder %s115, %s117
      %p124 = scmp.eq.s32.totalorder %s23, 1
      %p125 = por %p123, %p124
      %p126 = scmp.ne.s32.totalorder %s117, %s118
      %p127 = scmp.eq.s32.totalorder %s23, 0
      %p128 = por %p126, %p127
      %p129 = scmp.ne.s32.totalorder %s117, %s118
      %p130 = scmp.eq.s32.totalorder %s24, 1
      %p131 = por %p129, %p130
      %p133 = scmp.ne.s32.totalorder %s118, %s132
      %p134 = scmp.eq.s32.totalorder %s24, 0
      %p135 = por %p133, %p134
      %s137 = sadd.s32 %s136, 1
      %p140 = scmp.eq.s32.totalorder %s18, 1
      %p141 = scmp.ne.s32.totalorder %s136, %s138
      %p142 = scmp.eq.s32.totalorder %s18, 0
      %p143 = por %p141, %p142
      %p144 = scmp.ne.s32.totalorder %s136, %s138
      %p145 = scmp.eq.s32.totalorder %s23, 1
      %p146 = por %p144, %p145
      %p147 = scmp.ne.s32.totalorder %s138, %s139
      %p148 = scmp.eq.s32.totalorder %s23, 0
      %p149 = por %p147, %p148
      %p150 = scmp.ne.s32.totalorder %s138, %s139
      %p151 = scmp.eq.s32.totalorder %s24, 1
      %p152 = por %p150, %p151
      %p154 = scmp.ne.s32.totalorder %s139, %s153
      %p155 = scmp.eq.s32.totalorder %s24, 0
      %p156 = por %p154, %p155
      %s158 = sadd.s32 %s157, 1
      %p161 = scmp.eq.s32.totalorder %s18, 1
      %p162 = scmp.ne.s32.totalorder %s157, %s159
      %p163 = scmp.eq.s32.totalorder %s18, 0
      %p164 = por %p162, %p163
      %p165 = scmp.ne.s32.totalorder %s157, %s159
      %p166 = scmp.eq.s32.totalorder %s23, 1
      %p167 = por %p165, %p166
      %p168 = scmp.ne.s32.totalorder %s159, %s160
      %p169 = scmp.eq.s32.totalorder %s23, 0
      %p170 = por %p168, %p169
      %p171 = scmp.ne.s32.totalorder %s159, %s160
      %p172 = scmp.eq.s32.totalorder %s24, 1
      %p173 = por %p171, %p172
      %p175 = scmp.ne.s32.totalorder %s160, %s174
      %p176 = scmp.eq.s32.totalorder %s24, 0
      %p177 = por %p175, %p176
      %s179 = sadd.s32 %s178, 1
      %p182 = scmp.eq.s32.totalorder %s18, 1
      %p183 = scmp.ne.s32.totalorder %s178, %s180
      %p184 = scmp.eq.s32.totalorder %s18, 0
      %p185 = por %p183, %p184
      %p186 = scmp.ne.s32.totalorder %s178, %s180
      %p187 = scmp.eq.s32.totalorder %s23, 1
      %p188 = por %p186, %p187
      %p189 = scmp.ne.s32.totalorder %s180, %s181
      %p190 = scmp.eq.s32.totalorder %s23, 0
      %p191 = por %p189, %p190
      %p192 = scmp.ne.s32.totalorder %s180, %s181
      %p193 = scmp.eq.s32.totalorder %s24, 1
      %p194 = por %p192, %p193
      %p196 = scmp.ne.s32.totalorder %s181, %s195
      %p197 = scmp.eq.s32.totalorder %s24, 0
      %p198 = por %p196, %p197
      %s200 = sadd.s32 %s199, 1
      %p203 = scmp.eq.s32.totalorder %s18, 1
      %p204 = scmp.ne.s32.totalorder %s199, %s201
      %p205 = scmp.eq.s32.totalorder %s18, 0
      %p206 = por %p204, %p205
      %p207 = scmp.ne.s32.totalorder %s199, %s201
      %p208 = scmp.eq.s32.totalorder %s23, 1
      %p209 = por %p207, %p208
      %p210 = scmp.ne.s32.totalorder %s201, %s202
      %p211 = scmp.eq.s32.totalorder %s23, 0
      %p212 = por %p210, %p211
      %p213 = scmp.ne.s32.totalorder %s201, %s202
      %p214 = scmp.eq.s32.totalorder %s24, 1
      %p215 = por %p213, %p214
      %p217 = scmp.ne.s32.totalorder %s202, %s216
      %p218 = scmp.eq.s32.totalorder %s24, 0
      %p219 = por %p217, %p218
      %s220 = ssub.s32 %s18, %s25
      %p221 = scmp.eq.s32.totalorder %s220, 0
      %s223 = sadd.s32 %s222, 1
      %s224 = scalar_select %p221, %s222, %s223
      %p227 = pneg %p221
      %p228 = scmp.eq.s32.totalorder %s18, 1
      %p229 = por %p227, %p228
      %p230 = scmp.ne.s32.totalorder %s222, %s225
      %p231 = scmp.eq.s32.totalorder %s18, 0
      %p232 = por %p230, %p231
      %p233 = scmp.ne.s32.totalorder %s222, %s225
      %p234 = scmp.eq.s32.totalorder %s23, 1
      %p235 = por %p233, %p234
      %p236 = scmp.ne.s32.totalorder %s225, %s226
      %p237 = scmp.eq.s32.totalorder %s23, 0
      %p238 = por %p236, %p237
      %p239 = scmp.ne.s32.totalorder %s225, %s226
      %p240 = scmp.eq.s32.totalorder %s24, 1
      %p241 = por %p239, %p240
      %p243 = scmp.ne.s32.totalorder %s226, %s242
      %p244 = scmp.eq.s32.totalorder %s24, 0
      %p245 = por %p243, %p244
      %p246 = scmp.le.s32.totalorder 1, %s18
      %p247 = scmp.lt.s32.totalorder %s18, 3
      %p248 = pnand %p246, %p247
      %p249 = pneg %p248
      // Predicated region
      $region9: #{leaf_classify_forward.1} parent=5 // pred_check
        _
      $region10: #{leaf_classify_forward.1} parent=5 // pred_check_branch
        %251 = sbr.rel (%p248) target = $region12
      $region11: #{leaf_classify_forward.1} parent=5 // pred_region
        %s252 = ssub.s32 %s18, 1
        // Predicated region
        $region13: #{leaf_classify_forward.1} parent=11 // pred_check
          %p253 = pneg %p65
        $region14: #{leaf_classify_forward.1} parent=11 // pred_check_branch
          %255 = sbr.rel (%p253) target = $region16
        $region15: #{leaf_classify_forward.1} parent=11 // pred_region
          _
        $region16: #{leaf_classify_forward.1} parent=11 // pred_fallthru
          _
        // Predicated region
        $region17: #{leaf_classify_forward.1} parent=11 // pred_check
          %p256 = pneg %p86
        $region18: #{leaf_classify_forward.1} parent=11 // pred_check_branch
          %258 = sbr.rel (%p256) target = $region20
        $region19: #{leaf_classify_forward.1} parent=11 // pred_region
          _
        $region20: #{leaf_classify_forward.1} parent=11 // pred_fallthru
          _
        // Predicated region
        $region21: #{leaf_classify_forward.1} parent=11 // pred_check
          %p259 = pneg %p107
        $region22: #{leaf_classify_forward.1} parent=11 // pred_check_branch
          %261 = sbr.rel (%p259) target = $region24
        $region23: #{leaf_classify_forward.1} parent=11 // pred_region
          _
        $region24: #{leaf_classify_forward.1} parent=11 // pred_fallthru
          _
        // Predicated region
        $region25: #{leaf_classify_forward.1} parent=11 // pred_check
          %p262 = pneg %p128
        $region26: #{leaf_classify_forward.1} parent=11 // pred_check_branch
          %264 = sbr.rel (%p262) target = $region28
        $region27: #{leaf_classify_forward.1} parent=11 // pred_region
          _
        $region28: #{leaf_classify_forward.1} parent=11 // pred_fallthru
          _
        // Predicated region
        $region29: #{leaf_classify_forward.1} parent=11 // pred_check
          %p265 = pneg %p149
        $region30: #{leaf_classify_forward.1} parent=11 // pred_check_branch
          %267 = sbr.rel (%p265) target = $region32
        $region31: #{leaf_classify_forward.1} parent=11 // pred_region
          _
        $region32: #{leaf_classify_forward.1} parent=11 // pred_fallthru
          _
        // Predicated region
        $region33: #{leaf_classify_forward.1} parent=11 // pred_check
          %p268 = pneg %p170
        $region34: #{leaf_classify_forward.1} parent=11 // pred_check_branch
          %270 = sbr.rel (%p268) target = $region36
        $region35: #{leaf_classify_forward.1} parent=11 // pred_region
          _
        $region36: #{leaf_classify_forward.1} parent=11 // pred_fallthru
          _
        // Predicated region
        $region37: #{leaf_classify_forward.1} parent=11 // pred_check
          %p271 = pneg %p191
        $region38: #{leaf_classify_forward.1} parent=11 // pred_check_branch
          %273 = sbr.rel (%p271) target = $region40
        $region39: #{leaf_classify_forward.1} parent=11 // pred_region
          _
        $region40: #{leaf_classify_forward.1} parent=11 // pred_fallthru
          _
        // Predicated region
        $region41: #{leaf_classify_forward.1} parent=11 // pred_check
          %p274 = pneg %p212
        $region42: #{leaf_classify_forward.1} parent=11 // pred_check_branch
          %276 = sbr.rel (%p274) target = $region44
        $region43: #{leaf_classify_forward.1} parent=11 // pred_region
          _
        $region44: #{leaf_classify_forward.1} parent=11 // pred_fallthru
          _
      $region12: #{leaf_classify_forward.1} parent=5 // pred_fallthru
        _
      %p277 = scmp.lt.s32.totalorder %s18, 2
      // Predicated region
      $region45: #{leaf_classify_forward.1} parent=5 // pred_check
        %p278 = pneg %p277
      $region46: #{leaf_classify_forward.1} parent=5 // pred_check_branch
        %280 = sbr.rel (%p278) target = $region48
      $region47: #{leaf_classify_forward.1} parent=5 // pred_region
        // Predicated region
        $region49: #{leaf_classify_forward.1} parent=47 // pred_check
          %p281 = pneg %p38
        $region50: #{leaf_classify_forward.1} parent=47 // pred_check_branch
          %283 = sbr.rel (%p281) target = $region52
        $region51: #{leaf_classify_forward.1} parent=47 // pred_region
          %p284 = scmp.lt.s32.totalorder %s18, 1
          %s285 = scalar_select %p284, %s18, 1
          %s286 = smul.addr %s285, 96
          %s287 = smul.addr %s286, 4
          %s288 = scalar_lea.vmem %s0, %s287
        $region52: #{leaf_classify_forward.1} parent=47 // pred_fallthru
          _
      $region48: #{leaf_classify_forward.1} parent=5 // pred_fallthru
        _
      %p289 = scmp.le.s32.totalorder 1, %s18
      %p290 = scmp.lt.s32.totalorder %s18, 3
      %p291 = pnand %p289, %p290
      %p292 = pneg %p291
      // Predicated region
      $region53: #{leaf_classify_forward.1} parent=5 // pred_check
        _
      $region54: #{leaf_classify_forward.1} parent=5 // pred_check_branch
        %294 = sbr.rel (%p291) target = $region56
      $region55: #{leaf_classify_forward.1} parent=5 // pred_region
        %s295 = ssub.s32 %s18, 1
        %p296 = scmp.lt.s32.totalorder %s23, 1
        %s297 = scalar_select %p296, %s23, 1
        %s298 = smul.addr %s297, 96
        %s299 = smul.addr %s298, 4
        %s300 = scalar_lea.vmem %s0, %s299
        %p301 = pneg %p44
        %p302 = pneg %p41
        %p303 = pneg %p65
        %p304 = pneg %p62
        %p305 = pneg %p86
        %p306 = pneg %p83
        %p307 = pneg %p107
        %p308 = pneg %p104
        %p309 = pneg %p128
        %p310 = pneg %p125
        %p311 = pneg %p149
        %p312 = pneg %p146
        %p313 = pneg %p170
        %p314 = pneg %p167
        %p315 = pneg %p191
        %p316 = pneg %p188
        %p317 = pneg %p212
        %p318 = pneg %p209
        %p319 = pneg %p238
        %p320 = pneg %p235
        %s321 = sand.u32 %s225, 1
        %s322 = scalar_lea.sflag [#allocation6], %s321
        %s323 = sand.u32 %s225, 1
        %s324 = scalar_lea.vmem [#allocation5], %s323
        %p325 = scmp.lt.s32.totalorder %s23, 1
        %s326 = scalar_select %p325, %s23, 1
        %s327 = smul.addr %s326, 96
        %s328 = smul.addr %s327, 4
        %s329 = scalar_lea.vmem %s0, %s328
        %vm330 = vcmask 801792
        %331 = vst.msk [vmem:[#allocation2] sm:$0xff] %vm330, 0.0
        %332 = vst.msk [vmem:[#allocation2 + $0x8] sm:$0xff] %vm330, 0.0
        %333 = vst.msk [vmem:[#allocation2 + $0x10] sm:$0xff] %vm330, 0.0
        %334 = vst.msk [vmem:[#allocation2 + $0x18] sm:$0xff] %vm330, 0.0
        %335 = vst.msk [vmem:[#allocation2 + $0x20] sm:$0xff] %vm330, 0.0
        %336 = vst.msk [vmem:[#allocation2 + $0x28] sm:$0xff] %vm330, 0.0
        %337 = vst.msk [vmem:[#allocation2 + $0x30] sm:$0xff] %vm330, 0.0
        %338 = vst.msk [vmem:[#allocation2 + $0x38] sm:$0xff] %vm330, 0.0
        %339 = vst.msk [vmem:[#allocation2 + $0x40] sm:$0xff] %vm330, 0.0
        %340 = vst.msk [vmem:[#allocation2 + $0x48] sm:$0xff] %vm330, 0.0
        %341 = vst.msk [vmem:[#allocation2 + $0x50] sm:$0xff] %vm330, 0.0
        %342 = vst.msk [vmem:[#allocation2 + $0x58] sm:$0xff] %vm330, 0.0
        %343 = vst.msk [vmem:[#allocation2 + $0x60] sm:$0xff] %vm330, 0.0
        %344 = vst.msk [vmem:[#allocation2 + $0x68] sm:$0xff] %vm330, 0.0
        %345 = vst.msk [vmem:[#allocation2 + $0x70] sm:$0xff] %vm330, 0.0
        %346 = vst.msk [vmem:[#allocation2 + $0x78] sm:$0xff] %vm330, 0.0
        %347 = vst.msk [vmem:[#allocation2 + $0x80] sm:$0xff] %vm330, 0.0
        %348 = vst.msk [vmem:[#allocation2 + $0x88] sm:$0xff] %vm330, 0.0
        %349 = vst.msk [vmem:[#allocation2 + $0x90] sm:$0xff] %vm330, 0.0
        %350 = vst.msk [vmem:[#allocation2 + $0x98] sm:$0xff] %vm330, 0.0
        %351 = vst.msk [vmem:[#allocation2 + $0xa0] sm:$0xff] %vm330, 0.0
        %352 = vst.msk [vmem:[#allocation2 + $0xa8] sm:$0xff] %vm330, 0.0
        %353 = vst.msk [vmem:[#allocation2 + $0xb0] sm:$0xff] %vm330, 0.0
        %354 = vst.msk [vmem:[#allocation2 + $0xb8] sm:$0xff] %vm330, 0.0
        %355 = vst.msk [vmem:[#allocation2 + $0xc0] sm:$0xff] %vm330, 0.0
        %356 = vst.msk [vmem:[#allocation2 + $0xc8] sm:$0xff] %vm330, 0.0
        %357 = vst.msk [vmem:[#allocation2 + $0xd0] sm:$0xff] %vm330, 0.0
        %358 = vst.msk [vmem:[#allocation2 + $0xd8] sm:$0xff] %vm330, 0.0
        %359 = vst.msk [vmem:[#allocation2 + $0xe0] sm:$0xff] %vm330, 0.0
        %360 = vst.msk [vmem:[#allocation2 + $0xe8] sm:$0xff] %vm330, 0.0
        %361 = vst.msk [vmem:[#allocation2 + $0xf0] sm:$0xff] %vm330, 0.0
        %362 = vst.msk [vmem:[#allocation2 + $0xf8] sm:$0xff] %vm330, 0.0
        %363 = vst.msk [vmem:[#allocation2 + $0x100] sm:$0xff] %vm330, 0.0
        %364 = vst.msk [vmem:[#allocation2 + $0x108] sm:$0xff] %vm330, 0.0
        %365 = vst.msk [vmem:[#allocation2 + $0x110] sm:$0xff] %vm330, 0.0
        %366 = vst.msk [vmem:[#allocation2 + $0x118] sm:$0xff] %vm330, 0.0
        %367 = vst.msk [vmem:[#allocation2 + $0x120] sm:$0xff] %vm330, 0.0
        %368 = vst.msk [vmem:[#allocation2 + $0x128] sm:$0xff] %vm330, 0.0
        %369 = vst.msk [vmem:[#allocation2 + $0x130] sm:$0xff] %vm330, 0.0
        %370 = vst.msk [vmem:[#allocation2 + $0x138] sm:$0xff] %vm330, 0.0
        %371 = vst.msk [vmem:[#allocation2 + $0x140] sm:$0xff] %vm330, 0.0
        %372 = vst.msk [vmem:[#allocation2 + $0x148] sm:$0xff] %vm330, 0.0
        %373 = vst.msk [vmem:[#allocation2 + $0x150] sm:$0xff] %vm330, 0.0
        %374 = vst.msk [vmem:[#allocation2 + $0x158] sm:$0xff] %vm330, 0.0
        %375 = vst.msk [vmem:[#allocation2 + $0x160] sm:$0xff] %vm330, 0.0
        %376 = vst.msk [vmem:[#allocation2 + $0x168] sm:$0xff] %vm330, 0.0
        %377 = vst.msk [vmem:[#allocation2 + $0x170] sm:$0xff] %vm330, 0.0
        %378 = vst.msk [vmem:[#allocation2 + $0x178] sm:$0xff] %vm330, 0.0
        %379 = vst.msk [vmem:[#allocation2 + $0x180] sm:$0xff] %vm330, 0.0
        %380 = vst.msk [vmem:[#allocation2 + $0x188] sm:$0xff] %vm330, 0.0
        %381 = vst.msk [vmem:[#allocation2 + $0x190] sm:$0xff] %vm330, 0.0
        %382 = vst.msk [vmem:[#allocation2 + $0x198] sm:$0xff] %vm330, 0.0
        %383 = vst.msk [vmem:[#allocation2 + $0x1a0] sm:$0xff] %vm330, 0.0
        %384 = vst.msk [vmem:[#allocation2 + $0x1a8] sm:$0xff] %vm330, 0.0
        %385 = vst.msk [vmem:[#allocation2 + $0x1b0] sm:$0xff] %vm330, 0.0
        %386 = vst.msk [vmem:[#allocation2 + $0x1b8] sm:$0xff] %vm330, 0.0
        %387 = vst.msk [vmem:[#allocation2 + $0x1c0] sm:$0xff] %vm330, 0.0
        %388 = vst.msk [vmem:[#allocation2 + $0x1c8] sm:$0xff] %vm330, 0.0
        %389 = vst.msk [vmem:[#allocation2 + $0x1d0] sm:$0xff] %vm330, 0.0
        %390 = vst.msk [vmem:[#allocation2 + $0x1d8] sm:$0xff] %vm330, 0.0
        %391 = vst.msk [vmem:[#allocation2 + $0x1e0] sm:$0xff] %vm330, 0.0
        %392 = vst.msk [vmem:[#allocation2 + $0x1e8] sm:$0xff] %vm330, 0.0
        %393 = vst.msk [vmem:[#allocation2 + $0x1f0] sm:$0xff] %vm330, 0.0
        %394 = vst.msk [vmem:[#allocation2 + $0x1f8] sm:$0xff] %vm330, 0.0
        %395 = vst.msk [vmem:[#allocation2 + $0x200] sm:$0xff] %vm330, 0.0
        %396 = vst.msk [vmem:[#allocation2 + $0x208] sm:$0xff] %vm330, 0.0
        %397 = vst.msk [vmem:[#allocation2 + $0x210] sm:$0xff] %vm330, 0.0
        %398 = vst.msk [vmem:[#allocation2 + $0x218] sm:$0xff] %vm330, 0.0
        %399 = vst.msk [vmem:[#allocation2 + $0x220] sm:$0xff] %vm330, 0.0
        %400 = vst.msk [vmem:[#allocation2 + $0x228] sm:$0xff] %vm330, 0.0
        %401 = vst.msk [vmem:[#allocation2 + $0x230] sm:$0xff] %vm330, 0.0
        %402 = vst.msk [vmem:[#allocation2 + $0x238] sm:$0xff] %vm330, 0.0
        %403 = vst.msk [vmem:[#allocation2 + $0x240] sm:$0xff] %vm330, 0.0
        %404 = vst.msk [vmem:[#allocation2 + $0x248] sm:$0xff] %vm330, 0.0
        %405 = vst.msk [vmem:[#allocation2 + $0x250] sm:$0xff] %vm330, 0.0
        %406 = vst.msk [vmem:[#allocation2 + $0x258] sm:$0xff] %vm330, 0.0
        %407 = vst.msk [vmem:[#allocation2 + $0x260] sm:$0xff] %vm330, 0.0
        %408 = vst.msk [vmem:[#allocation2 + $0x268] sm:$0xff] %vm330, 0.0
        %409 = vst.msk [vmem:[#allocation2 + $0x270] sm:$0xff] %vm330, 0.0
        %410 = vst.msk [vmem:[#allocation2 + $0x278] sm:$0xff] %vm330, 0.0
        %411 = vst.msk [vmem:[#allocation2 + $0x280] sm:$0xff] %vm330, 0.0
        %412 = vst.msk [vmem:[#allocation2 + $0x288] sm:$0xff] %vm330, 0.0
        %413 = vst.msk [vmem:[#allocation2 + $0x290] sm:$0xff] %vm330, 0.0
        %414 = vst.msk [vmem:[#allocation2 + $0x298] sm:$0xff] %vm330, 0.0
        %415 = vst.msk [vmem:[#allocation2 + $0x2a0] sm:$0xff] %vm330, 0.0
        %416 = vst.msk [vmem:[#allocation2 + $0x2a8] sm:$0xff] %vm330, 0.0
        %417 = vst.msk [vmem:[#allocation2 + $0x2b0] sm:$0xff] %vm330, 0.0
        %418 = vst.msk [vmem:[#allocation2 + $0x2b8] sm:$0xff] %vm330, 0.0
        %419 = vst.msk [vmem:[#allocation2 + $0x2c0] sm:$0xff] %vm330, 0.0
        %420 = vst.msk [vmem:[#allocation2 + $0x2c8] sm:$0xff] %vm330, 0.0
        %421 = vst.msk [vmem:[#allocation2 + $0x2d0] sm:$0xff] %vm330, 0.0
        %422 = vst.msk [vmem:[#allocation2 + $0x2d8] sm:$0xff] %vm330, 0.0
        %423 = vst.msk [vmem:[#allocation2 + $0x2e0] sm:$0xff] %vm330, 0.0
        %424 = vst.msk [vmem:[#allocation2 + $0x2e8] sm:$0xff] %vm330, 0.0
        %425 = vst.msk [vmem:[#allocation2 + $0x2f0] sm:$0xff] %vm330, 0.0
        %426 = vst.msk [vmem:[#allocation2 + $0x2f8] sm:$0xff] %vm330, 0.0
        %427 = vst.msk [vmem:[#allocation2 + $0x300] sm:$0xff] %vm330, 0.0
        %428 = vst.msk [vmem:[#allocation2 + $0x308] sm:$0xff] %vm330, 0.0
        %vm429 = vcmask 408576
        %430 = vst.msk [vmem:[#allocation3] sm:$0xff] %vm429, 0.0
        %431 = vst.msk [vmem:[#allocation3 + $0x8] sm:$0xff] %vm429, 0.0
        %432 = vst.msk [vmem:[#allocation3 + $0x10] sm:$0xff] %vm429, 0.0
        %433 = vst.msk [vmem:[#allocation3 + $0x18] sm:$0xff] %vm429, 0.0
        %434 = vst.msk [vmem:[#allocation3 + $0x20] sm:$0xff] %vm429, 0.0
        %435 = vst.msk [vmem:[#allocation3 + $0x28] sm:$0xff] %vm429, 0.0
        %436 = vst.msk [vmem:[#allocation3 + $0x30] sm:$0xff] %vm429, 0.0
        %437 = vst.msk [vmem:[#allocation3 + $0x38] sm:$0xff] %vm429, 0.0
        %438 = vst.msk [vmem:[#allocation3 + $0x40] sm:$0xff] %vm429, 0.0
        %439 = vst.msk [vmem:[#allocation3 + $0x48] sm:$0xff] %vm429, 0.0
        %440 = vst.msk [vmem:[#allocation3 + $0x50] sm:$0xff] %vm429, 0.0
        %441 = vst.msk [vmem:[#allocation3 + $0x58] sm:$0xff] %vm429, 0.0
        %442 = vst.msk [vmem:[#allocation3 + $0x60] sm:$0xff] %vm429, 0.0
        %443 = vst.msk [vmem:[#allocation3 + $0x68] sm:$0xff] %vm429, 0.0
        %444 = vst.msk [vmem:[#allocation3 + $0x70] sm:$0xff] %vm429, 0.0
        %445 = vst.msk [vmem:[#allocation3 + $0x78] sm:$0xff] %vm429, 0.0
        %446 = vst.msk [vmem:[#allocation3 + $0x80] sm:$0xff] %vm429, 0.0
        %447 = vst.msk [vmem:[#allocation3 + $0x88] sm:$0xff] %vm429, 0.0
        %448 = vst.msk [vmem:[#allocation3 + $0x90] sm:$0xff] %vm429, 0.0
        %449 = vst.msk [vmem:[#allocation3 + $0x98] sm:$0xff] %vm429, 0.0
        %450 = vst.msk [vmem:[#allocation3 + $0xa0] sm:$0xff] %vm429, 0.0
        %451 = vst.msk [vmem:[#allocation3 + $0xa8] sm:$0xff] %vm429, 0.0
        %452 = vst.msk [vmem:[#allocation3 + $0xb0] sm:$0xff] %vm429, 0.0
        %453 = vst.msk [vmem:[#allocation3 + $0xb8] sm:$0xff] %vm429, 0.0
        %454 = vst.msk [vmem:[#allocation3 + $0xc0] sm:$0xff] %vm429, 0.0
        %455 = vst.msk [vmem:[#allocation3 + $0xc8] sm:$0xff] %vm429, 0.0
        %456 = vst.msk [vmem:[#allocation3 + $0xd0] sm:$0xff] %vm429, 0.0
        %457 = vst.msk [vmem:[#allocation3 + $0xd8] sm:$0xff] %vm429, 0.0
        %458 = vst.msk [vmem:[#allocation3 + $0xe0] sm:$0xff] %vm429, 0.0
        %459 = vst.msk [vmem:[#allocation3 + $0xe8] sm:$0xff] %vm429, 0.0
        %460 = vst.msk [vmem:[#allocation3 + $0xf0] sm:$0xff] %vm429, 0.0
        %461 = vst.msk [vmem:[#allocation3 + $0xf8] sm:$0xff] %vm429, 0.0
        %462 = vst.msk [vmem:[#allocation3 + $0x100] sm:$0xff] %vm429, 0.0
        %463 = vst.msk [vmem:[#allocation3 + $0x108] sm:$0xff] %vm429, 0.0
        %464 = vst.msk [vmem:[#allocation3 + $0x110] sm:$0xff] %vm429, 0.0
        %465 = vst.msk [vmem:[#allocation3 + $0x118] sm:$0xff] %vm429, 0.0
        %466 = vst.msk [vmem:[#allocation3 + $0x120] sm:$0xff] %vm429, 0.0
        %467 = vst.msk [vmem:[#allocation3 + $0x128] sm:$0xff] %vm429, 0.0
        %468 = vst.msk [vmem:[#allocation3 + $0x130] sm:$0xff] %vm429, 0.0
        %469 = vst.msk [vmem:[#allocation3 + $0x138] sm:$0xff] %vm429, 0.0
        %470 = vst.msk [vmem:[#allocation3 + $0x140] sm:$0xff] %vm429, 0.0
        %471 = vst.msk [vmem:[#allocation3 + $0x148] sm:$0xff] %vm429, 0.0
        %472 = vst.msk [vmem:[#allocation3 + $0x150] sm:$0xff] %vm429, 0.0
        %473 = vst.msk [vmem:[#allocation3 + $0x158] sm:$0xff] %vm429, 0.0
        %474 = vst.msk [vmem:[#allocation3 + $0x160] sm:$0xff] %vm429, 0.0
        %475 = vst.msk [vmem:[#allocation3 + $0x168] sm:$0xff] %vm429, 0.0
        %476 = vst.msk [vmem:[#allocation3 + $0x170] sm:$0xff] %vm429, 0.0
        %477 = vst.msk [vmem:[#allocation3 + $0x178] sm:$0xff] %vm429, 0.0
        %478 = vst.msk [vmem:[#allocation3 + $0x180] sm:$0xff] %vm429, 0.0
        %479 = vst.msk [vmem:[#allocation3 + $0x188] sm:$0xff] %vm429, 0.0
        %480 = vst.msk [vmem:[#allocation3 + $0x190] sm:$0xff] %vm429, 0.0
        %481 = vst.msk [vmem:[#allocation3 + $0x198] sm:$0xff] %vm429, 0.0
        %482 = vst.msk [vmem:[#allocation3 + $0x1a0] sm:$0xff] %vm429, 0.0
        %483 = vst.msk [vmem:[#allocation3 + $0x1a8] sm:$0xff] %vm429, 0.0
        %484 = vst.msk [vmem:[#allocation3 + $0x1b0] sm:$0xff] %vm429, 0.0
        %485 = vst.msk [vmem:[#allocation3 + $0x1b8] sm:$0xff] %vm429, 0.0
        %486 = vst.msk [vmem:[#allocation3 + $0x1c0] sm:$0xff] %vm429, 0.0
        %487 = vst.msk [vmem:[#allocation3 + $0x1c8] sm:$0xff] %vm429, 0.0
        %488 = vst.msk [vmem:[#allocation3 + $0x1d0] sm:$0xff] %vm429, 0.0
        %489 = vst.msk [vmem:[#allocation3 + $0x1d8] sm:$0xff] %vm429, 0.0
        %490 = vst.msk [vmem:[#allocation3 + $0x1e0] sm:$0xff] %vm429, 0.0
        %491 = vst.msk [vmem:[#allocation3 + $0x1e8] sm:$0xff] %vm429, 0.0
        %492 = vst.msk [vmem:[#allocation3 + $0x1f0] sm:$0xff] %vm429, 0.0
        %493 = vst.msk [vmem:[#allocation3 + $0x1f8] sm:$0xff] %vm429, 0.0
        %494 = vst.msk [vmem:[#allocation3 + $0x200] sm:$0xff] %vm429, 0.0
        %495 = vst.msk [vmem:[#allocation3 + $0x208] sm:$0xff] %vm429, 0.0
        %496 = vst.msk [vmem:[#allocation3 + $0x210] sm:$0xff] %vm429, 0.0
        %497 = vst.msk [vmem:[#allocation3 + $0x218] sm:$0xff] %vm429, 0.0
        %498 = vst.msk [vmem:[#allocation3 + $0x220] sm:$0xff] %vm429, 0.0
        %499 = vst.msk [vmem:[#allocation3 + $0x228] sm:$0xff] %vm429, 0.0
        %500 = vst.msk [vmem:[#allocation3 + $0x230] sm:$0xff] %vm429, 0.0
        %501 = vst.msk [vmem:[#allocation3 + $0x238] sm:$0xff] %vm429, 0.0
        %502 = vst.msk [vmem:[#allocation3 + $0x240] sm:$0xff] %vm429, 0.0
        %503 = vst.msk [vmem:[#allocation3 + $0x248] sm:$0xff] %vm429, 0.0
        %504 = vst.msk [vmem:[#allocation3 + $0x250] sm:$0xff] %vm429, 0.0
        %505 = vst.msk [vmem:[#allocation3 + $0x258] sm:$0xff] %vm429, 0.0
        %506 = vst.msk [vmem:[#allocation3 + $0x260] sm:$0xff] %vm429, 0.0
        %507 = vst.msk [vmem:[#allocation3 + $0x268] sm:$0xff] %vm429, 0.0
        %508 = vst.msk [vmem:[#allocation3 + $0x270] sm:$0xff] %vm429, 0.0
        %509 = vst.msk [vmem:[#allocation3 + $0x278] sm:$0xff] %vm429, 0.0
        %510 = vst.msk [vmem:[#allocation3 + $0x280] sm:$0xff] %vm429, 0.0
        %511 = vst.msk [vmem:[#allocation3 + $0x288] sm:$0xff] %vm429, 0.0
        %512 = vst.msk [vmem:[#allocation3 + $0x290] sm:$0xff] %vm429, 0.0
        %513 = vst.msk [vmem:[#allocation3 + $0x298] sm:$0xff] %vm429, 0.0
        %514 = vst.msk [vmem:[#allocation3 + $0x2a0] sm:$0xff] %vm429, 0.0
        %515 = vst.msk [vmem:[#allocation3 + $0x2a8] sm:$0xff] %vm429, 0.0
        %516 = vst.msk [vmem:[#allocation3 + $0x2b0] sm:$0xff] %vm429, 0.0
        %517 = vst.msk [vmem:[#allocation3 + $0x2b8] sm:$0xff] %vm429, 0.0
        %518 = vst.msk [vmem:[#allocation3 + $0x2c0] sm:$0xff] %vm429, 0.0
        %519 = vst.msk [vmem:[#allocation3 + $0x2c8] sm:$0xff] %vm429, 0.0
        %520 = vst.msk [vmem:[#allocation3 + $0x2d0] sm:$0xff] %vm429, 0.0
        %521 = vst.msk [vmem:[#allocation3 + $0x2d8] sm:$0xff] %vm429, 0.0
        %522 = vst.msk [vmem:[#allocation3 + $0x2e0] sm:$0xff] %vm429, 0.0
        %523 = vst.msk [vmem:[#allocation3 + $0x2e8] sm:$0xff] %vm429, 0.0
        %524 = vst.msk [vmem:[#allocation3 + $0x2f0] sm:$0xff] %vm429, 0.0
        %525 = vst.msk [vmem:[#allocation3 + $0x2f8] sm:$0xff] %vm429, 0.0
        %526 = vst.msk [vmem:[#allocation3 + $0x300] sm:$0xff] %vm429, 0.0
        %527 = vst.msk [vmem:[#allocation3 + $0x308] sm:$0xff] %vm429, 0.0
        %528 = vst.msk [vmem:[#allocation3 + $0x310] sm:$0xff] %vm429, 0.0
        %529 = vst.msk [vmem:[#allocation3 + $0x318] sm:$0xff] %vm429, 0.0
        %v530 = vld [vmem:[%s329] sm:$0x7]
        %v531 = vld [vmem:[%s329 + $0x4] sm:$0x7]
        %v532 = vld [vmem:[%s329 + $0x8] sm:$0x7]
        %v533 = vld [vmem:[%s329 + $0xc] sm:$0x7]
        %v534 = vld [vmem:[%s329 + $0x10] sm:$0x7]
        %v535 = vld [vmem:[%s329 + $0x14] sm:$0x7]
        %v536 = vld [vmem:[%s329 + $0x18] sm:$0x7]
        %v537 = vld [vmem:[%s329 + $0x1c] sm:$0x7]
        %v538 = vld [vmem:[%s329 + $0x20] sm:$0x7]
        %v539 = vld [vmem:[%s329 + $0x24] sm:$0x7]
        %v540 = vld [vmem:[%s329 + $0x28] sm:$0x7]
        %v541 = vld [vmem:[%s329 + $0x2c] sm:$0x7]
        %v542 = vld [vmem:[%s329 + $0x30] sm:$0x7]
        %v543 = vld [vmem:[%s329 + $0x34] sm:$0x7]
        %v544 = vld [vmem:[%s329 + $0x38] sm:$0x7]
        %v545 = vld [vmem:[%s329 + $0x3c] sm:$0x7]
        %v546 = vld [vmem:[%s329 + $0x40] sm:$0x7]
        %v547 = vld [vmem:[%s329 + $0x44] sm:$0x7]
        %v548 = vld [vmem:[%s329 + $0x48] sm:$0x7]
        %v549 = vld [vmem:[%s329 + $0x4c] sm:$0x7]
        %v550 = vld [vmem:[%s329 + $0x50] sm:$0x7]
        %v551 = vld [vmem:[%s329 + $0x54] sm:$0x7]
        %v552 = vld [vmem:[%s329 + $0x58] sm:$0x7]
        %v553 = vld [vmem:[%s329 + $0x5c] sm:$0x7]
        %v554 = vld [vmem:[%s329 + $0x60] sm:$0x7]
        %v555 = vld [vmem:[%s329 + $0x64] sm:$0x7]
        %v556 = vld [vmem:[%s329 + $0x68] sm:$0x7]
        %v557 = vld [vmem:[%s329 + $0x6c] sm:$0x7]
        %v558 = vld [vmem:[%s329 + $0x70] sm:$0x7]
        %v559 = vld [vmem:[%s329 + $0x74] sm:$0x7]
        %v560 = vld [vmem:[%s329 + $0x78] sm:$0x7]
        %v561 = vld [vmem:[%s329 + $0x7c] sm:$0x7]
        %v562 = vld [vmem:[%s329 + $0x80] sm:$0x7]
        %v563 = vld [vmem:[%s329 + $0x84] sm:$0x7]
        %v564 = vld [vmem:[%s329 + $0x88] sm:$0x7]
        %v565 = vld [vmem:[%s329 + $0x8c] sm:$0x7]
        %v566 = vld [vmem:[%s329 + $0x90] sm:$0x7]
        %v567 = vld [vmem:[%s329 + $0x94] sm:$0x7]
        %v568 = vld [vmem:[%s329 + $0x98] sm:$0x7]
        %v569 = vld [vmem:[%s329 + $0x9c] sm:$0x7]
        %v570 = vld [vmem:[%s329 + $0xa0] sm:$0x7]
        %v571 = vld [vmem:[%s329 + $0xa4] sm:$0x7]
        %v572 = vld [vmem:[%s329 + $0xa8] sm:$0x7]
        %v573 = vld [vmem:[%s329 + $0xac] sm:$0x7]
        %v574 = vld [vmem:[%s329 + $0xb0] sm:$0x7]
        %v575 = vld [vmem:[%s329 + $0xb4] sm:$0x7]
        %v576 = vld [vmem:[%s329 + $0xb8] sm:$0x7]
        %v577 = vld [vmem:[%s329 + $0xbc] sm:$0x7]
        %v578 = vld [vmem:[%s329 + $0xc0] sm:$0x7]
        %v579 = vld [vmem:[%s329 + $0xc4] sm:$0x7]
        %v580 = vld [vmem:[%s329 + $0xc8] sm:$0x7]
        %v581 = vld [vmem:[%s329 + $0xcc] sm:$0x7]
        %v582 = vld [vmem:[%s329 + $0xd0] sm:$0x7]
        %v583 = vld [vmem:[%s329 + $0xd4] sm:$0x7]
        %v584 = vld [vmem:[%s329 + $0xd8] sm:$0x7]
        %v585 = vld [vmem:[%s329 + $0xdc] sm:$0x7]
        %v586 = vld [vmem:[%s329 + $0xe0] sm:$0x7]
        %v587 = vld [vmem:[%s329 + $0xe4] sm:$0x7]
        %v588 = vld [vmem:[%s329 + $0xe8] sm:$0x7]
        %v589 = vld [vmem:[%s329 + $0xec] sm:$0x7]
        %v590 = vld [vmem:[%s329 + $0xf0] sm:$0x7]
        %v591 = vld [vmem:[%s329 + $0xf4] sm:$0x7]
        %v592 = vld [vmem:[%s329 + $0xf8] sm:$0x7]
        %v593 = vld [vmem:[%s329 + $0xfc] sm:$0x7]
        %v594 = vld [vmem:[%s329 + $0x100] sm:$0x7]
        %v595 = vld [vmem:[%s329 + $0x104] sm:$0x7]
        %v596 = vld [vmem:[%s329 + $0x108] sm:$0x7]
        %v597 = vld [vmem:[%s329 + $0x10c] sm:$0x7]
        %v598 = vld [vmem:[%s329 + $0x110] sm:$0x7]
        %v599 = vld [vmem:[%s329 + $0x114] sm:$0x7]
        %v600 = vld [vmem:[%s329 + $0x118] sm:$0x7]
        %v601 = vld [vmem:[%s329 + $0x11c] sm:$0x7]
        %v602 = vld [vmem:[%s329 + $0x120] sm:$0x7]
        %v603 = vld [vmem:[%s329 + $0x124] sm:$0x7]
        %v604 = vld [vmem:[%s329 + $0x128] sm:$0x7]
        %v605 = vld [vmem:[%s329 + $0x12c] sm:$0x7]
        %v606 = vld [vmem:[%s329 + $0x130] sm:$0x7]
        %v607 = vld [vmem:[%s329 + $0x134] sm:$0x7]
        %v608 = vld [vmem:[%s329 + $0x138] sm:$0x7]
        %v609 = vld [vmem:[%s329 + $0x13c] sm:$0x7]
        %v610 = vld [vmem:[%s329 + $0x140] sm:$0x7]
        %v611 = vld [vmem:[%s329 + $0x144] sm:$0x7]
        %v612 = vld [vmem:[%s329 + $0x148] sm:$0x7]
        %v613 = vld [vmem:[%s329 + $0x14c] sm:$0x7]
        %v614 = vld [vmem:[%s329 + $0x150] sm:$0x7]
        %v615 = vld [vmem:[%s329 + $0x154] sm:$0x7]
        %v616 = vld [vmem:[%s329 + $0x158] sm:$0x7]
        %v617 = vld [vmem:[%s329 + $0x15c] sm:$0x7]
        %v618 = vld [vmem:[%s329 + $0x160] sm:$0x7]
        %v619 = vld [vmem:[%s329 + $0x164] sm:$0x7]
        %v620 = vld [vmem:[%s329 + $0x168] sm:$0x7]
        %v621 = vld [vmem:[%s329 + $0x16c] sm:$0x7]
        %v622 = vld [vmem:[%s329 + $0x170] sm:$0x7]
        %v623 = vld [vmem:[%s329 + $0x174] sm:$0x7]
        %v624 = vld [vmem:[%s329 + $0x178] sm:$0x7]
        %v625 = vld [vmem:[%s329 + $0x17c] sm:$0x7]
        %722 = vrot.lane.b32.xlu0 %v530, 1
        %v723 = vpop.permute.xlu0 %722
        %724 = vrot.lane.b32.xlu0 %v531, 1
        %v725 = vpop.permute.xlu0 %724
        %726 = vrot.lane.b32.xlu0 %v532, 1
        %v727 = vpop.permute.xlu0 %726
        %728 = vrot.lane.b32.xlu0 %v533, 1
        %v729 = vpop.permute.xlu0 %728
        %730 = vrot.lane.b32.xlu0 %v534, 1
        %v731 = vpop.permute.xlu0 %730
        %732 = vrot.lane.b32.xlu0 %v535, 1
        %v733 = vpop.permute.xlu0 %732
        %734 = vrot.lane.b32.xlu0 %v536, 1
        %v735 = vpop.permute.xlu0 %734
        %736 = vrot.lane.b32.xlu0 %v537, 1
        %v737 = vpop.permute.xlu0 %736
        %738 = vrot.lane.b32.xlu0 %v538, 1
        %v739 = vpop.permute.xlu0 %738
        %740 = vrot.lane.b32.xlu0 %v539, 1
        %v741 = vpop.permute.xlu0 %740
        %742 = vrot.lane.b32.xlu0 %v540, 1
        %v743 = vpop.permute.xlu0 %742
        %744 = vrot.lane.b32.xlu0 %v541, 1
        %v745 = vpop.permute.xlu0 %744
        %746 = vrot.lane.b32.xlu0 %v542, 1
        %v747 = vpop.permute.xlu0 %746
        %748 = vrot.lane.b32.xlu0 %v543, 1
        %v749 = vpop.permute.xlu0 %748
        %750 = vrot.lane.b32.xlu0 %v544, 1
        %v751 = vpop.permute.xlu0 %750
        %752 = vrot.lane.b32.xlu0 %v545, 1
        %v753 = vpop.permute.xlu0 %752
        %754 = vrot.lane.b32.xlu0 %v546, 1
        %v755 = vpop.permute.xlu0 %754
        %756 = vrot.lane.b32.xlu0 %v547, 1
        %v757 = vpop.permute.xlu0 %756
        %758 = vrot.lane.b32.xlu0 %v548, 1
        %v759 = vpop.permute.xlu0 %758
        %760 = vrot.lane.b32.xlu0 %v549, 1
        %v761 = vpop.permute.xlu0 %760
        %762 = vrot.lane.b32.xlu0 %v550, 1
        %v763 = vpop.permute.xlu0 %762
        %764 = vrot.lane.b32.xlu0 %v551, 1
        %v765 = vpop.permute.xlu0 %764
        %766 = vrot.lane.b32.xlu0 %v552, 1
        %v767 = vpop.permute.xlu0 %766
        %768 = vrot.lane.b32.xlu0 %v553, 1
        %v769 = vpop.permute.xlu0 %768
        %770 = vrot.lane.b32.xlu0 %v554, 1
        %v771 = vpop.permute.xlu0 %770
        %772 = vrot.lane.b32.xlu0 %v555, 1
        %v773 = vpop.permute.xlu0 %772
        %774 = vrot.lane.b32.xlu0 %v556, 1
        %v775 = vpop.permute.xlu0 %774
        %776 = vrot.lane.b32.xlu0 %v557, 1
        %v777 = vpop.permute.xlu0 %776
        %778 = vrot.lane.b32.xlu0 %v558, 1
        %v779 = vpop.permute.xlu0 %778
        %780 = vrot.lane.b32.xlu0 %v559, 1
        %v781 = vpop.permute.xlu0 %780
        %782 = vrot.lane.b32.xlu0 %v560, 1
        %v783 = vpop.permute.xlu0 %782
        %784 = vrot.lane.b32.xlu0 %v561, 1
        %v785 = vpop.permute.xlu0 %784
        %786 = vrot.lane.b32.xlu0 %v562, 1
        %v787 = vpop.permute.xlu0 %786
        %788 = vrot.lane.b32.xlu0 %v563, 1
        %v789 = vpop.permute.xlu0 %788
        %790 = vrot.lane.b32.xlu0 %v564, 1
        %v791 = vpop.permute.xlu0 %790
        %792 = vrot.lane.b32.xlu0 %v565, 1
        %v793 = vpop.permute.xlu0 %792
        %794 = vrot.lane.b32.xlu0 %v566, 1
        %v795 = vpop.permute.xlu0 %794
        %796 = vrot.lane.b32.xlu0 %v567, 1
        %v797 = vpop.permute.xlu0 %796
        %798 = vrot.lane.b32.xlu0 %v568, 1
        %v799 = vpop.permute.xlu0 %798
        %800 = vrot.lane.b32.xlu0 %v569, 1
        %v801 = vpop.permute.xlu0 %800
        %802 = vrot.lane.b32.xlu0 %v570, 1
        %v803 = vpop.permute.xlu0 %802
        %804 = vrot.lane.b32.xlu0 %v571, 1
        %v805 = vpop.permute.xlu0 %804
        %806 = vrot.lane.b32.xlu0 %v572, 1
        %v807 = vpop.permute.xlu0 %806
        %808 = vrot.lane.b32.xlu0 %v573, 1
        %v809 = vpop.permute.xlu0 %808
        %810 = vrot.lane.b32.xlu0 %v574, 1
        %v811 = vpop.permute.xlu0 %810
        %812 = vrot.lane.b32.xlu0 %v575, 1
        %v813 = vpop.permute.xlu0 %812
        %814 = vrot.lane.b32.xlu0 %v576, 1
        %v815 = vpop.permute.xlu0 %814
        %816 = vrot.lane.b32.xlu0 %v577, 1
        %v817 = vpop.permute.xlu0 %816
        %818 = vrot.lane.b32.xlu0 %v578, 1
        %v819 = vpop.permute.xlu0 %818
        %820 = vrot.lane.b32.xlu0 %v579, 1
        %v821 = vpop.permute.xlu0 %820
        %822 = vrot.lane.b32.xlu0 %v580, 1
        %v823 = vpop.permute.xlu0 %822
        %824 = vrot.lane.b32.xlu0 %v581, 1
        %v825 = vpop.permute.xlu0 %824
        %826 = vrot.lane.b32.xlu0 %v582, 1
        %v827 = vpop.permute.xlu0 %826
        %828 = vrot.lane.b32.xlu0 %v583, 1
        %v829 = vpop.permute.xlu0 %828
        %830 = vrot.lane.b32.xlu0 %v584, 1
        %v831 = vpop.permute.xlu0 %830
        %832 = vrot.lane.b32.xlu0 %v585, 1
        %v833 = vpop.permute.xlu0 %832
        %834 = vrot.lane.b32.xlu0 %v586, 1
        %v835 = vpop.permute.xlu0 %834
        %836 = vrot.lane.b32.xlu0 %v587, 1
        %v837 = vpop.permute.xlu0 %836
        %838 = vrot.lane.b32.xlu0 %v588, 1
        %v839 = vpop.permute.xlu0 %838
        %840 = vrot.lane.b32.xlu0 %v589, 1
        %v841 = vpop.permute.xlu0 %840
        %842 = vrot.lane.b32.xlu0 %v590, 1
        %v843 = vpop.permute.xlu0 %842
        %844 = vrot.lane.b32.xlu0 %v591, 1
        %v845 = vpop.permute.xlu0 %844
        %846 = vrot.lane.b32.xlu0 %v592, 1
        %v847 = vpop.permute.xlu0 %846
        %848 = vrot.lane.b32.xlu0 %v593, 1
        %v849 = vpop.permute.xlu0 %848
        %850 = vrot.lane.b32.xlu0 %v594, 1
        %v851 = vpop.permute.xlu0 %850
        %852 = vrot.lane.b32.xlu0 %v595, 1
        %v853 = vpop.permute.xlu0 %852
        %854 = vrot.lane.b32.xlu0 %v596, 1
        %v855 = vpop.permute.xlu0 %854
        %856 = vrot.lane.b32.xlu0 %v597, 1
        %v857 = vpop.permute.xlu0 %856
        %858 = vrot.lane.b32.xlu0 %v598, 1
        %v859 = vpop.permute.xlu0 %858
        %860 = vrot.lane.b32.xlu0 %v599, 1
        %v861 = vpop.permute.xlu0 %860
        %862 = vrot.lane.b32.xlu0 %v600, 1
        %v863 = vpop.permute.xlu0 %862
        %864 = vrot.lane.b32.xlu0 %v601, 1
        %v865 = vpop.permute.xlu0 %864
        %866 = vrot.lane.b32.xlu0 %v602, 1
        %v867 = vpop.permute.xlu0 %866
        %868 = vrot.lane.b32.xlu0 %v603, 1
        %v869 = vpop.permute.xlu0 %868
        %870 = vrot.lane.b32.xlu0 %v604, 1
        %v871 = vpop.permute.xlu0 %870
        %872 = vrot.lane.b32.xlu0 %v605, 1
        %v873 = vpop.permute.xlu0 %872
        %874 = vrot.lane.b32.xlu0 %v606, 1
        %v875 = vpop.permute.xlu0 %874
        %876 = vrot.lane.b32.xlu0 %v607, 1
        %v877 = vpop.permute.xlu0 %876
        %878 = vrot.lane.b32.xlu0 %v608, 1
        %v879 = vpop.permute.xlu0 %878
        %880 = vrot.lane.b32.xlu0 %v609, 1
        %v881 = vpop.permute.xlu0 %880
        %882 = vrot.lane.b32.xlu0 %v610, 1
        %v883 = vpop.permute.xlu0 %882
        %884 = vrot.lane.b32.xlu0 %v611, 1
        %v885 = vpop.permute.xlu0 %884
        %886 = vrot.lane.b32.xlu0 %v612, 1
        %v887 = vpop.permute.xlu0 %886
        %888 = vrot.lane.b32.xlu0 %v613, 1
        %v889 = vpop.permute.xlu0 %888
        %890 = vrot.lane.b32.xlu0 %v614, 1
        %v891 = vpop.permute.xlu0 %890
        %892 = vrot.lane.b32.xlu0 %v615, 1
        %v893 = vpop.permute.xlu0 %892
        %894 = vrot.lane.b32.xlu0 %v616, 1
        %v895 = vpop.permute.xlu0 %894
        %896 = vrot.lane.b32.xlu0 %v617, 1
        %v897 = vpop.permute.xlu0 %896
        %898 = vrot.lane.b32.xlu0 %v618, 1
        %v899 = vpop.permute.xlu0 %898
        %900 = vrot.lane.b32.xlu0 %v619, 1
        %v901 = vpop.permute.xlu0 %900
        %902 = vrot.lane.b32.xlu0 %v620, 1
        %v903 = vpop.permute.xlu0 %902
        %904 = vrot.lane.b32.xlu0 %v621, 1
        %v905 = vpop.permute.xlu0 %904
        %906 = vrot.lane.b32.xlu0 %v622, 1
        %v907 = vpop.permute.xlu0 %906
        %908 = vrot.lane.b32.xlu0 %v623, 1
        %v909 = vpop.permute.xlu0 %908
        %910 = vrot.lane.b32.xlu0 %v624, 1
        %v911 = vpop.permute.xlu0 %910
        %912 = vrot.lane.b32.xlu0 %v625, 1
        %v913 = vpop.permute.xlu0 %912
        %vm1010 = vcmask 7168
        %v1011 = vsel %vm1010, 0.0, %v723
        %v1012 = vsel %vm1010, 0.0, %v725
        %v1013 = vsel %vm1010, 0.0, %v727
        %v1014 = vsel %vm1010, 0.0, %v729
        %v1015 = vsel %vm1010, 0.0, %v731
        %v1016 = vsel %vm1010, 0.0, %v733
        %v1017 = vsel %vm1010, 0.0, %v735
        %v1018 = vsel %vm1010, 0.0, %v737
        %v1019 = vsel %vm1010, 0.0, %v739
        %v1020 = vsel %vm1010, 0.0, %v741
        %v1021 = vsel %vm1010, 0.0, %v743
        %v1022 = vsel %vm1010, 0.0, %v745
        %v1023 = vsel %vm1010, 0.0, %v747
        %v1024 = vsel %vm1010, 0.0, %v749
        %v1025 = vsel %vm1010, 0.0, %v751
        %v1026 = vsel %vm1010, 0.0, %v753
        %v1027 = vsel %vm1010, 0.0, %v755
        %v1028 = vsel %vm1010, 0.0, %v757
        %v1029 = vsel %vm1010, 0.0, %v759
        %v1030 = vsel %vm1010, 0.0, %v761
        %v1031 = vsel %vm1010, 0.0, %v763
        %v1032 = vsel %vm1010, 0.0, %v765
        %v1033 = vsel %vm1010, 0.0, %v767
        %v1034 = vsel %vm1010, 0.0, %v769
        %v1035 = vsel %vm1010, 0.0, %v771
        %v1036 = vsel %vm1010, 0.0, %v773
        %v1037 = vsel %vm1010, 0.0, %v775
        %v1038 = vsel %vm1010, 0.0, %v777
        %v1039 = vsel %vm1010, 0.0, %v779
        %v1040 = vsel %vm1010, 0.0, %v781
        %v1041 = vsel %vm1010, 0.0, %v783
        %v1042 = vsel %vm1010, 0.0, %v785
        %v1043 = vsel %vm1010, 0.0, %v787
        %v1044 = vsel %vm1010, 0.0, %v789
        %v1045 = vsel %vm1010, 0.0, %v791
        %v1046 = vsel %vm1010, 0.0, %v793
        %v1047 = vsel %vm1010, 0.0, %v795
        %v1048 = vsel %vm1010, 0.0, %v797
        %v1049 = vsel %vm1010, 0.0, %v799
        %v1050 = vsel %vm1010, 0.0, %v801
        %v1051 = vsel %vm1010, 0.0, %v803
        %v1052 = vsel %vm1010, 0.0, %v805
        %v1053 = vsel %vm1010, 0.0, %v807
        %v1054 = vsel %vm1010, 0.0, %v809
        %v1055 = vsel %vm1010, 0.0, %v811
        %v1056 = vsel %vm1010, 0.0, %v813
        %v1057 = vsel %vm1010, 0.0, %v815
        %v1058 = vsel %vm1010, 0.0, %v817
        %v1059 = vsel %vm1010, 0.0, %v819
        %v1060 = vsel %vm1010, 0.0, %v821
        %v1061 = vsel %vm1010, 0.0, %v823
        %v1062 = vsel %vm1010, 0.0, %v825
        %v1063 = vsel %vm1010, 0.0, %v827
        %v1064 = vsel %vm1010, 0.0, %v829
        %v1065 = vsel %vm1010, 0.0, %v831
        %v1066 = vsel %vm1010, 0.0, %v833
        %v1067 = vsel %vm1010, 0.0, %v835
        %v1068 = vsel %vm1010, 0.0, %v837
        %v1069 = vsel %vm1010, 0.0, %v839
        %v1070 = vsel %vm1010, 0.0, %v841
        %v1071 = vsel %vm1010, 0.0, %v843
        %v1072 = vsel %vm1010, 0.0, %v845
        %v1073 = vsel %vm1010, 0.0, %v847
        %v1074 = vsel %vm1010, 0.0, %v849
        %v1075 = vsel %vm1010, 0.0, %v851
        %v1076 = vsel %vm1010, 0.0, %v853
        %v1077 = vsel %vm1010, 0.0, %v855
        %v1078 = vsel %vm1010, 0.0, %v857
        %v1079 = vsel %vm1010, 0.0, %v859
        %v1080 = vsel %vm1010, 0.0, %v861
        %v1081 = vsel %vm1010, 0.0, %v863
        %v1082 = vsel %vm1010, 0.0, %v865
        %v1083 = vsel %vm1010, 0.0, %v867
        %v1084 = vsel %vm1010, 0.0, %v869
        %v1085 = vsel %vm1010, 0.0, %v871
        %v1086 = vsel %vm1010, 0.0, %v873
        %v1087 = vsel %vm1010, 0.0, %v875
        %v1088 = vsel %vm1010, 0.0, %v877
        %v1089 = vsel %vm1010, 0.0, %v879
        %v1090 = vsel %vm1010, 0.0, %v881
        %v1091 = vsel %vm1010, 0.0, %v883
        %v1092 = vsel %vm1010, 0.0, %v885
        %v1093 = vsel %vm1010, 0.0, %v887
        %v1094 = vsel %vm1010, 0.0, %v889
        %v1095 = vsel %vm1010, 0.0, %v891
        %v1096 = vsel %vm1010, 0.0, %v893
        %v1097 = vsel %vm1010, 0.0, %v895
        %v1098 = vsel %vm1010, 0.0, %v897
        %v1099 = vsel %vm1010, 0.0, %v899
        %v1100 = vsel %vm1010, 0.0, %v901
        %v1101 = vsel %vm1010, 0.0, %v903
        %v1102 = vsel %vm1010, 0.0, %v905
        %v1103 = vsel %vm1010, 0.0, %v907
        %v1104 = vsel %vm1010, 0.0, %v909
        %v1105 = vsel %vm1010, 0.0, %v911
        %v1106 = vsel %vm1010, 0.0, %v913
        %vm1107 = vcmask 793600
        %v1108 = vsel %vm1107, %v1011, 0.0
        %v1109 = vsel %vm1107, %v1012, 0.0
        %v1110 = vsel %vm1107, %v1013, 0.0
        %v1111 = vsel %vm1107, %v1014, 0.0
        %v1112 = vsel %vm1107, %v1015, 0.0
        %v1113 = vsel %vm1107, %v1016, 0.0
        %v1114 = vsel %vm1107, %v1017, 0.0
        %v1115 = vsel %vm1107, %v1018, 0.0
        %v1116 = vsel %vm1107, %v1019, 0.0
        %v1117 = vsel %vm1107, %v1020, 0.0
        %v1118 = vsel %vm1107, %v1021, 0.0
        %v1119 = vsel %vm1107, %v1022, 0.0
        %v1120 = vsel %vm1107, %v1023, 0.0
        %v1121 = vsel %vm1107, %v1024, 0.0
        %v1122 = vsel %vm1107, %v1025, 0.0
        %v1123 = vsel %vm1107, %v1026, 0.0
        %v1124 = vsel %vm1107, %v1027, 0.0
        %v1125 = vsel %vm1107, %v1028, 0.0
        %v1126 = vsel %vm1107, %v1029, 0.0
        %v1127 = vsel %vm1107, %v1030, 0.0
        %v1128 = vsel %vm1107, %v1031, 0.0
        %v1129 = vsel %vm1107, %v1032, 0.0
        %v1130 = vsel %vm1107, %v1033, 0.0
        %v1131 = vsel %vm1107, %v1034, 0.0
        %v1132 = vsel %vm1107, %v1035, 0.0
        %v1133 = vsel %vm1107, %v1036, 0.0
        %v1134 = vsel %vm1107, %v1037, 0.0
        %v1135 = vsel %vm1107, %v1038, 0.0
        %v1136 = vsel %vm1107, %v1039, 0.0
        %v1137 = vsel %vm1107, %v1040, 0.0
        %v1138 = vsel %vm1107, %v1041, 0.0
        %v1139 = vsel %vm1107, %v1042, 0.0
        %v1140 = vsel %vm1107, %v1043, 0.0
        %v1141 = vsel %vm1107, %v1044, 0.0
        %v1142 = vsel %vm1107, %v1045, 0.0
        %v1143 = vsel %vm1107, %v1046, 0.0
        %v1144 = vsel %vm1107, %v1047, 0.0
        %v1145 = vsel %vm1107, %v1048, 0.0
        %v1146 = vsel %vm1107, %v1049, 0.0
        %v1147 = vsel %vm1107, %v1050, 0.0
        %v1148 = vsel %vm1107, %v1051, 0.0
        %v1149 = vsel %vm1107, %v1052, 0.0
        %v1150 = vsel %vm1107, %v1053, 0.0
        %v1151 = vsel %vm1107, %v1054, 0.0
        %v1152 = vsel %vm1107, %v1055, 0.0
        %v1153 = vsel %vm1107, %v1056, 0.0
        %v1154 = vsel %vm1107, %v1057, 0.0
        %v1155 = vsel %vm1107, %v1058, 0.0
        %v1156 = vsel %vm1107, %v1059, 0.0
        %v1157 = vsel %vm1107, %v1060, 0.0
        %v1158 = vsel %vm1107, %v1061, 0.0
        %v1159 = vsel %vm1107, %v1062, 0.0
        %v1160 = vsel %vm1107, %v1063, 0.0
        %v1161 = vsel %vm1107, %v1064, 0.0
        %v1162 = vsel %vm1107, %v1065, 0.0
        %v1163 = vsel %vm1107, %v1066, 0.0
        %v1164 = vsel %vm1107, %v1067, 0.0
        %v1165 = vsel %vm1107, %v1068, 0.0
        %v1166 = vsel %vm1107, %v1069, 0.0
        %v1167 = vsel %vm1107, %v1070, 0.0
        %v1168 = vsel %vm1107, %v1071, 0.0
        %v1169 = vsel %vm1107, %v1072, 0.0
        %v1170 = vsel %vm1107, %v1073, 0.0
        %v1171 = vsel %vm1107, %v1074, 0.0
        %v1172 = vsel %vm1107, %v1075, 0.0
        %v1173 = vsel %vm1107, %v1076, 0.0
        %v1174 = vsel %vm1107, %v1077, 0.0
        %v1175 = vsel %vm1107, %v1078, 0.0
        %v1176 = vsel %vm1107, %v1079, 0.0
        %v1177 = vsel %vm1107, %v1080, 0.0
        %v1178 = vsel %vm1107, %v1081, 0.0
        %v1179 = vsel %vm1107, %v1082, 0.0
        %v1180 = vsel %vm1107, %v1083, 0.0
        %v1181 = vsel %vm1107, %v1084, 0.0
        %v1182 = vsel %vm1107, %v1085, 0.0
        %v1183 = vsel %vm1107, %v1086, 0.0
        %v1184 = vsel %vm1107, %v1087, 0.0
        %v1185 = vsel %vm1107, %v1088, 0.0
        %v1186 = vsel %vm1107, %v1089, 0.0
        %v1187 = vsel %vm1107, %v1090, 0.0
        %v1188 = vsel %vm1107, %v1091, 0.0
        %v1189 = vsel %vm1107, %v1092, 0.0
        %v1190 = vsel %vm1107, %v1093, 0.0
        %v1191 = vsel %vm1107, %v1094, 0.0
        %v1192 = vsel %vm1107, %v1095, 0.0
        %v1193 = vsel %vm1107, %v1096, 0.0
        %v1194 = vsel %vm1107, %v1097, 0.0
        %v1195 = vsel %vm1107, %v1098, 0.0
        %v1196 = vsel %vm1107, %v1099, 0.0
        %v1197 = vsel %vm1107, %v1100, 0.0
        %v1198 = vsel %vm1107, %v1101, 0.0
        %v1199 = vsel %vm1107, %v1102, 0.0
        %v1200 = vsel %vm1107, %v1103, 0.0
        %v1201 = vsel %vm1107, %v1104, 0.0
        %v1202 = vsel %vm1107, %v1105, 0.0
        %v1203 = vsel %vm1107, %v1106, 0.0
        %s1204 = scalar_lea.vmem [#allocation2], 8
        %vm1205 = vcmask 796672
        %1206 = vst.msk [vmem:[%s1204] sm:$0x7] %vm1205, %v1108
        %1207 = vst.msk [vmem:[%s1204 + $0x8] sm:$0x7] %vm1205, %v1109
        %1208 = vst.msk [vmem:[%s1204 + $0x10] sm:$0x7] %vm1205, %v1110
        %1209 = vst.msk [vmem:[%s1204 + $0x18] sm:$0x7] %vm1205, %v1111
        %1210 = vst.msk [vmem:[%s1204 + $0x20] sm:$0x7] %vm1205, %v1112
        %1211 = vst.msk [vmem:[%s1204 + $0x28] sm:$0x7] %vm1205, %v1113
        %1212 = vst.msk [vmem:[%s1204 + $0x30] sm:$0x7] %vm1205, %v1114
        %1213 = vst.msk [vmem:[%s1204 + $0x38] sm:$0x7] %vm1205, %v1115
        %1214 = vst.msk [vmem:[%s1204 + $0x40] sm:$0x7] %vm1205, %v1116
        %1215 = vst.msk [vmem:[%s1204 + $0x48] sm:$0x7] %vm1205, %v1117
        %1216 = vst.msk [vmem:[%s1204 + $0x50] sm:$0x7] %vm1205, %v1118
        %1217 = vst.msk [vmem:[%s1204 + $0x58] sm:$0x7] %vm1205, %v1119
        %1218 = vst.msk [vmem:[%s1204 + $0x60] sm:$0x7] %vm1205, %v1120
        %1219 = vst.msk [vmem:[%s1204 + $0x68] sm:$0x7] %vm1205, %v1121
        %1220 = vst.msk [vmem:[%s1204 + $0x70] sm:$0x7] %vm1205, %v1122
        %1221 = vst.msk [vmem:[%s1204 + $0x78] sm:$0x7] %vm1205, %v1123
        %1222 = vst.msk [vmem:[%s1204 + $0x80] sm:$0x7] %vm1205, %v1124
        %1223 = vst.msk [vmem:[%s1204 + $0x88] sm:$0x7] %vm1205, %v1125
        %1224 = vst.msk [vmem:[%s1204 + $0x90] sm:$0x7] %vm1205, %v1126
        %1225 = vst.msk [vmem:[%s1204 + $0x98] sm:$0x7] %vm1205, %v1127
        %1226 = vst.msk [vmem:[%s1204 + $0xa0] sm:$0x7] %vm1205, %v1128
        %1227 = vst.msk [vmem:[%s1204 + $0xa8] sm:$0x7] %vm1205, %v1129
        %1228 = vst.msk [vmem:[%s1204 + $0xb0] sm:$0x7] %vm1205, %v1130
        %1229 = vst.msk [vmem:[%s1204 + $0xb8] sm:$0x7] %vm1205, %v1131
        %1230 = vst.msk [vmem:[%s1204 + $0xc0] sm:$0x7] %vm1205, %v1132
        %1231 = vst.msk [vmem:[%s1204 + $0xc8] sm:$0x7] %vm1205, %v1133
        %1232 = vst.msk [vmem:[%s1204 + $0xd0] sm:$0x7] %vm1205, %v1134
        %1233 = vst.msk [vmem:[%s1204 + $0xd8] sm:$0x7] %vm1205, %v1135
        %1234 = vst.msk [vmem:[%s1204 + $0xe0] sm:$0x7] %vm1205, %v1136
        %1235 = vst.msk [vmem:[%s1204 + $0xe8] sm:$0x7] %vm1205, %v1137
        %1236 = vst.msk [vmem:[%s1204 + $0xf0] sm:$0x7] %vm1205, %v1138
        %1237 = vst.msk [vmem:[%s1204 + $0xf8] sm:$0x7] %vm1205, %v1139
        %1238 = vst.msk [vmem:[%s1204 + $0x100] sm:$0x7] %vm1205, %v1140
        %1239 = vst.msk [vmem:[%s1204 + $0x108] sm:$0x7] %vm1205, %v1141
        %1240 = vst.msk [vmem:[%s1204 + $0x110] sm:$0x7] %vm1205, %v1142
        %1241 = vst.msk [vmem:[%s1204 + $0x118] sm:$0x7] %vm1205, %v1143
        %1242 = vst.msk [vmem:[%s1204 + $0x120] sm:$0x7] %vm1205, %v1144
        %1243 = vst.msk [vmem:[%s1204 + $0x128] sm:$0x7] %vm1205, %v1145
        %1244 = vst.msk [vmem:[%s1204 + $0x130] sm:$0x7] %vm1205, %v1146
        %1245 = vst.msk [vmem:[%s1204 + $0x138] sm:$0x7] %vm1205, %v1147
        %1246 = vst.msk [vmem:[%s1204 + $0x140] sm:$0x7] %vm1205, %v1148
        %1247 = vst.msk [vmem:[%s1204 + $0x148] sm:$0x7] %vm1205, %v1149
        %1248 = vst.msk [vmem:[%s1204 + $0x150] sm:$0x7] %vm1205, %v1150
        %1249 = vst.msk [vmem:[%s1204 + $0x158] sm:$0x7] %vm1205, %v1151
        %1250 = vst.msk [vmem:[%s1204 + $0x160] sm:$0x7] %vm1205, %v1152
        %1251 = vst.msk [vmem:[%s1204 + $0x168] sm:$0x7] %vm1205, %v1153
        %1252 = vst.msk [vmem:[%s1204 + $0x170] sm:$0x7] %vm1205, %v1154
        %1253 = vst.msk [vmem:[%s1204 + $0x178] sm:$0x7] %vm1205, %v1155
        %1254 = vst.msk [vmem:[%s1204 + $0x180] sm:$0x7] %vm1205, %v1156
        %1255 = vst.msk [vmem:[%s1204 + $0x188] sm:$0x7] %vm1205, %v1157
        %1256 = vst.msk [vmem:[%s1204 + $0x190] sm:$0x7] %vm1205, %v1158
        %1257 = vst.msk [vmem:[%s1204 + $0x198] sm:$0x7] %vm1205, %v1159
        %1258 = vst.msk [vmem:[%s1204 + $0x1a0] sm:$0x7] %vm1205, %v1160
        %1259 = vst.msk [vmem:[%s1204 + $0x1a8] sm:$0x7] %vm1205, %v1161
        %1260 = vst.msk [vmem:[%s1204 + $0x1b0] sm:$0x7] %vm1205, %v1162
        %1261 = vst.msk [vmem:[%s1204 + $0x1b8] sm:$0x7] %vm1205, %v1163
        %1262 = vst.msk [vmem:[%s1204 + $0x1c0] sm:$0x7] %vm1205, %v1164
        %1263 = vst.msk [vmem:[%s1204 + $0x1c8] sm:$0x7] %vm1205, %v1165
        %1264 = vst.msk [vmem:[%s1204 + $0x1d0] sm:$0x7] %vm1205, %v1166
        %1265 = vst.msk [vmem:[%s1204 + $0x1d8] sm:$0x7] %vm1205, %v1167
        %1266 = vst.msk [vmem:[%s1204 + $0x1e0] sm:$0x7] %vm1205, %v1168
        %1267 = vst.msk [vmem:[%s1204 + $0x1e8] sm:$0x7] %vm1205, %v1169
        %1268 = vst.msk [vmem:[%s1204 + $0x1f0] sm:$0x7] %vm1205, %v1170
        %1269 = vst.msk [vmem:[%s1204 + $0x1f8] sm:$0x7] %vm1205, %v1171
        %1270 = vst.msk [vmem:[%s1204 + $0x200] sm:$0x7] %vm1205, %v1172
        %1271 = vst.msk [vmem:[%s1204 + $0x208] sm:$0x7] %vm1205, %v1173
        %1272 = vst.msk [vmem:[%s1204 + $0x210] sm:$0x7] %vm1205, %v1174
        %1273 = vst.msk [vmem:[%s1204 + $0x218] sm:$0x7] %vm1205, %v1175
        %1274 = vst.msk [vmem:[%s1204 + $0x220] sm:$0x7] %vm1205, %v1176
        %1275 = vst.msk [vmem:[%s1204 + $0x228] sm:$0x7] %vm1205, %v1177
        %1276 = vst.msk [vmem:[%s1204 + $0x230] sm:$0x7] %vm1205, %v1178
        %1277 = vst.msk [vmem:[%s1204 + $0x238] sm:$0x7] %vm1205, %v1179
        %1278 = vst.msk [vmem:[%s1204 + $0x240] sm:$0x7] %vm1205, %v1180
        %1279 = vst.msk [vmem:[%s1204 + $0x248] sm:$0x7] %vm1205, %v1181
        %1280 = vst.msk [vmem:[%s1204 + $0x250] sm:$0x7] %vm1205, %v1182
        %1281 = vst.msk [vmem:[%s1204 + $0x258] sm:$0x7] %vm1205, %v1183
        %1282 = vst.msk [vmem:[%s1204 + $0x260] sm:$0x7] %vm1205, %v1184
        %1283 = vst.msk [vmem:[%s1204 + $0x268] sm:$0x7] %vm1205, %v1185
        %1284 = vst.msk [vmem:[%s1204 + $0x270] sm:$0x7] %vm1205, %v1186
        %1285 = vst.msk [vmem:[%s1204 + $0x278] sm:$0x7] %vm1205, %v1187
        %1286 = vst.msk [vmem:[%s1204 + $0x280] sm:$0x7] %vm1205, %v1188
        %1287 = vst.msk [vmem:[%s1204 + $0x288] sm:$0x7] %vm1205, %v1189
        %1288 = vst.msk [vmem:[%s1204 + $0x290] sm:$0x7] %vm1205, %v1190
        %1289 = vst.msk [vmem:[%s1204 + $0x298] sm:$0x7] %vm1205, %v1191
        %1290 = vst.msk [vmem:[%s1204 + $0x2a0] sm:$0x7] %vm1205, %v1192
        %1291 = vst.msk [vmem:[%s1204 + $0x2a8] sm:$0x7] %vm1205, %v1193
        %1292 = vst.msk [vmem:[%s1204 + $0x2b0] sm:$0x7] %vm1205, %v1194
        %1293 = vst.msk [vmem:[%s1204 + $0x2b8] sm:$0x7] %vm1205, %v1195
        %1294 = vst.msk [vmem:[%s1204 + $0x2c0] sm:$0x7] %vm1205, %v1196
        %1295 = vst.msk [vmem:[%s1204 + $0x2c8] sm:$0x7] %vm1205, %v1197
        %1296 = vst.msk [vmem:[%s1204 + $0x2d0] sm:$0x7] %vm1205, %v1198
        %1297 = vst.msk [vmem:[%s1204 + $0x2d8] sm:$0x7] %vm1205, %v1199
        %1298 = vst.msk [vmem:[%s1204 + $0x2e0] sm:$0x7] %vm1205, %v1200
        %1299 = vst.msk [vmem:[%s1204 + $0x2e8] sm:$0x7] %vm1205, %v1201
        %1300 = vst.msk [vmem:[%s1204 + $0x2f0] sm:$0x7] %vm1205, %v1202
        %1301 = vst.msk [vmem:[%s1204 + $0x2f8] sm:$0x7] %vm1205, %v1203
        %v1302 = vld [vmem:[%s1] sm:$0xff]
        %v1303 = vld [vmem:[%s1 + $0x8] sm:$0xff]
        %v1304 = vld [vmem:[%s2] sm:$0xff]
        %v1305 = vld [vmem:[%s2 + $0x8] sm:$0xff]
        %v1306 = vld [vmem:[%s5] sm:$0xff]
        %v1307 = vld [vmem:[%s5 + $0x8] sm:$0xff]
        %v1308 = vld [vmem:[%s5 + $0x10] sm:$0xff]
        %v1309 = vld [vmem:[%s5 + $0x18] sm:$0xff]
        %v1310 = vld [vmem:[%s5 + $0x20] sm:$0xff]
        %v1311 = vld [vmem:[%s5 + $0x28] sm:$0xff]
        %v1312 = vld [vmem:[%s5 + $0x30] sm:$0xff]
        %v1313 = vld [vmem:[%s5 + $0x38] sm:$0xff]
        %v1314 = vld [vmem:[%s5 + $0x40] sm:$0xff]
        %v1315 = vld [vmem:[%s5 + $0x48] sm:$0xff]
        %v1316 = vld [vmem:[%s5 + $0x50] sm:$0xff]
        %v1317 = vld [vmem:[%s5 + $0x58] sm:$0xff]
        loop: start=0, step=1, limit=48
        $region57: #{leaf_classify_forward.1} parent=55 // loop_pre_header
          _
        $region58: #{leaf_classify_forward.1} parent=55 // loop_header
          %s1319 = sphi 0, %s1323
          %p1320 = scmp.ge.s32.totalorder %s1319, 48
        $region59: #{leaf_classify_forward.1} parent=55 // loop_header_branch
          %1322 = sbr.rel (%p1320) target = $region63
        $region60: #{leaf_classify_forward.1} parent=55 // loop_body
          %s1324 = smul.u32 %s1319, 2
          %s1325 = smul.u32 %s1324, 8
          %s1326 = scalar_lea.vmem [#allocation2], %s1325
          %v1327 = vld [vmem:[%s1326] sm:$0xff]
          %v1328 = vld [vmem:[%s1326 + $0x8] sm:$0xff]
          %v1329 = vld [vmem:[%s1326 + $0x10] sm:$0xff]
          %v1330 = vld [vmem:[%s1326 + $0x18] sm:$0xff]
          %1334 = vrot.lane.b32.xlu0 %v1327, 127
          %v1335 = vpop.permute.xlu0 %1334
          %1336 = vrot.lane.b32.xlu0 %v1328, 127
          %v1337 = vpop.permute.xlu0 %1336
          %1338 = vrot.lane.b32.xlu0 %v1329, 127
          %v1339 = vpop.permute.xlu0 %1338
          %1343 = vrot.lane.b32.xlu0 %v1327, 126
          %v1344 = vpop.permute.xlu0 %1343
          %1345 = vrot.lane.b32.xlu0 %v1328, 126
          %v1346 = vpop.permute.xlu0 %1345
          %1347 = vrot.lane.b32.xlu0 %v1329, 126
          %v1348 = vpop.permute.xlu0 %1347
          %vm1352 = vcmask 588800
          %v1354 = vsel %vm1352, %v1302, 0
          %v1357 = vsel %vm1352, %v1303, 0
          %1359 = vmatprep.subr.mxu0 0.0
          %1360 = vmatpush1.msra.mxu0 %v1327
          %1361 = vmatprep.subr.mxu0 0.0
          %1362 = vmatpush1.msra.mxu0 %v1328
          %1363 = vmatprep.subr.mxu0 0.0
          %1364 = vmatpush1.msra.mxu0 %v1329
          %1365 = vmatprep.subr.mxu0 0.0
          %1366 = vmatpush1.msra.mxu0 %v1335
          %1367 = vmatprep.subr.mxu0 0.0
          %1368 = vmatpush1.msra.mxu0 %v1337
          %1369 = vmatprep.subr.mxu0 0.0
          %1370 = vmatpush1.msra.mxu0 %v1339
          %1371 = vmatprep.subr.mxu0 0.0
          %1372 = vmatpush1.msra.mxu0 %v1344
          %1373 = vmatprep.subr.mxu0 0.0
          %1374 = vmatpush1.msra.mxu0 %v1346
          %1375 = vmatprep.subr.mxu0 0.0
          %1376 = vmatpush1.msra.mxu0 %v1348
          %1377 = vmatprep.subr.mxu0 0.0
          %1378 = vmatpush1.msra.mxu0 0.0
          %1379 = vmatprep.subr.mxu0 0.0
          %1380 = vmatpush1.msra.mxu0 0.0
          %1381 = vmatprep.subr.mxu0 0.0
          %1382 = vmatpush1.msra.mxu0 0.0
          %1383 = vmatprep.subr.mxu0 0.0
          %1384 = vmatpush1.msra.mxu0 0.0
          %1385 = vmatprep.subr.mxu0 0.0
          %1386 = vmatpush1.msra.mxu0 0.0
          %1387 = vmatprep.subr.mxu0 0.0
          %1388 = vmatpush1.msra.mxu0 0.0
          %1389 = vmatprep.subr.mxu0 0.0
          %1390 = vmatpush1.msra.mxu0 0.0
          %1391 = vmatprep.subr.mxu0 0.0
          %1392 = vmatpush1.msra.mxu0 0.0
          %1393 = vmatprep.subr.mxu0 0.0
          %1394 = vmatpush1.msra.mxu0 0.0
          %1395 = vmatprep.subr.mxu0 0.0
          %1396 = vmatpush1.msra.mxu0 0.0
          %1397 = vmatprep.subr.mxu0 0.0
          %1398 = vmatpush1.msra.mxu0 0.0
          %1399 = vmatprep.subr.mxu0 0.0
          %1400 = vmatpush1.msra.mxu0 0.0
          %1401 = vmatprep.subr.mxu0 0.0
          %1402 = vmatpush1.msra.mxu0 0.0
          %1403 = vmatprep.subr.mxu0 0.0
          %1404 = vmatpush1.msra.mxu0 0.0
          %1405 = vmatprep.subr.mxu0 0.0
          %1406 = vmatpush1.msra.mxu0 0.0
          %1407 = vmatprep.subr.mxu0 0.0
          %1408 = vmatpush1.msra.mxu0 0.0
          %1409 = vmatprep.subr.mxu0 0.0
          %1410 = vmatpush1.msra.mxu0 0.0
          %1411 = vmatprep.subr.mxu0 0.0
          %1412 = vmatpush1.msra.mxu0 0.0
          %1413 = vmatprep.subr.mxu0 0.0
          %1414 = vmatpush1.msra.mxu0 0.0
          %1415 = vmatprep.subr.mxu0 0.0
          %1416 = vmatpush1.msra.mxu0 0.0
          %1417 = vmatprep.subr.mxu0 0.0
          %1418 = vmatpush1.msra.mxu0 0.0
          %1419 = vmatprep.subr.mxu0 0.0
          %1420 = vmatpush1.msra.mxu0 0.0
          %1421 = vmatprep.subr.mxu0 0.0
          %1422 = vmatpush1.msra.mxu0 0.0
          %1423 = vmatprep.mubr.f32.mxu0 0.0
          %1424 = vmatmul.mubr.f32.gmra.mrb[0].mxu0 %v1354
          %v1425 = vpop.f32.mrb[0].mxu0
          %v1426 = vadd.f32 0.0, %v1425
          %v1427 = vpop.f32.mrb[0].mxu0
          %1428 = vmatprep.mubr.f32.mxu0 0.0
          %1429 = vmatmul.mubr.f32.gmra.mrb[0].mxu0 %v1357
          %v1430 = vpop.f32.mrb[0].mxu0
          %v1431 = vadd.f32 0.0, %v1430
          %v1432 = vpop.f32.mrb[0].mxu0
          %1433 = vdwg.mxu0
          %1435 = vrot.lane.b32.xlu0 %v1330, 127
          %v1436 = vpop.permute.xlu0 %1435
          %1438 = vrot.lane.b32.xlu0 %v1330, 126
          %v1439 = vpop.permute.xlu0 %1438
          %1441 = vmatprep.subr.mxu0 0.0
          %1442 = vmatpush1.msra.mxu0 %v1328
          %1443 = vmatprep.subr.mxu0 0.0
          %1444 = vmatpush1.msra.mxu0 %v1329
          %1445 = vmatprep.subr.mxu0 0.0
          %1446 = vmatpush1.msra.mxu0 %v1330
          %1447 = vmatprep.subr.mxu0 0.0
          %1448 = vmatpush1.msra.mxu0 %v1337
          %1449 = vmatprep.subr.mxu0 0.0
          %1450 = vmatpush1.msra.mxu0 %v1339
          %1451 = vmatprep.subr.mxu0 0.0
          %1452 = vmatpush1.msra.mxu0 %v1436
          %1453 = vmatprep.subr.mxu0 0.0
          %1454 = vmatpush1.msra.mxu0 %v1346
          %1455 = vmatprep.subr.mxu0 0.0
          %1456 = vmatpush1.msra.mxu0 %v1348
          %1457 = vmatprep.subr.mxu0 0.0
          %1458 = vmatpush1.msra.mxu0 %v1439
          %1459 = vmatprep.subr.mxu0 0.0
          %1460 = vmatpush1.msra.mxu0 0.0
          %1461 = vmatprep.subr.mxu0 0.0
          %1462 = vmatpush1.msra.mxu0 0.0
          %1463 = vmatprep.subr.mxu0 0.0
          %1464 = vmatpush1.msra.mxu0 0.0
          %1465 = vmatprep.subr.mxu0 0.0
          %1466 = vmatpush1.msra.mxu0 0.0
          %1467 = vmatprep.subr.mxu0 0.0
          %1468 = vmatpush1.msra.mxu0 0.0
          %1469 = vmatprep.subr.mxu0 0.0
          %1470 = vmatpush1.msra.mxu0 0.0
          %1471 = vmatprep.subr.mxu0 0.0
          %1472 = vmatpush1.msra.mxu0 0.0
          %1473 = vmatprep.subr.mxu0 0.0
          %1474 = vmatpush1.msra.mxu0 0.0
          %1475 = vmatprep.subr.mxu0 0.0
          %1476 = vmatpush1.msra.mxu0 0.0
          %1477 = vmatprep.subr.mxu0 0.0
          %1478 = vmatpush1.msra.mxu0 0.0
          %1479 = vmatprep.subr.mxu0 0.0
          %1480 = vmatpush1.msra.mxu0 0.0
          %1481 = vmatprep.subr.mxu0 0.0
          %1482 = vmatpush1.msra.mxu0 0.0
          %1483 = vmatprep.subr.mxu0 0.0
          %1484 = vmatpush1.msra.mxu0 0.0
          %1485 = vmatprep.subr.mxu0 0.0
          %1486 = vmatpush1.msra.mxu0 0.0
          %1487 = vmatprep.subr.mxu0 0.0
          %1488 = vmatpush1.msra.mxu0 0.0
          %1489 = vmatprep.subr.mxu0 0.0
          %1490 = vmatpush1.msra.mxu0 0.0
          %1491 = vmatprep.subr.mxu0 0.0
          %1492 = vmatpush1.msra.mxu0 0.0
          %1493 = vmatprep.subr.mxu0 0.0
          %1494 = vmatpush1.msra.mxu0 0.0
          %1495 = vmatprep.subr.mxu0 0.0
          %1496 = vmatpush1.msra.mxu0 0.0
          %1497 = vmatprep.subr.mxu0 0.0
          %1498 = vmatpush1.msra.mxu0 0.0
          %1499 = vmatprep.subr.mxu0 0.0
          %1500 = vmatpush1.msra.mxu0 0.0
          %1501 = vmatprep.subr.mxu0 0.0
          %1502 = vmatpush1.msra.mxu0 0.0
          %1503 = vmatprep.subr.mxu0 0.0
          %1504 = vmatpush1.msra.mxu0 0.0
          %1505 = vmatprep.mubr.f32.mxu0 0.0
          %1506 = vmatmul.mubr.f32.gmra.mrb[0].mxu0 %v1354
          %v1507 = vpop.f32.mrb[0].mxu0
          %v1508 = vadd.f32 0.0, %v1507
          %v1509 = vpop.f32.mrb[0].mxu0
          %1510 = vmatprep.mubr.f32.mxu0 0.0
          %1511 = vmatmul.mubr.f32.gmra.mrb[0].mxu0 %v1357
          %v1512 = vpop.f32.mrb[0].mxu0
          %v1513 = vadd.f32 0.0, %v1512
          %v1514 = vpop.f32.mrb[0].mxu0
          %1515 = vdwg.mxu0
          %v1516 = vmax.f32 %v1426, %v1508
          %v1517 = vmax.f32 %v1431, %v1513
          %vm1518 = vcmask 785408
          %v1520 = vsel %vm1518, %v1516, 0
          %v1523 = vsel %vm1518, %v1517, 0
          %1525 = vmatprep.subr.mxu0 0.0
          %1526 = vmatpush1.msra.mxu0 %v1306
          %1527 = vmatprep.subr.mxu0 0.0
          %1528 = vmatpush1.msra.mxu0 %v1307
          %1529 = vmatprep.subr.mxu0 0.0
          %1530 = vmatpush1.msra.mxu0 %v1308
          %1531 = vmatprep.subr.mxu0 0.0
          %1532 = vmatpush1.msra.mxu0 %v1309
          %1533 = vmatprep.subr.mxu0 0.0
          %1534 = vmatpush1.msra.mxu0 %v1310
          %1535 = vmatprep.subr.mxu0 0.0
          %1536 = vmatpush1.msra.mxu0 %v1311
          %1537 = vmatprep.subr.mxu0 0.0
          %1538 = vmatpush1.msra.mxu0 %v1312
          %1539 = vmatprep.subr.mxu0 0.0
          %1540 = vmatpush1.msra.mxu0 %v1313
          %1541 = vmatprep.subr.mxu0 0.0
          %1542 = vmatpush1.msra.mxu0 %v1314
          %1543 = vmatprep.subr.mxu0 0.0
          %1544 = vmatpush1.msra.mxu0 %v1315
          %1545 = vmatprep.subr.mxu0 0.0
          %1546 = vmatpush1.msra.mxu0 %v1316
          %1547 = vmatprep.subr.mxu0 0.0
          %1548 = vmatpush1.msra.mxu0 %v1317
          %1549 = vmatprep.subr.mxu0 0.0
          %1550 = vmatpush1.msra.mxu0 0.0
          %1551 = vmatprep.subr.mxu0 0.0
          %1552 = vmatpush1.msra.mxu0 0.0
          %1553 = vmatprep.subr.mxu0 0.0
          %1554 = vmatpush1.msra.mxu0 0.0
          %1555 = vmatprep.subr.mxu0 0.0
          %1556 = vmatpush1.msra.mxu0 0.0
          %1557 = vmatprep.subr.mxu0 0.0
          %1558 = vmatpush1.msra.mxu0 0.0
          %1559 = vmatprep.subr.mxu0 0.0
          %1560 = vmatpush1.msra.mxu0 0.0
          %1561 = vmatprep.subr.mxu0 0.0
          %1562 = vmatpush1.msra.mxu0 0.0
          %1563 = vmatprep.subr.mxu0 0.0
          %1564 = vmatpush1.msra.mxu0 0.0
          %1565 = vmatprep.subr.mxu0 0.0
          %1566 = vmatpush1.msra.mxu0 0.0
          %1567 = vmatprep.subr.mxu0 0.0
          %1568 = vmatpush1.msra.mxu0 0.0
          %1569 = vmatprep.subr.mxu0 0.0
          %1570 = vmatpush1.msra.mxu0 0.0
          %1571 = vmatprep.subr.mxu0 0.0
          %1572 = vmatpush1.msra.mxu0 0.0
          %1573 = vmatprep.subr.mxu0 0.0
          %1574 = vmatpush1.msra.mxu0 0.0
          %1575 = vmatprep.subr.mxu0 0.0
          %1576 = vmatpush1.msra.mxu0 0.0
          %1577 = vmatprep.subr.mxu0 0.0
          %1578 = vmatpush1.msra.mxu0 0.0
          %1579 = vmatprep.subr.mxu0 0.0
          %1580 = vmatpush1.msra.mxu0 0.0
          %1581 = vmatprep.subr.mxu0 0.0
          %1582 = vmatpush1.msra.mxu0 0.0
          %1583 = vmatprep.subr.mxu0 0.0
          %1584 = vmatpush1.msra.mxu0 0.0
          %1585 = vmatprep.subr.mxu0 0.0
          %1586 = vmatpush1.msra.mxu0 0.0
          %1587 = vmatprep.subr.mxu0 0.0
          %1588 = vmatpush1.msra.mxu0 0.0
          %1589 = vmatprep.mubr.f32.mxu0 0.0
          %1590 = vmatmul.mubr.f32.gmra.mrb[0].mxu0 %v1520
          %v1591 = vpop.f32.mrb[0].mxu0
          %v1592 = vadd.f32 0.0, %v1591
          %v1593 = vpop.f32.mrb[0].mxu0
          %1594 = vmatprep.mubr.f32.mxu0 0.0
          %1595 = vmatmul.mubr.f32.gmra.mrb[0].mxu0 %v1523
          %v1596 = vpop.f32.mrb[0].mxu0
          %v1597 = vadd.f32 0.0, %v1596
          %v1598 = vpop.f32.mrb[0].mxu0
          %1599 = vdwg.mxu0
          %1602 = vrot.lane.b32.xlu0 %v1592, 80
          %v1603 = vpop.permute.xlu0 %1602
          %1604 = vrot.lane.b32.xlu0 %v1597, 80
          %v1605 = vpop.permute.xlu0 %1604
          %v1608 = vmax.f32 %v1592, %v1603
          %v1609 = vmax.f32 %v1597, %v1605
          %1611 = vset.pattern.permute.xlu0 0
          %1612 = vperm.xlu0 %1611, %v1304
          %v1613 = vpop.permute.xlu0 %1612
          %1616 = vset.pattern.permute.xlu0 0
          %1617 = vperm.xlu0 %1616, %v1305
          %v1618 = vpop.permute.xlu0 %1617
          %v1620 = vadd.f32 %v1608, %v1613
          %v1621 = vadd.f32 %v1609, %v1618
          %v1622 = vmax.f32 %v1620, 0.0
          %v1623 = vmax.f32 %v1621, 0.0
          %1626 = vrot.lane.b32.xlu0 %v1622, 1
          %v1627 = vpop.permute.xlu0 %1626
          %1628 = vrot.lane.b32.xlu0 %v1623, 1
          %v1629 = vpop.permute.xlu0 %1628
          %v1632 = vsel %vm1010, 0.0, %v1627
          %v1633 = vsel %vm1010, 0.0, %v1629
          %vm1634 = vcmask 400384
          %v1635 = vsel %vm1634, %v1632, 0.0
          %v1636 = vsel %vm1634, %v1633, 0.0
          %s1637 = sadd.s32 %s1319, 1
          %s1638 = smul.u32 %s1637, 16
          %s1639 = scalar_lea.vmem [#allocation3], %s1638
          %1640 = vst.msk [vmem:[%s1639] sm:$0xff] %vm429, %v1635
          %1641 = vst.msk [vmem:[%s1639 + $0x8] sm:$0xff] %vm429, %v1636
        $region61: #{leaf_classify_forward.1} parent=55 // loop_footer
          %s1323 = sadd.s32 1, %s1319
        $region62: #{leaf_classify_forward.1} parent=55 // loop_footer_branch
          %1318 = sbr.rel target = $region58
        $region63: #{leaf_classify_forward.1} parent=55 // loop_exit
          _
        %v1642 = vld [vmem:[%s3] sm:$0xff]
        %v1643 = vld [vmem:[%s3 + $0x8] sm:$0xff]
        %v1644 = vld [vmem:[%s3 + $0x10] sm:$0xff]
        %v1645 = vld [vmem:[%s3 + $0x18] sm:$0xff]
        %v1646 = vld [vmem:[%s4] sm:$0xff]
        %v1647 = vld [vmem:[%s4 + $0x8] sm:$0xff]
        %v1648 = vld [vmem:[%s6] sm:$0xff]
        %v1649 = vld [vmem:[%s6 + $0x8] sm:$0xff]
        %v1650 = vld [vmem:[%s6 + $0x10] sm:$0xff]
        %v1651 = vld [vmem:[%s6 + $0x18] sm:$0xff]
        %v1652 = vld [vmem:[%s6 + $0x20] sm:$0xff]
        %v1653 = vld [vmem:[%s6 + $0x28] sm:$0xff]
        loop: start=0, step=1, limit=24
        $region64: #{leaf_classify_forward.1} parent=55 // loop_pre_header
          _
        $region65: #{leaf_classify_forward.1} parent=55 // loop_header
          %s1655 = sphi 0, %s1659
          %p1656 = scmp.ge.s32.totalorder %s1655, 24
        $region66: #{leaf_classify_forward.1} parent=55 // loop_header_branch
          %1658 = sbr.rel (%p1656) target = $region70
        $region67: #{leaf_classify_forward.1} parent=55 // loop_body
          %s1660 = smul.u32 %s1655, 2
          %s1661 = smul.u32 %s1660, 16
          %s1662 = scalar_lea.vmem [#allocation3], %s1661
          %v1663 = vld [vmem:[%s1662] sm:$0xff]
          %v1664 = vld [vmem:[%s1662 + $0x8] sm:$0xff]
          %v1665 = vld [vmem:[%s1662 + $0x10] sm:$0xff]
          %v1666 = vld [vmem:[%s1662 + $0x18] sm:$0xff]
          %v1667 = vld [vmem:[%s1662 + $0x20] sm:$0xff]
          %v1668 = vld [vmem:[%s1662 + $0x28] sm:$0xff]
          %v1669 = vld [vmem:[%s1662 + $0x30] sm:$0xff]
          %v1670 = vld [vmem:[%s1662 + $0x38] sm:$0xff]
          %1677 = vrot.lane.b32.xlu0 %v1663, 127
          %v1678 = vpop.permute.xlu0 %1677
          %1679 = vrot.lane.b32.xlu0 %v1664, 127
          %v1680 = vpop.permute.xlu0 %1679
          %1681 = vrot.lane.b32.xlu0 %v1665, 127
          %v1682 = vpop.permute.xlu0 %1681
          %1683 = vrot.lane.b32.xlu0 %v1666, 127
          %v1684 = vpop.permute.xlu0 %1683
          %1685 = vrot.lane.b32.xlu0 %v1667, 127
          %v1686 = vpop.permute.xlu0 %1685
          %1687 = vrot.lane.b32.xlu0 %v1668, 127
          %v1688 = vpop.permute.xlu0 %1687
          %1695 = vrot.lane.b32.xlu0 %v1663, 126
          %v1696 = vpop.permute.xlu0 %1695
          %1697 = vrot.lane.b32.xlu0 %v1664, 126
          %v1698 = vpop.permute.xlu0 %1697
          %1699 = vrot.lane.b32.xlu0 %v1665, 126
          %v1700 = vpop.permute.xlu0 %1699
          %1701 = vrot.lane.b32.xlu0 %v1666, 126
          %v1702 = vpop.permute.xlu0 %1701
          %1703 = vrot.lane.b32.xlu0 %v1667, 126
          %v1704 = vpop.permute.xlu0 %1703
          %1705 = vrot.lane.b32.xlu0 %v1668, 126
          %v1706 = vpop.permute.xlu0 %1705
          %vm1713 = vcmask 130048
          %v1715 = vsel %vm1713, %v1643, 0
          %v1718 = vsel %vm1713, %v1645, 0
          %1720 = vmatprep.subr.mxu0 0.0
          %1721 = vmatpush1.msra.mxu0 %v1663
          %1722 = vmatprep.subr.mxu0 0.0
          %1723 = vmatpush1.msra.mxu0 %v1664
          %1724 = vmatprep.subr.mxu0 0.0
          %1725 = vmatpush1.msra.mxu0 %v1665
          %1726 = vmatprep.subr.mxu0 0.0
          %1727 = vmatpush1.msra.mxu0 %v1666
          %1728 = vmatprep.subr.mxu0 0.0
          %1729 = vmatpush1.msra.mxu0 %v1667
          %1730 = vmatprep.subr.mxu0 0.0
          %1731 = vmatpush1.msra.mxu0 %v1668
          %1732 = vmatprep.subr.mxu0 0.0
          %1733 = vmatpush1.msra.mxu0 %v1678
          %1734 = vmatprep.subr.mxu0 0.0
          %1735 = vmatpush1.msra.mxu0 %v1680
          %1736 = vmatprep.subr.mxu0 0.0
          %1737 = vmatpush1.msra.mxu0 %v1682
          %1738 = vmatprep.subr.mxu0 0.0
          %1739 = vmatpush1.msra.mxu0 %v1684
          %1740 = vmatprep.subr.mxu0 0.0
          %1741 = vmatpush1.msra.mxu0 %v1686
          %1742 = vmatprep.subr.mxu0 0.0
          %1743 = vmatpush1.msra.mxu0 %v1688
          %1744 = vmatprep.subr.mxu0 0.0
          %1745 = vmatpush1.msra.mxu0 %v1696
          %1746 = vmatprep.subr.mxu0 0.0
          %1747 = vmatpush1.msra.mxu0 %v1698
          %1748 = vmatprep.subr.mxu0 0.0
          %1749 = vmatpush1.msra.mxu0 %v1700
          %1750 = vmatprep.subr.mxu0 0.0
          %1751 = vmatpush1.msra.mxu0 %v1702
          %1752 = vmatprep.subr.mxu0 0.0
          %1753 = vmatpush1.msra.mxu0 %v1704
          %1754 = vmatprep.subr.mxu0 0.0
          %1755 = vmatpush1.msra.mxu0 %v1706
          %1756 = vmatprep.subr.mxu0 0.0
          %1757 = vmatpush1.msra.mxu0 0.0
          %1758 = vmatprep.subr.mxu0 0.0
          %1759 = vmatpush1.msra.mxu0 0.0
          %1760 = vmatprep.subr.mxu0 0.0
          %1761 = vmatpush1.msra.mxu0 0.0
          %1762 = vmatprep.subr.mxu0 0.0
          %1763 = vmatpush1.msra.mxu0 0.0
          %1764 = vmatprep.subr.mxu0 0.0
          %1765 = vmatpush1.msra.mxu0 0.0
          %1766 = vmatprep.subr.mxu0 0.0
          %1767 = vmatpush1.msra.mxu0 0.0
          %1768 = vmatprep.subr.mxu0 0.0
          %1769 = vmatpush1.msra.mxu0 0.0
          %1770 = vmatprep.subr.mxu0 0.0
          %1771 = vmatpush1.msra.mxu0 0.0
          %1772 = vmatprep.subr.mxu0 0.0
          %1773 = vmatpush1.msra.mxu0 0.0
          %1774 = vmatprep.subr.mxu0 0.0
          %1775 = vmatpush1.msra.mxu0 0.0
          %1776 = vmatprep.subr.mxu0 0.0
          %1777 = vmatpush1.msra.mxu0 0.0
          %1778 = vmatprep.subr.mxu0 0.0
          %1779 = vmatpush1.msra.mxu0 0.0
          %1780 = vmatprep.subr.mxu0 0.0
          %1781 = vmatpush1.msra.mxu0 0.0
          %1782 = vmatprep.subr.mxu0 0.0
          %1783 = vmatpush1.msra.mxu0 0.0
          %1784 = vmatprep.mubr.f32.mxu0 %v1715
          %1785 = vmatmul.mubr.f32.gmra.mrb[0].mxu0 %v1642
          %v1786 = vpop.f32.mrb[0].mxu0
          %v1787 = vadd.f32 0.0, %v1786
          %v1788 = vpop.f32.mrb[0].mxu0
          %1789 = vmatprep.mubr.f32.mxu0 %v1718
          %1790 = vmatmul.mubr.f32.gmra.mrb[0].mxu0 %v1644
          %v1791 = vpop.f32.mrb[0].mxu0
          %v1792 = vadd.f32 0.0, %v1791
          %v1793 = vpop.f32.mrb[0].mxu0
          %1794 = vdwg.mxu0
          %1797 = vrot.lane.b32.xlu0 %v1669, 127
          %v1798 = vpop.permute.xlu0 %1797
          %1799 = vrot.lane.b32.xlu0 %v1670, 127
          %v1800 = vpop.permute.xlu0 %1799
          %1803 = vrot.lane.b32.xlu0 %v1669, 126
          %v1804 = vpop.permute.xlu0 %1803
          %1805 = vrot.lane.b32.xlu0 %v1670, 126
          %v1806 = vpop.permute.xlu0 %1805
          %1809 = vmatprep.subr.mxu0 0.0
          %1810 = vmatpush1.msra.mxu0 %v1665
          %1811 = vmatprep.subr.mxu0 0.0
          %1812 = vmatpush1.msra.mxu0 %v1666
          %1813 = vmatprep.subr.mxu0 0.0
          %1814 = vmatpush1.msra.mxu0 %v1667
          %1815 = vmatprep.subr.mxu0 0.0
          %1816 = vmatpush1.msra.mxu0 %v1668
          %1817 = vmatprep.subr.mxu0 0.0
          %1818 = vmatpush1.msra.mxu0 %v1669
          %1819 = vmatprep.subr.mxu0 0.0
          %1820 = vmatpush1.msra.mxu0 %v1670
          %1821 = vmatprep.subr.mxu0 0.0
          %1822 = vmatpush1.msra.mxu0 %v1682
          %1823 = vmatprep.subr.mxu0 0.0
          %1824 = vmatpush1.msra.mxu0 %v1684
          %1825 = vmatprep.subr.mxu0 0.0
          %1826 = vmatpush1.msra.mxu0 %v1686
          %1827 = vmatprep.subr.mxu0 0.0
          %1828 = vmatpush1.msra.mxu0 %v1688
          %1829 = vmatprep.subr.mxu0 0.0
          %1830 = vmatpush1.msra.mxu0 %v1798
          %1831 = vmatprep.subr.mxu0 0.0
          %1832 = vmatpush1.msra.mxu0 %v1800
          %1833 = vmatprep.subr.mxu0 0.0
          %1834 = vmatpush1.msra.mxu0 %v1700
          %1835 = vmatprep.subr.mxu0 0.0
          %1836 = vmatpush1.msra.mxu0 %v1702
          %1837 = vmatprep.subr.mxu0 0.0
          %1838 = vmatpush1.msra.mxu0 %v1704
          %1839 = vmatprep.subr.mxu0 0.0
          %1840 = vmatpush1.msra.mxu0 %v1706
          %1841 = vmatprep.subr.mxu0 0.0
          %1842 = vmatpush1.msra.mxu0 %v1804
          %1843 = vmatprep.subr.mxu0 0.0
          %1844 = vmatpush1.msra.mxu0 %v1806
          %1845 = vmatprep.subr.mxu0 0.0
          %1846 = vmatpush1.msra.mxu0 0.0
          %1847 = vmatprep.subr.mxu0 0.0
          %1848 = vmatpush1.msra.mxu0 0.0
          %1849 = vmatprep.subr.mxu0 0.0
          %1850 = vmatpush1.msra.mxu0 0.0
          %1851 = vmatprep.subr.mxu0 0.0
          %1852 = vmatpush1.msra.mxu0 0.0
          %1853 = vmatprep.subr.mxu0 0.0
          %1854 = vmatpush1.msra.mxu0 0.0
          %1855 = vmatprep.subr.mxu0 0.0
          %1856 = vmatpush1.msra.mxu0 0.0
          %1857 = vmatprep.subr.mxu0 0.0
          %1858 = vmatpush1.msra.mxu0 0.0
          %1859 = vmatprep.subr.mxu0 0.0
          %1860 = vmatpush1.msra.mxu0 0.0
          %1861 = vmatprep.subr.mxu0 0.0
          %1862 = vmatpush1.msra.mxu0 0.0
          %1863 = vmatprep.subr.mxu0 0.0
          %1864 = vmatpush1.msra.mxu0 0.0
          %1865 = vmatprep.subr.mxu0 0.0
          %1866 = vmatpush1.msra.mxu0 0.0
          %1867 = vmatprep.subr.mxu0 0.0
          %1868 = vmatpush1.msra.mxu0 0.0
          %1869 = vmatprep.subr.mxu0 0.0
          %1870 = vmatpush1.msra.mxu0 0.0
          %1871 = vmatprep.subr.mxu0 0.0
          %1872 = vmatpush1.msra.mxu0 0.0
          %1873 = vmatprep.mubr.f32.mxu0 %v1715
          %1874 = vmatmul.mubr.f32.gmra.mrb[0].mxu0 %v1642
          %v1875 = vpop.f32.mrb[0].mxu0
          %v1876 = vadd.f32 0.0, %v1875
          %v1877 = vpop.f32.mrb[0].mxu0
          %1878 = vmatprep.mubr.f32.mxu0 %v1718
          %1879 = vmatmul.mubr.f32.gmra.mrb[0].mxu0 %v1644
          %v1880 = vpop.f32.mrb[0].mxu0
          %v1881 = vadd.f32 0.0, %v1880
          %v1882 = vpop.f32.mrb[0].mxu0
          %1883 = vdwg.mxu0
          %v1884 = vmax.f32 %v1787, %v1876
          %v1885 = vmax.f32 %v1792, %v1881
          %vm1886 = vcmask 392192
          %v1888 = vsel %vm1886, %v1884, 0
          %v1891 = vsel %vm1886, %v1885, 0
          %1893 = vmatprep.subr.mxu0 0.0
          %1894 = vmatpush1.msra.mxu0 %v1648
          %1895 = vmatprep.subr.mxu0 0.0
          %1896 = vmatpush1.msra.mxu0 %v1649
          %1897 = vmatprep.subr.mxu0 0.0
          %1898 = vmatpush1.msra.mxu0 %v1650
          %1899 = vmatprep.subr.mxu0 0.0
          %1900 = vmatpush1.msra.mxu0 %v1651
          %1901 = vmatprep.subr.mxu0 0.0
          %1902 = vmatpush1.msra.mxu0 %v1652
          %1903 = vmatprep.subr.mxu0 0.0
          %1904 = vmatpush1.msra.mxu0 %v1653
          %1905 = vmatprep.subr.mxu0 0.0
          %1906 = vmatpush1.msra.mxu0 0.0
          %1907 = vmatprep.subr.mxu0 0.0
          %1908 = vmatpush1.msra.mxu0 0.0
          %1909 = vmatprep.subr.mxu0 0.0
          %1910 = vmatpush1.msra.mxu0 0.0
          %1911 = vmatprep.subr.mxu0 0.0
          %1912 = vmatpush1.msra.mxu0 0.0
          %1913 = vmatprep.subr.mxu0 0.0
          %1914 = vmatpush1.msra.mxu0 0.0
          %1915 = vmatprep.subr.mxu0 0.0
          %1916 = vmatpush1.msra.mxu0 0.0
          %1917 = vmatprep.subr.mxu0 0.0
          %1918 = vmatpush1.msra.mxu0 0.0
          %1919 = vmatprep.subr.mxu0 0.0
          %1920 = vmatpush1.msra.mxu0 0.0
          %1921 = vmatprep.subr.mxu0 0.0
          %1922 = vmatpush1.msra.mxu0 0.0
          %1923 = vmatprep.subr.mxu0 0.0
          %1924 = vmatpush1.msra.mxu0 0.0
          %1925 = vmatprep.subr.mxu0 0.0
          %1926 = vmatpush1.msra.mxu0 0.0
          %1927 = vmatprep.subr.mxu0 0.0
          %1928 = vmatpush1.msra.mxu0 0.0
          %1929 = vmatprep.subr.mxu0 0.0
          %1930 = vmatpush1.msra.mxu0 0.0
          %1931 = vmatprep.subr.mxu0 0.0
          %1932 = vmatpush1.msra.mxu0 0.0
          %1933 = vmatprep.subr.mxu0 0.0
          %1934 = vmatpush1.msra.mxu0 0.0
          %1935 = vmatprep.subr.mxu0 0.0
          %1936 = vmatpush1.msra.mxu0 0.0
          %1937 = vmatprep.subr.mxu0 0.0
          %1938 = vmatpush1.msra.mxu0 0.0
          %1939 = vmatprep.subr.mxu0 0.0
          %1940 = vmatpush1.msra.mxu0 0.0
          %1941 = vmatprep.subr.mxu0 0.0
          %1942 = vmatpush1.msra.mxu0 0.0
          %1943 = vmatprep.subr.mxu0 0.0
          %1944 = vmatpush1.msra.mxu0 0.0
          %1945 = vmatprep.subr.mxu0 0.0
          %1946 = vmatpush1.msra.mxu0 0.0
          %1947 = vmatprep.subr.mxu0 0.0
          %1948 = vmatpush1.msra.mxu0 0.0
          %1949 = vmatprep.subr.mxu0 0.0
          %1950 = vmatpush1.msra.mxu0 0.0
          %1951 = vmatprep.subr.mxu0 0.0
          %1952 = vmatpush1.msra.mxu0 0.0
          %1953 = vmatprep.subr.mxu0 0.0
          %1954 = vmatpush1.msra.mxu0 0.0
          %1955 = vmatprep.subr.mxu0 0.0
          %1956 = vmatpush1.msra.mxu0 0.0
          %1957 = vmatprep.mubr.f32.mxu0 0.0
          %1958 = vmatmul.mubr.f32.gmra.mrb[0].mxu0 %v1888
          %v1959 = vpop.f32.mrb[0].mxu0
          %v1960 = vadd.f32 0.0, %v1959
          %v1961 = vpop.f32.mrb[0].mxu0
          %1962 = vmatprep.mubr.f32.mxu0 0.0
          %1963 = vmatmul.mubr.f32.gmra.mrb[0].mxu0 %v1891
          %v1964 = vpop.f32.mrb[0].mxu0
          %v1965 = vadd.f32 0.0, %v1964
          %v1966 = vpop.f32.mrb[0].mxu0
          %1967 = vdwg.mxu0
          %1970 = vrot.lane.b32.xlu0 %v1960, 104
          %v1971 = vpop.permute.xlu0 %1970
          %1972 = vrot.lane.b32.xlu0 %v1965, 104
          %v1973 = vpop.permute.xlu0 %1972
          %v1976 = vmax.f32 %v1960, %v1971
          %v1977 = vmax.f32 %v1965, %v1973
          %1979 = vset.pattern.permute.xlu0 0
          %1980 = vperm.xlu0 %1979, %v1646
          %v1981 = vpop.permute.xlu0 %1980
          %1984 = vset.pattern.permute.xlu0 0
          %1985 = vperm.xlu0 %1984, %v1647
          %v1986 = vpop.permute.xlu0 %1985
          %v1988 = vadd.f32 %v1976, %v1981
          %v1989 = vadd.f32 %v1977, %v1986
          %v1990 = vmax.f32 %v1988, 0.0
          %v1991 = vmax.f32 %v1989, 0.0
          %s1992 = smul.u32 %s1655, 16
          %s1993 = scalar_lea.vmem [#allocation4], %s1992
          %vm1994 = vcmask 195584
          %1995 = vst.msk [vmem:[%s1993] sm:$0xff] %vm1994, %v1990
          %1996 = vst.msk [vmem:[%s1993 + $0x8] sm:$0xff] %vm1994, %v1991
        $region68: #{leaf_classify_forward.1} parent=55 // loop_footer
          %s1659 = sadd.s32 1, %s1655
        $region69: #{leaf_classify_forward.1} parent=55 // loop_footer_branch
          %1654 = sbr.rel target = $region65
        $region70: #{leaf_classify_forward.1} parent=55 // loop_exit
          _
        %v1997 = vld [vmem:[#allocation4] sm:$0xff]
        %v1998 = vld [vmem:[#allocation4 + $0x8] sm:$0xff]
        %v1999 = vld [vmem:[#allocation4 + $0x10] sm:$0xff]
        %v2000 = vld [vmem:[#allocation4 + $0x18] sm:$0xff]
        %v2001 = vld [vmem:[#allocation4 + $0x20] sm:$0xff]
        %v2002 = vld [vmem:[#allocation4 + $0x28] sm:$0xff]
        %v2003 = vld [vmem:[#allocation4 + $0x30] sm:$0xff]
        %v2004 = vld [vmem:[#allocation4 + $0x38] sm:$0xff]
        %v2005 = vld [vmem:[#allocation4 + $0x40] sm:$0xff]
        %v2006 = vld [vmem:[#allocation4 + $0x48] sm:$0xff]
        %v2007 = vld [vmem:[#allocation4 + $0x50] sm:$0xff]
        %v2008 = vld [vmem:[#allocation4 + $0x58] sm:$0xff]
        %v2009 = vld [vmem:[#allocation4 + $0x60] sm:$0xff]
        %v2010 = vld [vmem:[#allocation4 + $0x68] sm:$0xff]
        %v2011 = vld [vmem:[#allocation4 + $0x70] sm:$0xff]
        %v2012 = vld [vmem:[#allocation4 + $0x78] sm:$0xff]
        %v2013 = vld [vmem:[#allocation4 + $0x80] sm:$0xff]
        %v2014 = vld [vmem:[#allocation4 + $0x88] sm:$0xff]
        %v2015 = vld [vmem:[#allocation4 + $0x90] sm:$0xff]
        %v2016 = vld [vmem:[#allocation4 + $0x98] sm:$0xff]
        %v2017 = vld [vmem:[#allocation4 + $0xa0] sm:$0xff]
        %v2018 = vld [vmem:[#allocation4 + $0xa8] sm:$0xff]
        %v2019 = vld [vmem:[#allocation4 + $0xb0] sm:$0xff]
        %v2020 = vld [vmem:[#allocation4 + $0xb8] sm:$0xff]
        %v2021 = vld [vmem:[#allocation4 + $0xc0] sm:$0xff]
        %v2022 = vld [vmem:[#allocation4 + $0xc8] sm:$0xff]
        %v2023 = vld [vmem:[#allocation4 + $0xd0] sm:$0xff]
        %v2024 = vld [vmem:[#allocation4 + $0xd8] sm:$0xff]
        %v2025 = vld [vmem:[#allocation4 + $0xe0] sm:$0xff]
        %v2026 = vld [vmem:[#allocation4 + $0xe8] sm:$0xff]
        %v2027 = vld [vmem:[#allocation4 + $0xf0] sm:$0xff]
        %v2028 = vld [vmem:[#allocation4 + $0xf8] sm:$0xff]
        %v2029 = vld [vmem:[#allocation4 + $0x100] sm:$0xff]
        %v2030 = vld [vmem:[#allocation4 + $0x108] sm:$0xff]
        %v2031 = vld [vmem:[#allocation4 + $0x110] sm:$0xff]
        %v2032 = vld [vmem:[#allocation4 + $0x118] sm:$0xff]
        %v2033 = vld [vmem:[#allocation4 + $0x120] sm:$0xff]
        %v2034 = vld [vmem:[#allocation4 + $0x128] sm:$0xff]
        %v2035 = vld [vmem:[#allocation4 + $0x130] sm:$0xff]
        %v2036 = vld [vmem:[#allocation4 + $0x138] sm:$0xff]
        %v2037 = vld [vmem:[#allocation4 + $0x140] sm:$0xff]
        %v2038 = vld [vmem:[#allocation4 + $0x148] sm:$0xff]
        %v2039 = vld [vmem:[#allocation4 + $0x150] sm:$0xff]
        %v2040 = vld [vmem:[#allocation4 + $0x158] sm:$0xff]
        %v2041 = vld [vmem:[#allocation4 + $0x160] sm:$0xff]
        %v2042 = vld [vmem:[#allocation4 + $0x168] sm:$0xff]
        %v2043 = vld [vmem:[#allocation4 + $0x170] sm:$0xff]
        %v2044 = vld [vmem:[#allocation4 + $0x178] sm:$0xff]
        %v2045 = vld [vmem:[%s7] sm:$0xff]
        %v2046 = vld [vmem:[%s7 + $0x8] sm:$0xff]
        %v2047 = vld [vmem:[%s7 + $0x10] sm:$0xff]
        %v2048 = vld [vmem:[%s7 + $0x18] sm:$0xff]
        %v2049 = vld [vmem:[%s7 + $0x20] sm:$0xff]
        %v2050 = vld [vmem:[%s7 + $0x28] sm:$0xff]
        %v2051 = vld [vmem:[%s7 + $0x30] sm:$0xff]
        %v2052 = vld [vmem:[%s7 + $0x38] sm:$0xff]
        %v2053 = vld [vmem:[%s7 + $0x40] sm:$0xff]
        %v2054 = vld [vmem:[%s7 + $0x48] sm:$0xff]
        %v2055 = vld [vmem:[%s7 + $0x50] sm:$0xff]
        %v2056 = vld [vmem:[%s7 + $0x58] sm:$0xff]
        %v2057 = vld [vmem:[%s7 + $0x60] sm:$0xff]
        %v2058 = vld [vmem:[%s7 + $0x68] sm:$0xff]
        %v2059 = vld [vmem:[%s7 + $0x70] sm:$0xff]
        %v2060 = vld [vmem:[%s7 + $0x78] sm:$0xff]
        %v2061 = vld [vmem:[%s7 + $0x80] sm:$0xff]
        %v2062 = vld [vmem:[%s7 + $0x88] sm:$0xff]
        %v2063 = vld [vmem:[%s7 + $0x90] sm:$0xff]
        %v2064 = vld [vmem:[%s7 + $0x98] sm:$0xff]
        %v2065 = vld [vmem:[%s7 + $0xa0] sm:$0xff]
        %v2066 = vld [vmem:[%s7 + $0xa8] sm:$0xff]
        %v2067 = vld [vmem:[%s7 + $0xb0] sm:$0xff]
        %v2068 = vld [vmem:[%s7 + $0xb8] sm:$0xff]
        %v2069 = vld [vmem:[%s7 + $0xc0] sm:$0xff]
        %v2070 = vld [vmem:[%s7 + $0xc8] sm:$0xff]
        %v2071 = vld [vmem:[%s7 + $0xd0] sm:$0xff]
        %v2072 = vld [vmem:[%s7 + $0xd8] sm:$0xff]
        %v2073 = vld [vmem:[%s7 + $0xe0] sm:$0xff]
        %v2074 = vld [vmem:[%s7 + $0xe8] sm:$0xff]
        %v2075 = vld [vmem:[%s7 + $0xf0] sm:$0xff]
        %v2076 = vld [vmem:[%s7 + $0xf8] sm:$0xff]
        %v2077 = vld [vmem:[%s7 + $0x100] sm:$0xff]
        %v2078 = vld [vmem:[%s7 + $0x108] sm:$0xff]
        %v2079 = vld [vmem:[%s7 + $0x110] sm:$0xff]
        %v2080 = vld [vmem:[%s7 + $0x118] sm:$0xff]
        %v2081 = vld [vmem:[%s7 + $0x120] sm:$0xff]
        %v2082 = vld [vmem:[%s7 + $0x128] sm:$0xff]
        %v2083 = vld [vmem:[%s7 + $0x130] sm:$0xff]
        %v2084 = vld [vmem:[%s7 + $0x138] sm:$0xff]
        %v2085 = vld [vmem:[%s7 + $0x140] sm:$0xff]
        %v2086 = vld [vmem:[%s7 + $0x148] sm:$0xff]
        %v2087 = vld [vmem:[%s7 + $0x150] sm:$0xff]
        %v2088 = vld [vmem:[%s7 + $0x158] sm:$0xff]
        %v2089 = vld [vmem:[%s7 + $0x160] sm:$0xff]
        %v2090 = vld [vmem:[%s7 + $0x168] sm:$0xff]
        %v2091 = vld [vmem:[%s7 + $0x170] sm:$0xff]
        %v2092 = vld [vmem:[%s7 + $0x178] sm:$0xff]
        %v2093 = vld [vmem:[%s7 + $0x180] sm:$0xff]
        %v2094 = vld [vmem:[%s7 + $0x188] sm:$0xff]
        %v2095 = vld [vmem:[%s7 + $0x190] sm:$0xff]
        %v2096 = vld [vmem:[%s7 + $0x198] sm:$0xff]
        %v2097 = vld [vmem:[%s7 + $0x1a0] sm:$0xff]
        %v2098 = vld [vmem:[%s7 + $0x1a8] sm:$0xff]
        %v2099 = vld [vmem:[%s7 + $0x1b0] sm:$0xff]
        %v2100 = vld [vmem:[%s7 + $0x1b8] sm:$0xff]
        %v2101 = vld [vmem:[%s7 + $0x1c0] sm:$0xff]
        %v2102 = vld [vmem:[%s7 + $0x1c8] sm:$0xff]
        %v2103 = vld [vmem:[%s7 + $0x1d0] sm:$0xff]
        %v2104 = vld [vmem:[%s7 + $0x1d8] sm:$0xff]
        %v2105 = vld [vmem:[%s7 + $0x1e0] sm:$0xff]
        %v2106 = vld [vmem:[%s7 + $0x1e8] sm:$0xff]
        %v2107 = vld [vmem:[%s7 + $0x1f0] sm:$0xff]
        %v2108 = vld [vmem:[%s7 + $0x1f8] sm:$0xff]
        %v2109 = vld [vmem:[%s7 + $0x200] sm:$0xff]
        %v2110 = vld [vmem:[%s7 + $0x208] sm:$0xff]
        %v2111 = vld [vmem:[%s7 + $0x210] sm:$0xff]
        %v2112 = vld [vmem:[%s7 + $0x218] sm:$0xff]
        %v2113 = vld [vmem:[%s7 + $0x220] sm:$0xff]
        %v2114 = vld [vmem:[%s7 + $0x228] sm:$0xff]
        %v2115 = vld [vmem:[%s7 + $0x230] sm:$0xff]
        %v2116 = vld [vmem:[%s7 + $0x238] sm:$0xff]
        %v2117 = vld [vmem:[%s7 + $0x240] sm:$0xff]
        %v2118 = vld [vmem:[%s7 + $0x248] sm:$0xff]
        %v2119 = vld [vmem:[%s7 + $0x250] sm:$0xff]
        %v2120 = vld [vmem:[%s7 + $0x258] sm:$0xff]
        %v2121 = vld [vmem:[%s7 + $0x260] sm:$0xff]
        %v2122 = vld [vmem:[%s7 + $0x268] sm:$0xff]
        %v2123 = vld [vmem:[%s7 + $0x270] sm:$0xff]
        %v2124 = vld [vmem:[%s7 + $0x278] sm:$0xff]
        %v2125 = vld [vmem:[%s7 + $0x280] sm:$0xff]
        %v2126 = vld [vmem:[%s7 + $0x288] sm:$0xff]
        %v2127 = vld [vmem:[%s7 + $0x290] sm:$0xff]
        %v2128 = vld [vmem:[%s7 + $0x298] sm:$0xff]
        %v2129 = vld [vmem:[%s7 + $0x2a0] sm:$0xff]
        %v2130 = vld [vmem:[%s7 + $0x2a8] sm:$0xff]
        %v2131 = vld [vmem:[%s7 + $0x2b0] sm:$0xff]
        %v2132 = vld [vmem:[%s7 + $0x2b8] sm:$0xff]
        %v2133 = vld [vmem:[%s7 + $0x2c0] sm:$0xff]
        %v2134 = vld [vmem:[%s7 + $0x2c8] sm:$0xff]
        %v2135 = vld [vmem:[%s7 + $0x2d0] sm:$0xff]
        %v2136 = vld [vmem:[%s7 + $0x2d8] sm:$0xff]
        %v2137 = vld [vmem:[%s7 + $0x2e0] sm:$0xff]
        %v2138 = vld [vmem:[%s7 + $0x2e8] sm:$0xff]
        %v2139 = vld [vmem:[%s7 + $0x2f0] sm:$0xff]
        %v2140 = vld [vmem:[%s7 + $0x2f8] sm:$0xff]
        %v2141 = vld [vmem:[%s7 + $0x300] sm:$0xff]
        %v2142 = vld [vmem:[%s7 + $0x308] sm:$0xff]
        %v2143 = vld [vmem:[%s7 + $0x310] sm:$0xff]
        %v2144 = vld [vmem:[%s7 + $0x318] sm:$0xff]
        %v2145 = vld [vmem:[%s7 + $0x320] sm:$0xff]
        %v2146 = vld [vmem:[%s7 + $0x328] sm:$0xff]
        %v2147 = vld [vmem:[%s7 + $0x330] sm:$0xff]
        %v2148 = vld [vmem:[%s7 + $0x338] sm:$0xff]
        %v2149 = vld [vmem:[%s7 + $0x340] sm:$0xff]
        %v2150 = vld [vmem:[%s7 + $0x348] sm:$0xff]
        %v2151 = vld [vmem:[%s7 + $0x350] sm:$0xff]
        %v2152 = vld [vmem:[%s7 + $0x358] sm:$0xff]
        %v2153 = vld [vmem:[%s7 + $0x360] sm:$0xff]
        %v2154 = vld [vmem:[%s7 + $0x368] sm:$0xff]
        %v2155 = vld [vmem:[%s7 + $0x370] sm:$0xff]
        %v2156 = vld [vmem:[%s7 + $0x378] sm:$0xff]
        %v2157 = vld [vmem:[%s7 + $0x380] sm:$0xff]
        %v2158 = vld [vmem:[%s7 + $0x388] sm:$0xff]
        %v2159 = vld [vmem:[%s7 + $0x390] sm:$0xff]
        %v2160 = vld [vmem:[%s7 + $0x398] sm:$0xff]
        %v2161 = vld [vmem:[%s7 + $0x3a0] sm:$0xff]
        %v2162 = vld [vmem:[%s7 + $0x3a8] sm:$0xff]
        %v2163 = vld [vmem:[%s7 + $0x3b0] sm:$0xff]
        %v2164 = vld [vmem:[%s7 + $0x3b8] sm:$0xff]
        %v2165 = vld [vmem:[%s7 + $0x3c0] sm:$0xff]
        %v2166 = vld [vmem:[%s7 + $0x3c8] sm:$0xff]
        %v2167 = vld [vmem:[%s7 + $0x3d0] sm:$0xff]
        %v2168 = vld [vmem:[%s7 + $0x3d8] sm:$0xff]
        %v2169 = vld [vmem:[%s7 + $0x3e0] sm:$0xff]
        %v2170 = vld [vmem:[%s7 + $0x3e8] sm:$0xff]
        %v2171 = vld [vmem:[%s7 + $0x3f0] sm:$0xff]
        %v2172 = vld [vmem:[%s7 + $0x3f8] sm:$0xff]
        %v2173 = vld [vmem:[%s7 + $0x400] sm:$0xff]
        %v2174 = vld [vmem:[%s7 + $0x408] sm:$0xff]
        %v2175 = vld [vmem:[%s7 + $0x410] sm:$0xff]
        %v2176 = vld [vmem:[%s7 + $0x418] sm:$0xff]
        %v2177 = vld [vmem:[%s7 + $0x420] sm:$0xff]
        %v2178 = vld [vmem:[%s7 + $0x428] sm:$0xff]
        %v2179 = vld [vmem:[%s7 + $0x430] sm:$0xff]
        %v2180 = vld [vmem:[%s7 + $0x438] sm:$0xff]
        %v2181 = vld [vmem:[%s7 + $0x440] sm:$0xff]
        %v2182 = vld [vmem:[%s7 + $0x448] sm:$0xff]
        %v2183 = vld [vmem:[%s7 + $0x450] sm:$0xff]
        %v2184 = vld [vmem:[%s7 + $0x458] sm:$0xff]
        %v2185 = vld [vmem:[%s7 + $0x460] sm:$0xff]
        %v2186 = vld [vmem:[%s7 + $0x468] sm:$0xff]
        %v2187 = vld [vmem:[%s7 + $0x470] sm:$0xff]
        %v2188 = vld [vmem:[%s7 + $0x478] sm:$0xff]
        %v2189 = vld [vmem:[%s7 + $0x480] sm:$0xff]
        %v2190 = vld [vmem:[%s7 + $0x488] sm:$0xff]
        %v2191 = vld [vmem:[%s7 + $0x490] sm:$0xff]
        %v2192 = vld [vmem:[%s7 + $0x498] sm:$0xff]
        %v2193 = vld [vmem:[%s7 + $0x4a0] sm:$0xff]
        %v2194 = vld [vmem:[%s7 + $0x4a8] sm:$0xff]
        %v2195 = vld [vmem:[%s7 + $0x4b0] sm:$0xff]
        %v2196 = vld [vmem:[%s7 + $0x4b8] sm:$0xff]
        %v2197 = vld [vmem:[%s7 + $0x4c0] sm:$0xff]
        %v2198 = vld [vmem:[%s7 + $0x4c8] sm:$0xff]
        %v2199 = vld [vmem:[%s7 + $0x4d0] sm:$0xff]
        %v2200 = vld [vmem:[%s7 + $0x4d8] sm:$0xff]
        %v2201 = vld [vmem:[%s7 + $0x4e0] sm:$0xff]
        %v2202 = vld [vmem:[%s7 + $0x4e8] sm:$0xff]
        %v2203 = vld [vmem:[%s7 + $0x4f0] sm:$0xff]
        %v2204 = vld [vmem:[%s7 + $0x4f8] sm:$0xff]
        %v2205 = vld [vmem:[%s7 + $0x500] sm:$0xff]
        %v2206 = vld [vmem:[%s7 + $0x508] sm:$0xff]
        %v2207 = vld [vmem:[%s7 + $0x510] sm:$0xff]
        %v2208 = vld [vmem:[%s7 + $0x518] sm:$0xff]
        %v2209 = vld [vmem:[%s7 + $0x520] sm:$0xff]
        %v2210 = vld [vmem:[%s7 + $0x528] sm:$0xff]
        %v2211 = vld [vmem:[%s7 + $0x530] sm:$0xff]
        %v2212 = vld [vmem:[%s7 + $0x538] sm:$0xff]
        %v2213 = vld [vmem:[%s7 + $0x540] sm:$0xff]
        %v2214 = vld [vmem:[%s7 + $0x548] sm:$0xff]
        %v2215 = vld [vmem:[%s7 + $0x550] sm:$0xff]
        %v2216 = vld [vmem:[%s7 + $0x558] sm:$0xff]
        %v2217 = vld [vmem:[%s7 + $0x560] sm:$0xff]
        %v2218 = vld [vmem:[%s7 + $0x568] sm:$0xff]
        %v2219 = vld [vmem:[%s7 + $0x570] sm:$0xff]
        %v2220 = vld [vmem:[%s7 + $0x578] sm:$0xff]
        %v2221 = vld [vmem:[%s7 + $0x580] sm:$0xff]
        %v2222 = vld [vmem:[%s7 + $0x588] sm:$0xff]
        %v2223 = vld [vmem:[%s7 + $0x590] sm:$0xff]
        %v2224 = vld [vmem:[%s7 + $0x598] sm:$0xff]
        %v2225 = vld [vmem:[%s7 + $0x5a0] sm:$0xff]
        %v2226 = vld [vmem:[%s7 + $0x5a8] sm:$0xff]
        %v2227 = vld [vmem:[%s7 + $0x5b0] sm:$0xff]
        %v2228 = vld [vmem:[%s7 + $0x5b8] sm:$0xff]
        %v2229 = vld [vmem:[%s7 + $0x5c0] sm:$0xff]
        %v2230 = vld [vmem:[%s7 + $0x5c8] sm:$0xff]
        %v2231 = vld [vmem:[%s7 + $0x5d0] sm:$0xff]
        %v2232 = vld [vmem:[%s7 + $0x5d8] sm:$0xff]
        %v2233 = vld [vmem:[%s7 + $0x5e0] sm:$0xff]
        %v2234 = vld [vmem:[%s7 + $0x5e8] sm:$0xff]
        %v2235 = vld [vmem:[%s7 + $0x5f0] sm:$0xff]
        %v2236 = vld [vmem:[%s7 + $0x5f8] sm:$0xff]
        %v2237 = vld [vmem:[%s7 + $0x600] sm:$0xff]
        %v2238 = vld [vmem:[%s7 + $0x608] sm:$0xff]
        %v2239 = vld [vmem:[%s7 + $0x610] sm:$0xff]
        %v2240 = vld [vmem:[%s7 + $0x618] sm:$0xff]
        %v2241 = vld [vmem:[%s7 + $0x620] sm:$0xff]
        %v2242 = vld [vmem:[%s7 + $0x628] sm:$0xff]
        %v2243 = vld [vmem:[%s7 + $0x630] sm:$0xff]
        %v2244 = vld [vmem:[%s7 + $0x638] sm:$0xff]
        %v2245 = vld [vmem:[%s7 + $0x640] sm:$0xff]
        %v2246 = vld [vmem:[%s7 + $0x648] sm:$0xff]
        %v2247 = vld [vmem:[%s7 + $0x650] sm:$0xff]
        %v2248 = vld [vmem:[%s7 + $0x658] sm:$0xff]
        %v2249 = vld [vmem:[%s7 + $0x660] sm:$0xff]
        %v2250 = vld [vmem:[%s7 + $0x668] sm:$0xff]
        %v2251 = vld [vmem:[%s7 + $0x670] sm:$0xff]
        %v2252 = vld [vmem:[%s7 + $0x678] sm:$0xff]
        %v2253 = vld [vmem:[%s7 + $0x680] sm:$0xff]
        %v2254 = vld [vmem:[%s7 + $0x688] sm:$0xff]
        %v2255 = vld [vmem:[%s7 + $0x690] sm:$0xff]
        %v2256 = vld [vmem:[%s7 + $0x698] sm:$0xff]
        %v2257 = vld [vmem:[%s7 + $0x6a0] sm:$0xff]
        %v2258 = vld [vmem:[%s7 + $0x6a8] sm:$0xff]
        %v2259 = vld [vmem:[%s7 + $0x6b0] sm:$0xff]
        %v2260 = vld [vmem:[%s7 + $0x6b8] sm:$0xff]
        %v2261 = vld [vmem:[%s7 + $0x6c0] sm:$0xff]
        %v2262 = vld [vmem:[%s7 + $0x6c8] sm:$0xff]
        %v2263 = vld [vmem:[%s7 + $0x6d0] sm:$0xff]
        %v2264 = vld [vmem:[%s7 + $0x6d8] sm:$0xff]
        %v2265 = vld [vmem:[%s7 + $0x6e0] sm:$0xff]
        %v2266 = vld [vmem:[%s7 + $0x6e8] sm:$0xff]
        %v2267 = vld [vmem:[%s7 + $0x6f0] sm:$0xff]
        %v2268 = vld [vmem:[%s7 + $0x6f8] sm:$0xff]
        %v2269 = vld [vmem:[%s7 + $0x700] sm:$0xff]
        %v2270 = vld [vmem:[%s7 + $0x708] sm:$0xff]
        %v2271 = vld [vmem:[%s7 + $0x710] sm:$0xff]
        %v2272 = vld [vmem:[%s7 + $0x718] sm:$0xff]
        %v2273 = vld [vmem:[%s7 + $0x720] sm:$0xff]
        %v2274 = vld [vmem:[%s7 + $0x728] sm:$0xff]
        %v2275 = vld [vmem:[%s7 + $0x730] sm:$0xff]
        %v2276 = vld [vmem:[%s7 + $0x738] sm:$0xff]
        %v2277 = vld [vmem:[%s7 + $0x740] sm:$0xff]
        %v2278 = vld [vmem:[%s7 + $0x748] sm:$0xff]
        %v2279 = vld [vmem:[%s7 + $0x750] sm:$0xff]
        %v2280 = vld [vmem:[%s7 + $0x758] sm:$0xff]
        %v2281 = vld [vmem:[%s7 + $0x760] sm:$0xff]
        %v2282 = vld [vmem:[%s7 + $0x768] sm:$0xff]
        %v2283 = vld [vmem:[%s7 + $0x770] sm:$0xff]
        %v2284 = vld [vmem:[%s7 + $0x778] sm:$0xff]
        %v2285 = vld [vmem:[%s7 + $0x780] sm:$0xff]
        %v2286 = vld [vmem:[%s7 + $0x788] sm:$0xff]
        %v2287 = vld [vmem:[%s7 + $0x790] sm:$0xff]
        %v2288 = vld [vmem:[%s7 + $0x798] sm:$0xff]
        %v2289 = vld [vmem:[%s7 + $0x7a0] sm:$0xff]
        %v2290 = vld [vmem:[%s7 + $0x7a8] sm:$0xff]
        %v2291 = vld [vmem:[%s7 + $0x7b0] sm:$0xff]
        %v2292 = vld [vmem:[%s7 + $0x7b8] sm:$0xff]
        %v2293 = vld [vmem:[%s7 + $0x7c0] sm:$0xff]
        %v2294 = vld [vmem:[%s7 + $0x7c8] sm:$0xff]
        %v2295 = vld [vmem:[%s7 + $0x7d0] sm:$0xff]
        %v2296 = vld [vmem:[%s7 + $0x7d8] sm:$0xff]
        %v2297 = vld [vmem:[%s7 + $0x7e0] sm:$0xff]
        %v2298 = vld [vmem:[%s7 + $0x7e8] sm:$0xff]
        %v2299 = vld [vmem:[%s7 + $0x7f0] sm:$0xff]
        %v2300 = vld [vmem:[%s7 + $0x7f8] sm:$0xff]
        %v2301 = vld [vmem:[%s7 + $0x800] sm:$0xff]
        %v2302 = vld [vmem:[%s7 + $0x808] sm:$0xff]
        %v2303 = vld [vmem:[%s7 + $0x810] sm:$0xff]
        %v2304 = vld [vmem:[%s7 + $0x818] sm:$0xff]
        %v2305 = vld [vmem:[%s7 + $0x820] sm:$0xff]
        %v2306 = vld [vmem:[%s7 + $0x828] sm:$0xff]
        %v2307 = vld [vmem:[%s7 + $0x830] sm:$0xff]
        %v2308 = vld [vmem:[%s7 + $0x838] sm:$0xff]
        %v2309 = vld [vmem:[%s7 + $0x840] sm:$0xff]
        %v2310 = vld [vmem:[%s7 + $0x848] sm:$0xff]
        %v2311 = vld [vmem:[%s7 + $0x850] sm:$0xff]
        %v2312 = vld [vmem:[%s7 + $0x858] sm:$0xff]
        %v2313 = vld [vmem:[%s7 + $0x860] sm:$0xff]
        %v2314 = vld [vmem:[%s7 + $0x868] sm:$0xff]
        %v2315 = vld [vmem:[%s7 + $0x870] sm:$0xff]
        %v2316 = vld [vmem:[%s7 + $0x878] sm:$0xff]
        %v2317 = vld [vmem:[%s7 + $0x880] sm:$0xff]
        %v2318 = vld [vmem:[%s7 + $0x888] sm:$0xff]
        %v2319 = vld [vmem:[%s7 + $0x890] sm:$0xff]
        %v2320 = vld [vmem:[%s7 + $0x898] sm:$0xff]
        %v2321 = vld [vmem:[%s7 + $0x8a0] sm:$0xff]
        %v2322 = vld [vmem:[%s7 + $0x8a8] sm:$0xff]
        %v2323 = vld [vmem:[%s7 + $0x8b0] sm:$0xff]
        %v2324 = vld [vmem:[%s7 + $0x8b8] sm:$0xff]
        %v2325 = vld [vmem:[%s7 + $0x8c0] sm:$0xff]
        %v2326 = vld [vmem:[%s7 + $0x8c8] sm:$0xff]
        %v2327 = vld [vmem:[%s7 + $0x8d0] sm:$0xff]
        %v2328 = vld [vmem:[%s7 + $0x8d8] sm:$0xff]
        %v2329 = vld [vmem:[%s7 + $0x8e0] sm:$0xff]
        %v2330 = vld [vmem:[%s7 + $0x8e8] sm:$0xff]
        %v2331 = vld [vmem:[%s7 + $0x8f0] sm:$0xff]
        %v2332 = vld [vmem:[%s7 + $0x8f8] sm:$0xff]
        %v2333 = vld [vmem:[%s7 + $0x900] sm:$0xff]
        %v2334 = vld [vmem:[%s7 + $0x908] sm:$0xff]
        %v2335 = vld [vmem:[%s7 + $0x910] sm:$0xff]
        %v2336 = vld [vmem:[%s7 + $0x918] sm:$0xff]
        %v2337 = vld [vmem:[%s7 + $0x920] sm:$0xff]
        %v2338 = vld [vmem:[%s7 + $0x928] sm:$0xff]
        %v2339 = vld [vmem:[%s7 + $0x930] sm:$0xff]
        %v2340 = vld [vmem:[%s7 + $0x938] sm:$0xff]
        %v2341 = vld [vmem:[%s7 + $0x940] sm:$0xff]
        %v2342 = vld [vmem:[%s7 + $0x948] sm:$0xff]
        %v2343 = vld [vmem:[%s7 + $0x950] sm:$0xff]
        %v2344 = vld [vmem:[%s7 + $0x958] sm:$0xff]
        %v2345 = vld [vmem:[%s7 + $0x960] sm:$0xff]
        %v2346 = vld [vmem:[%s7 + $0x968] sm:$0xff]
        %v2347 = vld [vmem:[%s7 + $0x970] sm:$0xff]
        %v2348 = vld [vmem:[%s7 + $0x978] sm:$0xff]
        %v2349 = vld [vmem:[%s7 + $0x980] sm:$0xff]
        %v2350 = vld [vmem:[%s7 + $0x988] sm:$0xff]
        %v2351 = vld [vmem:[%s7 + $0x990] sm:$0xff]
        %v2352 = vld [vmem:[%s7 + $0x998] sm:$0xff]
        %v2353 = vld [vmem:[%s7 + $0x9a0] sm:$0xff]
        %v2354 = vld [vmem:[%s7 + $0x9a8] sm:$0xff]
        %v2355 = vld [vmem:[%s7 + $0x9b0] sm:$0xff]
        %v2356 = vld [vmem:[%s7 + $0x9b8] sm:$0xff]
        %v2357 = vld [vmem:[%s7 + $0x9c0] sm:$0xff]
        %v2358 = vld [vmem:[%s7 + $0x9c8] sm:$0xff]
        %v2359 = vld [vmem:[%s7 + $0x9d0] sm:$0xff]
        %v2360 = vld [vmem:[%s7 + $0x9d8] sm:$0xff]
        %v2361 = vld [vmem:[%s7 + $0x9e0] sm:$0xff]
        %v2362 = vld [vmem:[%s7 + $0x9e8] sm:$0xff]
        %v2363 = vld [vmem:[%s7 + $0x9f0] sm:$0xff]
        %v2364 = vld [vmem:[%s7 + $0x9f8] sm:$0xff]
        %v2365 = vld [vmem:[%s7 + $0xa00] sm:$0xff]
        %v2366 = vld [vmem:[%s7 + $0xa08] sm:$0xff]
        %v2367 = vld [vmem:[%s7 + $0xa10] sm:$0xff]
        %v2368 = vld [vmem:[%s7 + $0xa18] sm:$0xff]
        %v2369 = vld [vmem:[%s7 + $0xa20] sm:$0xff]
        %v2370 = vld [vmem:[%s7 + $0xa28] sm:$0xff]
        %v2371 = vld [vmem:[%s7 + $0xa30] sm:$0xff]
        %v2372 = vld [vmem:[%s7 + $0xa38] sm:$0xff]
        %v2373 = vld [vmem:[%s7 + $0xa40] sm:$0xff]
        %v2374 = vld [vmem:[%s7 + $0xa48] sm:$0xff]
        %v2375 = vld [vmem:[%s7 + $0xa50] sm:$0xff]
        %v2376 = vld [vmem:[%s7 + $0xa58] sm:$0xff]
        %v2377 = vld [vmem:[%s7 + $0xa60] sm:$0xff]
        %v2378 = vld [vmem:[%s7 + $0xa68] sm:$0xff]
        %v2379 = vld [vmem:[%s7 + $0xa70] sm:$0xff]
        %v2380 = vld [vmem:[%s7 + $0xa78] sm:$0xff]
        %v2381 = vld [vmem:[%s7 + $0xa80] sm:$0xff]
        %v2382 = vld [vmem:[%s7 + $0xa88] sm:$0xff]
        %v2383 = vld [vmem:[%s7 + $0xa90] sm:$0xff]
        %v2384 = vld [vmem:[%s7 + $0xa98] sm:$0xff]
        %v2385 = vld [vmem:[%s7 + $0xaa0] sm:$0xff]
        %v2386 = vld [vmem:[%s7 + $0xaa8] sm:$0xff]
        %v2387 = vld [vmem:[%s7 + $0xab0] sm:$0xff]
        %v2388 = vld [vmem:[%s7 + $0xab8] sm:$0xff]
        %v2389 = vld [vmem:[%s7 + $0xac0] sm:$0xff]
        %v2390 = vld [vmem:[%s7 + $0xac8] sm:$0xff]
        %v2391 = vld [vmem:[%s7 + $0xad0] sm:$0xff]
        %v2392 = vld [vmem:[%s7 + $0xad8] sm:$0xff]
        %v2393 = vld [vmem:[%s7 + $0xae0] sm:$0xff]
        %v2394 = vld [vmem:[%s7 + $0xae8] sm:$0xff]
        %v2395 = vld [vmem:[%s7 + $0xaf0] sm:$0xff]
        %v2396 = vld [vmem:[%s7 + $0xaf8] sm:$0xff]
        %v2397 = vld [vmem:[%s7 + $0xb00] sm:$0xff]
        %v2398 = vld [vmem:[%s7 + $0xb08] sm:$0xff]
        %v2399 = vld [vmem:[%s7 + $0xb10] sm:$0xff]
        %v2400 = vld [vmem:[%s7 + $0xb18] sm:$0xff]
        %v2401 = vld [vmem:[%s7 + $0xb20] sm:$0xff]
        %v2402 = vld [vmem:[%s7 + $0xb28] sm:$0xff]
        %v2403 = vld [vmem:[%s7 + $0xb30] sm:$0xff]
        %v2404 = vld [vmem:[%s7 + $0xb38] sm:$0xff]
        %v2405 = vld [vmem:[%s7 + $0xb40] sm:$0xff]
        %v2406 = vld [vmem:[%s7 + $0xb48] sm:$0xff]
        %v2407 = vld [vmem:[%s7 + $0xb50] sm:$0xff]
        %v2408 = vld [vmem:[%s7 + $0xb58] sm:$0xff]
        %v2409 = vld [vmem:[%s7 + $0xb60] sm:$0xff]
        %v2410 = vld [vmem:[%s7 + $0xb68] sm:$0xff]
        %v2411 = vld [vmem:[%s7 + $0xb70] sm:$0xff]
        %v2412 = vld [vmem:[%s7 + $0xb78] sm:$0xff]
        %v2413 = vld [vmem:[%s7 + $0xb80] sm:$0xff]
        %v2414 = vld [vmem:[%s7 + $0xb88] sm:$0xff]
        %v2415 = vld [vmem:[%s7 + $0xb90] sm:$0xff]
        %v2416 = vld [vmem:[%s7 + $0xb98] sm:$0xff]
        %v2417 = vld [vmem:[%s7 + $0xba0] sm:$0xff]
        %v2418 = vld [vmem:[%s7 + $0xba8] sm:$0xff]
        %v2419 = vld [vmem:[%s7 + $0xbb0] sm:$0xff]
        %v2420 = vld [vmem:[%s7 + $0xbb8] sm:$0xff]
        %v2421 = vld [vmem:[%s7 + $0xbc0] sm:$0xff]
        %v2422 = vld [vmem:[%s7 + $0xbc8] sm:$0xff]
        %v2423 = vld [vmem:[%s7 + $0xbd0] sm:$0xff]
        %v2424 = vld [vmem:[%s7 + $0xbd8] sm:$0xff]
        %v2425 = vld [vmem:[%s7 + $0xbe0] sm:$0xff]
        %v2426 = vld [vmem:[%s7 + $0xbe8] sm:$0xff]
        %v2427 = vld [vmem:[%s7 + $0xbf0] sm:$0xff]
        %v2428 = vld [vmem:[%s7 + $0xbf8] sm:$0xff]
        %v2429 = vld [vmem:[%s7 + $0xc00] sm:$0xff]
        %v2430 = vld [vmem:[%s7 + $0xc08] sm:$0xff]
        %v2431 = vld [vmem:[%s7 + $0xc10] sm:$0xff]
        %v2432 = vld [vmem:[%s7 + $0xc18] sm:$0xff]
        %v2433 = vld [vmem:[%s7 + $0xc20] sm:$0xff]
        %v2434 = vld [vmem:[%s7 + $0xc28] sm:$0xff]
        %v2435 = vld [vmem:[%s7 + $0xc30] sm:$0xff]
        %v2436 = vld [vmem:[%s7 + $0xc38] sm:$0xff]
        %v2437 = vld [vmem:[%s7 + $0xc40] sm:$0xff]
        %v2438 = vld [vmem:[%s7 + $0xc48] sm:$0xff]
        %v2439 = vld [vmem:[%s7 + $0xc50] sm:$0xff]
        %v2440 = vld [vmem:[%s7 + $0xc58] sm:$0xff]
        %v2441 = vld [vmem:[%s7 + $0xc60] sm:$0xff]
        %v2442 = vld [vmem:[%s7 + $0xc68] sm:$0xff]
        %v2443 = vld [vmem:[%s7 + $0xc70] sm:$0xff]
        %v2444 = vld [vmem:[%s7 + $0xc78] sm:$0xff]
        %v2445 = vld [vmem:[%s7 + $0xc80] sm:$0xff]
        %v2446 = vld [vmem:[%s7 + $0xc88] sm:$0xff]
        %v2447 = vld [vmem:[%s7 + $0xc90] sm:$0xff]
        %v2448 = vld [vmem:[%s7 + $0xc98] sm:$0xff]
        %v2449 = vld [vmem:[%s7 + $0xca0] sm:$0xff]
        %v2450 = vld [vmem:[%s7 + $0xca8] sm:$0xff]
        %v2451 = vld [vmem:[%s7 + $0xcb0] sm:$0xff]
        %v2452 = vld [vmem:[%s7 + $0xcb8] sm:$0xff]
        %v2453 = vld [vmem:[%s7 + $0xcc0] sm:$0xff]
        %v2454 = vld [vmem:[%s7 + $0xcc8] sm:$0xff]
        %v2455 = vld [vmem:[%s7 + $0xcd0] sm:$0xff]
        %v2456 = vld [vmem:[%s7 + $0xcd8] sm:$0xff]
        %v2457 = vld [vmem:[%s7 + $0xce0] sm:$0xff]
        %v2458 = vld [vmem:[%s7 + $0xce8] sm:$0xff]
        %v2459 = vld [vmem:[%s7 + $0xcf0] sm:$0xff]
        %v2460 = vld [vmem:[%s7 + $0xcf8] sm:$0xff]
        %v2461 = vld [vmem:[%s7 + $0xd00] sm:$0xff]
        %v2462 = vld [vmem:[%s7 + $0xd08] sm:$0xff]
        %v2463 = vld [vmem:[%s7 + $0xd10] sm:$0xff]
        %v2464 = vld [vmem:[%s7 + $0xd18] sm:$0xff]
        %v2465 = vld [vmem:[%s7 + $0xd20] sm:$0xff]
        %v2466 = vld [vmem:[%s7 + $0xd28] sm:$0xff]
        %v2467 = vld [vmem:[%s7 + $0xd30] sm:$0xff]
        %v2468 = vld [vmem:[%s7 + $0xd38] sm:$0xff]
        %v2469 = vld [vmem:[%s7 + $0xd40] sm:$0xff]
        %v2470 = vld [vmem:[%s7 + $0xd48] sm:$0xff]
        %v2471 = vld [vmem:[%s7 + $0xd50] sm:$0xff]
        %v2472 = vld [vmem:[%s7 + $0xd58] sm:$0xff]
        %v2473 = vld [vmem:[%s7 + $0xd60] sm:$0xff]
        %v2474 = vld [vmem:[%s7 + $0xd68] sm:$0xff]
        %v2475 = vld [vmem:[%s7 + $0xd70] sm:$0xff]
        %v2476 = vld [vmem:[%s7 + $0xd78] sm:$0xff]
        %v2477 = vld [vmem:[%s7 + $0xd80] sm:$0xff]
        %v2478 = vld [vmem:[%s7 + $0xd88] sm:$0xff]
        %v2479 = vld [vmem:[%s7 + $0xd90] sm:$0xff]
        %v2480 = vld [vmem:[%s7 + $0xd98] sm:$0xff]
        %v2481 = vld [vmem:[%s7 + $0xda0] sm:$0xff]
        %v2482 = vld [vmem:[%s7 + $0xda8] sm:$0xff]
        %v2483 = vld [vmem:[%s7 + $0xdb0] sm:$0xff]
        %v2484 = vld [vmem:[%s7 + $0xdb8] sm:$0xff]
        %v2485 = vld [vmem:[%s7 + $0xdc0] sm:$0xff]
        %v2486 = vld [vmem:[%s7 + $0xdc8] sm:$0xff]
        %v2487 = vld [vmem:[%s7 + $0xdd0] sm:$0xff]
        %v2488 = vld [vmem:[%s7 + $0xdd8] sm:$0xff]
        %v2489 = vld [vmem:[%s7 + $0xde0] sm:$0xff]
        %v2490 = vld [vmem:[%s7 + $0xde8] sm:$0xff]
        %v2491 = vld [vmem:[%s7 + $0xdf0] sm:$0xff]
        %v2492 = vld [vmem:[%s7 + $0xdf8] sm:$0xff]
        %v2493 = vld [vmem:[%s7 + $0xe00] sm:$0xff]
        %v2494 = vld [vmem:[%s7 + $0xe08] sm:$0xff]
        %v2495 = vld [vmem:[%s7 + $0xe10] sm:$0xff]
        %v2496 = vld [vmem:[%s7 + $0xe18] sm:$0xff]
        %v2497 = vld [vmem:[%s7 + $0xe20] sm:$0xff]
        %v2498 = vld [vmem:[%s7 + $0xe28] sm:$0xff]
        %v2499 = vld [vmem:[%s7 + $0xe30] sm:$0xff]
        %v2500 = vld [vmem:[%s7 + $0xe38] sm:$0xff]
        %v2501 = vld [vmem:[%s7 + $0xe40] sm:$0xff]
        %v2502 = vld [vmem:[%s7 + $0xe48] sm:$0xff]
        %v2503 = vld [vmem:[%s7 + $0xe50] sm:$0xff]
        %v2504 = vld [vmem:[%s7 + $0xe58] sm:$0xff]
        %v2505 = vld [vmem:[%s7 + $0xe60] sm:$0xff]
        %v2506 = vld [vmem:[%s7 + $0xe68] sm:$0xff]
        %v2507 = vld [vmem:[%s7 + $0xe70] sm:$0xff]
        %v2508 = vld [vmem:[%s7 + $0xe78] sm:$0xff]
        %v2509 = vld [vmem:[%s7 + $0xe80] sm:$0xff]
        %v2510 = vld [vmem:[%s7 + $0xe88] sm:$0xff]
        %v2511 = vld [vmem:[%s7 + $0xe90] sm:$0xff]
        %v2512 = vld [vmem:[%s7 + $0xe98] sm:$0xff]
        %v2513 = vld [vmem:[%s7 + $0xea0] sm:$0xff]
        %v2514 = vld [vmem:[%s7 + $0xea8] sm:$0xff]
        %v2515 = vld [vmem:[%s7 + $0xeb0] sm:$0xff]
        %v2516 = vld [vmem:[%s7 + $0xeb8] sm:$0xff]
        %v2517 = vld [vmem:[%s7 + $0xec0] sm:$0xff]
        %v2518 = vld [vmem:[%s7 + $0xec8] sm:$0xff]
        %v2519 = vld [vmem:[%s7 + $0xed0] sm:$0xff]
        %v2520 = vld [vmem:[%s7 + $0xed8] sm:$0xff]
        %v2521 = vld [vmem:[%s7 + $0xee0] sm:$0xff]
        %v2522 = vld [vmem:[%s7 + $0xee8] sm:$0xff]
        %v2523 = vld [vmem:[%s7 + $0xef0] sm:$0xff]
        %v2524 = vld [vmem:[%s7 + $0xef8] sm:$0xff]
        %v2525 = vld [vmem:[%s7 + $0xf00] sm:$0xff]
        %v2526 = vld [vmem:[%s7 + $0xf08] sm:$0xff]
        %v2527 = vld [vmem:[%s7 + $0xf10] sm:$0xff]
        %v2528 = vld [vmem:[%s7 + $0xf18] sm:$0xff]
        %v2529 = vld [vmem:[%s7 + $0xf20] sm:$0xff]
        %v2530 = vld [vmem:[%s7 + $0xf28] sm:$0xff]
        %v2531 = vld [vmem:[%s7 + $0xf30] sm:$0xff]
        %v2532 = vld [vmem:[%s7 + $0xf38] sm:$0xff]
        %v2533 = vld [vmem:[%s7 + $0xf40] sm:$0xff]
        %v2534 = vld [vmem:[%s7 + $0xf48] sm:$0xff]
        %v2535 = vld [vmem:[%s7 + $0xf50] sm:$0xff]
        %v2536 = vld [vmem:[%s7 + $0xf58] sm:$0xff]
        %v2537 = vld [vmem:[%s7 + $0xf60] sm:$0xff]
        %v2538 = vld [vmem:[%s7 + $0xf68] sm:$0xff]
        %v2539 = vld [vmem:[%s7 + $0xf70] sm:$0xff]
        %v2540 = vld [vmem:[%s7 + $0xf78] sm:$0xff]
        %v2541 = vld [vmem:[%s7 + $0xf80] sm:$0xff]
        %v2542 = vld [vmem:[%s7 + $0xf88] sm:$0xff]
        %v2543 = vld [vmem:[%s7 + $0xf90] sm:$0xff]
        %v2544 = vld [vmem:[%s7 + $0xf98] sm:$0xff]
        %v2545 = vld [vmem:[%s7 + $0xfa0] sm:$0xff]
        %v2546 = vld [vmem:[%s7 + $0xfa8] sm:$0xff]
        %v2547 = vld [vmem:[%s7 + $0xfb0] sm:$0xff]
        %v2548 = vld [vmem:[%s7 + $0xfb8] sm:$0xff]
        %v2549 = vld [vmem:[%s7 + $0xfc0] sm:$0xff]
        %v2550 = vld [vmem:[%s7 + $0xfc8] sm:$0xff]
        %v2551 = vld [vmem:[%s7 + $0xfd0] sm:$0xff]
        %v2552 = vld [vmem:[%s7 + $0xfd8] sm:$0xff]
        %v2553 = vld [vmem:[%s7 + $0xfe0] sm:$0xff]
        %v2554 = vld [vmem:[%s7 + $0xfe8] sm:$0xff]
        %v2555 = vld [vmem:[%s7 + $0xff0] sm:$0xff]
        %v2556 = vld [vmem:[%s7 + $0xff8] sm:$0xff]
        %v2557 = vld [vmem:[%s7 + $0x1000] sm:$0xff]
        %v2558 = vld [vmem:[%s7 + $0x1008] sm:$0xff]
        %v2559 = vld [vmem:[%s7 + $0x1010] sm:$0xff]
        %v2560 = vld [vmem:[%s7 + $0x1018] sm:$0xff]
        %v2561 = vld [vmem:[%s7 + $0x1020] sm:$0xff]
        %v2562 = vld [vmem:[%s7 + $0x1028] sm:$0xff]
        %v2563 = vld [vmem:[%s7 + $0x1030] sm:$0xff]
        %v2564 = vld [vmem:[%s7 + $0x1038] sm:$0xff]
        %v2565 = vld [vmem:[%s7 + $0x1040] sm:$0xff]
        %v2566 = vld [vmem:[%s7 + $0x1048] sm:$0xff]
        %v2567 = vld [vmem:[%s7 + $0x1050] sm:$0xff]
        %v2568 = vld [vmem:[%s7 + $0x1058] sm:$0xff]
        %v2569 = vld [vmem:[%s7 + $0x1060] sm:$0xff]
        %v2570 = vld [vmem:[%s7 + $0x1068] sm:$0xff]
        %v2571 = vld [vmem:[%s7 + $0x1070] sm:$0xff]
        %v2572 = vld [vmem:[%s7 + $0x1078] sm:$0xff]
        %v2573 = vmul.f32 %v1997, %v2045
        %v2574 = vmul.f32 %v1998, %v2046
        %v2575 = vmul.f32 %v1999, %v2047
        %v2576 = vmul.f32 %v2000, %v2048
        %v2577 = vmul.f32 %v2001, %v2049
        %v2578 = vmul.f32 %v2002, %v2050
        %v2579 = vmul.f32 %v2003, %v2051
        %v2580 = vmul.f32 %v2004, %v2052
        %v2581 = vmul.f32 %v2005, %v2053
        %v2582 = vmul.f32 %v2006, %v2054
        %v2583 = vmul.f32 %v2007, %v2055
        %v2584 = vmul.f32 %v2008, %v2056
        %v2585 = vmul.f32 %v2009, %v2057
        %v2586 = vmul.f32 %v2010, %v2058
        %v2587 = vmul.f32 %v2011, %v2059
        %v2588 = vmul.f32 %v2012, %v2060
        %v2589 = vmul.f32 %v2013, %v2061
        %v2590 = vmul.f32 %v2014, %v2062
        %v2591 = vmul.f32 %v2015, %v2063
        %v2592 = vmul.f32 %v2016, %v2064
        %v2593 = vmul.f32 %v2017, %v2065
        %v2594 = vmul.f32 %v2018, %v2066
        %v2595 = vmul.f32 %v2019, %v2067
        %v2596 = vmul.f32 %v2020, %v2068
        %v2597 = vmul.f32 %v2021, %v2069
        %v2598 = vmul.f32 %v2022, %v2070
        %v2599 = vmul.f32 %v2023, %v2071
        %v2600 = vmul.f32 %v2024, %v2072
        %v2601 = vmul.f32 %v2025, %v2073
        %v2602 = vmul.f32 %v2026, %v2074
        %v2603 = vmul.f32 %v2027, %v2075
        %v2604 = vmul.f32 %v2028, %v2076
        %v2605 = vmul.f32 %v2029, %v2077
        %v2606 = vmul.f32 %v2030, %v2078
        %v2607 = vmul.f32 %v2031, %v2079
        %v2608 = vmul.f32 %v2032, %v2080
        %v2609 = vmul.f32 %v2033, %v2081
        %v2610 = vmul.f32 %v2034, %v2082
        %v2611 = vmul.f32 %v2035, %v2083
        %v2612 = vmul.f32 %v2036, %v2084
        %v2613 = vmul.f32 %v2037, %v2085
        %v2614 = vmul.f32 %v2038, %v2086
        %v2615 = vmul.f32 %v2039, %v2087
        %v2616 = vmul.f32 %v2040, %v2088
        %v2617 = vmul.f32 %v2041, %v2089
        %v2618 = vmul.f32 %v2042, %v2090
        %v2619 = vmul.f32 %v2043, %v2091
        %v2620 = vmul.f32 %v2044, %v2092
        %v2621 = vmul.f32 %v1997, %v2093
        %v2622 = vmul.f32 %v1998, %v2094
        %v2623 = vmul.f32 %v1999, %v2095
        %v2624 = vmul.f32 %v2000, %v2096
        %v2625 = vmul.f32 %v2001, %v2097
        %v2626 = vmul.f32 %v2002, %v2098
        %v2627 = vmul.f32 %v2003, %v2099
        %v2628 = vmul.f32 %v2004, %v2100
        %v2629 = vmul.f32 %v2005, %v2101
        %v2630 = vmul.f32 %v2006, %v2102
        %v2631 = vmul.f32 %v2007, %v2103
        %v2632 = vmul.f32 %v2008, %v2104
        %v2633 = vmul.f32 %v2009, %v2105
        %v2634 = vmul.f32 %v2010, %v2106
        %v2635 = vmul.f32 %v2011, %v2107
        %v2636 = vmul.f32 %v2012, %v2108
        %v2637 = vmul.f32 %v2013, %v2109
        %v2638 = vmul.f32 %v2014, %v2110
        %v2639 = vmul.f32 %v2015, %v2111
        %v2640 = vmul.f32 %v2016, %v2112
        %v2641 = vmul.f32 %v2017, %v2113
        %v2642 = vmul.f32 %v2018, %v2114
        %v2643 = vmul.f32 %v2019, %v2115
        %v2644 = vmul.f32 %v2020, %v2116
        %v2645 = vmul.f32 %v2021, %v2117
        %v2646 = vmul.f32 %v2022, %v2118
        %v2647 = vmul.f32 %v2023, %v2119
        %v2648 = vmul.f32 %v2024, %v2120
        %v2649 = vmul.f32 %v2025, %v2121
        %v2650 = vmul.f32 %v2026, %v2122
        %v2651 = vmul.f32 %v2027, %v2123
        %v2652 = vmul.f32 %v2028, %v2124
        %v2653 = vmul.f32 %v2029, %v2125
        %v2654 = vmul.f32 %v2030, %v2126
        %v2655 = vmul.f32 %v2031, %v2127
        %v2656 = vmul.f32 %v2032, %v2128
        %v2657 = vmul.f32 %v2033, %v2129
        %v2658 = vmul.f32 %v2034, %v2130
        %v2659 = vmul.f32 %v2035, %v2131
        %v2660 = vmul.f32 %v2036, %v2132
        %v2661 = vmul.f32 %v2037, %v2133
        %v2662 = vmul.f32 %v2038, %v2134
        %v2663 = vmul.f32 %v2039, %v2135
        %v2664 = vmul.f32 %v2040, %v2136
        %v2665 = vmul.f32 %v2041, %v2137
        %v2666 = vmul.f32 %v2042, %v2138
        %v2667 = vmul.f32 %v2043, %v2139
        %v2668 = vmul.f32 %v2044, %v2140
        %v2669 = vmul.f32 %v1997, %v2141
        %v2670 = vmul.f32 %v1998, %v2142
        %v2671 = vmul.f32 %v1999, %v2143
        %v2672 = vmul.f32 %v2000, %v2144
        %v2673 = vmul.f32 %v2001, %v2145
        %v2674 = vmul.f32 %v2002, %v2146
        %v2675 = vmul.f32 %v2003, %v2147
        %v2676 = vmul.f32 %v2004, %v2148
        %v2677 = vmul.f32 %v2005, %v2149
        %v2678 = vmul.f32 %v2006, %v2150
        %v2679 = vmul.f32 %v2007, %v2151
        %v2680 = vmul.f32 %v2008, %v2152
        %v2681 = vmul.f32 %v2009, %v2153
        %v2682 = vmul.f32 %v2010, %v2154
        %v2683 = vmul.f32 %v2011, %v2155
        %v2684 = vmul.f32 %v2012, %v2156
        %v2685 = vmul.f32 %v2013, %v2157
        %v2686 = vmul.f32 %v2014, %v2158
        %v2687 = vmul.f32 %v2015, %v2159
        %v2688 = vmul.f32 %v2016, %v2160
        %v2689 = vmul.f32 %v2017, %v2161
        %v2690 = vmul.f32 %v2018, %v2162
        %v2691 = vmul.f32 %v2019, %v2163
        %v2692 = vmul.f32 %v2020, %v2164
        %v2693 = vmul.f32 %v2021, %v2165
        %v2694 = vmul.f32 %v2022, %v2166
        %v2695 = vmul.f32 %v2023, %v2167
        %v2696 = vmul.f32 %v2024, %v2168
        %v2697 = vmul.f32 %v2025, %v2169
        %v2698 = vmul.f32 %v2026, %v2170
        %v2699 = vmul.f32 %v2027, %v2171
        %v2700 = vmul.f32 %v2028, %v2172
        %v2701 = vmul.f32 %v2029, %v2173
        %v2702 = vmul.f32 %v2030, %v2174
        %v2703 = vmul.f32 %v2031, %v2175
        %v2704 = vmul.f32 %v2032, %v2176
        %v2705 = vmul.f32 %v2033, %v2177
        %v2706 = vmul.f32 %v2034, %v2178
        %v2707 = vmul.f32 %v2035, %v2179
        %v2708 = vmul.f32 %v2036, %v2180
        %v2709 = vmul.f32 %v2037, %v2181
        %v2710 = vmul.f32 %v2038, %v2182
        %v2711 = vmul.f32 %v2039, %v2183
        %v2712 = vmul.f32 %v2040, %v2184
        %v2713 = vmul.f32 %v2041, %v2185
        %v2714 = vmul.f32 %v2042, %v2186
        %v2715 = vmul.f32 %v2043, %v2187
        %v2716 = vmul.f32 %v2044, %v2188
        %v2717 = vmul.f32 %v1997, %v2189
        %v2718 = vmul.f32 %v1998, %v2190
        %v2719 = vmul.f32 %v1999, %v2191
        %v2720 = vmul.f32 %v2000, %v2192
        %v2721 = vmul.f32 %v2001, %v2193
        %v2722 = vmul.f32 %v2002, %v2194
        %v2723 = vmul.f32 %v2003, %v2195
        %v2724 = vmul.f32 %v2004, %v2196
        %v2725 = vmul.f32 %v2005, %v2197
        %v2726 = vmul.f32 %v2006, %v2198
        %v2727 = vmul.f32 %v2007, %v2199
        %v2728 = vmul.f32 %v2008, %v2200
        %v2729 = vmul.f32 %v2009, %v2201
        %v2730 = vmul.f32 %v2010, %v2202
        %v2731 = vmul.f32 %v2011, %v2203
        %v2732 = vmul.f32 %v2012, %v2204
        %v2733 = vmul.f32 %v2013, %v2205
        %v2734 = vmul.f32 %v2014, %v2206
        %v2735 = vmul.f32 %v2015, %v2207
        %v2736 = vmul.f32 %v2016, %v2208
        %v2737 = vmul.f32 %v2017, %v2209
        %v2738 = vmul.f32 %v2018, %v2210
        %v2739 = vmul.f32 %v2019, %v2211
        %v2740 = vmul.f32 %v2020, %v2212
        %v2741 = vmul.f32 %v2021, %v2213
        %v2742 = vmul.f32 %v2022, %v2214
        %v2743 = vmul.f32 %v2023, %v2215
        %v2744 = vmul.f32 %v2024, %v2216
        %v2745 = vmul.f32 %v2025, %v2217
        %v2746 = vmul.f32 %v2026, %v2218
        %v2747 = vmul.f32 %v2027, %v2219
        %v2748 = vmul.f32 %v2028, %v2220
        %v2749 = vmul.f32 %v2029, %v2221
        %v2750 = vmul.f32 %v2030, %v2222
        %v2751 = vmul.f32 %v2031, %v2223
        %v2752 = vmul.f32 %v2032, %v2224
        %v2753 = vmul.f32 %v2033, %v2225
        %v2754 = vmul.f32 %v2034, %v2226
        %v2755 = vmul.f32 %v2035, %v2227
        %v2756 = vmul.f32 %v2036, %v2228
        %v2757 = vmul.f32 %v2037, %v2229
        %v2758 = vmul.f32 %v2038, %v2230
        %v2759 = vmul.f32 %v2039, %v2231
        %v2760 = vmul.f32 %v2040, %v2232
        %v2761 = vmul.f32 %v2041, %v2233
        %v2762 = vmul.f32 %v2042, %v2234
        %v2763 = vmul.f32 %v2043, %v2235
        %v2764 = vmul.f32 %v2044, %v2236
        %v2765 = vmul.f32 %v1997, %v2237
        %v2766 = vmul.f32 %v1998, %v2238
        %v2767 = vmul.f32 %v1999, %v2239
        %v2768 = vmul.f32 %v2000, %v2240
        %v2769 = vmul.f32 %v2001, %v2241
        %v2770 = vmul.f32 %v2002, %v2242
        %v2771 = vmul.f32 %v2003, %v2243
        %v2772 = vmul.f32 %v2004, %v2244
        %v2773 = vmul.f32 %v2005, %v2245
        %v2774 = vmul.f32 %v2006, %v2246
        %v2775 = vmul.f32 %v2007, %v2247
        %v2776 = vmul.f32 %v2008, %v2248
        %v2777 = vmul.f32 %v2009, %v2249
        %v2778 = vmul.f32 %v2010, %v2250
        %v2779 = vmul.f32 %v2011, %v2251
        %v2780 = vmul.f32 %v2012, %v2252
        %v2781 = vmul.f32 %v2013, %v2253
        %v2782 = vmul.f32 %v2014, %v2254
        %v2783 = vmul.f32 %v2015, %v2255
        %v2784 = vmul.f32 %v2016, %v2256
        %v2785 = vmul.f32 %v2017, %v2257
        %v2786 = vmul.f32 %v2018, %v2258
        %v2787 = vmul.f32 %v2019, %v2259
        %v2788 = vmul.f32 %v2020, %v2260
        %v2789 = vmul.f32 %v2021, %v2261
        %v2790 = vmul.f32 %v2022, %v2262
        %v2791 = vmul.f32 %v2023, %v2263
        %v2792 = vmul.f32 %v2024, %v2264
        %v2793 = vmul.f32 %v2025, %v2265
        %v2794 = vmul.f32 %v2026, %v2266
        %v2795 = vmul.f32 %v2027, %v2267
        %v2796 = vmul.f32 %v2028, %v2268
        %v2797 = vmul.f32 %v2029, %v2269
        %v2798 = vmul.f32 %v2030, %v2270
        %v2799 = vmul.f32 %v2031, %v2271
        %v2800 = vmul.f32 %v2032, %v2272
        %v2801 = vmul.f32 %v2033, %v2273
        %v2802 = vmul.f32 %v2034, %v2274
        %v2803 = vmul.f32 %v2035, %v2275
        %v2804 = vmul.f32 %v2036, %v2276
        %v2805 = vmul.f32 %v2037, %v2277
        %v2806 = vmul.f32 %v2038, %v2278
        %v2807 = vmul.f32 %v2039, %v2279
        %v2808 = vmul.f32 %v2040, %v2280
        %v2809 = vmul.f32 %v2041, %v2281
        %v2810 = vmul.f32 %v2042, %v2282
        %v2811 = vmul.f32 %v2043, %v2283
        %v2812 = vmul.f32 %v2044, %v2284
        %v2813 = vmul.f32 %v1997, %v2285
        %v2814 = vmul.f32 %v1998, %v2286
        %v2815 = vmul.f32 %v1999, %v2287
        %v2816 = vmul.f32 %v2000, %v2288
        %v2817 = vmul.f32 %v2001, %v2289
        %v2818 = vmul.f32 %v2002, %v2290
        %v2819 = vmul.f32 %v2003, %v2291
        %v2820 = vmul.f32 %v2004, %v2292
        %v2821 = vmul.f32 %v2005, %v2293
        %v2822 = vmul.f32 %v2006, %v2294
        %v2823 = vmul.f32 %v2007, %v2295
        %v2824 = vmul.f32 %v2008, %v2296
        %v2825 = vmul.f32 %v2009, %v2297
        %v2826 = vmul.f32 %v2010, %v2298
        %v2827 = vmul.f32 %v2011, %v2299
        %v2828 = vmul.f32 %v2012, %v2300
        %v2829 = vmul.f32 %v2013, %v2301
        %v2830 = vmul.f32 %v2014, %v2302
        %v2831 = vmul.f32 %v2015, %v2303
        %v2832 = vmul.f32 %v2016, %v2304
        %v2833 = vmul.f32 %v2017, %v2305
        %v2834 = vmul.f32 %v2018, %v2306
        %v2835 = vmul.f32 %v2019, %v2307
        %v2836 = vmul.f32 %v2020, %v2308
        %v2837 = vmul.f32 %v2021, %v2309
        %v2838 = vmul.f32 %v2022, %v2310
        %v2839 = vmul.f32 %v2023, %v2311
        %v2840 = vmul.f32 %v2024, %v2312
        %v2841 = vmul.f32 %v2025, %v2313
        %v2842 = vmul.f32 %v2026, %v2314
        %v2843 = vmul.f32 %v2027, %v2315
        %v2844 = vmul.f32 %v2028, %v2316
        %v2845 = vmul.f32 %v2029, %v2317
        %v2846 = vmul.f32 %v2030, %v2318
        %v2847 = vmul.f32 %v2031, %v2319
        %v2848 = vmul.f32 %v2032, %v2320
        %v2849 = vmul.f32 %v2033, %v2321
        %v2850 = vmul.f32 %v2034, %v2322
        %v2851 = vmul.f32 %v2035, %v2323
        %v2852 = vmul.f32 %v2036, %v2324
        %v2853 = vmul.f32 %v2037, %v2325
        %v2854 = vmul.f32 %v2038, %v2326
        %v2855 = vmul.f32 %v2039, %v2327
        %v2856 = vmul.f32 %v2040, %v2328
        %v2857 = vmul.f32 %v2041, %v2329
        %v2858 = vmul.f32 %v2042, %v2330
        %v2859 = vmul.f32 %v2043, %v2331
        %v2860 = vmul.f32 %v2044, %v2332
        %v2861 = vmul.f32 %v1997, %v2333
        %v2862 = vmul.f32 %v1998, %v2334
        %v2863 = vmul.f32 %v1999, %v2335
        %v2864 = vmul.f32 %v2000, %v2336
        %v2865 = vmul.f32 %v2001, %v2337
        %v2866 = vmul.f32 %v2002, %v2338
        %v2867 = vmul.f32 %v2003, %v2339
        %v2868 = vmul.f32 %v2004, %v2340
        %v2869 = vmul.f32 %v2005, %v2341
        %v2870 = vmul.f32 %v2006, %v2342
        %v2871 = vmul.f32 %v2007, %v2343
        %v2872 = vmul.f32 %v2008, %v2344
        %v2873 = vmul.f32 %v2009, %v2345
        %v2874 = vmul.f32 %v2010, %v2346
        %v2875 = vmul.f32 %v2011, %v2347
        %v2876 = vmul.f32 %v2012, %v2348
        %v2877 = vmul.f32 %v2013, %v2349
        %v2878 = vmul.f32 %v2014, %v2350
        %v2879 = vmul.f32 %v2015, %v2351
        %v2880 = vmul.f32 %v2016, %v2352
        %v2881 = vmul.f32 %v2017, %v2353
        %v2882 = vmul.f32 %v2018, %v2354
        %v2883 = vmul.f32 %v2019, %v2355
        %v2884 = vmul.f32 %v2020, %v2356
        %v2885 = vmul.f32 %v2021, %v2357
        %v2886 = vmul.f32 %v2022, %v2358
        %v2887 = vmul.f32 %v2023, %v2359
        %v2888 = vmul.f32 %v2024, %v2360
        %v2889 = vmul.f32 %v2025, %v2361
        %v2890 = vmul.f32 %v2026, %v2362
        %v2891 = vmul.f32 %v2027, %v2363
        %v2892 = vmul.f32 %v2028, %v2364
        %v2893 = vmul.f32 %v2029, %v2365
        %v2894 = vmul.f32 %v2030, %v2366
        %v2895 = vmul.f32 %v2031, %v2367
        %v2896 = vmul.f32 %v2032, %v2368
        %v2897 = vmul.f32 %v2033, %v2369
        %v2898 = vmul.f32 %v2034, %v2370
        %v2899 = vmul.f32 %v2035, %v2371
        %v2900 = vmul.f32 %v2036, %v2372
        %v2901 = vmul.f32 %v2037, %v2373
        %v2902 = vmul.f32 %v2038, %v2374
        %v2903 = vmul.f32 %v2039, %v2375
        %v2904 = vmul.f32 %v2040, %v2376
        %v2905 = vmul.f32 %v2041, %v2377
        %v2906 = vmul.f32 %v2042, %v2378
        %v2907 = vmul.f32 %v2043, %v2379
        %v2908 = vmul.f32 %v2044, %v2380
        %v2909 = vmul.f32 %v1997, %v2381
        %v2910 = vmul.f32 %v1998, %v2382
        %v2911 = vmul.f32 %v1999, %v2383
        %v2912 = vmul.f32 %v2000, %v2384
        %v2913 = vmul.f32 %v2001, %v2385
        %v2914 = vmul.f32 %v2002, %v2386
        %v2915 = vmul.f32 %v2003, %v2387
        %v2916 = vmul.f32 %v2004, %v2388
        %v2917 = vmul.f32 %v2005, %v2389
        %v2918 = vmul.f32 %v2006, %v2390
        %v2919 = vmul.f32 %v2007, %v2391
        %v2920 = vmul.f32 %v2008, %v2392
        %v2921 = vmul.f32 %v2009, %v2393
        %v2922 = vmul.f32 %v2010, %v2394
        %v2923 = vmul.f32 %v2011, %v2395
        %v2924 = vmul.f32 %v2012, %v2396
        %v2925 = vmul.f32 %v2013, %v2397
        %v2926 = vmul.f32 %v2014, %v2398
        %v2927 = vmul.f32 %v2015, %v2399
        %v2928 = vmul.f32 %v2016, %v2400
        %v2929 = vmul.f32 %v2017, %v2401
        %v2930 = vmul.f32 %v2018, %v2402
        %v2931 = vmul.f32 %v2019, %v2403
        %v2932 = vmul.f32 %v2020, %v2404
        %v2933 = vmul.f32 %v2021, %v2405
        %v2934 = vmul.f32 %v2022, %v2406
        %v2935 = vmul.f32 %v2023, %v2407
        %v2936 = vmul.f32 %v2024, %v2408
        %v2937 = vmul.f32 %v2025, %v2409
        %v2938 = vmul.f32 %v2026, %v2410
        %v2939 = vmul.f32 %v2027, %v2411
        %v2940 = vmul.f32 %v2028, %v2412
        %v2941 = vmul.f32 %v2029, %v2413
        %v2942 = vmul.f32 %v2030, %v2414
        %v2943 = vmul.f32 %v2031, %v2415
        %v2944 = vmul.f32 %v2032, %v2416
        %v2945 = vmul.f32 %v2033, %v2417
        %v2946 = vmul.f32 %v2034, %v2418
        %v2947 = vmul.f32 %v2035, %v2419
        %v2948 = vmul.f32 %v2036, %v2420
        %v2949 = vmul.f32 %v2037, %v2421
        %v2950 = vmul.f32 %v2038, %v2422
        %v2951 = vmul.f32 %v2039, %v2423
        %v2952 = vmul.f32 %v2040, %v2424
        %v2953 = vmul.f32 %v2041, %v2425
        %v2954 = vmul.f32 %v2042, %v2426
        %v2955 = vmul.f32 %v2043, %v2427
        %v2956 = vmul.f32 %v2044, %v2428
        %v2957 = vmul.f32 %v1997, %v2429
        %v2958 = vmul.f32 %v1998, %v2430
        %v2959 = vmul.f32 %v1999, %v2431
        %v2960 = vmul.f32 %v2000, %v2432
        %v2961 = vmul.f32 %v2001, %v2433
        %v2962 = vmul.f32 %v2002, %v2434
        %v2963 = vmul.f32 %v2003, %v2435
        %v2964 = vmul.f32 %v2004, %v2436
        %v2965 = vmul.f32 %v2005, %v2437
        %v2966 = vmul.f32 %v2006, %v2438
        %v2967 = vmul.f32 %v2007, %v2439
        %v2968 = vmul.f32 %v2008, %v2440
        %v2969 = vmul.f32 %v2009, %v2441
        %v2970 = vmul.f32 %v2010, %v2442
        %v2971 = vmul.f32 %v2011, %v2443
        %v2972 = vmul.f32 %v2012, %v2444
        %v2973 = vmul.f32 %v2013, %v2445
        %v2974 = vmul.f32 %v2014, %v2446
        %v2975 = vmul.f32 %v2015, %v2447
        %v2976 = vmul.f32 %v2016, %v2448
        %v2977 = vmul.f32 %v2017, %v2449
        %v2978 = vmul.f32 %v2018, %v2450
        %v2979 = vmul.f32 %v2019, %v2451
        %v2980 = vmul.f32 %v2020, %v2452
        %v2981 = vmul.f32 %v2021, %v2453
        %v2982 = vmul.f32 %v2022, %v2454
        %v2983 = vmul.f32 %v2023, %v2455
        %v2984 = vmul.f32 %v2024, %v2456
        %v2985 = vmul.f32 %v2025, %v2457
        %v2986 = vmul.f32 %v2026, %v2458
        %v2987 = vmul.f32 %v2027, %v2459
        %v2988 = vmul.f32 %v2028, %v2460
        %v2989 = vmul.f32 %v2029, %v2461
        %v2990 = vmul.f32 %v2030, %v2462
        %v2991 = vmul.f32 %v2031, %v2463
        %v2992 = vmul.f32 %v2032, %v2464
        %v2993 = vmul.f32 %v2033, %v2465
        %v2994 = vmul.f32 %v2034, %v2466
        %v2995 = vmul.f32 %v2035, %v2467
        %v2996 = vmul.f32 %v2036, %v2468
        %v2997 = vmul.f32 %v2037, %v2469
        %v2998 = vmul.f32 %v2038, %v2470
        %v2999 = vmul.f32 %v2039, %v2471
        %v3000 = vmul.f32 %v2040, %v2472
        %v3001 = vmul.f32 %v2041, %v2473
        %v3002 = vmul.f32 %v2042, %v2474
        %v3003 = vmul.f32 %v2043, %v2475
        %v3004 = vmul.f32 %v2044, %v2476
        %v3005 = vmul.f32 %v1997, %v2477
        %v3006 = vmul.f32 %v1998, %v2478
        %v3007 = vmul.f32 %v1999, %v2479
        %v3008 = vmul.f32 %v2000, %v2480
        %v3009 = vmul.f32 %v2001, %v2481
        %v3010 = vmul.f32 %v2002, %v2482
        %v3011 = vmul.f32 %v2003, %v2483
        %v3012 = vmul.f32 %v2004, %v2484
        %v3013 = vmul.f32 %v2005, %v2485
        %v3014 = vmul.f32 %v2006, %v2486
        %v3015 = vmul.f32 %v2007, %v2487
        %v3016 = vmul.f32 %v2008, %v2488
        %v3017 = vmul.f32 %v2009, %v2489
        %v3018 = vmul.f32 %v2010, %v2490
        %v3019 = vmul.f32 %v2011, %v2491
        %v3020 = vmul.f32 %v2012, %v2492
        %v3021 = vmul.f32 %v2013, %v2493
        %v3022 = vmul.f32 %v2014, %v2494
        %v3023 = vmul.f32 %v2015, %v2495
        %v3024 = vmul.f32 %v2016, %v2496
        %v3025 = vmul.f32 %v2017, %v2497
        %v3026 = vmul.f32 %v2018, %v2498
        %v3027 = vmul.f32 %v2019, %v2499
        %v3028 = vmul.f32 %v2020, %v2500
        %v3029 = vmul.f32 %v2021, %v2501
        %v3030 = vmul.f32 %v2022, %v2502
        %v3031 = vmul.f32 %v2023, %v2503
        %v3032 = vmul.f32 %v2024, %v2504
        %v3033 = vmul.f32 %v2025, %v2505
        %v3034 = vmul.f32 %v2026, %v2506
        %v3035 = vmul.f32 %v2027, %v2507
        %v3036 = vmul.f32 %v2028, %v2508
        %v3037 = vmul.f32 %v2029, %v2509
        %v3038 = vmul.f32 %v2030, %v2510
        %v3039 = vmul.f32 %v2031, %v2511
        %v3040 = vmul.f32 %v2032, %v2512
        %v3041 = vmul.f32 %v2033, %v2513
        %v3042 = vmul.f32 %v2034, %v2514
        %v3043 = vmul.f32 %v2035, %v2515
        %v3044 = vmul.f32 %v2036, %v2516
        %v3045 = vmul.f32 %v2037, %v2517
        %v3046 = vmul.f32 %v2038, %v2518
        %v3047 = vmul.f32 %v2039, %v2519
        %v3048 = vmul.f32 %v2040, %v2520
        %v3049 = vmul.f32 %v2041, %v2521
        %v3050 = vmul.f32 %v2042, %v2522
        %v3051 = vmul.f32 %v2043, %v2523
        %v3052 = vmul.f32 %v2044, %v2524
        %v3053 = vmul.f32 %v1997, %v2525
        %v3054 = vmul.f32 %v1998, %v2526
        %v3055 = vmul.f32 %v1999, %v2527
        %v3056 = vmul.f32 %v2000, %v2528
        %v3057 = vmul.f32 %v2001, %v2529
        %v3058 = vmul.f32 %v2002, %v2530
        %v3059 = vmul.f32 %v2003, %v2531
        %v3060 = vmul.f32 %v2004, %v2532
        %v3061 = vmul.f32 %v2005, %v2533
        %v3062 = vmul.f32 %v2006, %v2534
        %v3063 = vmul.f32 %v2007, %v2535
        %v3064 = vmul.f32 %v2008, %v2536
        %v3065 = vmul.f32 %v2009, %v2537
        %v3066 = vmul.f32 %v2010, %v2538
        %v3067 = vmul.f32 %v2011, %v2539
        %v3068 = vmul.f32 %v2012, %v2540
        %v3069 = vmul.f32 %v2013, %v2541
        %v3070 = vmul.f32 %v2014, %v2542
        %v3071 = vmul.f32 %v2015, %v2543
        %v3072 = vmul.f32 %v2016, %v2544
        %v3073 = vmul.f32 %v2017, %v2545
        %v3074 = vmul.f32 %v2018, %v2546
        %v3075 = vmul.f32 %v2019, %v2547
        %v3076 = vmul.f32 %v2020, %v2548
        %v3077 = vmul.f32 %v2021, %v2549
        %v3078 = vmul.f32 %v2022, %v2550
        %v3079 = vmul.f32 %v2023, %v2551
        %v3080 = vmul.f32 %v2024, %v2552
        %v3081 = vmul.f32 %v2025, %v2553
        %v3082 = vmul.f32 %v2026, %v2554
        %v3083 = vmul.f32 %v2027, %v2555
        %v3084 = vmul.f32 %v2028, %v2556
        %v3085 = vmul.f32 %v2029, %v2557
        %v3086 = vmul.f32 %v2030, %v2558
        %v3087 = vmul.f32 %v2031, %v2559
        %v3088 = vmul.f32 %v2032, %v2560
        %v3089 = vmul.f32 %v2033, %v2561
        %v3090 = vmul.f32 %v2034, %v2562
        %v3091 = vmul.f32 %v2035, %v2563
        %v3092 = vmul.f32 %v2036, %v2564
        %v3093 = vmul.f32 %v2037, %v2565
        %v3094 = vmul.f32 %v2038, %v2566
        %v3095 = vmul.f32 %v2039, %v2567
        %v3096 = vmul.f32 %v2040, %v2568
        %v3097 = vmul.f32 %v2041, %v2569
        %v3098 = vmul.f32 %v2042, %v2570
        %v3099 = vmul.f32 %v2043, %v2571
        %v3100 = vmul.f32 %v2044, %v2572
        %vm3101 = vcmask 195584
        %v3102 = vsel %vm3101, %v2573, 0.0
        %3103 = vadd.xlane.f32.xlu0 %v3102
        %v3104 = vpop.xlane.xlu0 %3103
        %v3105 = vsel %vm3101, %v2574, 0.0
        %3106 = vadd.xlane.f32.xlu0 %v3105
        %v3107 = vpop.xlane.xlu0 %3106
        %v3108 = vsel %vm3101, %v2575, 0.0
        %3109 = vadd.xlane.f32.xlu0 %v3108
        %v3110 = vpop.xlane.xlu0 %3109
        %v3111 = vsel %vm3101, %v2576, 0.0
        %3112 = vadd.xlane.f32.xlu0 %v3111
        %v3113 = vpop.xlane.xlu0 %3112
        %v3114 = vsel %vm3101, %v2577, 0.0
        %3115 = vadd.xlane.f32.xlu0 %v3114
        %v3116 = vpop.xlane.xlu0 %3115
        %v3117 = vsel %vm3101, %v2578, 0.0
        %3118 = vadd.xlane.f32.xlu0 %v3117
        %v3119 = vpop.xlane.xlu0 %3118
        %v3120 = vsel %vm3101, %v2579, 0.0
        %3121 = vadd.xlane.f32.xlu0 %v3120
        %v3122 = vpop.xlane.xlu0 %3121
        %v3123 = vsel %vm3101, %v2580, 0.0
        %3124 = vadd.xlane.f32.xlu0 %v3123
        %v3125 = vpop.xlane.xlu0 %3124
        %v3126 = vsel %vm3101, %v2581, 0.0
        %3127 = vadd.xlane.f32.xlu0 %v3126
        %v3128 = vpop.xlane.xlu0 %3127
        %v3129 = vsel %vm3101, %v2582, 0.0
        %3130 = vadd.xlane.f32.xlu0 %v3129
        %v3131 = vpop.xlane.xlu0 %3130
        %v3132 = vsel %vm3101, %v2583, 0.0
        %3133 = vadd.xlane.f32.xlu0 %v3132
        %v3134 = vpop.xlane.xlu0 %3133
        %v3135 = vsel %vm3101, %v2584, 0.0
        %3136 = vadd.xlane.f32.xlu0 %v3135
        %v3137 = vpop.xlane.xlu0 %3136
        %v3138 = vsel %vm3101, %v2585, 0.0
        %3139 = vadd.xlane.f32.xlu0 %v3138
        %v3140 = vpop.xlane.xlu0 %3139
        %v3141 = vsel %vm3101, %v2586, 0.0
        %3142 = vadd.xlane.f32.xlu0 %v3141
        %v3143 = vpop.xlane.xlu0 %3142
        %v3144 = vsel %vm3101, %v2587, 0.0
        %3145 = vadd.xlane.f32.xlu0 %v3144
        %v3146 = vpop.xlane.xlu0 %3145
        %v3147 = vsel %vm3101, %v2588, 0.0
        %3148 = vadd.xlane.f32.xlu0 %v3147
        %v3149 = vpop.xlane.xlu0 %3148
        %v3150 = vsel %vm3101, %v2589, 0.0
        %3151 = vadd.xlane.f32.xlu0 %v3150
        %v3152 = vpop.xlane.xlu0 %3151
        %v3153 = vsel %vm3101, %v2590, 0.0
        %3154 = vadd.xlane.f32.xlu0 %v3153
        %v3155 = vpop.xlane.xlu0 %3154
        %v3156 = vsel %vm3101, %v2591, 0.0
        %3157 = vadd.xlane.f32.xlu0 %v3156
        %v3158 = vpop.xlane.xlu0 %3157
        %v3159 = vsel %vm3101, %v2592, 0.0
        %3160 = vadd.xlane.f32.xlu0 %v3159
        %v3161 = vpop.xlane.xlu0 %3160
        %v3162 = vsel %vm3101, %v2593, 0.0
        %3163 = vadd.xlane.f32.xlu0 %v3162
        %v3164 = vpop.xlane.xlu0 %3163
        %v3165 = vsel %vm3101, %v2594, 0.0
        %3166 = vadd.xlane.f32.xlu0 %v3165
        %v3167 = vpop.xlane.xlu0 %3166
        %v3168 = vsel %vm3101, %v2595, 0.0
        %3169 = vadd.xlane.f32.xlu0 %v3168
        %v3170 = vpop.xlane.xlu0 %3169
        %v3171 = vsel %vm3101, %v2596, 0.0
        %3172 = vadd.xlane.f32.xlu0 %v3171
        %v3173 = vpop.xlane.xlu0 %3172
        %v3174 = vsel %vm3101, %v2597, 0.0
        %3175 = vadd.xlane.f32.xlu0 %v3174
        %v3176 = vpop.xlane.xlu0 %3175
        %v3177 = vsel %vm3101, %v2598, 0.0
        %3178 = vadd.xlane.f32.xlu0 %v3177
        %v3179 = vpop.xlane.xlu0 %3178
        %v3180 = vsel %vm3101, %v2599, 0.0
        %3181 = vadd.xlane.f32.xlu0 %v3180
        %v3182 = vpop.xlane.xlu0 %3181
        %v3183 = vsel %vm3101, %v2600, 0.0
        %3184 = vadd.xlane.f32.xlu0 %v3183
        %v3185 = vpop.xlane.xlu0 %3184
        %v3186 = vsel %vm3101, %v2601, 0.0
        %3187 = vadd.xlane.f32.xlu0 %v3186
        %v3188 = vpop.xlane.xlu0 %3187
        %v3189 = vsel %vm3101, %v2602, 0.0
        %3190 = vadd.xlane.f32.xlu0 %v3189
        %v3191 = vpop.xlane.xlu0 %3190
        %v3192 = vsel %vm3101, %v2603, 0.0
        %3193 = vadd.xlane.f32.xlu0 %v3192
        %v3194 = vpop.xlane.xlu0 %3193
        %v3195 = vsel %vm3101, %v2604, 0.0
        %3196 = vadd.xlane.f32.xlu0 %v3195
        %v3197 = vpop.xlane.xlu0 %3196
        %v3198 = vsel %vm3101, %v2605, 0.0
        %3199 = vadd.xlane.f32.xlu0 %v3198
        %v3200 = vpop.xlane.xlu0 %3199
        %v3201 = vsel %vm3101, %v2606, 0.0
        %3202 = vadd.xlane.f32.xlu0 %v3201
        %v3203 = vpop.xlane.xlu0 %3202
        %v3204 = vsel %vm3101, %v2607, 0.0
        %3205 = vadd.xlane.f32.xlu0 %v3204
        %v3206 = vpop.xlane.xlu0 %3205
        %v3207 = vsel %vm3101, %v2608, 0.0
        %3208 = vadd.xlane.f32.xlu0 %v3207
        %v3209 = vpop.xlane.xlu0 %3208
        %v3210 = vsel %vm3101, %v2609, 0.0
        %3211 = vadd.xlane.f32.xlu0 %v3210
        %v3212 = vpop.xlane.xlu0 %3211
        %v3213 = vsel %vm3101, %v2610, 0.0
        %3214 = vadd.xlane.f32.xlu0 %v3213
        %v3215 = vpop.xlane.xlu0 %3214
        %v3216 = vsel %vm3101, %v2611, 0.0
        %3217 = vadd.xlane.f32.xlu0 %v3216
        %v3218 = vpop.xlane.xlu0 %3217
        %v3219 = vsel %vm3101, %v2612, 0.0
        %3220 = vadd.xlane.f32.xlu0 %v3219
        %v3221 = vpop.xlane.xlu0 %3220
        %v3222 = vsel %vm3101, %v2613, 0.0
        %3223 = vadd.xlane.f32.xlu0 %v3222
        %v3224 = vpop.xlane.xlu0 %3223
        %v3225 = vsel %vm3101, %v2614, 0.0
        %3226 = vadd.xlane.f32.xlu0 %v3225
        %v3227 = vpop.xlane.xlu0 %3226
        %v3228 = vsel %vm3101, %v2615, 0.0
        %3229 = vadd.xlane.f32.xlu0 %v3228
        %v3230 = vpop.xlane.xlu0 %3229
        %v3231 = vsel %vm3101, %v2616, 0.0
        %3232 = vadd.xlane.f32.xlu0 %v3231
        %v3233 = vpop.xlane.xlu0 %3232
        %v3234 = vsel %vm3101, %v2617, 0.0
        %3235 = vadd.xlane.f32.xlu0 %v3234
        %v3236 = vpop.xlane.xlu0 %3235
        %v3237 = vsel %vm3101, %v2618, 0.0
        %3238 = vadd.xlane.f32.xlu0 %v3237
        %v3239 = vpop.xlane.xlu0 %3238
        %v3240 = vsel %vm3101, %v2619, 0.0
        %3241 = vadd.xlane.f32.xlu0 %v3240
        %v3242 = vpop.xlane.xlu0 %3241
        %v3243 = vsel %vm3101, %v2620, 0.0
        %3244 = vadd.xlane.f32.xlu0 %v3243
        %v3245 = vpop.xlane.xlu0 %3244
        %v3246 = vsel %vm3101, %v2621, 0.0
        %3247 = vadd.xlane.f32.xlu0 %v3246
        %v3248 = vpop.xlane.xlu0 %3247
        %v3249 = vsel %vm3101, %v2622, 0.0
        %3250 = vadd.xlane.f32.xlu0 %v3249
        %v3251 = vpop.xlane.xlu0 %3250
        %v3252 = vsel %vm3101, %v2623, 0.0
        %3253 = vadd.xlane.f32.xlu0 %v3252
        %v3254 = vpop.xlane.xlu0 %3253
        %v3255 = vsel %vm3101, %v2624, 0.0
        %3256 = vadd.xlane.f32.xlu0 %v3255
        %v3257 = vpop.xlane.xlu0 %3256
        %v3258 = vsel %vm3101, %v2625, 0.0
        %3259 = vadd.xlane.f32.xlu0 %v3258
        %v3260 = vpop.xlane.xlu0 %3259
        %v3261 = vsel %vm3101, %v2626, 0.0
        %3262 = vadd.xlane.f32.xlu0 %v3261
        %v3263 = vpop.xlane.xlu0 %3262
        %v3264 = vsel %vm3101, %v2627, 0.0
        %3265 = vadd.xlane.f32.xlu0 %v3264
        %v3266 = vpop.xlane.xlu0 %3265
        %v3267 = vsel %vm3101, %v2628, 0.0
        %3268 = vadd.xlane.f32.xlu0 %v3267
        %v3269 = vpop.xlane.xlu0 %3268
        %v3270 = vsel %vm3101, %v2629, 0.0
        %3271 = vadd.xlane.f32.xlu0 %v3270
        %v3272 = vpop.xlane.xlu0 %3271
        %v3273 = vsel %vm3101, %v2630, 0.0
        %3274 = vadd.xlane.f32.xlu0 %v3273
        %v3275 = vpop.xlane.xlu0 %3274
        %v3276 = vsel %vm3101, %v2631, 0.0
        %3277 = vadd.xlane.f32.xlu0 %v3276
        %v3278 = vpop.xlane.xlu0 %3277
        %v3279 = vsel %vm3101, %v2632, 0.0
        %3280 = vadd.xlane.f32.xlu0 %v3279
        %v3281 = vpop.xlane.xlu0 %3280
        %v3282 = vsel %vm3101, %v2633, 0.0
        %3283 = vadd.xlane.f32.xlu0 %v3282
        %v3284 = vpop.xlane.xlu0 %3283
        %v3285 = vsel %vm3101, %v2634, 0.0
        %3286 = vadd.xlane.f32.xlu0 %v3285
        %v3287 = vpop.xlane.xlu0 %3286
        %v3288 = vsel %vm3101, %v2635, 0.0
        %3289 = vadd.xlane.f32.xlu0 %v3288
        %v3290 = vpop.xlane.xlu0 %3289
        %v3291 = vsel %vm3101, %v2636, 0.0
        %3292 = vadd.xlane.f32.xlu0 %v3291
        %v3293 = vpop.xlane.xlu0 %3292
        %v3294 = vsel %vm3101, %v2637, 0.0
        %3295 = vadd.xlane.f32.xlu0 %v3294
        %v3296 = vpop.xlane.xlu0 %3295
        %v3297 = vsel %vm3101, %v2638, 0.0
        %3298 = vadd.xlane.f32.xlu0 %v3297
        %v3299 = vpop.xlane.xlu0 %3298
        %v3300 = vsel %vm3101, %v2639, 0.0
        %3301 = vadd.xlane.f32.xlu0 %v3300
        %v3302 = vpop.xlane.xlu0 %3301
        %v3303 = vsel %vm3101, %v2640, 0.0
        %3304 = vadd.xlane.f32.xlu0 %v3303
        %v3305 = vpop.xlane.xlu0 %3304
        %v3306 = vsel %vm3101, %v2641, 0.0
        %3307 = vadd.xlane.f32.xlu0 %v3306
        %v3308 = vpop.xlane.xlu0 %3307
        %v3309 = vsel %vm3101, %v2642, 0.0
        %3310 = vadd.xlane.f32.xlu0 %v3309
        %v3311 = vpop.xlane.xlu0 %3310
        %v3312 = vsel %vm3101, %v2643, 0.0
        %3313 = vadd.xlane.f32.xlu0 %v3312
        %v3314 = vpop.xlane.xlu0 %3313
        %v3315 = vsel %vm3101, %v2644, 0.0
        %3316 = vadd.xlane.f32.xlu0 %v3315
        %v3317 = vpop.xlane.xlu0 %3316
        %v3318 = vsel %vm3101, %v2645, 0.0
        %3319 = vadd.xlane.f32.xlu0 %v3318
        %v3320 = vpop.xlane.xlu0 %3319
        %v3321 = vsel %vm3101, %v2646, 0.0
        %3322 = vadd.xlane.f32.xlu0 %v3321
        %v3323 = vpop.xlane.xlu0 %3322
        %v3324 = vsel %vm3101, %v2647, 0.0
        %3325 = vadd.xlane.f32.xlu0 %v3324
        %v3326 = vpop.xlane.xlu0 %3325
        %v3327 = vsel %vm3101, %v2648, 0.0
        %3328 = vadd.xlane.f32.xlu0 %v3327
        %v3329 = vpop.xlane.xlu0 %3328
        %v3330 = vsel %vm3101, %v2649, 0.0
        %3331 = vadd.xlane.f32.xlu0 %v3330
        %v3332 = vpop.xlane.xlu0 %3331
        %v3333 = vsel %vm3101, %v2650, 0.0
        %3334 = vadd.xlane.f32.xlu0 %v3333
        %v3335 = vpop.xlane.xlu0 %3334
        %v3336 = vsel %vm3101, %v2651, 0.0
        %3337 = vadd.xlane.f32.xlu0 %v3336
        %v3338 = vpop.xlane.xlu0 %3337
        %v3339 = vsel %vm3101, %v2652, 0.0
        %3340 = vadd.xlane.f32.xlu0 %v3339
        %v3341 = vpop.xlane.xlu0 %3340
        %v3342 = vsel %vm3101, %v2653, 0.0
        %3343 = vadd.xlane.f32.xlu0 %v3342
        %v3344 = vpop.xlane.xlu0 %3343
        %v3345 = vsel %vm3101, %v2654, 0.0
        %3346 = vadd.xlane.f32.xlu0 %v3345
        %v3347 = vpop.xlane.xlu0 %3346
        %v3348 = vsel %vm3101, %v2655, 0.0
        %3349 = vadd.xlane.f32.xlu0 %v3348
        %v3350 = vpop.xlane.xlu0 %3349
        %v3351 = vsel %vm3101, %v2656, 0.0
        %3352 = vadd.xlane.f32.xlu0 %v3351
        %v3353 = vpop.xlane.xlu0 %3352
        %v3354 = vsel %vm3101, %v2657, 0.0
        %3355 = vadd.xlane.f32.xlu0 %v3354
        %v3356 = vpop.xlane.xlu0 %3355
        %v3357 = vsel %vm3101, %v2658, 0.0
        %3358 = vadd.xlane.f32.xlu0 %v3357
        %v3359 = vpop.xlane.xlu0 %3358
        %v3360 = vsel %vm3101, %v2659, 0.0
        %3361 = vadd.xlane.f32.xlu0 %v3360
        %v3362 = vpop.xlane.xlu0 %3361
        %v3363 = vsel %vm3101, %v2660, 0.0
        %3364 = vadd.xlane.f32.xlu0 %v3363
        %v3365 = vpop.xlane.xlu0 %3364
        %v3366 = vsel %vm3101, %v2661, 0.0
        %3367 = vadd.xlane.f32.xlu0 %v3366
        %v3368 = vpop.xlane.xlu0 %3367
        %v3369 = vsel %vm3101, %v2662, 0.0
        %3370 = vadd.xlane.f32.xlu0 %v3369
        %v3371 = vpop.xlane.xlu0 %3370
        %v3372 = vsel %vm3101, %v2663, 0.0
        %3373 = vadd.xlane.f32.xlu0 %v3372
        %v3374 = vpop.xlane.xlu0 %3373
        %v3375 = vsel %vm3101, %v2664, 0.0
        %3376 = vadd.xlane.f32.xlu0 %v3375
        %v3377 = vpop.xlane.xlu0 %3376
        %v3378 = vsel %vm3101, %v2665, 0.0
        %3379 = vadd.xlane.f32.xlu0 %v3378
        %v3380 = vpop.xlane.xlu0 %3379
        %v3381 = vsel %vm3101, %v2666, 0.0
        %3382 = vadd.xlane.f32.xlu0 %v3381
        %v3383 = vpop.xlane.xlu0 %3382
        %v3384 = vsel %vm3101, %v2667, 0.0
        %3385 = vadd.xlane.f32.xlu0 %v3384
        %v3386 = vpop.xlane.xlu0 %3385
        %v3387 = vsel %vm3101, %v2668, 0.0
        %3388 = vadd.xlane.f32.xlu0 %v3387
        %v3389 = vpop.xlane.xlu0 %3388
        %v3390 = vsel %vm3101, %v2669, 0.0
        %3391 = vadd.xlane.f32.xlu0 %v3390
        %v3392 = vpop.xlane.xlu0 %3391
        %v3393 = vsel %vm3101, %v2670, 0.0
        %3394 = vadd.xlane.f32.xlu0 %v3393
        %v3395 = vpop.xlane.xlu0 %3394
        %v3396 = vsel %vm3101, %v2671, 0.0
        %3397 = vadd.xlane.f32.xlu0 %v3396
        %v3398 = vpop.xlane.xlu0 %3397
        %v3399 = vsel %vm3101, %v2672, 0.0
        %3400 = vadd.xlane.f32.xlu0 %v3399
        %v3401 = vpop.xlane.xlu0 %3400
        %v3402 = vsel %vm3101, %v2673, 0.0
        %3403 = vadd.xlane.f32.xlu0 %v3402
        %v3404 = vpop.xlane.xlu0 %3403
        %v3405 = vsel %vm3101, %v2674, 0.0
        %3406 = vadd.xlane.f32.xlu0 %v3405
        %v3407 = vpop.xlane.xlu0 %3406
        %v3408 = vsel %vm3101, %v2675, 0.0
        %3409 = vadd.xlane.f32.xlu0 %v3408
        %v3410 = vpop.xlane.xlu0 %3409
        %v3411 = vsel %vm3101, %v2676, 0.0
        %3412 = vadd.xlane.f32.xlu0 %v3411
        %v3413 = vpop.xlane.xlu0 %3412
        %v3414 = vsel %vm3101, %v2677, 0.0
        %3415 = vadd.xlane.f32.xlu0 %v3414
        %v3416 = vpop.xlane.xlu0 %3415
        %v3417 = vsel %vm3101, %v2678, 0.0
        %3418 = vadd.xlane.f32.xlu0 %v3417
        %v3419 = vpop.xlane.xlu0 %3418
        %v3420 = vsel %vm3101, %v2679, 0.0
        %3421 = vadd.xlane.f32.xlu0 %v3420
        %v3422 = vpop.xlane.xlu0 %3421
        %v3423 = vsel %vm3101, %v2680, 0.0
        %3424 = vadd.xlane.f32.xlu0 %v3423
        %v3425 = vpop.xlane.xlu0 %3424
        %v3426 = vsel %vm3101, %v2681, 0.0
        %3427 = vadd.xlane.f32.xlu0 %v3426
        %v3428 = vpop.xlane.xlu0 %3427
        %v3429 = vsel %vm3101, %v2682, 0.0
        %3430 = vadd.xlane.f32.xlu0 %v3429
        %v3431 = vpop.xlane.xlu0 %3430
        %v3432 = vsel %vm3101, %v2683, 0.0
        %3433 = vadd.xlane.f32.xlu0 %v3432
        %v3434 = vpop.xlane.xlu0 %3433
        %v3435 = vsel %vm3101, %v2684, 0.0
        %3436 = vadd.xlane.f32.xlu0 %v3435
        %v3437 = vpop.xlane.xlu0 %3436
        %v3438 = vsel %vm3101, %v2685, 0.0
        %3439 = vadd.xlane.f32.xlu0 %v3438
        %v3440 = vpop.xlane.xlu0 %3439
        %v3441 = vsel %vm3101, %v2686, 0.0
        %3442 = vadd.xlane.f32.xlu0 %v3441
        %v3443 = vpop.xlane.xlu0 %3442
        %v3444 = vsel %vm3101, %v2687, 0.0
        %3445 = vadd.xlane.f32.xlu0 %v3444
        %v3446 = vpop.xlane.xlu0 %3445
        %v3447 = vsel %vm3101, %v2688, 0.0
        %3448 = vadd.xlane.f32.xlu0 %v3447
        %v3449 = vpop.xlane.xlu0 %3448
        %v3450 = vsel %vm3101, %v2689, 0.0
        %3451 = vadd.xlane.f32.xlu0 %v3450
        %v3452 = vpop.xlane.xlu0 %3451
        %v3453 = vsel %vm3101, %v2690, 0.0
        %3454 = vadd.xlane.f32.xlu0 %v3453
        %v3455 = vpop.xlane.xlu0 %3454
        %v3456 = vsel %vm3101, %v2691, 0.0
        %3457 = vadd.xlane.f32.xlu0 %v3456
        %v3458 = vpop.xlane.xlu0 %3457
        %v3459 = vsel %vm3101, %v2692, 0.0
        %3460 = vadd.xlane.f32.xlu0 %v3459
        %v3461 = vpop.xlane.xlu0 %3460
        %v3462 = vsel %vm3101, %v2693, 0.0
        %3463 = vadd.xlane.f32.xlu0 %v3462
        %v3464 = vpop.xlane.xlu0 %3463
        %v3465 = vsel %vm3101, %v2694, 0.0
        %3466 = vadd.xlane.f32.xlu0 %v3465
        %v3467 = vpop.xlane.xlu0 %3466
        %v3468 = vsel %vm3101, %v2695, 0.0
        %3469 = vadd.xlane.f32.xlu0 %v3468
        %v3470 = vpop.xlane.xlu0 %3469
        %v3471 = vsel %vm3101, %v2696, 0.0
        %3472 = vadd.xlane.f32.xlu0 %v3471
        %v3473 = vpop.xlane.xlu0 %3472
        %v3474 = vsel %vm3101, %v2697, 0.0
        %3475 = vadd.xlane.f32.xlu0 %v3474
        %v3476 = vpop.xlane.xlu0 %3475
        %v3477 = vsel %vm3101, %v2698, 0.0
        %3478 = vadd.xlane.f32.xlu0 %v3477
        %v3479 = vpop.xlane.xlu0 %3478
        %v3480 = vsel %vm3101, %v2699, 0.0
        %3481 = vadd.xlane.f32.xlu0 %v3480
        %v3482 = vpop.xlane.xlu0 %3481
        %v3483 = vsel %vm3101, %v2700, 0.0
        %3484 = vadd.xlane.f32.xlu0 %v3483
        %v3485 = vpop.xlane.xlu0 %3484
        %v3486 = vsel %vm3101, %v2701, 0.0
        %3487 = vadd.xlane.f32.xlu0 %v3486
        %v3488 = vpop.xlane.xlu0 %3487
        %v3489 = vsel %vm3101, %v2702, 0.0
        %3490 = vadd.xlane.f32.xlu0 %v3489
        %v3491 = vpop.xlane.xlu0 %3490
        %v3492 = vsel %vm3101, %v2703, 0.0
        %3493 = vadd.xlane.f32.xlu0 %v3492
        %v3494 = vpop.xlane.xlu0 %3493
        %v3495 = vsel %vm3101, %v2704, 0.0
        %3496 = vadd.xlane.f32.xlu0 %v3495
        %v3497 = vpop.xlane.xlu0 %3496
        %v3498 = vsel %vm3101, %v2705, 0.0
        %3499 = vadd.xlane.f32.xlu0 %v3498
        %v3500 = vpop.xlane.xlu0 %3499
        %v3501 = vsel %vm3101, %v2706, 0.0
        %3502 = vadd.xlane.f32.xlu0 %v3501
        %v3503 = vpop.xlane.xlu0 %3502
        %v3504 = vsel %vm3101, %v2707, 0.0
        %3505 = vadd.xlane.f32.xlu0 %v3504
        %v3506 = vpop.xlane.xlu0 %3505
        %v3507 = vsel %vm3101, %v2708, 0.0
        %3508 = vadd.xlane.f32.xlu0 %v3507
        %v3509 = vpop.xlane.xlu0 %3508
        %v3510 = vsel %vm3101, %v2709, 0.0
        %3511 = vadd.xlane.f32.xlu0 %v3510
        %v3512 = vpop.xlane.xlu0 %3511
        %v3513 = vsel %vm3101, %v2710, 0.0
        %3514 = vadd.xlane.f32.xlu0 %v3513
        %v3515 = vpop.xlane.xlu0 %3514
        %v3516 = vsel %vm3101, %v2711, 0.0
        %3517 = vadd.xlane.f32.xlu0 %v3516
        %v3518 = vpop.xlane.xlu0 %3517
        %v3519 = vsel %vm3101, %v2712, 0.0
        %3520 = vadd.xlane.f32.xlu0 %v3519
        %v3521 = vpop.xlane.xlu0 %3520
        %v3522 = vsel %vm3101, %v2713, 0.0
        %3523 = vadd.xlane.f32.xlu0 %v3522
        %v3524 = vpop.xlane.xlu0 %3523
        %v3525 = vsel %vm3101, %v2714, 0.0
        %3526 = vadd.xlane.f32.xlu0 %v3525
        %v3527 = vpop.xlane.xlu0 %3526
        %v3528 = vsel %vm3101, %v2715, 0.0
        %3529 = vadd.xlane.f32.xlu0 %v3528
        %v3530 = vpop.xlane.xlu0 %3529
        %v3531 = vsel %vm3101, %v2716, 0.0
        %3532 = vadd.xlane.f32.xlu0 %v3531
        %v3533 = vpop.xlane.xlu0 %3532
        %v3534 = vsel %vm3101, %v2717, 0.0
        %3535 = vadd.xlane.f32.xlu0 %v3534
        %v3536 = vpop.xlane.xlu0 %3535
        %v3537 = vsel %vm3101, %v2718, 0.0
        %3538 = vadd.xlane.f32.xlu0 %v3537
        %v3539 = vpop.xlane.xlu0 %3538
        %v3540 = vsel %vm3101, %v2719, 0.0
        %3541 = vadd.xlane.f32.xlu0 %v3540
        %v3542 = vpop.xlane.xlu0 %3541
        %v3543 = vsel %vm3101, %v2720, 0.0
        %3544 = vadd.xlane.f32.xlu0 %v3543
        %v3545 = vpop.xlane.xlu0 %3544
        %v3546 = vsel %vm3101, %v2721, 0.0
        %3547 = vadd.xlane.f32.xlu0 %v3546
        %v3548 = vpop.xlane.xlu0 %3547
        %v3549 = vsel %vm3101, %v2722, 0.0
        %3550 = vadd.xlane.f32.xlu0 %v3549
        %v3551 = vpop.xlane.xlu0 %3550
        %v3552 = vsel %vm3101, %v2723, 0.0
        %3553 = vadd.xlane.f32.xlu0 %v3552
        %v3554 = vpop.xlane.xlu0 %3553
        %v3555 = vsel %vm3101, %v2724, 0.0
        %3556 = vadd.xlane.f32.xlu0 %v3555
        %v3557 = vpop.xlane.xlu0 %3556
        %v3558 = vsel %vm3101, %v2725, 0.0
        %3559 = vadd.xlane.f32.xlu0 %v3558
        %v3560 = vpop.xlane.xlu0 %3559
        %v3561 = vsel %vm3101, %v2726, 0.0
        %3562 = vadd.xlane.f32.xlu0 %v3561
        %v3563 = vpop.xlane.xlu0 %3562
        %v3564 = vsel %vm3101, %v2727, 0.0
        %3565 = vadd.xlane.f32.xlu0 %v3564
        %v3566 = vpop.xlane.xlu0 %3565
        %v3567 = vsel %vm3101, %v2728, 0.0
        %3568 = vadd.xlane.f32.xlu0 %v3567
        %v3569 = vpop.xlane.xlu0 %3568
        %v3570 = vsel %vm3101, %v2729, 0.0
        %3571 = vadd.xlane.f32.xlu0 %v3570
        %v3572 = vpop.xlane.xlu0 %3571
        %v3573 = vsel %vm3101, %v2730, 0.0
        %3574 = vadd.xlane.f32.xlu0 %v3573
        %v3575 = vpop.xlane.xlu0 %3574
        %v3576 = vsel %vm3101, %v2731, 0.0
        %3577 = vadd.xlane.f32.xlu0 %v3576
        %v3578 = vpop.xlane.xlu0 %3577
        %v3579 = vsel %vm3101, %v2732, 0.0
        %3580 = vadd.xlane.f32.xlu0 %v3579
        %v3581 = vpop.xlane.xlu0 %3580
        %v3582 = vsel %vm3101, %v2733, 0.0
        %3583 = vadd.xlane.f32.xlu0 %v3582
        %v3584 = vpop.xlane.xlu0 %3583
        %v3585 = vsel %vm3101, %v2734, 0.0
        %3586 = vadd.xlane.f32.xlu0 %v3585
        %v3587 = vpop.xlane.xlu0 %3586
        %v3588 = vsel %vm3101, %v2735, 0.0
        %3589 = vadd.xlane.f32.xlu0 %v3588
        %v3590 = vpop.xlane.xlu0 %3589
        %v3591 = vsel %vm3101, %v2736, 0.0
        %3592 = vadd.xlane.f32.xlu0 %v3591
        %v3593 = vpop.xlane.xlu0 %3592
        %v3594 = vsel %vm3101, %v2737, 0.0
        %3595 = vadd.xlane.f32.xlu0 %v3594
        %v3596 = vpop.xlane.xlu0 %3595
        %v3597 = vsel %vm3101, %v2738, 0.0
        %3598 = vadd.xlane.f32.xlu0 %v3597
        %v3599 = vpop.xlane.xlu0 %3598
        %v3600 = vsel %vm3101, %v2739, 0.0
        %3601 = vadd.xlane.f32.xlu0 %v3600
        %v3602 = vpop.xlane.xlu0 %3601
        %v3603 = vsel %vm3101, %v2740, 0.0
        %3604 = vadd.xlane.f32.xlu0 %v3603
        %v3605 = vpop.xlane.xlu0 %3604
        %v3606 = vsel %vm3101, %v2741, 0.0
        %3607 = vadd.xlane.f32.xlu0 %v3606
        %v3608 = vpop.xlane.xlu0 %3607
        %v3609 = vsel %vm3101, %v2742, 0.0
        %3610 = vadd.xlane.f32.xlu0 %v3609
        %v3611 = vpop.xlane.xlu0 %3610
        %v3612 = vsel %vm3101, %v2743, 0.0
        %3613 = vadd.xlane.f32.xlu0 %v3612
        %v3614 = vpop.xlane.xlu0 %3613
        %v3615 = vsel %vm3101, %v2744, 0.0
        %3616 = vadd.xlane.f32.xlu0 %v3615
        %v3617 = vpop.xlane.xlu0 %3616
        %v3618 = vsel %vm3101, %v2745, 0.0
        %3619 = vadd.xlane.f32.xlu0 %v3618
        %v3620 = vpop.xlane.xlu0 %3619
        %v3621 = vsel %vm3101, %v2746, 0.0
        %3622 = vadd.xlane.f32.xlu0 %v3621
        %v3623 = vpop.xlane.xlu0 %3622
        %v3624 = vsel %vm3101, %v2747, 0.0
        %3625 = vadd.xlane.f32.xlu0 %v3624
        %v3626 = vpop.xlane.xlu0 %3625
        %v3627 = vsel %vm3101, %v2748, 0.0
        %3628 = vadd.xlane.f32.xlu0 %v3627
        %v3629 = vpop.xlane.xlu0 %3628
        %v3630 = vsel %vm3101, %v2749, 0.0
        %3631 = vadd.xlane.f32.xlu0 %v3630
        %v3632 = vpop.xlane.xlu0 %3631
        %v3633 = vsel %vm3101, %v2750, 0.0
        %3634 = vadd.xlane.f32.xlu0 %v3633
        %v3635 = vpop.xlane.xlu0 %3634
        %v3636 = vsel %vm3101, %v2751, 0.0
        %3637 = vadd.xlane.f32.xlu0 %v3636
        %v3638 = vpop.xlane.xlu0 %3637
        %v3639 = vsel %vm3101, %v2752, 0.0
        %3640 = vadd.xlane.f32.xlu0 %v3639
        %v3641 = vpop.xlane.xlu0 %3640
        %v3642 = vsel %vm3101, %v2753, 0.0
        %3643 = vadd.xlane.f32.xlu0 %v3642
        %v3644 = vpop.xlane.xlu0 %3643
        %v3645 = vsel %vm3101, %v2754, 0.0
        %3646 = vadd.xlane.f32.xlu0 %v3645
        %v3647 = vpop.xlane.xlu0 %3646
        %v3648 = vsel %vm3101, %v2755, 0.0
        %3649 = vadd.xlane.f32.xlu0 %v3648
        %v3650 = vpop.xlane.xlu0 %3649
        %v3651 = vsel %vm3101, %v2756, 0.0
        %3652 = vadd.xlane.f32.xlu0 %v3651
        %v3653 = vpop.xlane.xlu0 %3652
        %v3654 = vsel %vm3101, %v2757, 0.0
        %3655 = vadd.xlane.f32.xlu0 %v3654
        %v3656 = vpop.xlane.xlu0 %3655
        %v3657 = vsel %vm3101, %v2758, 0.0
        %3658 = vadd.xlane.f32.xlu0 %v3657
        %v3659 = vpop.xlane.xlu0 %3658
        %v3660 = vsel %vm3101, %v2759, 0.0
        %3661 = vadd.xlane.f32.xlu0 %v3660
        %v3662 = vpop.xlane.xlu0 %3661
        %v3663 = vsel %vm3101, %v2760, 0.0
        %3664 = vadd.xlane.f32.xlu0 %v3663
        %v3665 = vpop.xlane.xlu0 %3664
        %v3666 = vsel %vm3101, %v2761, 0.0
        %3667 = vadd.xlane.f32.xlu0 %v3666
        %v3668 = vpop.xlane.xlu0 %3667
        %v3669 = vsel %vm3101, %v2762, 0.0
        %3670 = vadd.xlane.f32.xlu0 %v3669
        %v3671 = vpop.xlane.xlu0 %3670
        %v3672 = vsel %vm3101, %v2763, 0.0
        %3673 = vadd.xlane.f32.xlu0 %v3672
        %v3674 = vpop.xlane.xlu0 %3673
        %v3675 = vsel %vm3101, %v2764, 0.0
        %3676 = vadd.xlane.f32.xlu0 %v3675
        %v3677 = vpop.xlane.xlu0 %3676
        %v3678 = vsel %vm3101, %v2765, 0.0
        %3679 = vadd.xlane.f32.xlu0 %v3678
        %v3680 = vpop.xlane.xlu0 %3679
        %v3681 = vsel %vm3101, %v2766, 0.0
        %3682 = vadd.xlane.f32.xlu0 %v3681
        %v3683 = vpop.xlane.xlu0 %3682
        %v3684 = vsel %vm3101, %v2767, 0.0
        %3685 = vadd.xlane.f32.xlu0 %v3684
        %v3686 = vpop.xlane.xlu0 %3685
        %v3687 = vsel %vm3101, %v2768, 0.0
        %3688 = vadd.xlane.f32.xlu0 %v3687
        %v3689 = vpop.xlane.xlu0 %3688
        %v3690 = vsel %vm3101, %v2769, 0.0
        %3691 = vadd.xlane.f32.xlu0 %v3690
        %v3692 = vpop.xlane.xlu0 %3691
        %v3693 = vsel %vm3101, %v2770, 0.0
        %3694 = vadd.xlane.f32.xlu0 %v3693
        %v3695 = vpop.xlane.xlu0 %3694
        %v3696 = vsel %vm3101, %v2771, 0.0
        %3697 = vadd.xlane.f32.xlu0 %v3696
        %v3698 = vpop.xlane.xlu0 %3697
        %v3699 = vsel %vm3101, %v2772, 0.0
        %3700 = vadd.xlane.f32.xlu0 %v3699
        %v3701 = vpop.xlane.xlu0 %3700
        %v3702 = vsel %vm3101, %v2773, 0.0
        %3703 = vadd.xlane.f32.xlu0 %v3702
        %v3704 = vpop.xlane.xlu0 %3703
        %v3705 = vsel %vm3101, %v2774, 0.0
        %3706 = vadd.xlane.f32.xlu0 %v3705
        %v3707 = vpop.xlane.xlu0 %3706
        %v3708 = vsel %vm3101, %v2775, 0.0
        %3709 = vadd.xlane.f32.xlu0 %v3708
        %v3710 = vpop.xlane.xlu0 %3709
        %v3711 = vsel %vm3101, %v2776, 0.0
        %3712 = vadd.xlane.f32.xlu0 %v3711
        %v3713 = vpop.xlane.xlu0 %3712
        %v3714 = vsel %vm3101, %v2777, 0.0
        %3715 = vadd.xlane.f32.xlu0 %v3714
        %v3716 = vpop.xlane.xlu0 %3715
        %v3717 = vsel %vm3101, %v2778, 0.0
        %3718 = vadd.xlane.f32.xlu0 %v3717
        %v3719 = vpop.xlane.xlu0 %3718
        %v3720 = vsel %vm3101, %v2779, 0.0
        %3721 = vadd.xlane.f32.xlu0 %v3720
        %v3722 = vpop.xlane.xlu0 %3721
        %v3723 = vsel %vm3101, %v2780, 0.0
        %3724 = vadd.xlane.f32.xlu0 %v3723
        %v3725 = vpop.xlane.xlu0 %3724
        %v3726 = vsel %vm3101, %v2781, 0.0
        %3727 = vadd.xlane.f32.xlu0 %v3726
        %v3728 = vpop.xlane.xlu0 %3727
        %v3729 = vsel %vm3101, %v2782, 0.0
        %3730 = vadd.xlane.f32.xlu0 %v3729
        %v3731 = vpop.xlane.xlu0 %3730
        %v3732 = vsel %vm3101, %v2783, 0.0
        %3733 = vadd.xlane.f32.xlu0 %v3732
        %v3734 = vpop.xlane.xlu0 %3733
        %v3735 = vsel %vm3101, %v2784, 0.0
        %3736 = vadd.xlane.f32.xlu0 %v3735
        %v3737 = vpop.xlane.xlu0 %3736
        %v3738 = vsel %vm3101, %v2785, 0.0
        %3739 = vadd.xlane.f32.xlu0 %v3738
        %v3740 = vpop.xlane.xlu0 %3739
        %v3741 = vsel %vm3101, %v2786, 0.0
        %3742 = vadd.xlane.f32.xlu0 %v3741
        %v3743 = vpop.xlane.xlu0 %3742
        %v3744 = vsel %vm3101, %v2787, 0.0
        %3745 = vadd.xlane.f32.xlu0 %v3744
        %v3746 = vpop.xlane.xlu0 %3745
        %v3747 = vsel %vm3101, %v2788, 0.0
        %3748 = vadd.xlane.f32.xlu0 %v3747
        %v3749 = vpop.xlane.xlu0 %3748
        %v3750 = vsel %vm3101, %v2789, 0.0
        %3751 = vadd.xlane.f32.xlu0 %v3750
        %v3752 = vpop.xlane.xlu0 %3751
        %v3753 = vsel %vm3101, %v2790, 0.0
        %3754 = vadd.xlane.f32.xlu0 %v3753
        %v3755 = vpop.xlane.xlu0 %3754
        %v3756 = vsel %vm3101, %v2791, 0.0
        %3757 = vadd.xlane.f32.xlu0 %v3756
        %v3758 = vpop.xlane.xlu0 %3757
        %v3759 = vsel %vm3101, %v2792, 0.0
        %3760 = vadd.xlane.f32.xlu0 %v3759
        %v3761 = vpop.xlane.xlu0 %3760
        %v3762 = vsel %vm3101, %v2793, 0.0
        %3763 = vadd.xlane.f32.xlu0 %v3762
        %v3764 = vpop.xlane.xlu0 %3763
        %v3765 = vsel %vm3101, %v2794, 0.0
        %3766 = vadd.xlane.f32.xlu0 %v3765
        %v3767 = vpop.xlane.xlu0 %3766
        %v3768 = vsel %vm3101, %v2795, 0.0
        %3769 = vadd.xlane.f32.xlu0 %v3768
        %v3770 = vpop.xlane.xlu0 %3769
        %v3771 = vsel %vm3101, %v2796, 0.0
        %3772 = vadd.xlane.f32.xlu0 %v3771
        %v3773 = vpop.xlane.xlu0 %3772
        %v3774 = vsel %vm3101, %v2797, 0.0
        %3775 = vadd.xlane.f32.xlu0 %v3774
        %v3776 = vpop.xlane.xlu0 %3775
        %v3777 = vsel %vm3101, %v2798, 0.0
        %3778 = vadd.xlane.f32.xlu0 %v3777
        %v3779 = vpop.xlane.xlu0 %3778
        %v3780 = vsel %vm3101, %v2799, 0.0
        %3781 = vadd.xlane.f32.xlu0 %v3780
        %v3782 = vpop.xlane.xlu0 %3781
        %v3783 = vsel %vm3101, %v2800, 0.0
        %3784 = vadd.xlane.f32.xlu0 %v3783
        %v3785 = vpop.xlane.xlu0 %3784
        %v3786 = vsel %vm3101, %v2801, 0.0
        %3787 = vadd.xlane.f32.xlu0 %v3786
        %v3788 = vpop.xlane.xlu0 %3787
        %v3789 = vsel %vm3101, %v2802, 0.0
        %3790 = vadd.xlane.f32.xlu0 %v3789
        %v3791 = vpop.xlane.xlu0 %3790
        %v3792 = vsel %vm3101, %v2803, 0.0
        %3793 = vadd.xlane.f32.xlu0 %v3792
        %v3794 = vpop.xlane.xlu0 %3793
        %v3795 = vsel %vm3101, %v2804, 0.0
        %3796 = vadd.xlane.f32.xlu0 %v3795
        %v3797 = vpop.xlane.xlu0 %3796
        %v3798 = vsel %vm3101, %v2805, 0.0
        %3799 = vadd.xlane.f32.xlu0 %v3798
        %v3800 = vpop.xlane.xlu0 %3799
        %v3801 = vsel %vm3101, %v2806, 0.0
        %3802 = vadd.xlane.f32.xlu0 %v3801
        %v3803 = vpop.xlane.xlu0 %3802
        %v3804 = vsel %vm3101, %v2807, 0.0
        %3805 = vadd.xlane.f32.xlu0 %v3804
        %v3806 = vpop.xlane.xlu0 %3805
        %v3807 = vsel %vm3101, %v2808, 0.0
        %3808 = vadd.xlane.f32.xlu0 %v3807
        %v3809 = vpop.xlane.xlu0 %3808
        %v3810 = vsel %vm3101, %v2809, 0.0
        %3811 = vadd.xlane.f32.xlu0 %v3810
        %v3812 = vpop.xlane.xlu0 %3811
        %v3813 = vsel %vm3101, %v2810, 0.0
        %3814 = vadd.xlane.f32.xlu0 %v3813
        %v3815 = vpop.xlane.xlu0 %3814
        %v3816 = vsel %vm3101, %v2811, 0.0
        %3817 = vadd.xlane.f32.xlu0 %v3816
        %v3818 = vpop.xlane.xlu0 %3817
        %v3819 = vsel %vm3101, %v2812, 0.0
        %3820 = vadd.xlane.f32.xlu0 %v3819
        %v3821 = vpop.xlane.xlu0 %3820
        %v3822 = vsel %vm3101, %v2813, 0.0
        %3823 = vadd.xlane.f32.xlu0 %v3822
        %v3824 = vpop.xlane.xlu0 %3823
        %v3825 = vsel %vm3101, %v2814, 0.0
        %3826 = vadd.xlane.f32.xlu0 %v3825
        %v3827 = vpop.xlane.xlu0 %3826
        %v3828 = vsel %vm3101, %v2815, 0.0
        %3829 = vadd.xlane.f32.xlu0 %v3828
        %v3830 = vpop.xlane.xlu0 %3829
        %v3831 = vsel %vm3101, %v2816, 0.0
        %3832 = vadd.xlane.f32.xlu0 %v3831
        %v3833 = vpop.xlane.xlu0 %3832
        %v3834 = vsel %vm3101, %v2817, 0.0
        %3835 = vadd.xlane.f32.xlu0 %v3834
        %v3836 = vpop.xlane.xlu0 %3835
        %v3837 = vsel %vm3101, %v2818, 0.0
        %3838 = vadd.xlane.f32.xlu0 %v3837
        %v3839 = vpop.xlane.xlu0 %3838
        %v3840 = vsel %vm3101, %v2819, 0.0
        %3841 = vadd.xlane.f32.xlu0 %v3840
        %v3842 = vpop.xlane.xlu0 %3841
        %v3843 = vsel %vm3101, %v2820, 0.0
        %3844 = vadd.xlane.f32.xlu0 %v3843
        %v3845 = vpop.xlane.xlu0 %3844
        %v3846 = vsel %vm3101, %v2821, 0.0
        %3847 = vadd.xlane.f32.xlu0 %v3846
        %v3848 = vpop.xlane.xlu0 %3847
        %v3849 = vsel %vm3101, %v2822, 0.0
        %3850 = vadd.xlane.f32.xlu0 %v3849
        %v3851 = vpop.xlane.xlu0 %3850
        %v3852 = vsel %vm3101, %v2823, 0.0
        %3853 = vadd.xlane.f32.xlu0 %v3852
        %v3854 = vpop.xlane.xlu0 %3853
        %v3855 = vsel %vm3101, %v2824, 0.0
        %3856 = vadd.xlane.f32.xlu0 %v3855
        %v3857 = vpop.xlane.xlu0 %3856
        %v3858 = vsel %vm3101, %v2825, 0.0
        %3859 = vadd.xlane.f32.xlu0 %v3858
        %v3860 = vpop.xlane.xlu0 %3859
        %v3861 = vsel %vm3101, %v2826, 0.0
        %3862 = vadd.xlane.f32.xlu0 %v3861
        %v3863 = vpop.xlane.xlu0 %3862
        %v3864 = vsel %vm3101, %v2827, 0.0
        %3865 = vadd.xlane.f32.xlu0 %v3864
        %v3866 = vpop.xlane.xlu0 %3865
        %v3867 = vsel %vm3101, %v2828, 0.0
        %3868 = vadd.xlane.f32.xlu0 %v3867
        %v3869 = vpop.xlane.xlu0 %3868
        %v3870 = vsel %vm3101, %v2829, 0.0
        %3871 = vadd.xlane.f32.xlu0 %v3870
        %v3872 = vpop.xlane.xlu0 %3871
        %v3873 = vsel %vm3101, %v2830, 0.0
        %3874 = vadd.xlane.f32.xlu0 %v3873
        %v3875 = vpop.xlane.xlu0 %3874
        %v3876 = vsel %vm3101, %v2831, 0.0
        %3877 = vadd.xlane.f32.xlu0 %v3876
        %v3878 = vpop.xlane.xlu0 %3877
        %v3879 = vsel %vm3101, %v2832, 0.0
        %3880 = vadd.xlane.f32.xlu0 %v3879
        %v3881 = vpop.xlane.xlu0 %3880
        %v3882 = vsel %vm3101, %v2833, 0.0
        %3883 = vadd.xlane.f32.xlu0 %v3882
        %v3884 = vpop.xlane.xlu0 %3883
        %v3885 = vsel %vm3101, %v2834, 0.0
        %3886 = vadd.xlane.f32.xlu0 %v3885
        %v3887 = vpop.xlane.xlu0 %3886
        %v3888 = vsel %vm3101, %v2835, 0.0
        %3889 = vadd.xlane.f32.xlu0 %v3888
        %v3890 = vpop.xlane.xlu0 %3889
        %v3891 = vsel %vm3101, %v2836, 0.0
        %3892 = vadd.xlane.f32.xlu0 %v3891
        %v3893 = vpop.xlane.xlu0 %3892
        %v3894 = vsel %vm3101, %v2837, 0.0
        %3895 = vadd.xlane.f32.xlu0 %v3894
        %v3896 = vpop.xlane.xlu0 %3895
        %v3897 = vsel %vm3101, %v2838, 0.0
        %3898 = vadd.xlane.f32.xlu0 %v3897
        %v3899 = vpop.xlane.xlu0 %3898
        %v3900 = vsel %vm3101, %v2839, 0.0
        %3901 = vadd.xlane.f32.xlu0 %v3900
        %v3902 = vpop.xlane.xlu0 %3901
        %v3903 = vsel %vm3101, %v2840, 0.0
        %3904 = vadd.xlane.f32.xlu0 %v3903
        %v3905 = vpop.xlane.xlu0 %3904
        %v3906 = vsel %vm3101, %v2841, 0.0
        %3907 = vadd.xlane.f32.xlu0 %v3906
        %v3908 = vpop.xlane.xlu0 %3907
        %v3909 = vsel %vm3101, %v2842, 0.0
        %3910 = vadd.xlane.f32.xlu0 %v3909
        %v3911 = vpop.xlane.xlu0 %3910
        %v3912 = vsel %vm3101, %v2843, 0.0
        %3913 = vadd.xlane.f32.xlu0 %v3912
        %v3914 = vpop.xlane.xlu0 %3913
        %v3915 = vsel %vm3101, %v2844, 0.0
        %3916 = vadd.xlane.f32.xlu0 %v3915
        %v3917 = vpop.xlane.xlu0 %3916
        %v3918 = vsel %vm3101, %v2845, 0.0
        %3919 = vadd.xlane.f32.xlu0 %v3918
        %v3920 = vpop.xlane.xlu0 %3919
        %v3921 = vsel %vm3101, %v2846, 0.0
        %3922 = vadd.xlane.f32.xlu0 %v3921
        %v3923 = vpop.xlane.xlu0 %3922
        %v3924 = vsel %vm3101, %v2847, 0.0
        %3925 = vadd.xlane.f32.xlu0 %v3924
        %v3926 = vpop.xlane.xlu0 %3925
        %v3927 = vsel %vm3101, %v2848, 0.0
        %3928 = vadd.xlane.f32.xlu0 %v3927
        %v3929 = vpop.xlane.xlu0 %3928
        %v3930 = vsel %vm3101, %v2849, 0.0
        %3931 = vadd.xlane.f32.xlu0 %v3930
        %v3932 = vpop.xlane.xlu0 %3931
        %v3933 = vsel %vm3101, %v2850, 0.0
        %3934 = vadd.xlane.f32.xlu0 %v3933
        %v3935 = vpop.xlane.xlu0 %3934
        %v3936 = vsel %vm3101, %v2851, 0.0
        %3937 = vadd.xlane.f32.xlu0 %v3936
        %v3938 = vpop.xlane.xlu0 %3937
        %v3939 = vsel %vm3101, %v2852, 0.0
        %3940 = vadd.xlane.f32.xlu0 %v3939
        %v3941 = vpop.xlane.xlu0 %3940
        %v3942 = vsel %vm3101, %v2853, 0.0
        %3943 = vadd.xlane.f32.xlu0 %v3942
        %v3944 = vpop.xlane.xlu0 %3943
        %v3945 = vsel %vm3101, %v2854, 0.0
        %3946 = vadd.xlane.f32.xlu0 %v3945
        %v3947 = vpop.xlane.xlu0 %3946
        %v3948 = vsel %vm3101, %v2855, 0.0
        %3949 = vadd.xlane.f32.xlu0 %v3948
        %v3950 = vpop.xlane.xlu0 %3949
        %v3951 = vsel %vm3101, %v2856, 0.0
        %3952 = vadd.xlane.f32.xlu0 %v3951
        %v3953 = vpop.xlane.xlu0 %3952
        %v3954 = vsel %vm3101, %v2857, 0.0
        %3955 = vadd.xlane.f32.xlu0 %v3954
        %v3956 = vpop.xlane.xlu0 %3955
        %v3957 = vsel %vm3101, %v2858, 0.0
        %3958 = vadd.xlane.f32.xlu0 %v3957
        %v3959 = vpop.xlane.xlu0 %3958
        %v3960 = vsel %vm3101, %v2859, 0.0
        %3961 = vadd.xlane.f32.xlu0 %v3960
        %v3962 = vpop.xlane.xlu0 %3961
        %v3963 = vsel %vm3101, %v2860, 0.0
        %3964 = vadd.xlane.f32.xlu0 %v3963
        %v3965 = vpop.xlane.xlu0 %3964
        %v3966 = vsel %vm3101, %v2861, 0.0
        %3967 = vadd.xlane.f32.xlu0 %v3966
        %v3968 = vpop.xlane.xlu0 %3967
        %v3969 = vsel %vm3101, %v2862, 0.0
        %3970 = vadd.xlane.f32.xlu0 %v3969
        %v3971 = vpop.xlane.xlu0 %3970
        %v3972 = vsel %vm3101, %v2863, 0.0
        %3973 = vadd.xlane.f32.xlu0 %v3972
        %v3974 = vpop.xlane.xlu0 %3973
        %v3975 = vsel %vm3101, %v2864, 0.0
        %3976 = vadd.xlane.f32.xlu0 %v3975
        %v3977 = vpop.xlane.xlu0 %3976
        %v3978 = vsel %vm3101, %v2865, 0.0
        %3979 = vadd.xlane.f32.xlu0 %v3978
        %v3980 = vpop.xlane.xlu0 %3979
        %v3981 = vsel %vm3101, %v2866, 0.0
        %3982 = vadd.xlane.f32.xlu0 %v3981
        %v3983 = vpop.xlane.xlu0 %3982
        %v3984 = vsel %vm3101, %v2867, 0.0
        %3985 = vadd.xlane.f32.xlu0 %v3984
        %v3986 = vpop.xlane.xlu0 %3985
        %v3987 = vsel %vm3101, %v2868, 0.0
        %3988 = vadd.xlane.f32.xlu0 %v3987
        %v3989 = vpop.xlane.xlu0 %3988
        %v3990 = vsel %vm3101, %v2869, 0.0
        %3991 = vadd.xlane.f32.xlu0 %v3990
        %v3992 = vpop.xlane.xlu0 %3991
        %v3993 = vsel %vm3101, %v2870, 0.0
        %3994 = vadd.xlane.f32.xlu0 %v3993
        %v3995 = vpop.xlane.xlu0 %3994
        %v3996 = vsel %vm3101, %v2871, 0.0
        %3997 = vadd.xlane.f32.xlu0 %v3996
        %v3998 = vpop.xlane.xlu0 %3997
        %v3999 = vsel %vm3101, %v2872, 0.0
        %4000 = vadd.xlane.f32.xlu0 %v3999
        %v4001 = vpop.xlane.xlu0 %4000
        %v4002 = vsel %vm3101, %v2873, 0.0
        %4003 = vadd.xlane.f32.xlu0 %v4002
        %v4004 = vpop.xlane.xlu0 %4003
        %v4005 = vsel %vm3101, %v2874, 0.0
        %4006 = vadd.xlane.f32.xlu0 %v4005
        %v4007 = vpop.xlane.xlu0 %4006
        %v4008 = vsel %vm3101, %v2875, 0.0
        %4009 = vadd.xlane.f32.xlu0 %v4008
        %v4010 = vpop.xlane.xlu0 %4009
        %v4011 = vsel %vm3101, %v2876, 0.0
        %4012 = vadd.xlane.f32.xlu0 %v4011
        %v4013 = vpop.xlane.xlu0 %4012
        %v4014 = vsel %vm3101, %v2877, 0.0
        %4015 = vadd.xlane.f32.xlu0 %v4014
        %v4016 = vpop.xlane.xlu0 %4015
        %v4017 = vsel %vm3101, %v2878, 0.0
        %4018 = vadd.xlane.f32.xlu0 %v4017
        %v4019 = vpop.xlane.xlu0 %4018
        %v4020 = vsel %vm3101, %v2879, 0.0
        %4021 = vadd.xlane.f32.xlu0 %v4020
        %v4022 = vpop.xlane.xlu0 %4021
        %v4023 = vsel %vm3101, %v2880, 0.0
        %4024 = vadd.xlane.f32.xlu0 %v4023
        %v4025 = vpop.xlane.xlu0 %4024
        %v4026 = vsel %vm3101, %v2881, 0.0
        %4027 = vadd.xlane.f32.xlu0 %v4026
        %v4028 = vpop.xlane.xlu0 %4027
        %v4029 = vsel %vm3101, %v2882, 0.0
        %4030 = vadd.xlane.f32.xlu0 %v4029
        %v4031 = vpop.xlane.xlu0 %4030
        %v4032 = vsel %vm3101, %v2883, 0.0
        %4033 = vadd.xlane.f32.xlu0 %v4032
        %v4034 = vpop.xlane.xlu0 %4033
        %v4035 = vsel %vm3101, %v2884, 0.0
        %4036 = vadd.xlane.f32.xlu0 %v4035
        %v4037 = vpop.xlane.xlu0 %4036
        %v4038 = vsel %vm3101, %v2885, 0.0
        %4039 = vadd.xlane.f32.xlu0 %v4038
        %v4040 = vpop.xlane.xlu0 %4039
        %v4041 = vsel %vm3101, %v2886, 0.0
        %4042 = vadd.xlane.f32.xlu0 %v4041
        %v4043 = vpop.xlane.xlu0 %4042
        %v4044 = vsel %vm3101, %v2887, 0.0
        %4045 = vadd.xlane.f32.xlu0 %v4044
        %v4046 = vpop.xlane.xlu0 %4045
        %v4047 = vsel %vm3101, %v2888, 0.0
        %4048 = vadd.xlane.f32.xlu0 %v4047
        %v4049 = vpop.xlane.xlu0 %4048
        %v4050 = vsel %vm3101, %v2889, 0.0
        %4051 = vadd.xlane.f32.xlu0 %v4050
        %v4052 = vpop.xlane.xlu0 %4051
        %v4053 = vsel %vm3101, %v2890, 0.0
        %4054 = vadd.xlane.f32.xlu0 %v4053
        %v4055 = vpop.xlane.xlu0 %4054
        %v4056 = vsel %vm3101, %v2891, 0.0
        %4057 = vadd.xlane.f32.xlu0 %v4056
        %v4058 = vpop.xlane.xlu0 %4057
        %v4059 = vsel %vm3101, %v2892, 0.0
        %4060 = vadd.xlane.f32.xlu0 %v4059
        %v4061 = vpop.xlane.xlu0 %4060
        %v4062 = vsel %vm3101, %v2893, 0.0
        %4063 = vadd.xlane.f32.xlu0 %v4062
        %v4064 = vpop.xlane.xlu0 %4063
        %v4065 = vsel %vm3101, %v2894, 0.0
        %4066 = vadd.xlane.f32.xlu0 %v4065
        %v4067 = vpop.xlane.xlu0 %4066
        %v4068 = vsel %vm3101, %v2895, 0.0
        %4069 = vadd.xlane.f32.xlu0 %v4068
        %v4070 = vpop.xlane.xlu0 %4069
        %v4071 = vsel %vm3101, %v2896, 0.0
        %4072 = vadd.xlane.f32.xlu0 %v4071
        %v4073 = vpop.xlane.xlu0 %4072
        %v4074 = vsel %vm3101, %v2897, 0.0
        %4075 = vadd.xlane.f32.xlu0 %v4074
        %v4076 = vpop.xlane.xlu0 %4075
        %v4077 = vsel %vm3101, %v2898, 0.0
        %4078 = vadd.xlane.f32.xlu0 %v4077
        %v4079 = vpop.xlane.xlu0 %4078
        %v4080 = vsel %vm3101, %v2899, 0.0
        %4081 = vadd.xlane.f32.xlu0 %v4080
        %v4082 = vpop.xlane.xlu0 %4081
        %v4083 = vsel %vm3101, %v2900, 0.0
        %4084 = vadd.xlane.f32.xlu0 %v4083
        %v4085 = vpop.xlane.xlu0 %4084
        %v4086 = vsel %vm3101, %v2901, 0.0
        %4087 = vadd.xlane.f32.xlu0 %v4086
        %v4088 = vpop.xlane.xlu0 %4087
        %v4089 = vsel %vm3101, %v2902, 0.0
        %4090 = vadd.xlane.f32.xlu0 %v4089
        %v4091 = vpop.xlane.xlu0 %4090
        %v4092 = vsel %vm3101, %v2903, 0.0
        %4093 = vadd.xlane.f32.xlu0 %v4092
        %v4094 = vpop.xlane.xlu0 %4093
        %v4095 = vsel %vm3101, %v2904, 0.0
        %4096 = vadd.xlane.f32.xlu0 %v4095
        %v4097 = vpop.xlane.xlu0 %4096
        %v4098 = vsel %vm3101, %v2905, 0.0
        %4099 = vadd.xlane.f32.xlu0 %v4098
        %v4100 = vpop.xlane.xlu0 %4099
        %v4101 = vsel %vm3101, %v2906, 0.0
        %4102 = vadd.xlane.f32.xlu0 %v4101
        %v4103 = vpop.xlane.xlu0 %4102
        %v4104 = vsel %vm3101, %v2907, 0.0
        %4105 = vadd.xlane.f32.xlu0 %v4104
        %v4106 = vpop.xlane.xlu0 %4105
        %v4107 = vsel %vm3101, %v2908, 0.0
        %4108 = vadd.xlane.f32.xlu0 %v4107
        %v4109 = vpop.xlane.xlu0 %4108
        %v4110 = vsel %vm3101, %v2909, 0.0
        %4111 = vadd.xlane.f32.xlu0 %v4110
        %v4112 = vpop.xlane.xlu0 %4111
        %v4113 = vsel %vm3101, %v2910, 0.0
        %4114 = vadd.xlane.f32.xlu0 %v4113
        %v4115 = vpop.xlane.xlu0 %4114
        %v4116 = vsel %vm3101, %v2911, 0.0
        %4117 = vadd.xlane.f32.xlu0 %v4116
        %v4118 = vpop.xlane.xlu0 %4117
        %v4119 = vsel %vm3101, %v2912, 0.0
        %4120 = vadd.xlane.f32.xlu0 %v4119
        %v4121 = vpop.xlane.xlu0 %4120
        %v4122 = vsel %vm3101, %v2913, 0.0
        %4123 = vadd.xlane.f32.xlu0 %v4122
        %v4124 = vpop.xlane.xlu0 %4123
        %v4125 = vsel %vm3101, %v2914, 0.0
        %4126 = vadd.xlane.f32.xlu0 %v4125
        %v4127 = vpop.xlane.xlu0 %4126
        %v4128 = vsel %vm3101, %v2915, 0.0
        %4129 = vadd.xlane.f32.xlu0 %v4128
        %v4130 = vpop.xlane.xlu0 %4129
        %v4131 = vsel %vm3101, %v2916, 0.0
        %4132 = vadd.xlane.f32.xlu0 %v4131
        %v4133 = vpop.xlane.xlu0 %4132
        %v4134 = vsel %vm3101, %v2917, 0.0
        %4135 = vadd.xlane.f32.xlu0 %v4134
        %v4136 = vpop.xlane.xlu0 %4135
        %v4137 = vsel %vm3101, %v2918, 0.0
        %4138 = vadd.xlane.f32.xlu0 %v4137
        %v4139 = vpop.xlane.xlu0 %4138
        %v4140 = vsel %vm3101, %v2919, 0.0
        %4141 = vadd.xlane.f32.xlu0 %v4140
        %v4142 = vpop.xlane.xlu0 %4141
        %v4143 = vsel %vm3101, %v2920, 0.0
        %4144 = vadd.xlane.f32.xlu0 %v4143
        %v4145 = vpop.xlane.xlu0 %4144
        %v4146 = vsel %vm3101, %v2921, 0.0
        %4147 = vadd.xlane.f32.xlu0 %v4146
        %v4148 = vpop.xlane.xlu0 %4147
        %v4149 = vsel %vm3101, %v2922, 0.0
        %4150 = vadd.xlane.f32.xlu0 %v4149
        %v4151 = vpop.xlane.xlu0 %4150
        %v4152 = vsel %vm3101, %v2923, 0.0
        %4153 = vadd.xlane.f32.xlu0 %v4152
        %v4154 = vpop.xlane.xlu0 %4153
        %v4155 = vsel %vm3101, %v2924, 0.0
        %4156 = vadd.xlane.f32.xlu0 %v4155
        %v4157 = vpop.xlane.xlu0 %4156
        %v4158 = vsel %vm3101, %v2925, 0.0
        %4159 = vadd.xlane.f32.xlu0 %v4158
        %v4160 = vpop.xlane.xlu0 %4159
        %v4161 = vsel %vm3101, %v2926, 0.0
        %4162 = vadd.xlane.f32.xlu0 %v4161
        %v4163 = vpop.xlane.xlu0 %4162
        %v4164 = vsel %vm3101, %v2927, 0.0
        %4165 = vadd.xlane.f32.xlu0 %v4164
        %v4166 = vpop.xlane.xlu0 %4165
        %v4167 = vsel %vm3101, %v2928, 0.0
        %4168 = vadd.xlane.f32.xlu0 %v4167
        %v4169 = vpop.xlane.xlu0 %4168
        %v4170 = vsel %vm3101, %v2929, 0.0
        %4171 = vadd.xlane.f32.xlu0 %v4170
        %v4172 = vpop.xlane.xlu0 %4171
        %v4173 = vsel %vm3101, %v2930, 0.0
        %4174 = vadd.xlane.f32.xlu0 %v4173
        %v4175 = vpop.xlane.xlu0 %4174
        %v4176 = vsel %vm3101, %v2931, 0.0
        %4177 = vadd.xlane.f32.xlu0 %v4176
        %v4178 = vpop.xlane.xlu0 %4177
        %v4179 = vsel %vm3101, %v2932, 0.0
        %4180 = vadd.xlane.f32.xlu0 %v4179
        %v4181 = vpop.xlane.xlu0 %4180
        %v4182 = vsel %vm3101, %v2933, 0.0
        %4183 = vadd.xlane.f32.xlu0 %v4182
        %v4184 = vpop.xlane.xlu0 %4183
        %v4185 = vsel %vm3101, %v2934, 0.0
        %4186 = vadd.xlane.f32.xlu0 %v4185
        %v4187 = vpop.xlane.xlu0 %4186
        %v4188 = vsel %vm3101, %v2935, 0.0
        %4189 = vadd.xlane.f32.xlu0 %v4188
        %v4190 = vpop.xlane.xlu0 %4189
        %v4191 = vsel %vm3101, %v2936, 0.0
        %4192 = vadd.xlane.f32.xlu0 %v4191
        %v4193 = vpop.xlane.xlu0 %4192
        %v4194 = vsel %vm3101, %v2937, 0.0
        %4195 = vadd.xlane.f32.xlu0 %v4194
        %v4196 = vpop.xlane.xlu0 %4195
        %v4197 = vsel %vm3101, %v2938, 0.0
        %4198 = vadd.xlane.f32.xlu0 %v4197
        %v4199 = vpop.xlane.xlu0 %4198
        %v4200 = vsel %vm3101, %v2939, 0.0
        %4201 = vadd.xlane.f32.xlu0 %v4200
        %v4202 = vpop.xlane.xlu0 %4201
        %v4203 = vsel %vm3101, %v2940, 0.0
        %4204 = vadd.xlane.f32.xlu0 %v4203
        %v4205 = vpop.xlane.xlu0 %4204
        %v4206 = vsel %vm3101, %v2941, 0.0
        %4207 = vadd.xlane.f32.xlu0 %v4206
        %v4208 = vpop.xlane.xlu0 %4207
        %v4209 = vsel %vm3101, %v2942, 0.0
        %4210 = vadd.xlane.f32.xlu0 %v4209
        %v4211 = vpop.xlane.xlu0 %4210
        %v4212 = vsel %vm3101, %v2943, 0.0
        %4213 = vadd.xlane.f32.xlu0 %v4212
        %v4214 = vpop.xlane.xlu0 %4213
        %v4215 = vsel %vm3101, %v2944, 0.0
        %4216 = vadd.xlane.f32.xlu0 %v4215
        %v4217 = vpop.xlane.xlu0 %4216
        %v4218 = vsel %vm3101, %v2945, 0.0
        %4219 = vadd.xlane.f32.xlu0 %v4218
        %v4220 = vpop.xlane.xlu0 %4219
        %v4221 = vsel %vm3101, %v2946, 0.0
        %4222 = vadd.xlane.f32.xlu0 %v4221
        %v4223 = vpop.xlane.xlu0 %4222
        %v4224 = vsel %vm3101, %v2947, 0.0
        %4225 = vadd.xlane.f32.xlu0 %v4224
        %v4226 = vpop.xlane.xlu0 %4225
        %v4227 = vsel %vm3101, %v2948, 0.0
        %4228 = vadd.xlane.f32.xlu0 %v4227
        %v4229 = vpop.xlane.xlu0 %4228
        %v4230 = vsel %vm3101, %v2949, 0.0
        %4231 = vadd.xlane.f32.xlu0 %v4230
        %v4232 = vpop.xlane.xlu0 %4231
        %v4233 = vsel %vm3101, %v2950, 0.0
        %4234 = vadd.xlane.f32.xlu0 %v4233
        %v4235 = vpop.xlane.xlu0 %4234
        %v4236 = vsel %vm3101, %v2951, 0.0
        %4237 = vadd.xlane.f32.xlu0 %v4236
        %v4238 = vpop.xlane.xlu0 %4237
        %v4239 = vsel %vm3101, %v2952, 0.0
        %4240 = vadd.xlane.f32.xlu0 %v4239
        %v4241 = vpop.xlane.xlu0 %4240
        %v4242 = vsel %vm3101, %v2953, 0.0
        %4243 = vadd.xlane.f32.xlu0 %v4242
        %v4244 = vpop.xlane.xlu0 %4243
        %v4245 = vsel %vm3101, %v2954, 0.0
        %4246 = vadd.xlane.f32.xlu0 %v4245
        %v4247 = vpop.xlane.xlu0 %4246
        %v4248 = vsel %vm3101, %v2955, 0.0
        %4249 = vadd.xlane.f32.xlu0 %v4248
        %v4250 = vpop.xlane.xlu0 %4249
        %v4251 = vsel %vm3101, %v2956, 0.0
        %4252 = vadd.xlane.f32.xlu0 %v4251
        %v4253 = vpop.xlane.xlu0 %4252
        %v4254 = vsel %vm3101, %v2957, 0.0
        %4255 = vadd.xlane.f32.xlu0 %v4254
        %v4256 = vpop.xlane.xlu0 %4255
        %v4257 = vsel %vm3101, %v2958, 0.0
        %4258 = vadd.xlane.f32.xlu0 %v4257
        %v4259 = vpop.xlane.xlu0 %4258
        %v4260 = vsel %vm3101, %v2959, 0.0
        %4261 = vadd.xlane.f32.xlu0 %v4260
        %v4262 = vpop.xlane.xlu0 %4261
        %v4263 = vsel %vm3101, %v2960, 0.0
        %4264 = vadd.xlane.f32.xlu0 %v4263
        %v4265 = vpop.xlane.xlu0 %4264
        %v4266 = vsel %vm3101, %v2961, 0.0
        %4267 = vadd.xlane.f32.xlu0 %v4266
        %v4268 = vpop.xlane.xlu0 %4267
        %v4269 = vsel %vm3101, %v2962, 0.0
        %4270 = vadd.xlane.f32.xlu0 %v4269
        %v4271 = vpop.xlane.xlu0 %4270
        %v4272 = vsel %vm3101, %v2963, 0.0
        %4273 = vadd.xlane.f32.xlu0 %v4272
        %v4274 = vpop.xlane.xlu0 %4273
        %v4275 = vsel %vm3101, %v2964, 0.0
        %4276 = vadd.xlane.f32.xlu0 %v4275
        %v4277 = vpop.xlane.xlu0 %4276
        %v4278 = vsel %vm3101, %v2965, 0.0
        %4279 = vadd.xlane.f32.xlu0 %v4278
        %v4280 = vpop.xlane.xlu0 %4279
        %v4281 = vsel %vm3101, %v2966, 0.0
        %4282 = vadd.xlane.f32.xlu0 %v4281
        %v4283 = vpop.xlane.xlu0 %4282
        %v4284 = vsel %vm3101, %v2967, 0.0
        %4285 = vadd.xlane.f32.xlu0 %v4284
        %v4286 = vpop.xlane.xlu0 %4285
        %v4287 = vsel %vm3101, %v2968, 0.0
        %4288 = vadd.xlane.f32.xlu0 %v4287
        %v4289 = vpop.xlane.xlu0 %4288
        %v4290 = vsel %vm3101, %v2969, 0.0
        %4291 = vadd.xlane.f32.xlu0 %v4290
        %v4292 = vpop.xlane.xlu0 %4291
        %v4293 = vsel %vm3101, %v2970, 0.0
        %4294 = vadd.xlane.f32.xlu0 %v4293
        %v4295 = vpop.xlane.xlu0 %4294
        %v4296 = vsel %vm3101, %v2971, 0.0
        %4297 = vadd.xlane.f32.xlu0 %v4296
        %v4298 = vpop.xlane.xlu0 %4297
        %v4299 = vsel %vm3101, %v2972, 0.0
        %4300 = vadd.xlane.f32.xlu0 %v4299
        %v4301 = vpop.xlane.xlu0 %4300
        %v4302 = vsel %vm3101, %v2973, 0.0
        %4303 = vadd.xlane.f32.xlu0 %v4302
        %v4304 = vpop.xlane.xlu0 %4303
        %v4305 = vsel %vm3101, %v2974, 0.0
        %4306 = vadd.xlane.f32.xlu0 %v4305
        %v4307 = vpop.xlane.xlu0 %4306
        %v4308 = vsel %vm3101, %v2975, 0.0
        %4309 = vadd.xlane.f32.xlu0 %v4308
        %v4310 = vpop.xlane.xlu0 %4309
        %v4311 = vsel %vm3101, %v2976, 0.0
        %4312 = vadd.xlane.f32.xlu0 %v4311
        %v4313 = vpop.xlane.xlu0 %4312
        %v4314 = vsel %vm3101, %v2977, 0.0
        %4315 = vadd.xlane.f32.xlu0 %v4314
        %v4316 = vpop.xlane.xlu0 %4315
        %v4317 = vsel %vm3101, %v2978, 0.0
        %4318 = vadd.xlane.f32.xlu0 %v4317
        %v4319 = vpop.xlane.xlu0 %4318
        %v4320 = vsel %vm3101, %v2979, 0.0
        %4321 = vadd.xlane.f32.xlu0 %v4320
        %v4322 = vpop.xlane.xlu0 %4321
        %v4323 = vsel %vm3101, %v2980, 0.0
        %4324 = vadd.xlane.f32.xlu0 %v4323
        %v4325 = vpop.xlane.xlu0 %4324
        %v4326 = vsel %vm3101, %v2981, 0.0
        %4327 = vadd.xlane.f32.xlu0 %v4326
        %v4328 = vpop.xlane.xlu0 %4327
        %v4329 = vsel %vm3101, %v2982, 0.0
        %4330 = vadd.xlane.f32.xlu0 %v4329
        %v4331 = vpop.xlane.xlu0 %4330
        %v4332 = vsel %vm3101, %v2983, 0.0
        %4333 = vadd.xlane.f32.xlu0 %v4332
        %v4334 = vpop.xlane.xlu0 %4333
        %v4335 = vsel %vm3101, %v2984, 0.0
        %4336 = vadd.xlane.f32.xlu0 %v4335
        %v4337 = vpop.xlane.xlu0 %4336
        %v4338 = vsel %vm3101, %v2985, 0.0
        %4339 = vadd.xlane.f32.xlu0 %v4338
        %v4340 = vpop.xlane.xlu0 %4339
        %v4341 = vsel %vm3101, %v2986, 0.0
        %4342 = vadd.xlane.f32.xlu0 %v4341
        %v4343 = vpop.xlane.xlu0 %4342
        %v4344 = vsel %vm3101, %v2987, 0.0
        %4345 = vadd.xlane.f32.xlu0 %v4344
        %v4346 = vpop.xlane.xlu0 %4345
        %v4347 = vsel %vm3101, %v2988, 0.0
        %4348 = vadd.xlane.f32.xlu0 %v4347
        %v4349 = vpop.xlane.xlu0 %4348
        %v4350 = vsel %vm3101, %v2989, 0.0
        %4351 = vadd.xlane.f32.xlu0 %v4350
        %v4352 = vpop.xlane.xlu0 %4351
        %v4353 = vsel %vm3101, %v2990, 0.0
        %4354 = vadd.xlane.f32.xlu0 %v4353
        %v4355 = vpop.xlane.xlu0 %4354
        %v4356 = vsel %vm3101, %v2991, 0.0
        %4357 = vadd.xlane.f32.xlu0 %v4356
        %v4358 = vpop.xlane.xlu0 %4357
        %v4359 = vsel %vm3101, %v2992, 0.0
        %4360 = vadd.xlane.f32.xlu0 %v4359
        %v4361 = vpop.xlane.xlu0 %4360
        %v4362 = vsel %vm3101, %v2993, 0.0
        %4363 = vadd.xlane.f32.xlu0 %v4362
        %v4364 = vpop.xlane.xlu0 %4363
        %v4365 = vsel %vm3101, %v2994, 0.0
        %4366 = vadd.xlane.f32.xlu0 %v4365
        %v4367 = vpop.xlane.xlu0 %4366
        %v4368 = vsel %vm3101, %v2995, 0.0
        %4369 = vadd.xlane.f32.xlu0 %v4368
        %v4370 = vpop.xlane.xlu0 %4369
        %v4371 = vsel %vm3101, %v2996, 0.0
        %4372 = vadd.xlane.f32.xlu0 %v4371
        %v4373 = vpop.xlane.xlu0 %4372
        %v4374 = vsel %vm3101, %v2997, 0.0
        %4375 = vadd.xlane.f32.xlu0 %v4374
        %v4376 = vpop.xlane.xlu0 %4375
        %v4377 = vsel %vm3101, %v2998, 0.0
        %4378 = vadd.xlane.f32.xlu0 %v4377
        %v4379 = vpop.xlane.xlu0 %4378
        %v4380 = vsel %vm3101, %v2999, 0.0
        %4381 = vadd.xlane.f32.xlu0 %v4380
        %v4382 = vpop.xlane.xlu0 %4381
        %v4383 = vsel %vm3101, %v3000, 0.0
        %4384 = vadd.xlane.f32.xlu0 %v4383
        %v4385 = vpop.xlane.xlu0 %4384
        %v4386 = vsel %vm3101, %v3001, 0.0
        %4387 = vadd.xlane.f32.xlu0 %v4386
        %v4388 = vpop.xlane.xlu0 %4387
        %v4389 = vsel %vm3101, %v3002, 0.0
        %4390 = vadd.xlane.f32.xlu0 %v4389
        %v4391 = vpop.xlane.xlu0 %4390
        %v4392 = vsel %vm3101, %v3003, 0.0
        %4393 = vadd.xlane.f32.xlu0 %v4392
        %v4394 = vpop.xlane.xlu0 %4393
        %v4395 = vsel %vm3101, %v3004, 0.0
        %4396 = vadd.xlane.f32.xlu0 %v4395
        %v4397 = vpop.xlane.xlu0 %4396
        %v4398 = vsel %vm3101, %v3005, 0.0
        %4399 = vadd.xlane.f32.xlu0 %v4398
        %v4400 = vpop.xlane.xlu0 %4399
        %v4401 = vsel %vm3101, %v3006, 0.0
        %4402 = vadd.xlane.f32.xlu0 %v4401
        %v4403 = vpop.xlane.xlu0 %4402
        %v4404 = vsel %vm3101, %v3007, 0.0
        %4405 = vadd.xlane.f32.xlu0 %v4404
        %v4406 = vpop.xlane.xlu0 %4405
        %v4407 = vsel %vm3101, %v3008, 0.0
        %4408 = vadd.xlane.f32.xlu0 %v4407
        %v4409 = vpop.xlane.xlu0 %4408
        %v4410 = vsel %vm3101, %v3009, 0.0
        %4411 = vadd.xlane.f32.xlu0 %v4410
        %v4412 = vpop.xlane.xlu0 %4411
        %v4413 = vsel %vm3101, %v3010, 0.0
        %4414 = vadd.xlane.f32.xlu0 %v4413
        %v4415 = vpop.xlane.xlu0 %4414
        %v4416 = vsel %vm3101, %v3011, 0.0
        %4417 = vadd.xlane.f32.xlu0 %v4416
        %v4418 = vpop.xlane.xlu0 %4417
        %v4419 = vsel %vm3101, %v3012, 0.0
        %4420 = vadd.xlane.f32.xlu0 %v4419
        %v4421 = vpop.xlane.xlu0 %4420
        %v4422 = vsel %vm3101, %v3013, 0.0
        %4423 = vadd.xlane.f32.xlu0 %v4422
        %v4424 = vpop.xlane.xlu0 %4423
        %v4425 = vsel %vm3101, %v3014, 0.0
        %4426 = vadd.xlane.f32.xlu0 %v4425
        %v4427 = vpop.xlane.xlu0 %4426
        %v4428 = vsel %vm3101, %v3015, 0.0
        %4429 = vadd.xlane.f32.xlu0 %v4428
        %v4430 = vpop.xlane.xlu0 %4429
        %v4431 = vsel %vm3101, %v3016, 0.0
        %4432 = vadd.xlane.f32.xlu0 %v4431
        %v4433 = vpop.xlane.xlu0 %4432
        %v4434 = vsel %vm3101, %v3017, 0.0
        %4435 = vadd.xlane.f32.xlu0 %v4434
        %v4436 = vpop.xlane.xlu0 %4435
        %v4437 = vsel %vm3101, %v3018, 0.0
        %4438 = vadd.xlane.f32.xlu0 %v4437
        %v4439 = vpop.xlane.xlu0 %4438
        %v4440 = vsel %vm3101, %v3019, 0.0
        %4441 = vadd.xlane.f32.xlu0 %v4440
        %v4442 = vpop.xlane.xlu0 %4441
        %v4443 = vsel %vm3101, %v3020, 0.0
        %4444 = vadd.xlane.f32.xlu0 %v4443
        %v4445 = vpop.xlane.xlu0 %4444
        %v4446 = vsel %vm3101, %v3021, 0.0
        %4447 = vadd.xlane.f32.xlu0 %v4446
        %v4448 = vpop.xlane.xlu0 %4447
        %v4449 = vsel %vm3101, %v3022, 0.0
        %4450 = vadd.xlane.f32.xlu0 %v4449
        %v4451 = vpop.xlane.xlu0 %4450
        %v4452 = vsel %vm3101, %v3023, 0.0
        %4453 = vadd.xlane.f32.xlu0 %v4452
        %v4454 = vpop.xlane.xlu0 %4453
        %v4455 = vsel %vm3101, %v3024, 0.0
        %4456 = vadd.xlane.f32.xlu0 %v4455
        %v4457 = vpop.xlane.xlu0 %4456
        %v4458 = vsel %vm3101, %v3025, 0.0
        %4459 = vadd.xlane.f32.xlu0 %v4458
        %v4460 = vpop.xlane.xlu0 %4459
        %v4461 = vsel %vm3101, %v3026, 0.0
        %4462 = vadd.xlane.f32.xlu0 %v4461
        %v4463 = vpop.xlane.xlu0 %4462
        %v4464 = vsel %vm3101, %v3027, 0.0
        %4465 = vadd.xlane.f32.xlu0 %v4464
        %v4466 = vpop.xlane.xlu0 %4465
        %v4467 = vsel %vm3101, %v3028, 0.0
        %4468 = vadd.xlane.f32.xlu0 %v4467
        %v4469 = vpop.xlane.xlu0 %4468
        %v4470 = vsel %vm3101, %v3029, 0.0
        %4471 = vadd.xlane.f32.xlu0 %v4470
        %v4472 = vpop.xlane.xlu0 %4471
        %v4473 = vsel %vm3101, %v3030, 0.0
        %4474 = vadd.xlane.f32.xlu0 %v4473
        %v4475 = vpop.xlane.xlu0 %4474
        %v4476 = vsel %vm3101, %v3031, 0.0
        %4477 = vadd.xlane.f32.xlu0 %v4476
        %v4478 = vpop.xlane.xlu0 %4477
        %v4479 = vsel %vm3101, %v3032, 0.0
        %4480 = vadd.xlane.f32.xlu0 %v4479
        %v4481 = vpop.xlane.xlu0 %4480
        %v4482 = vsel %vm3101, %v3033, 0.0
        %4483 = vadd.xlane.f32.xlu0 %v4482
        %v4484 = vpop.xlane.xlu0 %4483
        %v4485 = vsel %vm3101, %v3034, 0.0
        %4486 = vadd.xlane.f32.xlu0 %v4485
        %v4487 = vpop.xlane.xlu0 %4486
        %v4488 = vsel %vm3101, %v3035, 0.0
        %4489 = vadd.xlane.f32.xlu0 %v4488
        %v4490 = vpop.xlane.xlu0 %4489
        %v4491 = vsel %vm3101, %v3036, 0.0
        %4492 = vadd.xlane.f32.xlu0 %v4491
        %v4493 = vpop.xlane.xlu0 %4492
        %v4494 = vsel %vm3101, %v3037, 0.0
        %4495 = vadd.xlane.f32.xlu0 %v4494
        %v4496 = vpop.xlane.xlu0 %4495
        %v4497 = vsel %vm3101, %v3038, 0.0
        %4498 = vadd.xlane.f32.xlu0 %v4497
        %v4499 = vpop.xlane.xlu0 %4498
        %v4500 = vsel %vm3101, %v3039, 0.0
        %4501 = vadd.xlane.f32.xlu0 %v4500
        %v4502 = vpop.xlane.xlu0 %4501
        %v4503 = vsel %vm3101, %v3040, 0.0
        %4504 = vadd.xlane.f32.xlu0 %v4503
        %v4505 = vpop.xlane.xlu0 %4504
        %v4506 = vsel %vm3101, %v3041, 0.0
        %4507 = vadd.xlane.f32.xlu0 %v4506
        %v4508 = vpop.xlane.xlu0 %4507
        %v4509 = vsel %vm3101, %v3042, 0.0
        %4510 = vadd.xlane.f32.xlu0 %v4509
        %v4511 = vpop.xlane.xlu0 %4510
        %v4512 = vsel %vm3101, %v3043, 0.0
        %4513 = vadd.xlane.f32.xlu0 %v4512
        %v4514 = vpop.xlane.xlu0 %4513
        %v4515 = vsel %vm3101, %v3044, 0.0
        %4516 = vadd.xlane.f32.xlu0 %v4515
        %v4517 = vpop.xlane.xlu0 %4516
        %v4518 = vsel %vm3101, %v3045, 0.0
        %4519 = vadd.xlane.f32.xlu0 %v4518
        %v4520 = vpop.xlane.xlu0 %4519
        %v4521 = vsel %vm3101, %v3046, 0.0
        %4522 = vadd.xlane.f32.xlu0 %v4521
        %v4523 = vpop.xlane.xlu0 %4522
        %v4524 = vsel %vm3101, %v3047, 0.0
        %4525 = vadd.xlane.f32.xlu0 %v4524
        %v4526 = vpop.xlane.xlu0 %4525
        %v4527 = vsel %vm3101, %v3048, 0.0
        %4528 = vadd.xlane.f32.xlu0 %v4527
        %v4529 = vpop.xlane.xlu0 %4528
        %v4530 = vsel %vm3101, %v3049, 0.0
        %4531 = vadd.xlane.f32.xlu0 %v4530
        %v4532 = vpop.xlane.xlu0 %4531
        %v4533 = vsel %vm3101, %v3050, 0.0
        %4534 = vadd.xlane.f32.xlu0 %v4533
        %v4535 = vpop.xlane.xlu0 %4534
        %v4536 = vsel %vm3101, %v3051, 0.0
        %4537 = vadd.xlane.f32.xlu0 %v4536
        %v4538 = vpop.xlane.xlu0 %4537
        %v4539 = vsel %vm3101, %v3052, 0.0
        %4540 = vadd.xlane.f32.xlu0 %v4539
        %v4541 = vpop.xlane.xlu0 %4540
        %v4542 = vsel %vm3101, %v3053, 0.0
        %4543 = vadd.xlane.f32.xlu0 %v4542
        %v4544 = vpop.xlane.xlu0 %4543
        %v4545 = vsel %vm3101, %v3054, 0.0
        %4546 = vadd.xlane.f32.xlu0 %v4545
        %v4547 = vpop.xlane.xlu0 %4546
        %v4548 = vsel %vm3101, %v3055, 0.0
        %4549 = vadd.xlane.f32.xlu0 %v4548
        %v4550 = vpop.xlane.xlu0 %4549
        %v4551 = vsel %vm3101, %v3056, 0.0
        %4552 = vadd.xlane.f32.xlu0 %v4551
        %v4553 = vpop.xlane.xlu0 %4552
        %v4554 = vsel %vm3101, %v3057, 0.0
        %4555 = vadd.xlane.f32.xlu0 %v4554
        %v4556 = vpop.xlane.xlu0 %4555
        %v4557 = vsel %vm3101, %v3058, 0.0
        %4558 = vadd.xlane.f32.xlu0 %v4557
        %v4559 = vpop.xlane.xlu0 %4558
        %v4560 = vsel %vm3101, %v3059, 0.0
        %4561 = vadd.xlane.f32.xlu0 %v4560
        %v4562 = vpop.xlane.xlu0 %4561
        %v4563 = vsel %vm3101, %v3060, 0.0
        %4564 = vadd.xlane.f32.xlu0 %v4563
        %v4565 = vpop.xlane.xlu0 %4564
        %v4566 = vsel %vm3101, %v3061, 0.0
        %4567 = vadd.xlane.f32.xlu0 %v4566
        %v4568 = vpop.xlane.xlu0 %4567
        %v4569 = vsel %vm3101, %v3062, 0.0
        %4570 = vadd.xlane.f32.xlu0 %v4569
        %v4571 = vpop.xlane.xlu0 %4570
        %v4572 = vsel %vm3101, %v3063, 0.0
        %4573 = vadd.xlane.f32.xlu0 %v4572
        %v4574 = vpop.xlane.xlu0 %4573
        %v4575 = vsel %vm3101, %v3064, 0.0
        %4576 = vadd.xlane.f32.xlu0 %v4575
        %v4577 = vpop.xlane.xlu0 %4576
        %v4578 = vsel %vm3101, %v3065, 0.0
        %4579 = vadd.xlane.f32.xlu0 %v4578
        %v4580 = vpop.xlane.xlu0 %4579
        %v4581 = vsel %vm3101, %v3066, 0.0
        %4582 = vadd.xlane.f32.xlu0 %v4581
        %v4583 = vpop.xlane.xlu0 %4582
        %v4584 = vsel %vm3101, %v3067, 0.0
        %4585 = vadd.xlane.f32.xlu0 %v4584
        %v4586 = vpop.xlane.xlu0 %4585
        %v4587 = vsel %vm3101, %v3068, 0.0
        %4588 = vadd.xlane.f32.xlu0 %v4587
        %v4589 = vpop.xlane.xlu0 %4588
        %v4590 = vsel %vm3101, %v3069, 0.0
        %4591 = vadd.xlane.f32.xlu0 %v4590
        %v4592 = vpop.xlane.xlu0 %4591
        %v4593 = vsel %vm3101, %v3070, 0.0
        %4594 = vadd.xlane.f32.xlu0 %v4593
        %v4595 = vpop.xlane.xlu0 %4594
        %v4596 = vsel %vm3101, %v3071, 0.0
        %4597 = vadd.xlane.f32.xlu0 %v4596
        %v4598 = vpop.xlane.xlu0 %4597
        %v4599 = vsel %vm3101, %v3072, 0.0
        %4600 = vadd.xlane.f32.xlu0 %v4599
        %v4601 = vpop.xlane.xlu0 %4600
        %v4602 = vsel %vm3101, %v3073, 0.0
        %4603 = vadd.xlane.f32.xlu0 %v4602
        %v4604 = vpop.xlane.xlu0 %4603
        %v4605 = vsel %vm3101, %v3074, 0.0
        %4606 = vadd.xlane.f32.xlu0 %v4605
        %v4607 = vpop.xlane.xlu0 %4606
        %v4608 = vsel %vm3101, %v3075, 0.0
        %4609 = vadd.xlane.f32.xlu0 %v4608
        %v4610 = vpop.xlane.xlu0 %4609
        %v4611 = vsel %vm3101, %v3076, 0.0
        %4612 = vadd.xlane.f32.xlu0 %v4611
        %v4613 = vpop.xlane.xlu0 %4612
        %v4614 = vsel %vm3101, %v3077, 0.0
        %4615 = vadd.xlane.f32.xlu0 %v4614
        %v4616 = vpop.xlane.xlu0 %4615
        %v4617 = vsel %vm3101, %v3078, 0.0
        %4618 = vadd.xlane.f32.xlu0 %v4617
        %v4619 = vpop.xlane.xlu0 %4618
        %v4620 = vsel %vm3101, %v3079, 0.0
        %4621 = vadd.xlane.f32.xlu0 %v4620
        %v4622 = vpop.xlane.xlu0 %4621
        %v4623 = vsel %vm3101, %v3080, 0.0
        %4624 = vadd.xlane.f32.xlu0 %v4623
        %v4625 = vpop.xlane.xlu0 %4624
        %v4626 = vsel %vm3101, %v3081, 0.0
        %4627 = vadd.xlane.f32.xlu0 %v4626
        %v4628 = vpop.xlane.xlu0 %4627
        %v4629 = vsel %vm3101, %v3082, 0.0
        %4630 = vadd.xlane.f32.xlu0 %v4629
        %v4631 = vpop.xlane.xlu0 %4630
        %v4632 = vsel %vm3101, %v3083, 0.0
        %4633 = vadd.xlane.f32.xlu0 %v4632
        %v4634 = vpop.xlane.xlu0 %4633
        %v4635 = vsel %vm3101, %v3084, 0.0
        %4636 = vadd.xlane.f32.xlu0 %v4635
        %v4637 = vpop.xlane.xlu0 %4636
        %v4638 = vsel %vm3101, %v3085, 0.0
        %4639 = vadd.xlane.f32.xlu0 %v4638
        %v4640 = vpop.xlane.xlu0 %4639
        %v4641 = vsel %vm3101, %v3086, 0.0
        %4642 = vadd.xlane.f32.xlu0 %v4641
        %v4643 = vpop.xlane.xlu0 %4642
        %v4644 = vsel %vm3101, %v3087, 0.0
        %4645 = vadd.xlane.f32.xlu0 %v4644
        %v4646 = vpop.xlane.xlu0 %4645
        %v4647 = vsel %vm3101, %v3088, 0.0
        %4648 = vadd.xlane.f32.xlu0 %v4647
        %v4649 = vpop.xlane.xlu0 %4648
        %v4650 = vsel %vm3101, %v3089, 0.0
        %4651 = vadd.xlane.f32.xlu0 %v4650
        %v4652 = vpop.xlane.xlu0 %4651
        %v4653 = vsel %vm3101, %v3090, 0.0
        %4654 = vadd.xlane.f32.xlu0 %v4653
        %v4655 = vpop.xlane.xlu0 %4654
        %v4656 = vsel %vm3101, %v3091, 0.0
        %4657 = vadd.xlane.f32.xlu0 %v4656
        %v4658 = vpop.xlane.xlu0 %4657
        %v4659 = vsel %vm3101, %v3092, 0.0
        %4660 = vadd.xlane.f32.xlu0 %v4659
        %v4661 = vpop.xlane.xlu0 %4660
        %v4662 = vsel %vm3101, %v3093, 0.0
        %4663 = vadd.xlane.f32.xlu0 %v4662
        %v4664 = vpop.xlane.xlu0 %4663
        %v4665 = vsel %vm3101, %v3094, 0.0
        %4666 = vadd.xlane.f32.xlu0 %v4665
        %v4667 = vpop.xlane.xlu0 %4666
        %v4668 = vsel %vm3101, %v3095, 0.0
        %4669 = vadd.xlane.f32.xlu0 %v4668
        %v4670 = vpop.xlane.xlu0 %4669
        %v4671 = vsel %vm3101, %v3096, 0.0
        %4672 = vadd.xlane.f32.xlu0 %v4671
        %v4673 = vpop.xlane.xlu0 %4672
        %v4674 = vsel %vm3101, %v3097, 0.0
        %4675 = vadd.xlane.f32.xlu0 %v4674
        %v4676 = vpop.xlane.xlu0 %4675
        %v4677 = vsel %vm3101, %v3098, 0.0
        %4678 = vadd.xlane.f32.xlu0 %v4677
        %v4679 = vpop.xlane.xlu0 %4678
        %v4680 = vsel %vm3101, %v3099, 0.0
        %4681 = vadd.xlane.f32.xlu0 %v4680
        %v4682 = vpop.xlane.xlu0 %4681
        %v4683 = vsel %vm3101, %v3100, 0.0
        %4684 = vadd.xlane.f32.xlu0 %v4683
        %v4685 = vpop.xlane.xlu0 %4684
        %v5214 = vlaneseq
        %v5215 = vand.u32 %v5214, 127
        %v5216 = vlaneseq
        %v5217 = vshrl.u32 %v5216, 7
        %v5218 = vsub.s32 %v5215, %v5217
        %v5219 = vrot.slane %v3104, %v5218
        %v5220 = vadd.s32 %v5215, 4294967288
        %v5221 = vlaneseq
        %v5222 = vshrl.u32 %v5221, 7
        %v5223 = vsub.s32 %v5220, %v5222
        %v5224 = vrot.slane %v3107, %v5223
        %vm5225 = vcmask 130112
        %v5226 = vsel %vm5225, %v5224, %v5219
        %v5227 = vadd.s32 %v5215, 4294967280
        %v5228 = vlaneseq
        %v5229 = vshrl.u32 %v5228, 7
        %v5230 = vsub.s32 %v5227, %v5229
        %v5231 = vrot.slane %v3110, %v5230
        %vm5232 = vcmask 195712
        %v5233 = vsel %vm5232, %v5231, %v5226
        %v5234 = vadd.s32 %v5215, 4294967272
        %v5235 = vlaneseq
        %v5236 = vshrl.u32 %v5235, 7
        %v5237 = vsub.s32 %v5234, %v5236
        %v5238 = vrot.slane %v3113, %v5237
        %vm5239 = vcmask 261312
        %v5240 = vsel %vm5239, %v5238, %v5233
        %v5241 = vadd.s32 %v5215, 4294967264
        %v5242 = vlaneseq
        %v5243 = vshrl.u32 %v5242, 7
        %v5244 = vsub.s32 %v5241, %v5243
        %v5245 = vrot.slane %v3116, %v5244
        %vm5246 = vcmask 326912
        %v5247 = vsel %vm5246, %v5245, %v5240
        %v5248 = vadd.s32 %v5215, 4294967256
        %v5249 = vlaneseq
        %v5250 = vshrl.u32 %v5249, 7
        %v5251 = vsub.s32 %v5248, %v5250
        %v5252 = vrot.slane %v3119, %v5251
        %vm5253 = vcmask 392512
        %v5254 = vsel %vm5253, %v5252, %v5247
        %v5255 = vadd.s32 %v5215, 4294967248
        %v5256 = vlaneseq
        %v5257 = vshrl.u32 %v5256, 7
        %v5258 = vsub.s32 %v5255, %v5257
        %v5259 = vrot.slane %v3122, %v5258
        %vm5260 = vcmask 458112
        %v5261 = vsel %vm5260, %v5259, %v5254
        %v5262 = vadd.s32 %v5215, 4294967240
        %v5263 = vlaneseq
        %v5264 = vshrl.u32 %v5263, 7
        %v5265 = vsub.s32 %v5262, %v5264
        %v5266 = vrot.slane %v3125, %v5265
        %vm5267 = vcmask 523712
        %v5268 = vsel %vm5267, %v5266, %v5261
        %v5269 = vadd.s32 %v5215, 4294967232
        %v5270 = vlaneseq
        %v5271 = vshrl.u32 %v5270, 7
        %v5272 = vsub.s32 %v5269, %v5271
        %v5273 = vrot.slane %v3128, %v5272
        %vm5274 = vcmask 589312
        %v5275 = vsel %vm5274, %v5273, %v5268
        %v5276 = vadd.s32 %v5215, 4294967224
        %v5277 = vlaneseq
        %v5278 = vshrl.u32 %v5277, 7
        %v5279 = vsub.s32 %v5276, %v5278
        %v5280 = vrot.slane %v3131, %v5279
        %vm5281 = vcmask 654912
        %v5282 = vsel %vm5281, %v5280, %v5275
        %v5283 = vadd.s32 %v5215, 4294967216
        %v5284 = vlaneseq
        %v5285 = vshrl.u32 %v5284, 7
        %v5286 = vsub.s32 %v5283, %v5285
        %v5287 = vrot.slane %v3134, %v5286
        %vm5288 = vcmask 720512
        %v5289 = vsel %vm5288, %v5287, %v5282
        %v5290 = vadd.s32 %v5215, 4294967208
        %v5291 = vlaneseq
        %v5292 = vshrl.u32 %v5291, 7
        %v5293 = vsub.s32 %v5290, %v5292
        %v5294 = vrot.slane %v3137, %v5293
        %vm5295 = vcmask 786112
        %v5296 = vsel %vm5295, %v5294, %v5289
        %v5297 = vadd.s32 %v5215, 4294967200
        %v5298 = vlaneseq
        %v5299 = vshrl.u32 %v5298, 7
        %v5300 = vsub.s32 %v5297, %v5299
        %v5301 = vrot.slane %v3140, %v5300
        %vm5302 = vcmask 851712
        %v5303 = vsel %vm5302, %v5301, %v5296
        %v5304 = vadd.s32 %v5215, 4294967192
        %v5305 = vlaneseq
        %v5306 = vshrl.u32 %v5305, 7
        %v5307 = vsub.s32 %v5304, %v5306
        %v5308 = vrot.slane %v3143, %v5307
        %vm5309 = vcmask 917312
        %v5310 = vsel %vm5309, %v5308, %v5303
        %v5311 = vadd.s32 %v5215, 4294967184
        %v5312 = vlaneseq
        %v5313 = vshrl.u32 %v5312, 7
        %v5314 = vsub.s32 %v5311, %v5313
        %v5315 = vrot.slane %v3146, %v5314
        %vm5316 = vcmask 982912
        %v5317 = vsel %vm5316, %v5315, %v5310
        %v5318 = vadd.s32 %v5215, 4294967176
        %v5319 = vlaneseq
        %v5320 = vshrl.u32 %v5319, 7
        %v5321 = vsub.s32 %v5318, %v5320
        %v5322 = vrot.slane %v3149, %v5321
        %vm5323 = vcmask 1048512
        %v5324 = vsel %vm5323, %v5322, %v5317
        %v5325 = vlaneseq
        %v5326 = vshrl.u32 %v5325, 7
        %v5327 = vsub.s32 %v5215, %v5326
        %v5328 = vrot.slane %v3152, %v5327
        %v5329 = vlaneseq
        %v5330 = vshrl.u32 %v5329, 7
        %v5331 = vsub.s32 %v5220, %v5330
        %v5332 = vrot.slane %v3155, %v5331
        %v5333 = vsel %vm5225, %v5332, %v5328
        %v5334 = vlaneseq
        %v5335 = vshrl.u32 %v5334, 7
        %v5336 = vsub.s32 %v5227, %v5335
        %v5337 = vrot.slane %v3158, %v5336
        %v5338 = vsel %vm5232, %v5337, %v5333
        %v5339 = vlaneseq
        %v5340 = vshrl.u32 %v5339, 7
        %v5341 = vsub.s32 %v5234, %v5340
        %v5342 = vrot.slane %v3161, %v5341
        %v5343 = vsel %vm5239, %v5342, %v5338
        %v5344 = vlaneseq
        %v5345 = vshrl.u32 %v5344, 7
        %v5346 = vsub.s32 %v5241, %v5345
        %v5347 = vrot.slane %v3164, %v5346
        %v5348 = vsel %vm5246, %v5347, %v5343
        %v5349 = vlaneseq
        %v5350 = vshrl.u32 %v5349, 7
        %v5351 = vsub.s32 %v5248, %v5350
        %v5352 = vrot.slane %v3167, %v5351
        %v5353 = vsel %vm5253, %v5352, %v5348
        %v5354 = vlaneseq
        %v5355 = vshrl.u32 %v5354, 7
        %v5356 = vsub.s32 %v5255, %v5355
        %v5357 = vrot.slane %v3170, %v5356
        %v5358 = vsel %vm5260, %v5357, %v5353
        %v5359 = vlaneseq
        %v5360 = vshrl.u32 %v5359, 7
        %v5361 = vsub.s32 %v5262, %v5360
        %v5362 = vrot.slane %v3173, %v5361
        %v5363 = vsel %vm5267, %v5362, %v5358
        %v5364 = vlaneseq
        %v5365 = vshrl.u32 %v5364, 7
        %v5366 = vsub.s32 %v5269, %v5365
        %v5367 = vrot.slane %v3176, %v5366
        %v5368 = vsel %vm5274, %v5367, %v5363
        %v5369 = vlaneseq
        %v5370 = vshrl.u32 %v5369, 7
        %v5371 = vsub.s32 %v5276, %v5370
        %v5372 = vrot.slane %v3179, %v5371
        %v5373 = vsel %vm5281, %v5372, %v5368
        %v5374 = vlaneseq
        %v5375 = vshrl.u32 %v5374, 7
        %v5376 = vsub.s32 %v5283, %v5375
        %v5377 = vrot.slane %v3182, %v5376
        %v5378 = vsel %vm5288, %v5377, %v5373
        %v5379 = vlaneseq
        %v5380 = vshrl.u32 %v5379, 7
        %v5381 = vsub.s32 %v5290, %v5380
        %v5382 = vrot.slane %v3185, %v5381
        %v5383 = vsel %vm5295, %v5382, %v5378
        %v5384 = vlaneseq
        %v5385 = vshrl.u32 %v5384, 7
        %v5386 = vsub.s32 %v5297, %v5385
        %v5387 = vrot.slane %v3188, %v5386
        %v5388 = vsel %vm5302, %v5387, %v5383
        %v5389 = vlaneseq
        %v5390 = vshrl.u32 %v5389, 7
        %v5391 = vsub.s32 %v5304, %v5390
        %v5392 = vrot.slane %v3191, %v5391
        %v5393 = vsel %vm5309, %v5392, %v5388
        %v5394 = vlaneseq
        %v5395 = vshrl.u32 %v5394, 7
        %v5396 = vsub.s32 %v5311, %v5395
        %v5397 = vrot.slane %v3194, %v5396
        %v5398 = vsel %vm5316, %v5397, %v5393
        %v5399 = vlaneseq
        %v5400 = vshrl.u32 %v5399, 7
        %v5401 = vsub.s32 %v5318, %v5400
        %v5402 = vrot.slane %v3197, %v5401
        %v5403 = vsel %vm5323, %v5402, %v5398
        %v5404 = vlaneseq
        %v5405 = vshrl.u32 %v5404, 7
        %v5406 = vsub.s32 %v5215, %v5405
        %v5407 = vrot.slane %v3200, %v5406
        %v5408 = vlaneseq
        %v5409 = vshrl.u32 %v5408, 7
        %v5410 = vsub.s32 %v5220, %v5409
        %v5411 = vrot.slane %v3203, %v5410
        %v5412 = vsel %vm5225, %v5411, %v5407
        %v5413 = vlaneseq
        %v5414 = vshrl.u32 %v5413, 7
        %v5415 = vsub.s32 %v5227, %v5414
        %v5416 = vrot.slane %v3206, %v5415
        %v5417 = vsel %vm5232, %v5416, %v5412
        %v5418 = vlaneseq
        %v5419 = vshrl.u32 %v5418, 7
        %v5420 = vsub.s32 %v5234, %v5419
        %v5421 = vrot.slane %v3209, %v5420
        %v5422 = vsel %vm5239, %v5421, %v5417
        %v5423 = vlaneseq
        %v5424 = vshrl.u32 %v5423, 7
        %v5425 = vsub.s32 %v5241, %v5424
        %v5426 = vrot.slane %v3212, %v5425
        %v5427 = vsel %vm5246, %v5426, %v5422
        %v5428 = vlaneseq
        %v5429 = vshrl.u32 %v5428, 7
        %v5430 = vsub.s32 %v5248, %v5429
        %v5431 = vrot.slane %v3215, %v5430
        %v5432 = vsel %vm5253, %v5431, %v5427
        %v5433 = vlaneseq
        %v5434 = vshrl.u32 %v5433, 7
        %v5435 = vsub.s32 %v5255, %v5434
        %v5436 = vrot.slane %v3218, %v5435
        %v5437 = vsel %vm5260, %v5436, %v5432
        %v5438 = vlaneseq
        %v5439 = vshrl.u32 %v5438, 7
        %v5440 = vsub.s32 %v5262, %v5439
        %v5441 = vrot.slane %v3221, %v5440
        %v5442 = vsel %vm5267, %v5441, %v5437
        %v5443 = vlaneseq
        %v5444 = vshrl.u32 %v5443, 7
        %v5445 = vsub.s32 %v5269, %v5444
        %v5446 = vrot.slane %v3224, %v5445
        %v5447 = vsel %vm5274, %v5446, %v5442
        %v5448 = vlaneseq
        %v5449 = vshrl.u32 %v5448, 7
        %v5450 = vsub.s32 %v5276, %v5449
        %v5451 = vrot.slane %v3227, %v5450
        %v5452 = vsel %vm5281, %v5451, %v5447
        %v5453 = vlaneseq
        %v5454 = vshrl.u32 %v5453, 7
        %v5455 = vsub.s32 %v5283, %v5454
        %v5456 = vrot.slane %v3230, %v5455
        %v5457 = vsel %vm5288, %v5456, %v5452
        %v5458 = vlaneseq
        %v5459 = vshrl.u32 %v5458, 7
        %v5460 = vsub.s32 %v5290, %v5459
        %v5461 = vrot.slane %v3233, %v5460
        %v5462 = vsel %vm5295, %v5461, %v5457
        %v5463 = vlaneseq
        %v5464 = vshrl.u32 %v5463, 7
        %v5465 = vsub.s32 %v5297, %v5464
        %v5466 = vrot.slane %v3236, %v5465
        %v5467 = vsel %vm5302, %v5466, %v5462
        %v5468 = vlaneseq
        %v5469 = vshrl.u32 %v5468, 7
        %v5470 = vsub.s32 %v5304, %v5469
        %v5471 = vrot.slane %v3239, %v5470
        %v5472 = vsel %vm5309, %v5471, %v5467
        %v5473 = vlaneseq
        %v5474 = vshrl.u32 %v5473, 7
        %v5475 = vsub.s32 %v5311, %v5474
        %v5476 = vrot.slane %v3242, %v5475
        %v5477 = vsel %vm5316, %v5476, %v5472
        %v5478 = vlaneseq
        %v5479 = vshrl.u32 %v5478, 7
        %v5480 = vsub.s32 %v5318, %v5479
        %v5481 = vrot.slane %v3245, %v5480
        %v5482 = vsel %vm5323, %v5481, %v5477
        %v5483 = vlaneseq
        %v5484 = vshrl.u32 %v5483, 7
        %v5485 = vsub.s32 %v5215, %v5484
        %v5486 = vrot.slane %v3248, %v5485
        %v5487 = vlaneseq
        %v5488 = vshrl.u32 %v5487, 7
        %v5489 = vsub.s32 %v5220, %v5488
        %v5490 = vrot.slane %v3251, %v5489
        %v5491 = vsel %vm5225, %v5490, %v5486
        %v5492 = vlaneseq
        %v5493 = vshrl.u32 %v5492, 7
        %v5494 = vsub.s32 %v5227, %v5493
        %v5495 = vrot.slane %v3254, %v5494
        %v5496 = vsel %vm5232, %v5495, %v5491
        %v5497 = vlaneseq
        %v5498 = vshrl.u32 %v5497, 7
        %v5499 = vsub.s32 %v5234, %v5498
        %v5500 = vrot.slane %v3257, %v5499
        %v5501 = vsel %vm5239, %v5500, %v5496
        %v5502 = vlaneseq
        %v5503 = vshrl.u32 %v5502, 7
        %v5504 = vsub.s32 %v5241, %v5503
        %v5505 = vrot.slane %v3260, %v5504
        %v5506 = vsel %vm5246, %v5505, %v5501
        %v5507 = vlaneseq
        %v5508 = vshrl.u32 %v5507, 7
        %v5509 = vsub.s32 %v5248, %v5508
        %v5510 = vrot.slane %v3263, %v5509
        %v5511 = vsel %vm5253, %v5510, %v5506
        %v5512 = vlaneseq
        %v5513 = vshrl.u32 %v5512, 7
        %v5514 = vsub.s32 %v5255, %v5513
        %v5515 = vrot.slane %v3266, %v5514
        %v5516 = vsel %vm5260, %v5515, %v5511
        %v5517 = vlaneseq
        %v5518 = vshrl.u32 %v5517, 7
        %v5519 = vsub.s32 %v5262, %v5518
        %v5520 = vrot.slane %v3269, %v5519
        %v5521 = vsel %vm5267, %v5520, %v5516
        %v5522 = vlaneseq
        %v5523 = vshrl.u32 %v5522, 7
        %v5524 = vsub.s32 %v5269, %v5523
        %v5525 = vrot.slane %v3272, %v5524
        %v5526 = vsel %vm5274, %v5525, %v5521
        %v5527 = vlaneseq
        %v5528 = vshrl.u32 %v5527, 7
        %v5529 = vsub.s32 %v5276, %v5528
        %v5530 = vrot.slane %v3275, %v5529
        %v5531 = vsel %vm5281, %v5530, %v5526
        %v5532 = vlaneseq
        %v5533 = vshrl.u32 %v5532, 7
        %v5534 = vsub.s32 %v5283, %v5533
        %v5535 = vrot.slane %v3278, %v5534
        %v5536 = vsel %vm5288, %v5535, %v5531
        %v5537 = vlaneseq
        %v5538 = vshrl.u32 %v5537, 7
        %v5539 = vsub.s32 %v5290, %v5538
        %v5540 = vrot.slane %v3281, %v5539
        %v5541 = vsel %vm5295, %v5540, %v5536
        %v5542 = vlaneseq
        %v5543 = vshrl.u32 %v5542, 7
        %v5544 = vsub.s32 %v5297, %v5543
        %v5545 = vrot.slane %v3284, %v5544
        %v5546 = vsel %vm5302, %v5545, %v5541
        %v5547 = vlaneseq
        %v5548 = vshrl.u32 %v5547, 7
        %v5549 = vsub.s32 %v5304, %v5548
        %v5550 = vrot.slane %v3287, %v5549
        %v5551 = vsel %vm5309, %v5550, %v5546
        %v5552 = vlaneseq
        %v5553 = vshrl.u32 %v5552, 7
        %v5554 = vsub.s32 %v5311, %v5553
        %v5555 = vrot.slane %v3290, %v5554
        %v5556 = vsel %vm5316, %v5555, %v5551
        %v5557 = vlaneseq
        %v5558 = vshrl.u32 %v5557, 7
        %v5559 = vsub.s32 %v5318, %v5558
        %v5560 = vrot.slane %v3293, %v5559
        %v5561 = vsel %vm5323, %v5560, %v5556
        %v5562 = vlaneseq
        %v5563 = vshrl.u32 %v5562, 7
        %v5564 = vsub.s32 %v5215, %v5563
        %v5565 = vrot.slane %v3296, %v5564
        %v5566 = vlaneseq
        %v5567 = vshrl.u32 %v5566, 7
        %v5568 = vsub.s32 %v5220, %v5567
        %v5569 = vrot.slane %v3299, %v5568
        %v5570 = vsel %vm5225, %v5569, %v5565
        %v5571 = vlaneseq
        %v5572 = vshrl.u32 %v5571, 7
        %v5573 = vsub.s32 %v5227, %v5572
        %v5574 = vrot.slane %v3302, %v5573
        %v5575 = vsel %vm5232, %v5574, %v5570
        %v5576 = vlaneseq
        %v5577 = vshrl.u32 %v5576, 7
        %v5578 = vsub.s32 %v5234, %v5577
        %v5579 = vrot.slane %v3305, %v5578
        %v5580 = vsel %vm5239, %v5579, %v5575
        %v5581 = vlaneseq
        %v5582 = vshrl.u32 %v5581, 7
        %v5583 = vsub.s32 %v5241, %v5582
        %v5584 = vrot.slane %v3308, %v5583
        %v5585 = vsel %vm5246, %v5584, %v5580
        %v5586 = vlaneseq
        %v5587 = vshrl.u32 %v5586, 7
        %v5588 = vsub.s32 %v5248, %v5587
        %v5589 = vrot.slane %v3311, %v5588
        %v5590 = vsel %vm5253, %v5589, %v5585
        %v5591 = vlaneseq
        %v5592 = vshrl.u32 %v5591, 7
        %v5593 = vsub.s32 %v5255, %v5592
        %v5594 = vrot.slane %v3314, %v5593
        %v5595 = vsel %vm5260, %v5594, %v5590
        %v5596 = vlaneseq
        %v5597 = vshrl.u32 %v5596, 7
        %v5598 = vsub.s32 %v5262, %v5597
        %v5599 = vrot.slane %v3317, %v5598
        %v5600 = vsel %vm5267, %v5599, %v5595
        %v5601 = vlaneseq
        %v5602 = vshrl.u32 %v5601, 7
        %v5603 = vsub.s32 %v5269, %v5602
        %v5604 = vrot.slane %v3320, %v5603
        %v5605 = vsel %vm5274, %v5604, %v5600
        %v5606 = vlaneseq
        %v5607 = vshrl.u32 %v5606, 7
        %v5608 = vsub.s32 %v5276, %v5607
        %v5609 = vrot.slane %v3323, %v5608
        %v5610 = vsel %vm5281, %v5609, %v5605
        %v5611 = vlaneseq
        %v5612 = vshrl.u32 %v5611, 7
        %v5613 = vsub.s32 %v5283, %v5612
        %v5614 = vrot.slane %v3326, %v5613
        %v5615 = vsel %vm5288, %v5614, %v5610
        %v5616 = vlaneseq
        %v5617 = vshrl.u32 %v5616, 7
        %v5618 = vsub.s32 %v5290, %v5617
        %v5619 = vrot.slane %v3329, %v5618
        %v5620 = vsel %vm5295, %v5619, %v5615
        %v5621 = vlaneseq
        %v5622 = vshrl.u32 %v5621, 7
        %v5623 = vsub.s32 %v5297, %v5622
        %v5624 = vrot.slane %v3332, %v5623
        %v5625 = vsel %vm5302, %v5624, %v5620
        %v5626 = vlaneseq
        %v5627 = vshrl.u32 %v5626, 7
        %v5628 = vsub.s32 %v5304, %v5627
        %v5629 = vrot.slane %v3335, %v5628
        %v5630 = vsel %vm5309, %v5629, %v5625
        %v5631 = vlaneseq
        %v5632 = vshrl.u32 %v5631, 7
        %v5633 = vsub.s32 %v5311, %v5632
        %v5634 = vrot.slane %v3338, %v5633
        %v5635 = vsel %vm5316, %v5634, %v5630
        %v5636 = vlaneseq
        %v5637 = vshrl.u32 %v5636, 7
        %v5638 = vsub.s32 %v5318, %v5637
        %v5639 = vrot.slane %v3341, %v5638
        %v5640 = vsel %vm5323, %v5639, %v5635
        %v5641 = vlaneseq
        %v5642 = vshrl.u32 %v5641, 7
        %v5643 = vsub.s32 %v5215, %v5642
        %v5644 = vrot.slane %v3344, %v5643
        %v5645 = vlaneseq
        %v5646 = vshrl.u32 %v5645, 7
        %v5647 = vsub.s32 %v5220, %v5646
        %v5648 = vrot.slane %v3347, %v5647
        %v5649 = vsel %vm5225, %v5648, %v5644
        %v5650 = vlaneseq
        %v5651 = vshrl.u32 %v5650, 7
        %v5652 = vsub.s32 %v5227, %v5651
        %v5653 = vrot.slane %v3350, %v5652
        %v5654 = vsel %vm5232, %v5653, %v5649
        %v5655 = vlaneseq
        %v5656 = vshrl.u32 %v5655, 7
        %v5657 = vsub.s32 %v5234, %v5656
        %v5658 = vrot.slane %v3353, %v5657
        %v5659 = vsel %vm5239, %v5658, %v5654
        %v5660 = vlaneseq
        %v5661 = vshrl.u32 %v5660, 7
        %v5662 = vsub.s32 %v5241, %v5661
        %v5663 = vrot.slane %v3356, %v5662
        %v5664 = vsel %vm5246, %v5663, %v5659
        %v5665 = vlaneseq
        %v5666 = vshrl.u32 %v5665, 7
        %v5667 = vsub.s32 %v5248, %v5666
        %v5668 = vrot.slane %v3359, %v5667
        %v5669 = vsel %vm5253, %v5668, %v5664
        %v5670 = vlaneseq
        %v5671 = vshrl.u32 %v5670, 7
        %v5672 = vsub.s32 %v5255, %v5671
        %v5673 = vrot.slane %v3362, %v5672
        %v5674 = vsel %vm5260, %v5673, %v5669
        %v5675 = vlaneseq
        %v5676 = vshrl.u32 %v5675, 7
        %v5677 = vsub.s32 %v5262, %v5676
        %v5678 = vrot.slane %v3365, %v5677
        %v5679 = vsel %vm5267, %v5678, %v5674
        %v5680 = vlaneseq
        %v5681 = vshrl.u32 %v5680, 7
        %v5682 = vsub.s32 %v5269, %v5681
        %v5683 = vrot.slane %v3368, %v5682
        %v5684 = vsel %vm5274, %v5683, %v5679
        %v5685 = vlaneseq
        %v5686 = vshrl.u32 %v5685, 7
        %v5687 = vsub.s32 %v5276, %v5686
        %v5688 = vrot.slane %v3371, %v5687
        %v5689 = vsel %vm5281, %v5688, %v5684
        %v5690 = vlaneseq
        %v5691 = vshrl.u32 %v5690, 7
        %v5692 = vsub.s32 %v5283, %v5691
        %v5693 = vrot.slane %v3374, %v5692
        %v5694 = vsel %vm5288, %v5693, %v5689
        %v5695 = vlaneseq
        %v5696 = vshrl.u32 %v5695, 7
        %v5697 = vsub.s32 %v5290, %v5696
        %v5698 = vrot.slane %v3377, %v5697
        %v5699 = vsel %vm5295, %v5698, %v5694
        %v5700 = vlaneseq
        %v5701 = vshrl.u32 %v5700, 7
        %v5702 = vsub.s32 %v5297, %v5701
        %v5703 = vrot.slane %v3380, %v5702
        %v5704 = vsel %vm5302, %v5703, %v5699
        %v5705 = vlaneseq
        %v5706 = vshrl.u32 %v5705, 7
        %v5707 = vsub.s32 %v5304, %v5706
        %v5708 = vrot.slane %v3383, %v5707
        %v5709 = vsel %vm5309, %v5708, %v5704
        %v5710 = vlaneseq
        %v5711 = vshrl.u32 %v5710, 7
        %v5712 = vsub.s32 %v5311, %v5711
        %v5713 = vrot.slane %v3386, %v5712
        %v5714 = vsel %vm5316, %v5713, %v5709
        %v5715 = vlaneseq
        %v5716 = vshrl.u32 %v5715, 7
        %v5717 = vsub.s32 %v5318, %v5716
        %v5718 = vrot.slane %v3389, %v5717
        %v5719 = vsel %vm5323, %v5718, %v5714
        %v5720 = vlaneseq
        %v5721 = vshrl.u32 %v5720, 7
        %v5722 = vsub.s32 %v5215, %v5721
        %v5723 = vrot.slane %v3392, %v5722
        %v5724 = vlaneseq
        %v5725 = vshrl.u32 %v5724, 7
        %v5726 = vsub.s32 %v5220, %v5725
        %v5727 = vrot.slane %v3395, %v5726
        %v5728 = vsel %vm5225, %v5727, %v5723
        %v5729 = vlaneseq
        %v5730 = vshrl.u32 %v5729, 7
        %v5731 = vsub.s32 %v5227, %v5730
        %v5732 = vrot.slane %v3398, %v5731
        %v5733 = vsel %vm5232, %v5732, %v5728
        %v5734 = vlaneseq
        %v5735 = vshrl.u32 %v5734, 7
        %v5736 = vsub.s32 %v5234, %v5735
        %v5737 = vrot.slane %v3401, %v5736
        %v5738 = vsel %vm5239, %v5737, %v5733
        %v5739 = vlaneseq
        %v5740 = vshrl.u32 %v5739, 7
        %v5741 = vsub.s32 %v5241, %v5740
        %v5742 = vrot.slane %v3404, %v5741
        %v5743 = vsel %vm5246, %v5742, %v5738
        %v5744 = vlaneseq
        %v5745 = vshrl.u32 %v5744, 7
        %v5746 = vsub.s32 %v5248, %v5745
        %v5747 = vrot.slane %v3407, %v5746
        %v5748 = vsel %vm5253, %v5747, %v5743
        %v5749 = vlaneseq
        %v5750 = vshrl.u32 %v5749, 7
        %v5751 = vsub.s32 %v5255, %v5750
        %v5752 = vrot.slane %v3410, %v5751
        %v5753 = vsel %vm5260, %v5752, %v5748
        %v5754 = vlaneseq
        %v5755 = vshrl.u32 %v5754, 7
        %v5756 = vsub.s32 %v5262, %v5755
        %v5757 = vrot.slane %v3413, %v5756
        %v5758 = vsel %vm5267, %v5757, %v5753
        %v5759 = vlaneseq
        %v5760 = vshrl.u32 %v5759, 7
        %v5761 = vsub.s32 %v5269, %v5760
        %v5762 = vrot.slane %v3416, %v5761
        %v5763 = vsel %vm5274, %v5762, %v5758
        %v5764 = vlaneseq
        %v5765 = vshrl.u32 %v5764, 7
        %v5766 = vsub.s32 %v5276, %v5765
        %v5767 = vrot.slane %v3419, %v5766
        %v5768 = vsel %vm5281, %v5767, %v5763
        %v5769 = vlaneseq
        %v5770 = vshrl.u32 %v5769, 7
        %v5771 = vsub.s32 %v5283, %v5770
        %v5772 = vrot.slane %v3422, %v5771
        %v5773 = vsel %vm5288, %v5772, %v5768
        %v5774 = vlaneseq
        %v5775 = vshrl.u32 %v5774, 7
        %v5776 = vsub.s32 %v5290, %v5775
        %v5777 = vrot.slane %v3425, %v5776
        %v5778 = vsel %vm5295, %v5777, %v5773
        %v5779 = vlaneseq
        %v5780 = vshrl.u32 %v5779, 7
        %v5781 = vsub.s32 %v5297, %v5780
        %v5782 = vrot.slane %v3428, %v5781
        %v5783 = vsel %vm5302, %v5782, %v5778
        %v5784 = vlaneseq
        %v5785 = vshrl.u32 %v5784, 7
        %v5786 = vsub.s32 %v5304, %v5785
        %v5787 = vrot.slane %v3431, %v5786
        %v5788 = vsel %vm5309, %v5787, %v5783
        %v5789 = vlaneseq
        %v5790 = vshrl.u32 %v5789, 7
        %v5791 = vsub.s32 %v5311, %v5790
        %v5792 = vrot.slane %v3434, %v5791
        %v5793 = vsel %vm5316, %v5792, %v5788
        %v5794 = vlaneseq
        %v5795 = vshrl.u32 %v5794, 7
        %v5796 = vsub.s32 %v5318, %v5795
        %v5797 = vrot.slane %v3437, %v5796
        %v5798 = vsel %vm5323, %v5797, %v5793
        %v5799 = vlaneseq
        %v5800 = vshrl.u32 %v5799, 7
        %v5801 = vsub.s32 %v5215, %v5800
        %v5802 = vrot.slane %v3440, %v5801
        %v5803 = vlaneseq
        %v5804 = vshrl.u32 %v5803, 7
        %v5805 = vsub.s32 %v5220, %v5804
        %v5806 = vrot.slane %v3443, %v5805
        %v5807 = vsel %vm5225, %v5806, %v5802
        %v5808 = vlaneseq
        %v5809 = vshrl.u32 %v5808, 7
        %v5810 = vsub.s32 %v5227, %v5809
        %v5811 = vrot.slane %v3446, %v5810
        %v5812 = vsel %vm5232, %v5811, %v5807
        %v5813 = vlaneseq
        %v5814 = vshrl.u32 %v5813, 7
        %v5815 = vsub.s32 %v5234, %v5814
        %v5816 = vrot.slane %v3449, %v5815
        %v5817 = vsel %vm5239, %v5816, %v5812
        %v5818 = vlaneseq
        %v5819 = vshrl.u32 %v5818, 7
        %v5820 = vsub.s32 %v5241, %v5819
        %v5821 = vrot.slane %v3452, %v5820
        %v5822 = vsel %vm5246, %v5821, %v5817
        %v5823 = vlaneseq
        %v5824 = vshrl.u32 %v5823, 7
        %v5825 = vsub.s32 %v5248, %v5824
        %v5826 = vrot.slane %v3455, %v5825
        %v5827 = vsel %vm5253, %v5826, %v5822
        %v5828 = vlaneseq
        %v5829 = vshrl.u32 %v5828, 7
        %v5830 = vsub.s32 %v5255, %v5829
        %v5831 = vrot.slane %v3458, %v5830
        %v5832 = vsel %vm5260, %v5831, %v5827
        %v5833 = vlaneseq
        %v5834 = vshrl.u32 %v5833, 7
        %v5835 = vsub.s32 %v5262, %v5834
        %v5836 = vrot.slane %v3461, %v5835
        %v5837 = vsel %vm5267, %v5836, %v5832
        %v5838 = vlaneseq
        %v5839 = vshrl.u32 %v5838, 7
        %v5840 = vsub.s32 %v5269, %v5839
        %v5841 = vrot.slane %v3464, %v5840
        %v5842 = vsel %vm5274, %v5841, %v5837
        %v5843 = vlaneseq
        %v5844 = vshrl.u32 %v5843, 7
        %v5845 = vsub.s32 %v5276, %v5844
        %v5846 = vrot.slane %v3467, %v5845
        %v5847 = vsel %vm5281, %v5846, %v5842
        %v5848 = vlaneseq
        %v5849 = vshrl.u32 %v5848, 7
        %v5850 = vsub.s32 %v5283, %v5849
        %v5851 = vrot.slane %v3470, %v5850
        %v5852 = vsel %vm5288, %v5851, %v5847
        %v5853 = vlaneseq
        %v5854 = vshrl.u32 %v5853, 7
        %v5855 = vsub.s32 %v5290, %v5854
        %v5856 = vrot.slane %v3473, %v5855
        %v5857 = vsel %vm5295, %v5856, %v5852
        %v5858 = vlaneseq
        %v5859 = vshrl.u32 %v5858, 7
        %v5860 = vsub.s32 %v5297, %v5859
        %v5861 = vrot.slane %v3476, %v5860
        %v5862 = vsel %vm5302, %v5861, %v5857
        %v5863 = vlaneseq
        %v5864 = vshrl.u32 %v5863, 7
        %v5865 = vsub.s32 %v5304, %v5864
        %v5866 = vrot.slane %v3479, %v5865
        %v5867 = vsel %vm5309, %v5866, %v5862
        %v5868 = vlaneseq
        %v5869 = vshrl.u32 %v5868, 7
        %v5870 = vsub.s32 %v5311, %v5869
        %v5871 = vrot.slane %v3482, %v5870
        %v5872 = vsel %vm5316, %v5871, %v5867
        %v5873 = vlaneseq
        %v5874 = vshrl.u32 %v5873, 7
        %v5875 = vsub.s32 %v5318, %v5874
        %v5876 = vrot.slane %v3485, %v5875
        %v5877 = vsel %vm5323, %v5876, %v5872
        %v5878 = vlaneseq
        %v5879 = vshrl.u32 %v5878, 7
        %v5880 = vsub.s32 %v5215, %v5879
        %v5881 = vrot.slane %v3488, %v5880
        %v5882 = vlaneseq
        %v5883 = vshrl.u32 %v5882, 7
        %v5884 = vsub.s32 %v5220, %v5883
        %v5885 = vrot.slane %v3491, %v5884
        %v5886 = vsel %vm5225, %v5885, %v5881
        %v5887 = vlaneseq
        %v5888 = vshrl.u32 %v5887, 7
        %v5889 = vsub.s32 %v5227, %v5888
        %v5890 = vrot.slane %v3494, %v5889
        %v5891 = vsel %vm5232, %v5890, %v5886
        %v5892 = vlaneseq
        %v5893 = vshrl.u32 %v5892, 7
        %v5894 = vsub.s32 %v5234, %v5893
        %v5895 = vrot.slane %v3497, %v5894
        %v5896 = vsel %vm5239, %v5895, %v5891
        %v5897 = vlaneseq
        %v5898 = vshrl.u32 %v5897, 7
        %v5899 = vsub.s32 %v5241, %v5898
        %v5900 = vrot.slane %v3500, %v5899
        %v5901 = vsel %vm5246, %v5900, %v5896
        %v5902 = vlaneseq
        %v5903 = vshrl.u32 %v5902, 7
        %v5904 = vsub.s32 %v5248, %v5903
        %v5905 = vrot.slane %v3503, %v5904
        %v5906 = vsel %vm5253, %v5905, %v5901
        %v5907 = vlaneseq
        %v5908 = vshrl.u32 %v5907, 7
        %v5909 = vsub.s32 %v5255, %v5908
        %v5910 = vrot.slane %v3506, %v5909
        %v5911 = vsel %vm5260, %v5910, %v5906
        %v5912 = vlaneseq
        %v5913 = vshrl.u32 %v5912, 7
        %v5914 = vsub.s32 %v5262, %v5913
        %v5915 = vrot.slane %v3509, %v5914
        %v5916 = vsel %vm5267, %v5915, %v5911
        %v5917 = vlaneseq
        %v5918 = vshrl.u32 %v5917, 7
        %v5919 = vsub.s32 %v5269, %v5918
        %v5920 = vrot.slane %v3512, %v5919
        %v5921 = vsel %vm5274, %v5920, %v5916
        %v5922 = vlaneseq
        %v5923 = vshrl.u32 %v5922, 7
        %v5924 = vsub.s32 %v5276, %v5923
        %v5925 = vrot.slane %v3515, %v5924
        %v5926 = vsel %vm5281, %v5925, %v5921
        %v5927 = vlaneseq
        %v5928 = vshrl.u32 %v5927, 7
        %v5929 = vsub.s32 %v5283, %v5928
        %v5930 = vrot.slane %v3518, %v5929
        %v5931 = vsel %vm5288, %v5930, %v5926
        %v5932 = vlaneseq
        %v5933 = vshrl.u32 %v5932, 7
        %v5934 = vsub.s32 %v5290, %v5933
        %v5935 = vrot.slane %v3521, %v5934
        %v5936 = vsel %vm5295, %v5935, %v5931
        %v5937 = vlaneseq
        %v5938 = vshrl.u32 %v5937, 7
        %v5939 = vsub.s32 %v5297, %v5938
        %v5940 = vrot.slane %v3524, %v5939
        %v5941 = vsel %vm5302, %v5940, %v5936
        %v5942 = vlaneseq
        %v5943 = vshrl.u32 %v5942, 7
        %v5944 = vsub.s32 %v5304, %v5943
        %v5945 = vrot.slane %v3527, %v5944
        %v5946 = vsel %vm5309, %v5945, %v5941
        %v5947 = vlaneseq
        %v5948 = vshrl.u32 %v5947, 7
        %v5949 = vsub.s32 %v5311, %v5948
        %v5950 = vrot.slane %v3530, %v5949
        %v5951 = vsel %vm5316, %v5950, %v5946
        %v5952 = vlaneseq
        %v5953 = vshrl.u32 %v5952, 7
        %v5954 = vsub.s32 %v5318, %v5953
        %v5955 = vrot.slane %v3533, %v5954
        %v5956 = vsel %vm5323, %v5955, %v5951
        %v5957 = vlaneseq
        %v5958 = vshrl.u32 %v5957, 7
        %v5959 = vsub.s32 %v5215, %v5958
        %v5960 = vrot.slane %v3536, %v5959
        %v5961 = vlaneseq
        %v5962 = vshrl.u32 %v5961, 7
        %v5963 = vsub.s32 %v5220, %v5962
        %v5964 = vrot.slane %v3539, %v5963
        %v5965 = vsel %vm5225, %v5964, %v5960
        %v5966 = vlaneseq
        %v5967 = vshrl.u32 %v5966, 7
        %v5968 = vsub.s32 %v5227, %v5967
        %v5969 = vrot.slane %v3542, %v5968
        %v5970 = vsel %vm5232, %v5969, %v5965
        %v5971 = vlaneseq
        %v5972 = vshrl.u32 %v5971, 7
        %v5973 = vsub.s32 %v5234, %v5972
        %v5974 = vrot.slane %v3545, %v5973
        %v5975 = vsel %vm5239, %v5974, %v5970
        %v5976 = vlaneseq
        %v5977 = vshrl.u32 %v5976, 7
        %v5978 = vsub.s32 %v5241, %v5977
        %v5979 = vrot.slane %v3548, %v5978
        %v5980 = vsel %vm5246, %v5979, %v5975
        %v5981 = vlaneseq
        %v5982 = vshrl.u32 %v5981, 7
        %v5983 = vsub.s32 %v5248, %v5982
        %v5984 = vrot.slane %v3551, %v5983
        %v5985 = vsel %vm5253, %v5984, %v5980
        %v5986 = vlaneseq
        %v5987 = vshrl.u32 %v5986, 7
        %v5988 = vsub.s32 %v5255, %v5987
        %v5989 = vrot.slane %v3554, %v5988
        %v5990 = vsel %vm5260, %v5989, %v5985
        %v5991 = vlaneseq
        %v5992 = vshrl.u32 %v5991, 7
        %v5993 = vsub.s32 %v5262, %v5992
        %v5994 = vrot.slane %v3557, %v5993
        %v5995 = vsel %vm5267, %v5994, %v5990
        %v5996 = vlaneseq
        %v5997 = vshrl.u32 %v5996, 7
        %v5998 = vsub.s32 %v5269, %v5997
        %v5999 = vrot.slane %v3560, %v5998
        %v6000 = vsel %vm5274, %v5999, %v5995
        %v6001 = vlaneseq
        %v6002 = vshrl.u32 %v6001, 7
        %v6003 = vsub.s32 %v5276, %v6002
        %v6004 = vrot.slane %v3563, %v6003
        %v6005 = vsel %vm5281, %v6004, %v6000
        %v6006 = vlaneseq
        %v6007 = vshrl.u32 %v6006, 7
        %v6008 = vsub.s32 %v5283, %v6007
        %v6009 = vrot.slane %v3566, %v6008
        %v6010 = vsel %vm5288, %v6009, %v6005
        %v6011 = vlaneseq
        %v6012 = vshrl.u32 %v6011, 7
        %v6013 = vsub.s32 %v5290, %v6012
        %v6014 = vrot.slane %v3569, %v6013
        %v6015 = vsel %vm5295, %v6014, %v6010
        %v6016 = vlaneseq
        %v6017 = vshrl.u32 %v6016, 7
        %v6018 = vsub.s32 %v5297, %v6017
        %v6019 = vrot.slane %v3572, %v6018
        %v6020 = vsel %vm5302, %v6019, %v6015
        %v6021 = vlaneseq
        %v6022 = vshrl.u32 %v6021, 7
        %v6023 = vsub.s32 %v5304, %v6022
        %v6024 = vrot.slane %v3575, %v6023
        %v6025 = vsel %vm5309, %v6024, %v6020
        %v6026 = vlaneseq
        %v6027 = vshrl.u32 %v6026, 7
        %v6028 = vsub.s32 %v5311, %v6027
        %v6029 = vrot.slane %v3578, %v6028
        %v6030 = vsel %vm5316, %v6029, %v6025
        %v6031 = vlaneseq
        %v6032 = vshrl.u32 %v6031, 7
        %v6033 = vsub.s32 %v5318, %v6032
        %v6034 = vrot.slane %v3581, %v6033
        %v6035 = vsel %vm5323, %v6034, %v6030
        %v6036 = vlaneseq
        %v6037 = vshrl.u32 %v6036, 7
        %v6038 = vsub.s32 %v5215, %v6037
        %v6039 = vrot.slane %v3584, %v6038
        %v6040 = vlaneseq
        %v6041 = vshrl.u32 %v6040, 7
        %v6042 = vsub.s32 %v5220, %v6041
        %v6043 = vrot.slane %v3587, %v6042
        %v6044 = vsel %vm5225, %v6043, %v6039
        %v6045 = vlaneseq
        %v6046 = vshrl.u32 %v6045, 7
        %v6047 = vsub.s32 %v5227, %v6046
        %v6048 = vrot.slane %v3590, %v6047
        %v6049 = vsel %vm5232, %v6048, %v6044
        %v6050 = vlaneseq
        %v6051 = vshrl.u32 %v6050, 7
        %v6052 = vsub.s32 %v5234, %v6051
        %v6053 = vrot.slane %v3593, %v6052
        %v6054 = vsel %vm5239, %v6053, %v6049
        %v6055 = vlaneseq
        %v6056 = vshrl.u32 %v6055, 7
        %v6057 = vsub.s32 %v5241, %v6056
        %v6058 = vrot.slane %v3596, %v6057
        %v6059 = vsel %vm5246, %v6058, %v6054
        %v6060 = vlaneseq
        %v6061 = vshrl.u32 %v6060, 7
        %v6062 = vsub.s32 %v5248, %v6061
        %v6063 = vrot.slane %v3599, %v6062
        %v6064 = vsel %vm5253, %v6063, %v6059
        %v6065 = vlaneseq
        %v6066 = vshrl.u32 %v6065, 7
        %v6067 = vsub.s32 %v5255, %v6066
        %v6068 = vrot.slane %v3602, %v6067
        %v6069 = vsel %vm5260, %v6068, %v6064
        %v6070 = vlaneseq
        %v6071 = vshrl.u32 %v6070, 7
        %v6072 = vsub.s32 %v5262, %v6071
        %v6073 = vrot.slane %v3605, %v6072
        %v6074 = vsel %vm5267, %v6073, %v6069
        %v6075 = vlaneseq
        %v6076 = vshrl.u32 %v6075, 7
        %v6077 = vsub.s32 %v5269, %v6076
        %v6078 = vrot.slane %v3608, %v6077
        %v6079 = vsel %vm5274, %v6078, %v6074
        %v6080 = vlaneseq
        %v6081 = vshrl.u32 %v6080, 7
        %v6082 = vsub.s32 %v5276, %v6081
        %v6083 = vrot.slane %v3611, %v6082
        %v6084 = vsel %vm5281, %v6083, %v6079
        %v6085 = vlaneseq
        %v6086 = vshrl.u32 %v6085, 7
        %v6087 = vsub.s32 %v5283, %v6086
        %v6088 = vrot.slane %v3614, %v6087
        %v6089 = vsel %vm5288, %v6088, %v6084
        %v6090 = vlaneseq
        %v6091 = vshrl.u32 %v6090, 7
        %v6092 = vsub.s32 %v5290, %v6091
        %v6093 = vrot.slane %v3617, %v6092
        %v6094 = vsel %vm5295, %v6093, %v6089
        %v6095 = vlaneseq
        %v6096 = vshrl.u32 %v6095, 7
        %v6097 = vsub.s32 %v5297, %v6096
        %v6098 = vrot.slane %v3620, %v6097
        %v6099 = vsel %vm5302, %v6098, %v6094
        %v6100 = vlaneseq
        %v6101 = vshrl.u32 %v6100, 7
        %v6102 = vsub.s32 %v5304, %v6101
        %v6103 = vrot.slane %v3623, %v6102
        %v6104 = vsel %vm5309, %v6103, %v6099
        %v6105 = vlaneseq
        %v6106 = vshrl.u32 %v6105, 7
        %v6107 = vsub.s32 %v5311, %v6106
        %v6108 = vrot.slane %v3626, %v6107
        %v6109 = vsel %vm5316, %v6108, %v6104
        %v6110 = vlaneseq
        %v6111 = vshrl.u32 %v6110, 7
        %v6112 = vsub.s32 %v5318, %v6111
        %v6113 = vrot.slane %v3629, %v6112
        %v6114 = vsel %vm5323, %v6113, %v6109
        %v6115 = vlaneseq
        %v6116 = vshrl.u32 %v6115, 7
        %v6117 = vsub.s32 %v5215, %v6116
        %v6118 = vrot.slane %v3632, %v6117
        %v6119 = vlaneseq
        %v6120 = vshrl.u32 %v6119, 7
        %v6121 = vsub.s32 %v5220, %v6120
        %v6122 = vrot.slane %v3635, %v6121
        %v6123 = vsel %vm5225, %v6122, %v6118
        %v6124 = vlaneseq
        %v6125 = vshrl.u32 %v6124, 7
        %v6126 = vsub.s32 %v5227, %v6125
        %v6127 = vrot.slane %v3638, %v6126
        %v6128 = vsel %vm5232, %v6127, %v6123
        %v6129 = vlaneseq
        %v6130 = vshrl.u32 %v6129, 7
        %v6131 = vsub.s32 %v5234, %v6130
        %v6132 = vrot.slane %v3641, %v6131
        %v6133 = vsel %vm5239, %v6132, %v6128
        %v6134 = vlaneseq
        %v6135 = vshrl.u32 %v6134, 7
        %v6136 = vsub.s32 %v5241, %v6135
        %v6137 = vrot.slane %v3644, %v6136
        %v6138 = vsel %vm5246, %v6137, %v6133
        %v6139 = vlaneseq
        %v6140 = vshrl.u32 %v6139, 7
        %v6141 = vsub.s32 %v5248, %v6140
        %v6142 = vrot.slane %v3647, %v6141
        %v6143 = vsel %vm5253, %v6142, %v6138
        %v6144 = vlaneseq
        %v6145 = vshrl.u32 %v6144, 7
        %v6146 = vsub.s32 %v5255, %v6145
        %v6147 = vrot.slane %v3650, %v6146
        %v6148 = vsel %vm5260, %v6147, %v6143
        %v6149 = vlaneseq
        %v6150 = vshrl.u32 %v6149, 7
        %v6151 = vsub.s32 %v5262, %v6150
        %v6152 = vrot.slane %v3653, %v6151
        %v6153 = vsel %vm5267, %v6152, %v6148
        %v6154 = vlaneseq
        %v6155 = vshrl.u32 %v6154, 7
        %v6156 = vsub.s32 %v5269, %v6155
        %v6157 = vrot.slane %v3656, %v6156
        %v6158 = vsel %vm5274, %v6157, %v6153
        %v6159 = vlaneseq
        %v6160 = vshrl.u32 %v6159, 7
        %v6161 = vsub.s32 %v5276, %v6160
        %v6162 = vrot.slane %v3659, %v6161
        %v6163 = vsel %vm5281, %v6162, %v6158
        %v6164 = vlaneseq
        %v6165 = vshrl.u32 %v6164, 7
        %v6166 = vsub.s32 %v5283, %v6165
        %v6167 = vrot.slane %v3662, %v6166
        %v6168 = vsel %vm5288, %v6167, %v6163
        %v6169 = vlaneseq
        %v6170 = vshrl.u32 %v6169, 7
        %v6171 = vsub.s32 %v5290, %v6170
        %v6172 = vrot.slane %v3665, %v6171
        %v6173 = vsel %vm5295, %v6172, %v6168
        %v6174 = vlaneseq
        %v6175 = vshrl.u32 %v6174, 7
        %v6176 = vsub.s32 %v5297, %v6175
        %v6177 = vrot.slane %v3668, %v6176
        %v6178 = vsel %vm5302, %v6177, %v6173
        %v6179 = vlaneseq
        %v6180 = vshrl.u32 %v6179, 7
        %v6181 = vsub.s32 %v5304, %v6180
        %v6182 = vrot.slane %v3671, %v6181
        %v6183 = vsel %vm5309, %v6182, %v6178
        %v6184 = vlaneseq
        %v6185 = vshrl.u32 %v6184, 7
        %v6186 = vsub.s32 %v5311, %v6185
        %v6187 = vrot.slane %v3674, %v6186
        %v6188 = vsel %vm5316, %v6187, %v6183
        %v6189 = vlaneseq
        %v6190 = vshrl.u32 %v6189, 7
        %v6191 = vsub.s32 %v5318, %v6190
        %v6192 = vrot.slane %v3677, %v6191
        %v6193 = vsel %vm5323, %v6192, %v6188
        %v6194 = vlaneseq
        %v6195 = vshrl.u32 %v6194, 7
        %v6196 = vsub.s32 %v5215, %v6195
        %v6197 = vrot.slane %v3680, %v6196
        %v6198 = vlaneseq
        %v6199 = vshrl.u32 %v6198, 7
        %v6200 = vsub.s32 %v5220, %v6199
        %v6201 = vrot.slane %v3683, %v6200
        %v6202 = vsel %vm5225, %v6201, %v6197
        %v6203 = vlaneseq
        %v6204 = vshrl.u32 %v6203, 7
        %v6205 = vsub.s32 %v5227, %v6204
        %v6206 = vrot.slane %v3686, %v6205
        %v6207 = vsel %vm5232, %v6206, %v6202
        %v6208 = vlaneseq
        %v6209 = vshrl.u32 %v6208, 7
        %v6210 = vsub.s32 %v5234, %v6209
        %v6211 = vrot.slane %v3689, %v6210
        %v6212 = vsel %vm5239, %v6211, %v6207
        %v6213 = vlaneseq
        %v6214 = vshrl.u32 %v6213, 7
        %v6215 = vsub.s32 %v5241, %v6214
        %v6216 = vrot.slane %v3692, %v6215
        %v6217 = vsel %vm5246, %v6216, %v6212
        %v6218 = vlaneseq
        %v6219 = vshrl.u32 %v6218, 7
        %v6220 = vsub.s32 %v5248, %v6219
        %v6221 = vrot.slane %v3695, %v6220
        %v6222 = vsel %vm5253, %v6221, %v6217
        %v6223 = vlaneseq
        %v6224 = vshrl.u32 %v6223, 7
        %v6225 = vsub.s32 %v5255, %v6224
        %v6226 = vrot.slane %v3698, %v6225
        %v6227 = vsel %vm5260, %v6226, %v6222
        %v6228 = vlaneseq
        %v6229 = vshrl.u32 %v6228, 7
        %v6230 = vsub.s32 %v5262, %v6229
        %v6231 = vrot.slane %v3701, %v6230
        %v6232 = vsel %vm5267, %v6231, %v6227
        %v6233 = vlaneseq
        %v6234 = vshrl.u32 %v6233, 7
        %v6235 = vsub.s32 %v5269, %v6234
        %v6236 = vrot.slane %v3704, %v6235
        %v6237 = vsel %vm5274, %v6236, %v6232
        %v6238 = vlaneseq
        %v6239 = vshrl.u32 %v6238, 7
        %v6240 = vsub.s32 %v5276, %v6239
        %v6241 = vrot.slane %v3707, %v6240
        %v6242 = vsel %vm5281, %v6241, %v6237
        %v6243 = vlaneseq
        %v6244 = vshrl.u32 %v6243, 7
        %v6245 = vsub.s32 %v5283, %v6244
        %v6246 = vrot.slane %v3710, %v6245
        %v6247 = vsel %vm5288, %v6246, %v6242
        %v6248 = vlaneseq
        %v6249 = vshrl.u32 %v6248, 7
        %v6250 = vsub.s32 %v5290, %v6249
        %v6251 = vrot.slane %v3713, %v6250
        %v6252 = vsel %vm5295, %v6251, %v6247
        %v6253 = vlaneseq
        %v6254 = vshrl.u32 %v6253, 7
        %v6255 = vsub.s32 %v5297, %v6254
        %v6256 = vrot.slane %v3716, %v6255
        %v6257 = vsel %vm5302, %v6256, %v6252
        %v6258 = vlaneseq
        %v6259 = vshrl.u32 %v6258, 7
        %v6260 = vsub.s32 %v5304, %v6259
        %v6261 = vrot.slane %v3719, %v6260
        %v6262 = vsel %vm5309, %v6261, %v6257
        %v6263 = vlaneseq
        %v6264 = vshrl.u32 %v6263, 7
        %v6265 = vsub.s32 %v5311, %v6264
        %v6266 = vrot.slane %v3722, %v6265
        %v6267 = vsel %vm5316, %v6266, %v6262
        %v6268 = vlaneseq
        %v6269 = vshrl.u32 %v6268, 7
        %v6270 = vsub.s32 %v5318, %v6269
        %v6271 = vrot.slane %v3725, %v6270
        %v6272 = vsel %vm5323, %v6271, %v6267
        %v6273 = vlaneseq
        %v6274 = vshrl.u32 %v6273, 7
        %v6275 = vsub.s32 %v5215, %v6274
        %v6276 = vrot.slane %v3728, %v6275
        %v6277 = vlaneseq
        %v6278 = vshrl.u32 %v6277, 7
        %v6279 = vsub.s32 %v5220, %v6278
        %v6280 = vrot.slane %v3731, %v6279
        %v6281 = vsel %vm5225, %v6280, %v6276
        %v6282 = vlaneseq
        %v6283 = vshrl.u32 %v6282, 7
        %v6284 = vsub.s32 %v5227, %v6283
        %v6285 = vrot.slane %v3734, %v6284
        %v6286 = vsel %vm5232, %v6285, %v6281
        %v6287 = vlaneseq
        %v6288 = vshrl.u32 %v6287, 7
        %v6289 = vsub.s32 %v5234, %v6288
        %v6290 = vrot.slane %v3737, %v6289
        %v6291 = vsel %vm5239, %v6290, %v6286
        %v6292 = vlaneseq
        %v6293 = vshrl.u32 %v6292, 7
        %v6294 = vsub.s32 %v5241, %v6293
        %v6295 = vrot.slane %v3740, %v6294
        %v6296 = vsel %vm5246, %v6295, %v6291
        %v6297 = vlaneseq
        %v6298 = vshrl.u32 %v6297, 7
        %v6299 = vsub.s32 %v5248, %v6298
        %v6300 = vrot.slane %v3743, %v6299
        %v6301 = vsel %vm5253, %v6300, %v6296
        %v6302 = vlaneseq
        %v6303 = vshrl.u32 %v6302, 7
        %v6304 = vsub.s32 %v5255, %v6303
        %v6305 = vrot.slane %v3746, %v6304
        %v6306 = vsel %vm5260, %v6305, %v6301
        %v6307 = vlaneseq
        %v6308 = vshrl.u32 %v6307, 7
        %v6309 = vsub.s32 %v5262, %v6308
        %v6310 = vrot.slane %v3749, %v6309
        %v6311 = vsel %vm5267, %v6310, %v6306
        %v6312 = vlaneseq
        %v6313 = vshrl.u32 %v6312, 7
        %v6314 = vsub.s32 %v5269, %v6313
        %v6315 = vrot.slane %v3752, %v6314
        %v6316 = vsel %vm5274, %v6315, %v6311
        %v6317 = vlaneseq
        %v6318 = vshrl.u32 %v6317, 7
        %v6319 = vsub.s32 %v5276, %v6318
        %v6320 = vrot.slane %v3755, %v6319
        %v6321 = vsel %vm5281, %v6320, %v6316
        %v6322 = vlaneseq
        %v6323 = vshrl.u32 %v6322, 7
        %v6324 = vsub.s32 %v5283, %v6323
        %v6325 = vrot.slane %v3758, %v6324
        %v6326 = vsel %vm5288, %v6325, %v6321
        %v6327 = vlaneseq
        %v6328 = vshrl.u32 %v6327, 7
        %v6329 = vsub.s32 %v5290, %v6328
        %v6330 = vrot.slane %v3761, %v6329
        %v6331 = vsel %vm5295, %v6330, %v6326
        %v6332 = vlaneseq
        %v6333 = vshrl.u32 %v6332, 7
        %v6334 = vsub.s32 %v5297, %v6333
        %v6335 = vrot.slane %v3764, %v6334
        %v6336 = vsel %vm5302, %v6335, %v6331
        %v6337 = vlaneseq
        %v6338 = vshrl.u32 %v6337, 7
        %v6339 = vsub.s32 %v5304, %v6338
        %v6340 = vrot.slane %v3767, %v6339
        %v6341 = vsel %vm5309, %v6340, %v6336
        %v6342 = vlaneseq
        %v6343 = vshrl.u32 %v6342, 7
        %v6344 = vsub.s32 %v5311, %v6343
        %v6345 = vrot.slane %v3770, %v6344
        %v6346 = vsel %vm5316, %v6345, %v6341
        %v6347 = vlaneseq
        %v6348 = vshrl.u32 %v6347, 7
        %v6349 = vsub.s32 %v5318, %v6348
        %v6350 = vrot.slane %v3773, %v6349
        %v6351 = vsel %vm5323, %v6350, %v6346
        %v6352 = vlaneseq
        %v6353 = vshrl.u32 %v6352, 7
        %v6354 = vsub.s32 %v5215, %v6353
        %v6355 = vrot.slane %v3776, %v6354
        %v6356 = vlaneseq
        %v6357 = vshrl.u32 %v6356, 7
        %v6358 = vsub.s32 %v5220, %v6357
        %v6359 = vrot.slane %v3779, %v6358
        %v6360 = vsel %vm5225, %v6359, %v6355
        %v6361 = vlaneseq
        %v6362 = vshrl.u32 %v6361, 7
        %v6363 = vsub.s32 %v5227, %v6362
        %v6364 = vrot.slane %v3782, %v6363
        %v6365 = vsel %vm5232, %v6364, %v6360
        %v6366 = vlaneseq
        %v6367 = vshrl.u32 %v6366, 7
        %v6368 = vsub.s32 %v5234, %v6367
        %v6369 = vrot.slane %v3785, %v6368
        %v6370 = vsel %vm5239, %v6369, %v6365
        %v6371 = vlaneseq
        %v6372 = vshrl.u32 %v6371, 7
        %v6373 = vsub.s32 %v5241, %v6372
        %v6374 = vrot.slane %v3788, %v6373
        %v6375 = vsel %vm5246, %v6374, %v6370
        %v6376 = vlaneseq
        %v6377 = vshrl.u32 %v6376, 7
        %v6378 = vsub.s32 %v5248, %v6377
        %v6379 = vrot.slane %v3791, %v6378
        %v6380 = vsel %vm5253, %v6379, %v6375
        %v6381 = vlaneseq
        %v6382 = vshrl.u32 %v6381, 7
        %v6383 = vsub.s32 %v5255, %v6382
        %v6384 = vrot.slane %v3794, %v6383
        %v6385 = vsel %vm5260, %v6384, %v6380
        %v6386 = vlaneseq
        %v6387 = vshrl.u32 %v6386, 7
        %v6388 = vsub.s32 %v5262, %v6387
        %v6389 = vrot.slane %v3797, %v6388
        %v6390 = vsel %vm5267, %v6389, %v6385
        %v6391 = vlaneseq
        %v6392 = vshrl.u32 %v6391, 7
        %v6393 = vsub.s32 %v5269, %v6392
        %v6394 = vrot.slane %v3800, %v6393
        %v6395 = vsel %vm5274, %v6394, %v6390
        %v6396 = vlaneseq
        %v6397 = vshrl.u32 %v6396, 7
        %v6398 = vsub.s32 %v5276, %v6397
        %v6399 = vrot.slane %v3803, %v6398
        %v6400 = vsel %vm5281, %v6399, %v6395
        %v6401 = vlaneseq
        %v6402 = vshrl.u32 %v6401, 7
        %v6403 = vsub.s32 %v5283, %v6402
        %v6404 = vrot.slane %v3806, %v6403
        %v6405 = vsel %vm5288, %v6404, %v6400
        %v6406 = vlaneseq
        %v6407 = vshrl.u32 %v6406, 7
        %v6408 = vsub.s32 %v5290, %v6407
        %v6409 = vrot.slane %v3809, %v6408
        %v6410 = vsel %vm5295, %v6409, %v6405
        %v6411 = vlaneseq
        %v6412 = vshrl.u32 %v6411, 7
        %v6413 = vsub.s32 %v5297, %v6412
        %v6414 = vrot.slane %v3812, %v6413
        %v6415 = vsel %vm5302, %v6414, %v6410
        %v6416 = vlaneseq
        %v6417 = vshrl.u32 %v6416, 7
        %v6418 = vsub.s32 %v5304, %v6417
        %v6419 = vrot.slane %v3815, %v6418
        %v6420 = vsel %vm5309, %v6419, %v6415
        %v6421 = vlaneseq
        %v6422 = vshrl.u32 %v6421, 7
        %v6423 = vsub.s32 %v5311, %v6422
        %v6424 = vrot.slane %v3818, %v6423
        %v6425 = vsel %vm5316, %v6424, %v6420
        %v6426 = vlaneseq
        %v6427 = vshrl.u32 %v6426, 7
        %v6428 = vsub.s32 %v5318, %v6427
        %v6429 = vrot.slane %v3821, %v6428
        %v6430 = vsel %vm5323, %v6429, %v6425
        %v6431 = vlaneseq
        %v6432 = vshrl.u32 %v6431, 7
        %v6433 = vsub.s32 %v5215, %v6432
        %v6434 = vrot.slane %v3824, %v6433
        %v6435 = vlaneseq
        %v6436 = vshrl.u32 %v6435, 7
        %v6437 = vsub.s32 %v5220, %v6436
        %v6438 = vrot.slane %v3827, %v6437
        %v6439 = vsel %vm5225, %v6438, %v6434
        %v6440 = vlaneseq
        %v6441 = vshrl.u32 %v6440, 7
        %v6442 = vsub.s32 %v5227, %v6441
        %v6443 = vrot.slane %v3830, %v6442
        %v6444 = vsel %vm5232, %v6443, %v6439
        %v6445 = vlaneseq
        %v6446 = vshrl.u32 %v6445, 7
        %v6447 = vsub.s32 %v5234, %v6446
        %v6448 = vrot.slane %v3833, %v6447
        %v6449 = vsel %vm5239, %v6448, %v6444
        %v6450 = vlaneseq
        %v6451 = vshrl.u32 %v6450, 7
        %v6452 = vsub.s32 %v5241, %v6451
        %v6453 = vrot.slane %v3836, %v6452
        %v6454 = vsel %vm5246, %v6453, %v6449
        %v6455 = vlaneseq
        %v6456 = vshrl.u32 %v6455, 7
        %v6457 = vsub.s32 %v5248, %v6456
        %v6458 = vrot.slane %v3839, %v6457
        %v6459 = vsel %vm5253, %v6458, %v6454
        %v6460 = vlaneseq
        %v6461 = vshrl.u32 %v6460, 7
        %v6462 = vsub.s32 %v5255, %v6461
        %v6463 = vrot.slane %v3842, %v6462
        %v6464 = vsel %vm5260, %v6463, %v6459
        %v6465 = vlaneseq
        %v6466 = vshrl.u32 %v6465, 7
        %v6467 = vsub.s32 %v5262, %v6466
        %v6468 = vrot.slane %v3845, %v6467
        %v6469 = vsel %vm5267, %v6468, %v6464
        %v6470 = vlaneseq
        %v6471 = vshrl.u32 %v6470, 7
        %v6472 = vsub.s32 %v5269, %v6471
        %v6473 = vrot.slane %v3848, %v6472
        %v6474 = vsel %vm5274, %v6473, %v6469
        %v6475 = vlaneseq
        %v6476 = vshrl.u32 %v6475, 7
        %v6477 = vsub.s32 %v5276, %v6476
        %v6478 = vrot.slane %v3851, %v6477
        %v6479 = vsel %vm5281, %v6478, %v6474
        %v6480 = vlaneseq
        %v6481 = vshrl.u32 %v6480, 7
        %v6482 = vsub.s32 %v5283, %v6481
        %v6483 = vrot.slane %v3854, %v6482
        %v6484 = vsel %vm5288, %v6483, %v6479
        %v6485 = vlaneseq
        %v6486 = vshrl.u32 %v6485, 7
        %v6487 = vsub.s32 %v5290, %v6486
        %v6488 = vrot.slane %v3857, %v6487
        %v6489 = vsel %vm5295, %v6488, %v6484
        %v6490 = vlaneseq
        %v6491 = vshrl.u32 %v6490, 7
        %v6492 = vsub.s32 %v5297, %v6491
        %v6493 = vrot.slane %v3860, %v6492
        %v6494 = vsel %vm5302, %v6493, %v6489
        %v6495 = vlaneseq
        %v6496 = vshrl.u32 %v6495, 7
        %v6497 = vsub.s32 %v5304, %v6496
        %v6498 = vrot.slane %v3863, %v6497
        %v6499 = vsel %vm5309, %v6498, %v6494
        %v6500 = vlaneseq
        %v6501 = vshrl.u32 %v6500, 7
        %v6502 = vsub.s32 %v5311, %v6501
        %v6503 = vrot.slane %v3866, %v6502
        %v6504 = vsel %vm5316, %v6503, %v6499
        %v6505 = vlaneseq
        %v6506 = vshrl.u32 %v6505, 7
        %v6507 = vsub.s32 %v5318, %v6506
        %v6508 = vrot.slane %v3869, %v6507
        %v6509 = vsel %vm5323, %v6508, %v6504
        %v6510 = vlaneseq
        %v6511 = vshrl.u32 %v6510, 7
        %v6512 = vsub.s32 %v5215, %v6511
        %v6513 = vrot.slane %v3872, %v6512
        %v6514 = vlaneseq
        %v6515 = vshrl.u32 %v6514, 7
        %v6516 = vsub.s32 %v5220, %v6515
        %v6517 = vrot.slane %v3875, %v6516
        %v6518 = vsel %vm5225, %v6517, %v6513
        %v6519 = vlaneseq
        %v6520 = vshrl.u32 %v6519, 7
        %v6521 = vsub.s32 %v5227, %v6520
        %v6522 = vrot.slane %v3878, %v6521
        %v6523 = vsel %vm5232, %v6522, %v6518
        %v6524 = vlaneseq
        %v6525 = vshrl.u32 %v6524, 7
        %v6526 = vsub.s32 %v5234, %v6525
        %v6527 = vrot.slane %v3881, %v6526
        %v6528 = vsel %vm5239, %v6527, %v6523
        %v6529 = vlaneseq
        %v6530 = vshrl.u32 %v6529, 7
        %v6531 = vsub.s32 %v5241, %v6530
        %v6532 = vrot.slane %v3884, %v6531
        %v6533 = vsel %vm5246, %v6532, %v6528
        %v6534 = vlaneseq
        %v6535 = vshrl.u32 %v6534, 7
        %v6536 = vsub.s32 %v5248, %v6535
        %v6537 = vrot.slane %v3887, %v6536
        %v6538 = vsel %vm5253, %v6537, %v6533
        %v6539 = vlaneseq
        %v6540 = vshrl.u32 %v6539, 7
        %v6541 = vsub.s32 %v5255, %v6540
        %v6542 = vrot.slane %v3890, %v6541
        %v6543 = vsel %vm5260, %v6542, %v6538
        %v6544 = vlaneseq
        %v6545 = vshrl.u32 %v6544, 7
        %v6546 = vsub.s32 %v5262, %v6545
        %v6547 = vrot.slane %v3893, %v6546
        %v6548 = vsel %vm5267, %v6547, %v6543
        %v6549 = vlaneseq
        %v6550 = vshrl.u32 %v6549, 7
        %v6551 = vsub.s32 %v5269, %v6550
        %v6552 = vrot.slane %v3896, %v6551
        %v6553 = vsel %vm5274, %v6552, %v6548
        %v6554 = vlaneseq
        %v6555 = vshrl.u32 %v6554, 7
        %v6556 = vsub.s32 %v5276, %v6555
        %v6557 = vrot.slane %v3899, %v6556
        %v6558 = vsel %vm5281, %v6557, %v6553
        %v6559 = vlaneseq
        %v6560 = vshrl.u32 %v6559, 7
        %v6561 = vsub.s32 %v5283, %v6560
        %v6562 = vrot.slane %v3902, %v6561
        %v6563 = vsel %vm5288, %v6562, %v6558
        %v6564 = vlaneseq
        %v6565 = vshrl.u32 %v6564, 7
        %v6566 = vsub.s32 %v5290, %v6565
        %v6567 = vrot.slane %v3905, %v6566
        %v6568 = vsel %vm5295, %v6567, %v6563
        %v6569 = vlaneseq
        %v6570 = vshrl.u32 %v6569, 7
        %v6571 = vsub.s32 %v5297, %v6570
        %v6572 = vrot.slane %v3908, %v6571
        %v6573 = vsel %vm5302, %v6572, %v6568
        %v6574 = vlaneseq
        %v6575 = vshrl.u32 %v6574, 7
        %v6576 = vsub.s32 %v5304, %v6575
        %v6577 = vrot.slane %v3911, %v6576
        %v6578 = vsel %vm5309, %v6577, %v6573
        %v6579 = vlaneseq
        %v6580 = vshrl.u32 %v6579, 7
        %v6581 = vsub.s32 %v5311, %v6580
        %v6582 = vrot.slane %v3914, %v6581
        %v6583 = vsel %vm5316, %v6582, %v6578
        %v6584 = vlaneseq
        %v6585 = vshrl.u32 %v6584, 7
        %v6586 = vsub.s32 %v5318, %v6585
        %v6587 = vrot.slane %v3917, %v6586
        %v6588 = vsel %vm5323, %v6587, %v6583
        %v6589 = vlaneseq
        %v6590 = vshrl.u32 %v6589, 7
        %v6591 = vsub.s32 %v5215, %v6590
        %v6592 = vrot.slane %v3920, %v6591
        %v6593 = vlaneseq
        %v6594 = vshrl.u32 %v6593, 7
        %v6595 = vsub.s32 %v5220, %v6594
        %v6596 = vrot.slane %v3923, %v6595
        %v6597 = vsel %vm5225, %v6596, %v6592
        %v6598 = vlaneseq
        %v6599 = vshrl.u32 %v6598, 7
        %v6600 = vsub.s32 %v5227, %v6599
        %v6601 = vrot.slane %v3926, %v6600
        %v6602 = vsel %vm5232, %v6601, %v6597
        %v6603 = vlaneseq
        %v6604 = vshrl.u32 %v6603, 7
        %v6605 = vsub.s32 %v5234, %v6604
        %v6606 = vrot.slane %v3929, %v6605
        %v6607 = vsel %vm5239, %v6606, %v6602
        %v6608 = vlaneseq
        %v6609 = vshrl.u32 %v6608, 7
        %v6610 = vsub.s32 %v5241, %v6609
        %v6611 = vrot.slane %v3932, %v6610
        %v6612 = vsel %vm5246, %v6611, %v6607
        %v6613 = vlaneseq
        %v6614 = vshrl.u32 %v6613, 7
        %v6615 = vsub.s32 %v5248, %v6614
        %v6616 = vrot.slane %v3935, %v6615
        %v6617 = vsel %vm5253, %v6616, %v6612
        %v6618 = vlaneseq
        %v6619 = vshrl.u32 %v6618, 7
        %v6620 = vsub.s32 %v5255, %v6619
        %v6621 = vrot.slane %v3938, %v6620
        %v6622 = vsel %vm5260, %v6621, %v6617
        %v6623 = vlaneseq
        %v6624 = vshrl.u32 %v6623, 7
        %v6625 = vsub.s32 %v5262, %v6624
        %v6626 = vrot.slane %v3941, %v6625
        %v6627 = vsel %vm5267, %v6626, %v6622
        %v6628 = vlaneseq
        %v6629 = vshrl.u32 %v6628, 7
        %v6630 = vsub.s32 %v5269, %v6629
        %v6631 = vrot.slane %v3944, %v6630
        %v6632 = vsel %vm5274, %v6631, %v6627
        %v6633 = vlaneseq
        %v6634 = vshrl.u32 %v6633, 7
        %v6635 = vsub.s32 %v5276, %v6634
        %v6636 = vrot.slane %v3947, %v6635
        %v6637 = vsel %vm5281, %v6636, %v6632
        %v6638 = vlaneseq
        %v6639 = vshrl.u32 %v6638, 7
        %v6640 = vsub.s32 %v5283, %v6639
        %v6641 = vrot.slane %v3950, %v6640
        %v6642 = vsel %vm5288, %v6641, %v6637
        %v6643 = vlaneseq
        %v6644 = vshrl.u32 %v6643, 7
        %v6645 = vsub.s32 %v5290, %v6644
        %v6646 = vrot.slane %v3953, %v6645
        %v6647 = vsel %vm5295, %v6646, %v6642
        %v6648 = vlaneseq
        %v6649 = vshrl.u32 %v6648, 7
        %v6650 = vsub.s32 %v5297, %v6649
        %v6651 = vrot.slane %v3956, %v6650
        %v6652 = vsel %vm5302, %v6651, %v6647
        %v6653 = vlaneseq
        %v6654 = vshrl.u32 %v6653, 7
        %v6655 = vsub.s32 %v5304, %v6654
        %v6656 = vrot.slane %v3959, %v6655
        %v6657 = vsel %vm5309, %v6656, %v6652
        %v6658 = vlaneseq
        %v6659 = vshrl.u32 %v6658, 7
        %v6660 = vsub.s32 %v5311, %v6659
        %v6661 = vrot.slane %v3962, %v6660
        %v6662 = vsel %vm5316, %v6661, %v6657
        %v6663 = vlaneseq
        %v6664 = vshrl.u32 %v6663, 7
        %v6665 = vsub.s32 %v5318, %v6664
        %v6666 = vrot.slane %v3965, %v6665
        %v6667 = vsel %vm5323, %v6666, %v6662
        %v6668 = vlaneseq
        %v6669 = vshrl.u32 %v6668, 7
        %v6670 = vsub.s32 %v5215, %v6669
        %v6671 = vrot.slane %v3968, %v6670
        %v6672 = vlaneseq
        %v6673 = vshrl.u32 %v6672, 7
        %v6674 = vsub.s32 %v5220, %v6673
        %v6675 = vrot.slane %v3971, %v6674
        %v6676 = vsel %vm5225, %v6675, %v6671
        %v6677 = vlaneseq
        %v6678 = vshrl.u32 %v6677, 7
        %v6679 = vsub.s32 %v5227, %v6678
        %v6680 = vrot.slane %v3974, %v6679
        %v6681 = vsel %vm5232, %v6680, %v6676
        %v6682 = vlaneseq
        %v6683 = vshrl.u32 %v6682, 7
        %v6684 = vsub.s32 %v5234, %v6683
        %v6685 = vrot.slane %v3977, %v6684
        %v6686 = vsel %vm5239, %v6685, %v6681
        %v6687 = vlaneseq
        %v6688 = vshrl.u32 %v6687, 7
        %v6689 = vsub.s32 %v5241, %v6688
        %v6690 = vrot.slane %v3980, %v6689
        %v6691 = vsel %vm5246, %v6690, %v6686
        %v6692 = vlaneseq
        %v6693 = vshrl.u32 %v6692, 7
        %v6694 = vsub.s32 %v5248, %v6693
        %v6695 = vrot.slane %v3983, %v6694
        %v6696 = vsel %vm5253, %v6695, %v6691
        %v6697 = vlaneseq
        %v6698 = vshrl.u32 %v6697, 7
        %v6699 = vsub.s32 %v5255, %v6698
        %v6700 = vrot.slane %v3986, %v6699
        %v6701 = vsel %vm5260, %v6700, %v6696
        %v6702 = vlaneseq
        %v6703 = vshrl.u32 %v6702, 7
        %v6704 = vsub.s32 %v5262, %v6703
        %v6705 = vrot.slane %v3989, %v6704
        %v6706 = vsel %vm5267, %v6705, %v6701
        %v6707 = vlaneseq
        %v6708 = vshrl.u32 %v6707, 7
        %v6709 = vsub.s32 %v5269, %v6708
        %v6710 = vrot.slane %v3992, %v6709
        %v6711 = vsel %vm5274, %v6710, %v6706
        %v6712 = vlaneseq
        %v6713 = vshrl.u32 %v6712, 7
        %v6714 = vsub.s32 %v5276, %v6713
        %v6715 = vrot.slane %v3995, %v6714
        %v6716 = vsel %vm5281, %v6715, %v6711
        %v6717 = vlaneseq
        %v6718 = vshrl.u32 %v6717, 7
        %v6719 = vsub.s32 %v5283, %v6718
        %v6720 = vrot.slane %v3998, %v6719
        %v6721 = vsel %vm5288, %v6720, %v6716
        %v6722 = vlaneseq
        %v6723 = vshrl.u32 %v6722, 7
        %v6724 = vsub.s32 %v5290, %v6723
        %v6725 = vrot.slane %v4001, %v6724
        %v6726 = vsel %vm5295, %v6725, %v6721
        %v6727 = vlaneseq
        %v6728 = vshrl.u32 %v6727, 7
        %v6729 = vsub.s32 %v5297, %v6728
        %v6730 = vrot.slane %v4004, %v6729
        %v6731 = vsel %vm5302, %v6730, %v6726
        %v6732 = vlaneseq
        %v6733 = vshrl.u32 %v6732, 7
        %v6734 = vsub.s32 %v5304, %v6733
        %v6735 = vrot.slane %v4007, %v6734
        %v6736 = vsel %vm5309, %v6735, %v6731
        %v6737 = vlaneseq
        %v6738 = vshrl.u32 %v6737, 7
        %v6739 = vsub.s32 %v5311, %v6738
        %v6740 = vrot.slane %v4010, %v6739
        %v6741 = vsel %vm5316, %v6740, %v6736
        %v6742 = vlaneseq
        %v6743 = vshrl.u32 %v6742, 7
        %v6744 = vsub.s32 %v5318, %v6743
        %v6745 = vrot.slane %v4013, %v6744
        %v6746 = vsel %vm5323, %v6745, %v6741
        %v6747 = vlaneseq
        %v6748 = vshrl.u32 %v6747, 7
        %v6749 = vsub.s32 %v5215, %v6748
        %v6750 = vrot.slane %v4016, %v6749
        %v6751 = vlaneseq
        %v6752 = vshrl.u32 %v6751, 7
        %v6753 = vsub.s32 %v5220, %v6752
        %v6754 = vrot.slane %v4019, %v6753
        %v6755 = vsel %vm5225, %v6754, %v6750
        %v6756 = vlaneseq
        %v6757 = vshrl.u32 %v6756, 7
        %v6758 = vsub.s32 %v5227, %v6757
        %v6759 = vrot.slane %v4022, %v6758
        %v6760 = vsel %vm5232, %v6759, %v6755
        %v6761 = vlaneseq
        %v6762 = vshrl.u32 %v6761, 7
        %v6763 = vsub.s32 %v5234, %v6762
        %v6764 = vrot.slane %v4025, %v6763
        %v6765 = vsel %vm5239, %v6764, %v6760
        %v6766 = vlaneseq
        %v6767 = vshrl.u32 %v6766, 7
        %v6768 = vsub.s32 %v5241, %v6767
        %v6769 = vrot.slane %v4028, %v6768
        %v6770 = vsel %vm5246, %v6769, %v6765
        %v6771 = vlaneseq
        %v6772 = vshrl.u32 %v6771, 7
        %v6773 = vsub.s32 %v5248, %v6772
        %v6774 = vrot.slane %v4031, %v6773
        %v6775 = vsel %vm5253, %v6774, %v6770
        %v6776 = vlaneseq
        %v6777 = vshrl.u32 %v6776, 7
        %v6778 = vsub.s32 %v5255, %v6777
        %v6779 = vrot.slane %v4034, %v6778
        %v6780 = vsel %vm5260, %v6779, %v6775
        %v6781 = vlaneseq
        %v6782 = vshrl.u32 %v6781, 7
        %v6783 = vsub.s32 %v5262, %v6782
        %v6784 = vrot.slane %v4037, %v6783
        %v6785 = vsel %vm5267, %v6784, %v6780
        %v6786 = vlaneseq
        %v6787 = vshrl.u32 %v6786, 7
        %v6788 = vsub.s32 %v5269, %v6787
        %v6789 = vrot.slane %v4040, %v6788
        %v6790 = vsel %vm5274, %v6789, %v6785
        %v6791 = vlaneseq
        %v6792 = vshrl.u32 %v6791, 7
        %v6793 = vsub.s32 %v5276, %v6792
        %v6794 = vrot.slane %v4043, %v6793
        %v6795 = vsel %vm5281, %v6794, %v6790
        %v6796 = vlaneseq
        %v6797 = vshrl.u32 %v6796, 7
        %v6798 = vsub.s32 %v5283, %v6797
        %v6799 = vrot.slane %v4046, %v6798
        %v6800 = vsel %vm5288, %v6799, %v6795
        %v6801 = vlaneseq
        %v6802 = vshrl.u32 %v6801, 7
        %v6803 = vsub.s32 %v5290, %v6802
        %v6804 = vrot.slane %v4049, %v6803
        %v6805 = vsel %vm5295, %v6804, %v6800
        %v6806 = vlaneseq
        %v6807 = vshrl.u32 %v6806, 7
        %v6808 = vsub.s32 %v5297, %v6807
        %v6809 = vrot.slane %v4052, %v6808
        %v6810 = vsel %vm5302, %v6809, %v6805
        %v6811 = vlaneseq
        %v6812 = vshrl.u32 %v6811, 7
        %v6813 = vsub.s32 %v5304, %v6812
        %v6814 = vrot.slane %v4055, %v6813
        %v6815 = vsel %vm5309, %v6814, %v6810
        %v6816 = vlaneseq
        %v6817 = vshrl.u32 %v6816, 7
        %v6818 = vsub.s32 %v5311, %v6817
        %v6819 = vrot.slane %v4058, %v6818
        %v6820 = vsel %vm5316, %v6819, %v6815
        %v6821 = vlaneseq
        %v6822 = vshrl.u32 %v6821, 7
        %v6823 = vsub.s32 %v5318, %v6822
        %v6824 = vrot.slane %v4061, %v6823
        %v6825 = vsel %vm5323, %v6824, %v6820
        %v6826 = vlaneseq
        %v6827 = vshrl.u32 %v6826, 7
        %v6828 = vsub.s32 %v5215, %v6827
        %v6829 = vrot.slane %v4064, %v6828
        %v6830 = vlaneseq
        %v6831 = vshrl.u32 %v6830, 7
        %v6832 = vsub.s32 %v5220, %v6831
        %v6833 = vrot.slane %v4067, %v6832
        %v6834 = vsel %vm5225, %v6833, %v6829
        %v6835 = vlaneseq
        %v6836 = vshrl.u32 %v6835, 7
        %v6837 = vsub.s32 %v5227, %v6836
        %v6838 = vrot.slane %v4070, %v6837
        %v6839 = vsel %vm5232, %v6838, %v6834
        %v6840 = vlaneseq
        %v6841 = vshrl.u32 %v6840, 7
        %v6842 = vsub.s32 %v5234, %v6841
        %v6843 = vrot.slane %v4073, %v6842
        %v6844 = vsel %vm5239, %v6843, %v6839
        %v6845 = vlaneseq
        %v6846 = vshrl.u32 %v6845, 7
        %v6847 = vsub.s32 %v5241, %v6846
        %v6848 = vrot.slane %v4076, %v6847
        %v6849 = vsel %vm5246, %v6848, %v6844
        %v6850 = vlaneseq
        %v6851 = vshrl.u32 %v6850, 7
        %v6852 = vsub.s32 %v5248, %v6851
        %v6853 = vrot.slane %v4079, %v6852
        %v6854 = vsel %vm5253, %v6853, %v6849
        %v6855 = vlaneseq
        %v6856 = vshrl.u32 %v6855, 7
        %v6857 = vsub.s32 %v5255, %v6856
        %v6858 = vrot.slane %v4082, %v6857
        %v6859 = vsel %vm5260, %v6858, %v6854
        %v6860 = vlaneseq
        %v6861 = vshrl.u32 %v6860, 7
        %v6862 = vsub.s32 %v5262, %v6861
        %v6863 = vrot.slane %v4085, %v6862
        %v6864 = vsel %vm5267, %v6863, %v6859
        %v6865 = vlaneseq
        %v6866 = vshrl.u32 %v6865, 7
        %v6867 = vsub.s32 %v5269, %v6866
        %v6868 = vrot.slane %v4088, %v6867
        %v6869 = vsel %vm5274, %v6868, %v6864
        %v6870 = vlaneseq
        %v6871 = vshrl.u32 %v6870, 7
        %v6872 = vsub.s32 %v5276, %v6871
        %v6873 = vrot.slane %v4091, %v6872
        %v6874 = vsel %vm5281, %v6873, %v6869
        %v6875 = vlaneseq
        %v6876 = vshrl.u32 %v6875, 7
        %v6877 = vsub.s32 %v5283, %v6876
        %v6878 = vrot.slane %v4094, %v6877
        %v6879 = vsel %vm5288, %v6878, %v6874
        %v6880 = vlaneseq
        %v6881 = vshrl.u32 %v6880, 7
        %v6882 = vsub.s32 %v5290, %v6881
        %v6883 = vrot.slane %v4097, %v6882
        %v6884 = vsel %vm5295, %v6883, %v6879
        %v6885 = vlaneseq
        %v6886 = vshrl.u32 %v6885, 7
        %v6887 = vsub.s32 %v5297, %v6886
        %v6888 = vrot.slane %v4100, %v6887
        %v6889 = vsel %vm5302, %v6888, %v6884
        %v6890 = vlaneseq
        %v6891 = vshrl.u32 %v6890, 7
        %v6892 = vsub.s32 %v5304, %v6891
        %v6893 = vrot.slane %v4103, %v6892
        %v6894 = vsel %vm5309, %v6893, %v6889
        %v6895 = vlaneseq
        %v6896 = vshrl.u32 %v6895, 7
        %v6897 = vsub.s32 %v5311, %v6896
        %v6898 = vrot.slane %v4106, %v6897
        %v6899 = vsel %vm5316, %v6898, %v6894
        %v6900 = vlaneseq
        %v6901 = vshrl.u32 %v6900, 7
        %v6902 = vsub.s32 %v5318, %v6901
        %v6903 = vrot.slane %v4109, %v6902
        %v6904 = vsel %vm5323, %v6903, %v6899
        %v6905 = vlaneseq
        %v6906 = vshrl.u32 %v6905, 7
        %v6907 = vsub.s32 %v5215, %v6906
        %v6908 = vrot.slane %v4112, %v6907
        %v6909 = vlaneseq
        %v6910 = vshrl.u32 %v6909, 7
        %v6911 = vsub.s32 %v5220, %v6910
        %v6912 = vrot.slane %v4115, %v6911
        %v6913 = vsel %vm5225, %v6912, %v6908
        %v6914 = vlaneseq
        %v6915 = vshrl.u32 %v6914, 7
        %v6916 = vsub.s32 %v5227, %v6915
        %v6917 = vrot.slane %v4118, %v6916
        %v6918 = vsel %vm5232, %v6917, %v6913
        %v6919 = vlaneseq
        %v6920 = vshrl.u32 %v6919, 7
        %v6921 = vsub.s32 %v5234, %v6920
        %v6922 = vrot.slane %v4121, %v6921
        %v6923 = vsel %vm5239, %v6922, %v6918
        %v6924 = vlaneseq
        %v6925 = vshrl.u32 %v6924, 7
        %v6926 = vsub.s32 %v5241, %v6925
        %v6927 = vrot.slane %v4124, %v6926
        %v6928 = vsel %vm5246, %v6927, %v6923
        %v6929 = vlaneseq
        %v6930 = vshrl.u32 %v6929, 7
        %v6931 = vsub.s32 %v5248, %v6930
        %v6932 = vrot.slane %v4127, %v6931
        %v6933 = vsel %vm5253, %v6932, %v6928
        %v6934 = vlaneseq
        %v6935 = vshrl.u32 %v6934, 7
        %v6936 = vsub.s32 %v5255, %v6935
        %v6937 = vrot.slane %v4130, %v6936
        %v6938 = vsel %vm5260, %v6937, %v6933
        %v6939 = vlaneseq
        %v6940 = vshrl.u32 %v6939, 7
        %v6941 = vsub.s32 %v5262, %v6940
        %v6942 = vrot.slane %v4133, %v6941
        %v6943 = vsel %vm5267, %v6942, %v6938
        %v6944 = vlaneseq
        %v6945 = vshrl.u32 %v6944, 7
        %v6946 = vsub.s32 %v5269, %v6945
        %v6947 = vrot.slane %v4136, %v6946
        %v6948 = vsel %vm5274, %v6947, %v6943
        %v6949 = vlaneseq
        %v6950 = vshrl.u32 %v6949, 7
        %v6951 = vsub.s32 %v5276, %v6950
        %v6952 = vrot.slane %v4139, %v6951
        %v6953 = vsel %vm5281, %v6952, %v6948
        %v6954 = vlaneseq
        %v6955 = vshrl.u32 %v6954, 7
        %v6956 = vsub.s32 %v5283, %v6955
        %v6957 = vrot.slane %v4142, %v6956
        %v6958 = vsel %vm5288, %v6957, %v6953
        %v6959 = vlaneseq
        %v6960 = vshrl.u32 %v6959, 7
        %v6961 = vsub.s32 %v5290, %v6960
        %v6962 = vrot.slane %v4145, %v6961
        %v6963 = vsel %vm5295, %v6962, %v6958
        %v6964 = vlaneseq
        %v6965 = vshrl.u32 %v6964, 7
        %v6966 = vsub.s32 %v5297, %v6965
        %v6967 = vrot.slane %v4148, %v6966
        %v6968 = vsel %vm5302, %v6967, %v6963
        %v6969 = vlaneseq
        %v6970 = vshrl.u32 %v6969, 7
        %v6971 = vsub.s32 %v5304, %v6970
        %v6972 = vrot.slane %v4151, %v6971
        %v6973 = vsel %vm5309, %v6972, %v6968
        %v6974 = vlaneseq
        %v6975 = vshrl.u32 %v6974, 7
        %v6976 = vsub.s32 %v5311, %v6975
        %v6977 = vrot.slane %v4154, %v6976
        %v6978 = vsel %vm5316, %v6977, %v6973
        %v6979 = vlaneseq
        %v6980 = vshrl.u32 %v6979, 7
        %v6981 = vsub.s32 %v5318, %v6980
        %v6982 = vrot.slane %v4157, %v6981
        %v6983 = vsel %vm5323, %v6982, %v6978
        %v6984 = vlaneseq
        %v6985 = vshrl.u32 %v6984, 7
        %v6986 = vsub.s32 %v5215, %v6985
        %v6987 = vrot.slane %v4160, %v6986
        %v6988 = vlaneseq
        %v6989 = vshrl.u32 %v6988, 7
        %v6990 = vsub.s32 %v5220, %v6989
        %v6991 = vrot.slane %v4163, %v6990
        %v6992 = vsel %vm5225, %v6991, %v6987
        %v6993 = vlaneseq
        %v6994 = vshrl.u32 %v6993, 7
        %v6995 = vsub.s32 %v5227, %v6994
        %v6996 = vrot.slane %v4166, %v6995
        %v6997 = vsel %vm5232, %v6996, %v6992
        %v6998 = vlaneseq
        %v6999 = vshrl.u32 %v6998, 7
        %v7000 = vsub.s32 %v5234, %v6999
        %v7001 = vrot.slane %v4169, %v7000
        %v7002 = vsel %vm5239, %v7001, %v6997
        %v7003 = vlaneseq
        %v7004 = vshrl.u32 %v7003, 7
        %v7005 = vsub.s32 %v5241, %v7004
        %v7006 = vrot.slane %v4172, %v7005
        %v7007 = vsel %vm5246, %v7006, %v7002
        %v7008 = vlaneseq
        %v7009 = vshrl.u32 %v7008, 7
        %v7010 = vsub.s32 %v5248, %v7009
        %v7011 = vrot.slane %v4175, %v7010
        %v7012 = vsel %vm5253, %v7011, %v7007
        %v7013 = vlaneseq
        %v7014 = vshrl.u32 %v7013, 7
        %v7015 = vsub.s32 %v5255, %v7014
        %v7016 = vrot.slane %v4178, %v7015
        %v7017 = vsel %vm5260, %v7016, %v7012
        %v7018 = vlaneseq
        %v7019 = vshrl.u32 %v7018, 7
        %v7020 = vsub.s32 %v5262, %v7019
        %v7021 = vrot.slane %v4181, %v7020
        %v7022 = vsel %vm5267, %v7021, %v7017
        %v7023 = vlaneseq
        %v7024 = vshrl.u32 %v7023, 7
        %v7025 = vsub.s32 %v5269, %v7024
        %v7026 = vrot.slane %v4184, %v7025
        %v7027 = vsel %vm5274, %v7026, %v7022
        %v7028 = vlaneseq
        %v7029 = vshrl.u32 %v7028, 7
        %v7030 = vsub.s32 %v5276, %v7029
        %v7031 = vrot.slane %v4187, %v7030
        %v7032 = vsel %vm5281, %v7031, %v7027
        %v7033 = vlaneseq
        %v7034 = vshrl.u32 %v7033, 7
        %v7035 = vsub.s32 %v5283, %v7034
        %v7036 = vrot.slane %v4190, %v7035
        %v7037 = vsel %vm5288, %v7036, %v7032
        %v7038 = vlaneseq
        %v7039 = vshrl.u32 %v7038, 7
        %v7040 = vsub.s32 %v5290, %v7039
        %v7041 = vrot.slane %v4193, %v7040
        %v7042 = vsel %vm5295, %v7041, %v7037
        %v7043 = vlaneseq
        %v7044 = vshrl.u32 %v7043, 7
        %v7045 = vsub.s32 %v5297, %v7044
        %v7046 = vrot.slane %v4196, %v7045
        %v7047 = vsel %vm5302, %v7046, %v7042
        %v7048 = vlaneseq
        %v7049 = vshrl.u32 %v7048, 7
        %v7050 = vsub.s32 %v5304, %v7049
        %v7051 = vrot.slane %v4199, %v7050
        %v7052 = vsel %vm5309, %v7051, %v7047
        %v7053 = vlaneseq
        %v7054 = vshrl.u32 %v7053, 7
        %v7055 = vsub.s32 %v5311, %v7054
        %v7056 = vrot.slane %v4202, %v7055
        %v7057 = vsel %vm5316, %v7056, %v7052
        %v7058 = vlaneseq
        %v7059 = vshrl.u32 %v7058, 7
        %v7060 = vsub.s32 %v5318, %v7059
        %v7061 = vrot.slane %v4205, %v7060
        %v7062 = vsel %vm5323, %v7061, %v7057
        %v7063 = vlaneseq
        %v7064 = vshrl.u32 %v7063, 7
        %v7065 = vsub.s32 %v5215, %v7064
        %v7066 = vrot.slane %v4208, %v7065
        %v7067 = vlaneseq
        %v7068 = vshrl.u32 %v7067, 7
        %v7069 = vsub.s32 %v5220, %v7068
        %v7070 = vrot.slane %v4211, %v7069
        %v7071 = vsel %vm5225, %v7070, %v7066
        %v7072 = vlaneseq
        %v7073 = vshrl.u32 %v7072, 7
        %v7074 = vsub.s32 %v5227, %v7073
        %v7075 = vrot.slane %v4214, %v7074
        %v7076 = vsel %vm5232, %v7075, %v7071
        %v7077 = vlaneseq
        %v7078 = vshrl.u32 %v7077, 7
        %v7079 = vsub.s32 %v5234, %v7078
        %v7080 = vrot.slane %v4217, %v7079
        %v7081 = vsel %vm5239, %v7080, %v7076
        %v7082 = vlaneseq
        %v7083 = vshrl.u32 %v7082, 7
        %v7084 = vsub.s32 %v5241, %v7083
        %v7085 = vrot.slane %v4220, %v7084
        %v7086 = vsel %vm5246, %v7085, %v7081
        %v7087 = vlaneseq
        %v7088 = vshrl.u32 %v7087, 7
        %v7089 = vsub.s32 %v5248, %v7088
        %v7090 = vrot.slane %v4223, %v7089
        %v7091 = vsel %vm5253, %v7090, %v7086
        %v7092 = vlaneseq
        %v7093 = vshrl.u32 %v7092, 7
        %v7094 = vsub.s32 %v5255, %v7093
        %v7095 = vrot.slane %v4226, %v7094
        %v7096 = vsel %vm5260, %v7095, %v7091
        %v7097 = vlaneseq
        %v7098 = vshrl.u32 %v7097, 7
        %v7099 = vsub.s32 %v5262, %v7098
        %v7100 = vrot.slane %v4229, %v7099
        %v7101 = vsel %vm5267, %v7100, %v7096
        %v7102 = vlaneseq
        %v7103 = vshrl.u32 %v7102, 7
        %v7104 = vsub.s32 %v5269, %v7103
        %v7105 = vrot.slane %v4232, %v7104
        %v7106 = vsel %vm5274, %v7105, %v7101
        %v7107 = vlaneseq
        %v7108 = vshrl.u32 %v7107, 7
        %v7109 = vsub.s32 %v5276, %v7108
        %v7110 = vrot.slane %v4235, %v7109
        %v7111 = vsel %vm5281, %v7110, %v7106
        %v7112 = vlaneseq
        %v7113 = vshrl.u32 %v7112, 7
        %v7114 = vsub.s32 %v5283, %v7113
        %v7115 = vrot.slane %v4238, %v7114
        %v7116 = vsel %vm5288, %v7115, %v7111
        %v7117 = vlaneseq
        %v7118 = vshrl.u32 %v7117, 7
        %v7119 = vsub.s32 %v5290, %v7118
        %v7120 = vrot.slane %v4241, %v7119
        %v7121 = vsel %vm5295, %v7120, %v7116
        %v7122 = vlaneseq
        %v7123 = vshrl.u32 %v7122, 7
        %v7124 = vsub.s32 %v5297, %v7123
        %v7125 = vrot.slane %v4244, %v7124
        %v7126 = vsel %vm5302, %v7125, %v7121
        %v7127 = vlaneseq
        %v7128 = vshrl.u32 %v7127, 7
        %v7129 = vsub.s32 %v5304, %v7128
        %v7130 = vrot.slane %v4247, %v7129
        %v7131 = vsel %vm5309, %v7130, %v7126
        %v7132 = vlaneseq
        %v7133 = vshrl.u32 %v7132, 7
        %v7134 = vsub.s32 %v5311, %v7133
        %v7135 = vrot.slane %v4250, %v7134
        %v7136 = vsel %vm5316, %v7135, %v7131
        %v7137 = vlaneseq
        %v7138 = vshrl.u32 %v7137, 7
        %v7139 = vsub.s32 %v5318, %v7138
        %v7140 = vrot.slane %v4253, %v7139
        %v7141 = vsel %vm5323, %v7140, %v7136
        %v7142 = vlaneseq
        %v7143 = vshrl.u32 %v7142, 7
        %v7144 = vsub.s32 %v5215, %v7143
        %v7145 = vrot.slane %v4256, %v7144
        %v7146 = vlaneseq
        %v7147 = vshrl.u32 %v7146, 7
        %v7148 = vsub.s32 %v5220, %v7147
        %v7149 = vrot.slane %v4259, %v7148
        %v7150 = vsel %vm5225, %v7149, %v7145
        %v7151 = vlaneseq
        %v7152 = vshrl.u32 %v7151, 7
        %v7153 = vsub.s32 %v5227, %v7152
        %v7154 = vrot.slane %v4262, %v7153
        %v7155 = vsel %vm5232, %v7154, %v7150
        %v7156 = vlaneseq
        %v7157 = vshrl.u32 %v7156, 7
        %v7158 = vsub.s32 %v5234, %v7157
        %v7159 = vrot.slane %v4265, %v7158
        %v7160 = vsel %vm5239, %v7159, %v7155
        %v7161 = vlaneseq
        %v7162 = vshrl.u32 %v7161, 7
        %v7163 = vsub.s32 %v5241, %v7162
        %v7164 = vrot.slane %v4268, %v7163
        %v7165 = vsel %vm5246, %v7164, %v7160
        %v7166 = vlaneseq
        %v7167 = vshrl.u32 %v7166, 7
        %v7168 = vsub.s32 %v5248, %v7167
        %v7169 = vrot.slane %v4271, %v7168
        %v7170 = vsel %vm5253, %v7169, %v7165
        %v7171 = vlaneseq
        %v7172 = vshrl.u32 %v7171, 7
        %v7173 = vsub.s32 %v5255, %v7172
        %v7174 = vrot.slane %v4274, %v7173
        %v7175 = vsel %vm5260, %v7174, %v7170
        %v7176 = vlaneseq
        %v7177 = vshrl.u32 %v7176, 7
        %v7178 = vsub.s32 %v5262, %v7177
        %v7179 = vrot.slane %v4277, %v7178
        %v7180 = vsel %vm5267, %v7179, %v7175
        %v7181 = vlaneseq
        %v7182 = vshrl.u32 %v7181, 7
        %v7183 = vsub.s32 %v5269, %v7182
        %v7184 = vrot.slane %v4280, %v7183
        %v7185 = vsel %vm5274, %v7184, %v7180
        %v7186 = vlaneseq
        %v7187 = vshrl.u32 %v7186, 7
        %v7188 = vsub.s32 %v5276, %v7187
        %v7189 = vrot.slane %v4283, %v7188
        %v7190 = vsel %vm5281, %v7189, %v7185
        %v7191 = vlaneseq
        %v7192 = vshrl.u32 %v7191, 7
        %v7193 = vsub.s32 %v5283, %v7192
        %v7194 = vrot.slane %v4286, %v7193
        %v7195 = vsel %vm5288, %v7194, %v7190
        %v7196 = vlaneseq
        %v7197 = vshrl.u32 %v7196, 7
        %v7198 = vsub.s32 %v5290, %v7197
        %v7199 = vrot.slane %v4289, %v7198
        %v7200 = vsel %vm5295, %v7199, %v7195
        %v7201 = vlaneseq
        %v7202 = vshrl.u32 %v7201, 7
        %v7203 = vsub.s32 %v5297, %v7202
        %v7204 = vrot.slane %v4292, %v7203
        %v7205 = vsel %vm5302, %v7204, %v7200
        %v7206 = vlaneseq
        %v7207 = vshrl.u32 %v7206, 7
        %v7208 = vsub.s32 %v5304, %v7207
        %v7209 = vrot.slane %v4295, %v7208
        %v7210 = vsel %vm5309, %v7209, %v7205
        %v7211 = vlaneseq
        %v7212 = vshrl.u32 %v7211, 7
        %v7213 = vsub.s32 %v5311, %v7212
        %v7214 = vrot.slane %v4298, %v7213
        %v7215 = vsel %vm5316, %v7214, %v7210
        %v7216 = vlaneseq
        %v7217 = vshrl.u32 %v7216, 7
        %v7218 = vsub.s32 %v5318, %v7217
        %v7219 = vrot.slane %v4301, %v7218
        %v7220 = vsel %vm5323, %v7219, %v7215
        %v7221 = vlaneseq
        %v7222 = vshrl.u32 %v7221, 7
        %v7223 = vsub.s32 %v5215, %v7222
        %v7224 = vrot.slane %v4304, %v7223
        %v7225 = vlaneseq
        %v7226 = vshrl.u32 %v7225, 7
        %v7227 = vsub.s32 %v5220, %v7226
        %v7228 = vrot.slane %v4307, %v7227
        %v7229 = vsel %vm5225, %v7228, %v7224
        %v7230 = vlaneseq
        %v7231 = vshrl.u32 %v7230, 7
        %v7232 = vsub.s32 %v5227, %v7231
        %v7233 = vrot.slane %v4310, %v7232
        %v7234 = vsel %vm5232, %v7233, %v7229
        %v7235 = vlaneseq
        %v7236 = vshrl.u32 %v7235, 7
        %v7237 = vsub.s32 %v5234, %v7236
        %v7238 = vrot.slane %v4313, %v7237
        %v7239 = vsel %vm5239, %v7238, %v7234
        %v7240 = vlaneseq
        %v7241 = vshrl.u32 %v7240, 7
        %v7242 = vsub.s32 %v5241, %v7241
        %v7243 = vrot.slane %v4316, %v7242
        %v7244 = vsel %vm5246, %v7243, %v7239
        %v7245 = vlaneseq
        %v7246 = vshrl.u32 %v7245, 7
        %v7247 = vsub.s32 %v5248, %v7246
        %v7248 = vrot.slane %v4319, %v7247
        %v7249 = vsel %vm5253, %v7248, %v7244
        %v7250 = vlaneseq
        %v7251 = vshrl.u32 %v7250, 7
        %v7252 = vsub.s32 %v5255, %v7251
        %v7253 = vrot.slane %v4322, %v7252
        %v7254 = vsel %vm5260, %v7253, %v7249
        %v7255 = vlaneseq
        %v7256 = vshrl.u32 %v7255, 7
        %v7257 = vsub.s32 %v5262, %v7256
        %v7258 = vrot.slane %v4325, %v7257
        %v7259 = vsel %vm5267, %v7258, %v7254
        %v7260 = vlaneseq
        %v7261 = vshrl.u32 %v7260, 7
        %v7262 = vsub.s32 %v5269, %v7261
        %v7263 = vrot.slane %v4328, %v7262
        %v7264 = vsel %vm5274, %v7263, %v7259
        %v7265 = vlaneseq
        %v7266 = vshrl.u32 %v7265, 7
        %v7267 = vsub.s32 %v5276, %v7266
        %v7268 = vrot.slane %v4331, %v7267
        %v7269 = vsel %vm5281, %v7268, %v7264
        %v7270 = vlaneseq
        %v7271 = vshrl.u32 %v7270, 7
        %v7272 = vsub.s32 %v5283, %v7271
        %v7273 = vrot.slane %v4334, %v7272
        %v7274 = vsel %vm5288, %v7273, %v7269
        %v7275 = vlaneseq
        %v7276 = vshrl.u32 %v7275, 7
        %v7277 = vsub.s32 %v5290, %v7276
        %v7278 = vrot.slane %v4337, %v7277
        %v7279 = vsel %vm5295, %v7278, %v7274
        %v7280 = vlaneseq
        %v7281 = vshrl.u32 %v7280, 7
        %v7282 = vsub.s32 %v5297, %v7281
        %v7283 = vrot.slane %v4340, %v7282
        %v7284 = vsel %vm5302, %v7283, %v7279
        %v7285 = vlaneseq
        %v7286 = vshrl.u32 %v7285, 7
        %v7287 = vsub.s32 %v5304, %v7286
        %v7288 = vrot.slane %v4343, %v7287
        %v7289 = vsel %vm5309, %v7288, %v7284
        %v7290 = vlaneseq
        %v7291 = vshrl.u32 %v7290, 7
        %v7292 = vsub.s32 %v5311, %v7291
        %v7293 = vrot.slane %v4346, %v7292
        %v7294 = vsel %vm5316, %v7293, %v7289
        %v7295 = vlaneseq
        %v7296 = vshrl.u32 %v7295, 7
        %v7297 = vsub.s32 %v5318, %v7296
        %v7298 = vrot.slane %v4349, %v7297
        %v7299 = vsel %vm5323, %v7298, %v7294
        %v7300 = vlaneseq
        %v7301 = vshrl.u32 %v7300, 7
        %v7302 = vsub.s32 %v5215, %v7301
        %v7303 = vrot.slane %v4352, %v7302
        %v7304 = vlaneseq
        %v7305 = vshrl.u32 %v7304, 7
        %v7306 = vsub.s32 %v5220, %v7305
        %v7307 = vrot.slane %v4355, %v7306
        %v7308 = vsel %vm5225, %v7307, %v7303
        %v7309 = vlaneseq
        %v7310 = vshrl.u32 %v7309, 7
        %v7311 = vsub.s32 %v5227, %v7310
        %v7312 = vrot.slane %v4358, %v7311
        %v7313 = vsel %vm5232, %v7312, %v7308
        %v7314 = vlaneseq
        %v7315 = vshrl.u32 %v7314, 7
        %v7316 = vsub.s32 %v5234, %v7315
        %v7317 = vrot.slane %v4361, %v7316
        %v7318 = vsel %vm5239, %v7317, %v7313
        %v7319 = vlaneseq
        %v7320 = vshrl.u32 %v7319, 7
        %v7321 = vsub.s32 %v5241, %v7320
        %v7322 = vrot.slane %v4364, %v7321
        %v7323 = vsel %vm5246, %v7322, %v7318
        %v7324 = vlaneseq
        %v7325 = vshrl.u32 %v7324, 7
        %v7326 = vsub.s32 %v5248, %v7325
        %v7327 = vrot.slane %v4367, %v7326
        %v7328 = vsel %vm5253, %v7327, %v7323
        %v7329 = vlaneseq
        %v7330 = vshrl.u32 %v7329, 7
        %v7331 = vsub.s32 %v5255, %v7330
        %v7332 = vrot.slane %v4370, %v7331
        %v7333 = vsel %vm5260, %v7332, %v7328
        %v7334 = vlaneseq
        %v7335 = vshrl.u32 %v7334, 7
        %v7336 = vsub.s32 %v5262, %v7335
        %v7337 = vrot.slane %v4373, %v7336
        %v7338 = vsel %vm5267, %v7337, %v7333
        %v7339 = vlaneseq
        %v7340 = vshrl.u32 %v7339, 7
        %v7341 = vsub.s32 %v5269, %v7340
        %v7342 = vrot.slane %v4376, %v7341
        %v7343 = vsel %vm5274, %v7342, %v7338
        %v7344 = vlaneseq
        %v7345 = vshrl.u32 %v7344, 7
        %v7346 = vsub.s32 %v5276, %v7345
        %v7347 = vrot.slane %v4379, %v7346
        %v7348 = vsel %vm5281, %v7347, %v7343
        %v7349 = vlaneseq
        %v7350 = vshrl.u32 %v7349, 7
        %v7351 = vsub.s32 %v5283, %v7350
        %v7352 = vrot.slane %v4382, %v7351
        %v7353 = vsel %vm5288, %v7352, %v7348
        %v7354 = vlaneseq
        %v7355 = vshrl.u32 %v7354, 7
        %v7356 = vsub.s32 %v5290, %v7355
        %v7357 = vrot.slane %v4385, %v7356
        %v7358 = vsel %vm5295, %v7357, %v7353
        %v7359 = vlaneseq
        %v7360 = vshrl.u32 %v7359, 7
        %v7361 = vsub.s32 %v5297, %v7360
        %v7362 = vrot.slane %v4388, %v7361
        %v7363 = vsel %vm5302, %v7362, %v7358
        %v7364 = vlaneseq
        %v7365 = vshrl.u32 %v7364, 7
        %v7366 = vsub.s32 %v5304, %v7365
        %v7367 = vrot.slane %v4391, %v7366
        %v7368 = vsel %vm5309, %v7367, %v7363
        %v7369 = vlaneseq
        %v7370 = vshrl.u32 %v7369, 7
        %v7371 = vsub.s32 %v5311, %v7370
        %v7372 = vrot.slane %v4394, %v7371
        %v7373 = vsel %vm5316, %v7372, %v7368
        %v7374 = vlaneseq
        %v7375 = vshrl.u32 %v7374, 7
        %v7376 = vsub.s32 %v5318, %v7375
        %v7377 = vrot.slane %v4397, %v7376
        %v7378 = vsel %vm5323, %v7377, %v7373
        %v7379 = vlaneseq
        %v7380 = vshrl.u32 %v7379, 7
        %v7381 = vsub.s32 %v5215, %v7380
        %v7382 = vrot.slane %v4400, %v7381
        %v7383 = vlaneseq
        %v7384 = vshrl.u32 %v7383, 7
        %v7385 = vsub.s32 %v5220, %v7384
        %v7386 = vrot.slane %v4403, %v7385
        %v7387 = vsel %vm5225, %v7386, %v7382
        %v7388 = vlaneseq
        %v7389 = vshrl.u32 %v7388, 7
        %v7390 = vsub.s32 %v5227, %v7389
        %v7391 = vrot.slane %v4406, %v7390
        %v7392 = vsel %vm5232, %v7391, %v7387
        %v7393 = vlaneseq
        %v7394 = vshrl.u32 %v7393, 7
        %v7395 = vsub.s32 %v5234, %v7394
        %v7396 = vrot.slane %v4409, %v7395
        %v7397 = vsel %vm5239, %v7396, %v7392
        %v7398 = vlaneseq
        %v7399 = vshrl.u32 %v7398, 7
        %v7400 = vsub.s32 %v5241, %v7399
        %v7401 = vrot.slane %v4412, %v7400
        %v7402 = vsel %vm5246, %v7401, %v7397
        %v7403 = vlaneseq
        %v7404 = vshrl.u32 %v7403, 7
        %v7405 = vsub.s32 %v5248, %v7404
        %v7406 = vrot.slane %v4415, %v7405
        %v7407 = vsel %vm5253, %v7406, %v7402
        %v7408 = vlaneseq
        %v7409 = vshrl.u32 %v7408, 7
        %v7410 = vsub.s32 %v5255, %v7409
        %v7411 = vrot.slane %v4418, %v7410
        %v7412 = vsel %vm5260, %v7411, %v7407
        %v7413 = vlaneseq
        %v7414 = vshrl.u32 %v7413, 7
        %v7415 = vsub.s32 %v5262, %v7414
        %v7416 = vrot.slane %v4421, %v7415
        %v7417 = vsel %vm5267, %v7416, %v7412
        %v7418 = vlaneseq
        %v7419 = vshrl.u32 %v7418, 7
        %v7420 = vsub.s32 %v5269, %v7419
        %v7421 = vrot.slane %v4424, %v7420
        %v7422 = vsel %vm5274, %v7421, %v7417
        %v7423 = vlaneseq
        %v7424 = vshrl.u32 %v7423, 7
        %v7425 = vsub.s32 %v5276, %v7424
        %v7426 = vrot.slane %v4427, %v7425
        %v7427 = vsel %vm5281, %v7426, %v7422
        %v7428 = vlaneseq
        %v7429 = vshrl.u32 %v7428, 7
        %v7430 = vsub.s32 %v5283, %v7429
        %v7431 = vrot.slane %v4430, %v7430
        %v7432 = vsel %vm5288, %v7431, %v7427
        %v7433 = vlaneseq
        %v7434 = vshrl.u32 %v7433, 7
        %v7435 = vsub.s32 %v5290, %v7434
        %v7436 = vrot.slane %v4433, %v7435
        %v7437 = vsel %vm5295, %v7436, %v7432
        %v7438 = vlaneseq
        %v7439 = vshrl.u32 %v7438, 7
        %v7440 = vsub.s32 %v5297, %v7439
        %v7441 = vrot.slane %v4436, %v7440
        %v7442 = vsel %vm5302, %v7441, %v7437
        %v7443 = vlaneseq
        %v7444 = vshrl.u32 %v7443, 7
        %v7445 = vsub.s32 %v5304, %v7444
        %v7446 = vrot.slane %v4439, %v7445
        %v7447 = vsel %vm5309, %v7446, %v7442
        %v7448 = vlaneseq
        %v7449 = vshrl.u32 %v7448, 7
        %v7450 = vsub.s32 %v5311, %v7449
        %v7451 = vrot.slane %v4442, %v7450
        %v7452 = vsel %vm5316, %v7451, %v7447
        %v7453 = vlaneseq
        %v7454 = vshrl.u32 %v7453, 7
        %v7455 = vsub.s32 %v5318, %v7454
        %v7456 = vrot.slane %v4445, %v7455
        %v7457 = vsel %vm5323, %v7456, %v7452
        %v7458 = vlaneseq
        %v7459 = vshrl.u32 %v7458, 7
        %v7460 = vsub.s32 %v5215, %v7459
        %v7461 = vrot.slane %v4448, %v7460
        %v7462 = vlaneseq
        %v7463 = vshrl.u32 %v7462, 7
        %v7464 = vsub.s32 %v5220, %v7463
        %v7465 = vrot.slane %v4451, %v7464
        %v7466 = vsel %vm5225, %v7465, %v7461
        %v7467 = vlaneseq
        %v7468 = vshrl.u32 %v7467, 7
        %v7469 = vsub.s32 %v5227, %v7468
        %v7470 = vrot.slane %v4454, %v7469
        %v7471 = vsel %vm5232, %v7470, %v7466
        %v7472 = vlaneseq
        %v7473 = vshrl.u32 %v7472, 7
        %v7474 = vsub.s32 %v5234, %v7473
        %v7475 = vrot.slane %v4457, %v7474
        %v7476 = vsel %vm5239, %v7475, %v7471
        %v7477 = vlaneseq
        %v7478 = vshrl.u32 %v7477, 7
        %v7479 = vsub.s32 %v5241, %v7478
        %v7480 = vrot.slane %v4460, %v7479
        %v7481 = vsel %vm5246, %v7480, %v7476
        %v7482 = vlaneseq
        %v7483 = vshrl.u32 %v7482, 7
        %v7484 = vsub.s32 %v5248, %v7483
        %v7485 = vrot.slane %v4463, %v7484
        %v7486 = vsel %vm5253, %v7485, %v7481
        %v7487 = vlaneseq
        %v7488 = vshrl.u32 %v7487, 7
        %v7489 = vsub.s32 %v5255, %v7488
        %v7490 = vrot.slane %v4466, %v7489
        %v7491 = vsel %vm5260, %v7490, %v7486
        %v7492 = vlaneseq
        %v7493 = vshrl.u32 %v7492, 7
        %v7494 = vsub.s32 %v5262, %v7493
        %v7495 = vrot.slane %v4469, %v7494
        %v7496 = vsel %vm5267, %v7495, %v7491
        %v7497 = vlaneseq
        %v7498 = vshrl.u32 %v7497, 7
        %v7499 = vsub.s32 %v5269, %v7498
        %v7500 = vrot.slane %v4472, %v7499
        %v7501 = vsel %vm5274, %v7500, %v7496
        %v7502 = vlaneseq
        %v7503 = vshrl.u32 %v7502, 7
        %v7504 = vsub.s32 %v5276, %v7503
        %v7505 = vrot.slane %v4475, %v7504
        %v7506 = vsel %vm5281, %v7505, %v7501
        %v7507 = vlaneseq
        %v7508 = vshrl.u32 %v7507, 7
        %v7509 = vsub.s32 %v5283, %v7508
        %v7510 = vrot.slane %v4478, %v7509
        %v7511 = vsel %vm5288, %v7510, %v7506
        %v7512 = vlaneseq
        %v7513 = vshrl.u32 %v7512, 7
        %v7514 = vsub.s32 %v5290, %v7513
        %v7515 = vrot.slane %v4481, %v7514
        %v7516 = vsel %vm5295, %v7515, %v7511
        %v7517 = vlaneseq
        %v7518 = vshrl.u32 %v7517, 7
        %v7519 = vsub.s32 %v5297, %v7518
        %v7520 = vrot.slane %v4484, %v7519
        %v7521 = vsel %vm5302, %v7520, %v7516
        %v7522 = vlaneseq
        %v7523 = vshrl.u32 %v7522, 7
        %v7524 = vsub.s32 %v5304, %v7523
        %v7525 = vrot.slane %v4487, %v7524
        %v7526 = vsel %vm5309, %v7525, %v7521
        %v7527 = vlaneseq
        %v7528 = vshrl.u32 %v7527, 7
        %v7529 = vsub.s32 %v5311, %v7528
        %v7530 = vrot.slane %v4490, %v7529
        %v7531 = vsel %vm5316, %v7530, %v7526
        %v7532 = vlaneseq
        %v7533 = vshrl.u32 %v7532, 7
        %v7534 = vsub.s32 %v5318, %v7533
        %v7535 = vrot.slane %v4493, %v7534
        %v7536 = vsel %vm5323, %v7535, %v7531
        %v7537 = vlaneseq
        %v7538 = vshrl.u32 %v7537, 7
        %v7539 = vsub.s32 %v5215, %v7538
        %v7540 = vrot.slane %v4496, %v7539
        %v7541 = vlaneseq
        %v7542 = vshrl.u32 %v7541, 7
        %v7543 = vsub.s32 %v5220, %v7542
        %v7544 = vrot.slane %v4499, %v7543
        %v7545 = vsel %vm5225, %v7544, %v7540
        %v7546 = vlaneseq
        %v7547 = vshrl.u32 %v7546, 7
        %v7548 = vsub.s32 %v5227, %v7547
        %v7549 = vrot.slane %v4502, %v7548
        %v7550 = vsel %vm5232, %v7549, %v7545
        %v7551 = vlaneseq
        %v7552 = vshrl.u32 %v7551, 7
        %v7553 = vsub.s32 %v5234, %v7552
        %v7554 = vrot.slane %v4505, %v7553
        %v7555 = vsel %vm5239, %v7554, %v7550
        %v7556 = vlaneseq
        %v7557 = vshrl.u32 %v7556, 7
        %v7558 = vsub.s32 %v5241, %v7557
        %v7559 = vrot.slane %v4508, %v7558
        %v7560 = vsel %vm5246, %v7559, %v7555
        %v7561 = vlaneseq
        %v7562 = vshrl.u32 %v7561, 7
        %v7563 = vsub.s32 %v5248, %v7562
        %v7564 = vrot.slane %v4511, %v7563
        %v7565 = vsel %vm5253, %v7564, %v7560
        %v7566 = vlaneseq
        %v7567 = vshrl.u32 %v7566, 7
        %v7568 = vsub.s32 %v5255, %v7567
        %v7569 = vrot.slane %v4514, %v7568
        %v7570 = vsel %vm5260, %v7569, %v7565
        %v7571 = vlaneseq
        %v7572 = vshrl.u32 %v7571, 7
        %v7573 = vsub.s32 %v5262, %v7572
        %v7574 = vrot.slane %v4517, %v7573
        %v7575 = vsel %vm5267, %v7574, %v7570
        %v7576 = vlaneseq
        %v7577 = vshrl.u32 %v7576, 7
        %v7578 = vsub.s32 %v5269, %v7577
        %v7579 = vrot.slane %v4520, %v7578
        %v7580 = vsel %vm5274, %v7579, %v7575
        %v7581 = vlaneseq
        %v7582 = vshrl.u32 %v7581, 7
        %v7583 = vsub.s32 %v5276, %v7582
        %v7584 = vrot.slane %v4523, %v7583
        %v7585 = vsel %vm5281, %v7584, %v7580
        %v7586 = vlaneseq
        %v7587 = vshrl.u32 %v7586, 7
        %v7588 = vsub.s32 %v5283, %v7587
        %v7589 = vrot.slane %v4526, %v7588
        %v7590 = vsel %vm5288, %v7589, %v7585
        %v7591 = vlaneseq
        %v7592 = vshrl.u32 %v7591, 7
        %v7593 = vsub.s32 %v5290, %v7592
        %v7594 = vrot.slane %v4529, %v7593
        %v7595 = vsel %vm5295, %v7594, %v7590
        %v7596 = vlaneseq
        %v7597 = vshrl.u32 %v7596, 7
        %v7598 = vsub.s32 %v5297, %v7597
        %v7599 = vrot.slane %v4532, %v7598
        %v7600 = vsel %vm5302, %v7599, %v7595
        %v7601 = vlaneseq
        %v7602 = vshrl.u32 %v7601, 7
        %v7603 = vsub.s32 %v5304, %v7602
        %v7604 = vrot.slane %v4535, %v7603
        %v7605 = vsel %vm5309, %v7604, %v7600
        %v7606 = vlaneseq
        %v7607 = vshrl.u32 %v7606, 7
        %v7608 = vsub.s32 %v5311, %v7607
        %v7609 = vrot.slane %v4538, %v7608
        %v7610 = vsel %vm5316, %v7609, %v7605
        %v7611 = vlaneseq
        %v7612 = vshrl.u32 %v7611, 7
        %v7613 = vsub.s32 %v5318, %v7612
        %v7614 = vrot.slane %v4541, %v7613
        %v7615 = vsel %vm5323, %v7614, %v7610
        %v7616 = vlaneseq
        %v7617 = vshrl.u32 %v7616, 7
        %v7618 = vsub.s32 %v5215, %v7617
        %v7619 = vrot.slane %v4544, %v7618
        %v7620 = vlaneseq
        %v7621 = vshrl.u32 %v7620, 7
        %v7622 = vsub.s32 %v5220, %v7621
        %v7623 = vrot.slane %v4547, %v7622
        %v7624 = vsel %vm5225, %v7623, %v7619
        %v7625 = vlaneseq
        %v7626 = vshrl.u32 %v7625, 7
        %v7627 = vsub.s32 %v5227, %v7626
        %v7628 = vrot.slane %v4550, %v7627
        %v7629 = vsel %vm5232, %v7628, %v7624
        %v7630 = vlaneseq
        %v7631 = vshrl.u32 %v7630, 7
        %v7632 = vsub.s32 %v5234, %v7631
        %v7633 = vrot.slane %v4553, %v7632
        %v7634 = vsel %vm5239, %v7633, %v7629
        %v7635 = vlaneseq
        %v7636 = vshrl.u32 %v7635, 7
        %v7637 = vsub.s32 %v5241, %v7636
        %v7638 = vrot.slane %v4556, %v7637
        %v7639 = vsel %vm5246, %v7638, %v7634
        %v7640 = vlaneseq
        %v7641 = vshrl.u32 %v7640, 7
        %v7642 = vsub.s32 %v5248, %v7641
        %v7643 = vrot.slane %v4559, %v7642
        %v7644 = vsel %vm5253, %v7643, %v7639
        %v7645 = vlaneseq
        %v7646 = vshrl.u32 %v7645, 7
        %v7647 = vsub.s32 %v5255, %v7646
        %v7648 = vrot.slane %v4562, %v7647
        %v7649 = vsel %vm5260, %v7648, %v7644
        %v7650 = vlaneseq
        %v7651 = vshrl.u32 %v7650, 7
        %v7652 = vsub.s32 %v5262, %v7651
        %v7653 = vrot.slane %v4565, %v7652
        %v7654 = vsel %vm5267, %v7653, %v7649
        %v7655 = vlaneseq
        %v7656 = vshrl.u32 %v7655, 7
        %v7657 = vsub.s32 %v5269, %v7656
        %v7658 = vrot.slane %v4568, %v7657
        %v7659 = vsel %vm5274, %v7658, %v7654
        %v7660 = vlaneseq
        %v7661 = vshrl.u32 %v7660, 7
        %v7662 = vsub.s32 %v5276, %v7661
        %v7663 = vrot.slane %v4571, %v7662
        %v7664 = vsel %vm5281, %v7663, %v7659
        %v7665 = vlaneseq
        %v7666 = vshrl.u32 %v7665, 7
        %v7667 = vsub.s32 %v5283, %v7666
        %v7668 = vrot.slane %v4574, %v7667
        %v7669 = vsel %vm5288, %v7668, %v7664
        %v7670 = vlaneseq
        %v7671 = vshrl.u32 %v7670, 7
        %v7672 = vsub.s32 %v5290, %v7671
        %v7673 = vrot.slane %v4577, %v7672
        %v7674 = vsel %vm5295, %v7673, %v7669
        %v7675 = vlaneseq
        %v7676 = vshrl.u32 %v7675, 7
        %v7677 = vsub.s32 %v5297, %v7676
        %v7678 = vrot.slane %v4580, %v7677
        %v7679 = vsel %vm5302, %v7678, %v7674
        %v7680 = vlaneseq
        %v7681 = vshrl.u32 %v7680, 7
        %v7682 = vsub.s32 %v5304, %v7681
        %v7683 = vrot.slane %v4583, %v7682
        %v7684 = vsel %vm5309, %v7683, %v7679
        %v7685 = vlaneseq
        %v7686 = vshrl.u32 %v7685, 7
        %v7687 = vsub.s32 %v5311, %v7686
        %v7688 = vrot.slane %v4586, %v7687
        %v7689 = vsel %vm5316, %v7688, %v7684
        %v7690 = vlaneseq
        %v7691 = vshrl.u32 %v7690, 7
        %v7692 = vsub.s32 %v5318, %v7691
        %v7693 = vrot.slane %v4589, %v7692
        %v7694 = vsel %vm5323, %v7693, %v7689
        %v7695 = vlaneseq
        %v7696 = vshrl.u32 %v7695, 7
        %v7697 = vsub.s32 %v5215, %v7696
        %v7698 = vrot.slane %v4592, %v7697
        %v7699 = vlaneseq
        %v7700 = vshrl.u32 %v7699, 7
        %v7701 = vsub.s32 %v5220, %v7700
        %v7702 = vrot.slane %v4595, %v7701
        %v7703 = vsel %vm5225, %v7702, %v7698
        %v7704 = vlaneseq
        %v7705 = vshrl.u32 %v7704, 7
        %v7706 = vsub.s32 %v5227, %v7705
        %v7707 = vrot.slane %v4598, %v7706
        %v7708 = vsel %vm5232, %v7707, %v7703
        %v7709 = vlaneseq
        %v7710 = vshrl.u32 %v7709, 7
        %v7711 = vsub.s32 %v5234, %v7710
        %v7712 = vrot.slane %v4601, %v7711
        %v7713 = vsel %vm5239, %v7712, %v7708
        %v7714 = vlaneseq
        %v7715 = vshrl.u32 %v7714, 7
        %v7716 = vsub.s32 %v5241, %v7715
        %v7717 = vrot.slane %v4604, %v7716
        %v7718 = vsel %vm5246, %v7717, %v7713
        %v7719 = vlaneseq
        %v7720 = vshrl.u32 %v7719, 7
        %v7721 = vsub.s32 %v5248, %v7720
        %v7722 = vrot.slane %v4607, %v7721
        %v7723 = vsel %vm5253, %v7722, %v7718
        %v7724 = vlaneseq
        %v7725 = vshrl.u32 %v7724, 7
        %v7726 = vsub.s32 %v5255, %v7725
        %v7727 = vrot.slane %v4610, %v7726
        %v7728 = vsel %vm5260, %v7727, %v7723
        %v7729 = vlaneseq
        %v7730 = vshrl.u32 %v7729, 7
        %v7731 = vsub.s32 %v5262, %v7730
        %v7732 = vrot.slane %v4613, %v7731
        %v7733 = vsel %vm5267, %v7732, %v7728
        %v7734 = vlaneseq
        %v7735 = vshrl.u32 %v7734, 7
        %v7736 = vsub.s32 %v5269, %v7735
        %v7737 = vrot.slane %v4616, %v7736
        %v7738 = vsel %vm5274, %v7737, %v7733
        %v7739 = vlaneseq
        %v7740 = vshrl.u32 %v7739, 7
        %v7741 = vsub.s32 %v5276, %v7740
        %v7742 = vrot.slane %v4619, %v7741
        %v7743 = vsel %vm5281, %v7742, %v7738
        %v7744 = vlaneseq
        %v7745 = vshrl.u32 %v7744, 7
        %v7746 = vsub.s32 %v5283, %v7745
        %v7747 = vrot.slane %v4622, %v7746
        %v7748 = vsel %vm5288, %v7747, %v7743
        %v7749 = vlaneseq
        %v7750 = vshrl.u32 %v7749, 7
        %v7751 = vsub.s32 %v5290, %v7750
        %v7752 = vrot.slane %v4625, %v7751
        %v7753 = vsel %vm5295, %v7752, %v7748
        %v7754 = vlaneseq
        %v7755 = vshrl.u32 %v7754, 7
        %v7756 = vsub.s32 %v5297, %v7755
        %v7757 = vrot.slane %v4628, %v7756
        %v7758 = vsel %vm5302, %v7757, %v7753
        %v7759 = vlaneseq
        %v7760 = vshrl.u32 %v7759, 7
        %v7761 = vsub.s32 %v5304, %v7760
        %v7762 = vrot.slane %v4631, %v7761
        %v7763 = vsel %vm5309, %v7762, %v7758
        %v7764 = vlaneseq
        %v7765 = vshrl.u32 %v7764, 7
        %v7766 = vsub.s32 %v5311, %v7765
        %v7767 = vrot.slane %v4634, %v7766
        %v7768 = vsel %vm5316, %v7767, %v7763
        %v7769 = vlaneseq
        %v7770 = vshrl.u32 %v7769, 7
        %v7771 = vsub.s32 %v5318, %v7770
        %v7772 = vrot.slane %v4637, %v7771
        %v7773 = vsel %vm5323, %v7772, %v7768
        %v7774 = vlaneseq
        %v7775 = vshrl.u32 %v7774, 7
        %v7776 = vsub.s32 %v5215, %v7775
        %v7777 = vrot.slane %v4640, %v7776
        %v7778 = vlaneseq
        %v7779 = vshrl.u32 %v7778, 7
        %v7780 = vsub.s32 %v5220, %v7779
        %v7781 = vrot.slane %v4643, %v7780
        %v7782 = vsel %vm5225, %v7781, %v7777
        %v7783 = vlaneseq
        %v7784 = vshrl.u32 %v7783, 7
        %v7785 = vsub.s32 %v5227, %v7784
        %v7786 = vrot.slane %v4646, %v7785
        %v7787 = vsel %vm5232, %v7786, %v7782
        %v7788 = vlaneseq
        %v7789 = vshrl.u32 %v7788, 7
        %v7790 = vsub.s32 %v5234, %v7789
        %v7791 = vrot.slane %v4649, %v7790
        %v7792 = vsel %vm5239, %v7791, %v7787
        %v7793 = vlaneseq
        %v7794 = vshrl.u32 %v7793, 7
        %v7795 = vsub.s32 %v5241, %v7794
        %v7796 = vrot.slane %v4652, %v7795
        %v7797 = vsel %vm5246, %v7796, %v7792
        %v7798 = vlaneseq
        %v7799 = vshrl.u32 %v7798, 7
        %v7800 = vsub.s32 %v5248, %v7799
        %v7801 = vrot.slane %v4655, %v7800
        %v7802 = vsel %vm5253, %v7801, %v7797
        %v7803 = vlaneseq
        %v7804 = vshrl.u32 %v7803, 7
        %v7805 = vsub.s32 %v5255, %v7804
        %v7806 = vrot.slane %v4658, %v7805
        %v7807 = vsel %vm5260, %v7806, %v7802
        %v7808 = vlaneseq
        %v7809 = vshrl.u32 %v7808, 7
        %v7810 = vsub.s32 %v5262, %v7809
        %v7811 = vrot.slane %v4661, %v7810
        %v7812 = vsel %vm5267, %v7811, %v7807
        %v7813 = vlaneseq
        %v7814 = vshrl.u32 %v7813, 7
        %v7815 = vsub.s32 %v5269, %v7814
        %v7816 = vrot.slane %v4664, %v7815
        %v7817 = vsel %vm5274, %v7816, %v7812
        %v7818 = vlaneseq
        %v7819 = vshrl.u32 %v7818, 7
        %v7820 = vsub.s32 %v5276, %v7819
        %v7821 = vrot.slane %v4667, %v7820
        %v7822 = vsel %vm5281, %v7821, %v7817
        %v7823 = vlaneseq
        %v7824 = vshrl.u32 %v7823, 7
        %v7825 = vsub.s32 %v5283, %v7824
        %v7826 = vrot.slane %v4670, %v7825
        %v7827 = vsel %vm5288, %v7826, %v7822
        %v7828 = vlaneseq
        %v7829 = vshrl.u32 %v7828, 7
        %v7830 = vsub.s32 %v5290, %v7829
        %v7831 = vrot.slane %v4673, %v7830
        %v7832 = vsel %vm5295, %v7831, %v7827
        %v7833 = vlaneseq
        %v7834 = vshrl.u32 %v7833, 7
        %v7835 = vsub.s32 %v5297, %v7834
        %v7836 = vrot.slane %v4676, %v7835
        %v7837 = vsel %vm5302, %v7836, %v7832
        %v7838 = vlaneseq
        %v7839 = vshrl.u32 %v7838, 7
        %v7840 = vsub.s32 %v5304, %v7839
        %v7841 = vrot.slane %v4679, %v7840
        %v7842 = vsel %vm5309, %v7841, %v7837
        %v7843 = vlaneseq
        %v7844 = vshrl.u32 %v7843, 7
        %v7845 = vsub.s32 %v5311, %v7844
        %v7846 = vrot.slane %v4682, %v7845
        %v7847 = vsel %vm5316, %v7846, %v7842
        %v7848 = vlaneseq
        %v7849 = vshrl.u32 %v7848, 7
        %v7850 = vsub.s32 %v5318, %v7849
        %v7851 = vrot.slane %v4685, %v7850
        %v7852 = vsel %vm5323, %v7851, %v7847
        %vm7853 = vcmask 1041409
        %v7854 = vsel %vm7853, %v5561, %v5324
        %vm7855 = vcmask 1042434
        %v7856 = vsel %vm7855, %v5798, %v7854
        %vm7857 = vcmask 1043459
        %v7858 = vsel %vm7857, %v6035, %v7856
        %vm7859 = vcmask 1044484
        %v7860 = vsel %vm7859, %v6272, %v7858
        %vm7861 = vcmask 1045509
        %v7862 = vsel %vm7861, %v6509, %v7860
        %vm7863 = vcmask 1046534
        %v7864 = vsel %vm7863, %v6746, %v7862
        %vm7865 = vcmask 1047559
        %v7866 = vsel %vm7865, %v6983, %v7864
        %v7867 = vsel %vm7853, %v5640, %v5403
        %v7868 = vsel %vm7855, %v5877, %v7867
        %v7869 = vsel %vm7857, %v6114, %v7868
        %v7870 = vsel %vm7859, %v6351, %v7869
        %v7871 = vsel %vm7861, %v6588, %v7870
        %v7872 = vsel %vm7863, %v6825, %v7871
        %v7873 = vsel %vm7865, %v7062, %v7872
        %v7874 = vsel %vm7853, %v5719, %v5482
        %v7875 = vsel %vm7855, %v5956, %v7874
        %v7876 = vsel %vm7857, %v6193, %v7875
        %v7877 = vsel %vm7859, %v6430, %v7876
        %v7878 = vsel %vm7861, %v6667, %v7877
        %v7879 = vsel %vm7863, %v6904, %v7878
        %v7880 = vsel %vm7865, %v7141, %v7879
        %v7881 = vsel %vm7853, %v7457, %v7220
        %v7882 = vsel %vm7855, %v7694, %v7881
        %v7883 = vsel %vm7853, %v7536, %v7299
        %v7884 = vsel %vm7855, %v7773, %v7883
        %v7885 = vsel %vm7853, %v7615, %v7378
        %v7886 = vsel %vm7855, %v7852, %v7885
        %v7893 = vadd.f32 %v7866, %v7873
        %v7894 = vadd.f32 %v7893, %v7880
        %7895 = vadd.xlane.f32.xlu0 %v7894
        %v7896 = vpop.xlane.xlu0 %7895
        %vm7897 = vcmask 1042432
        %v7898 = vsel %vm7897, %v7882, 0.0
        %v7899 = vsel %vm7897, %v7884, 0.0
        %v7900 = vadd.f32 %v7898, %v7899
        %v7901 = vsel %vm7897, %v7886, 0.0
        %v7902 = vadd.f32 %v7900, %v7901
        %7903 = vadd.xlane.f32.xlu0 %v7902
        %v7904 = vpop.xlane.xlu0 %7903
        %v7905 = vld [vmem:[%s8] sm:$0x1]
        %v7907 = vlaneseq
        %v7908 = vshrl.u32 %v7907, 7
        %v7909 = vsub.s32 0, %v7908
        %v7910 = vrot.slane %v7905, %v7909
        %7912 = vbcast.lane.b32.xlu0 %v7910, 256
        %v7913 = vpop.permute.xlu0 %7912
        %s7915 = sor.u32 256, 8
        %7916 = vbcast.lane.b32.xlu0 %v7910, %s7915
        %v7917 = vpop.permute.xlu0 %7916
        %v7920 = vadd.f32 %v7896, %v7913
        %v7921 = vadd.f32 %v7904, %v7917
        %7924 = vset.pattern.permute.xlu0 0
        %7925 = vperm.xlu0 %7924, %v7920
        %v7926 = vpop.permute.xlu0 %7925
        %7927 = vset.pattern.permute.xlu0 0
        %7928 = vperm.xlu0 %7927, %v7921
        %v7929 = vpop.permute.xlu0 %7928
        %v7930 = vlaneseq
        %v7931 = vshrl.u32 %v7930, 7
        %v7932 = vsub.s32 %v5215, %v7931
        %v7933 = vrot.slane %v7926, %v7932
        %v7934 = vlaneseq
        %v7935 = vshrl.u32 %v7934, 7
        %v7936 = vsub.s32 %v5220, %v7935
        %v7937 = vrot.slane %v7929, %v7936
        %v7938 = vsel %vm5225, %v7937, %v7933
        %vm7940 = vcmask 81920
        %7941 = vst.msk [vmem:[%s324] sm:$0x1] %vm7940, %v7938
        %s7942 = sand.u32 %s225, 1
        %s7943 = scalar_lea.sflag [#allocation6], %s7942
        %s7944 = sand.u32 %s225, 1
        %s7945 = scalar_lea.vmem [#allocation5], %s7944
        // Predicated region
        $region71: #{leaf_classify_forward.1} parent=55 // pred_check
          %p7946 = pneg %p235
        $region72: #{leaf_classify_forward.1} parent=55 // pred_check_branch
          %7948 = sbr.rel (%p7946) target = $region74
        $region73: #{leaf_classify_forward.1} parent=55 // pred_region
          %s7950 = ssub.s32 16, 16
          %7951 = vsyncadd %s7943, %s7950
          %s7952 = smul.addr %s23, 16
          %s7953 = scalar_lea.hbm %s9, %s7952
          %s7955 = sshll.u32 %s7945, 4
          %s7956 = int_to_ptr.vmem [resolvable:$true] %s7955
          %7958 = dma.vmem_to_hbm [thread:$0]  %s7956, 16, %s7953, %s7943
        $region74: #{leaf_classify_forward.1} parent=55 // pred_fallthru
          _
      $region56: #{leaf_classify_forward.1} parent=5 // pred_fallthru
        _
      %p7959 = scmp.le.s32.totalorder 2, %s18
      // Predicated region
      $region75: #{leaf_classify_forward.1} parent=5 // pred_check
        %p7960 = pneg %p7959
      $region76: #{leaf_classify_forward.1} parent=5 // pred_check_branch
        %7962 = sbr.rel (%p7960) target = $region78
      $region77: #{leaf_classify_forward.1} parent=5 // pred_region
        %s7963 = ssub.s32 %s18, 2
        // Predicated region
        $region79: #{leaf_classify_forward.1} parent=77 // pred_check
          %p7964 = pneg %p241
        $region80: #{leaf_classify_forward.1} parent=77 // pred_check_branch
          %7966 = sbr.rel (%p7964) target = $region82
        $region81: #{leaf_classify_forward.1} parent=77 // pred_region
          %s7967 = sand.u32 %s226, 1
          %s7968 = scalar_lea.sflag [#allocation6], %s7967
          %s7969 = sand.u32 %s226, 1
          %s7970 = scalar_lea.vmem [#allocation5], %s7969
          %7971 = dma.done %s7968, 16
        $region82: #{leaf_classify_forward.1} parent=77 // pred_fallthru
          _
      $region78: #{leaf_classify_forward.1} parent=5 // pred_fallthru
        _
    $region6: #{leaf_classify_forward.1} parent=1 // loop_footer
      %s22 = sadd.s32 1, %s18
    $region7: #{leaf_classify_forward.1} parent=1 // loop_footer_branch
      %17 = sbr.rel target = $region3
    $region8: #{leaf_classify_forward.1} parent=1 // loop_exit
      _
    %7972 = vsyncpa [#allocation6], 1
    %s7973 = scalar_lea.sflag [#allocation6], 1
    %7974 = vsyncpa %s7973, 1

</llo_original>
